<compile_context>
chip_gen: v5e
topology: v5e:2x2
jax: 0.10.0
libtpu: 0.0.40
codegen_flags: <defaults>
</compile_context>

<pallas_src>
import numpy as np

import jax
import jax.numpy as jnp
from jax.experimental import pallas as pl
from jax.experimental.pallas import tpu as pltpu

BN_EPS = 1e-5          # nn.BatchNorm3d default
NUM_CLASSES = 2
C = 32                 # every conv layer of the module has 32 output channels

_LAYER_CFG = [
    # (in_c, out_c, (kd, kh, kw), stride)
    (1, 32, (3, 7, 7), 2),
    (32, 32, (2, 5, 5), 1),
    (32, 32, (2, 3, 3), 1),
    (32, 32, (2, 3, 3), 1),
]


# -----------------------------------------------------------------------------
# In-kernel helpers
# -----------------------------------------------------------------------------
def _relu_bn(y, prm, g_sum, g_bc):
    """conv-bias + ReLU + BatchNorm3d (training-mode batch stats).

    y     : (rows, l) activation, lanes = (w, channel) channel-minor.
    prm   : (3, l)  [bias, gamma, beta], pre-tiled over w groups.
    g_sum : (l, C)  0/1 channel regroup, pre-scaled by 1/count.
    g_bc  : (C, l)  0/1 channel broadcast back to lanes.
    """
    y = jnp.maximum(y + prm[0:1, :], 0.0)                     # conv bias, ReLU
    mu_c = jnp.dot(jnp.sum(y, axis=0, keepdims=True), g_sum,
                   preferred_element_type=jnp.float32)        # (1, C)
    mu = jnp.dot(mu_c, g_bc, preferred_element_type=jnp.float32)   # (1, l)
    d = y - mu
    var_c = jnp.dot(jnp.sum(d * d, axis=0, keepdims=True), g_sum,
                    preferred_element_type=jnp.float32)       # (1, C)
    rstd = jnp.dot(jax.lax.rsqrt(var_c + BN_EPS), g_bc,
                   preferred_element_type=jnp.float32)        # (1, l)
    return d * (rstd * prm[1:2, :]) + prm[2:3, :]


def glaucoma3d_kernel(p1_ref, w1b_ref, prm1_ref, gs1_ref, gb1_ref,
                      g2_ref, b2_ref, prm2_ref, gs2_ref, gb2_ref,
                      g3_ref, b3_ref, prm3_ref, gs3_ref, gb3_ref,
                      g4_ref, b4_ref, prm4_ref, gs4_ref, gb4_ref,
                      navg_ref, fcm_ref, fcb_ref,
                      o_ref):
    f32 = jnp.float32

    # ---- layer 1: wrapper-built row-patch matrix @ banded stride-2 weight ----
    y = jnp.dot(p1_ref[...], w1b_ref[...].astype(f32),
                preferred_element_type=f32)
    y = _relu_bn(y, prm1_ref[...], gs1_ref[...], gb1_ref[...])

    # ---- layers 2..4: per-(kd,kh)-tap row-selection matmul + banded matmul ---
    for g_ref, b_ref, prm_ref, gs_ref, gb_ref in (
            (g2_ref, b2_ref, prm2_ref, gs2_ref, gb2_ref),
            (g3_ref, b3_ref, prm3_ref, gs3_ref, gb3_ref),
            (g4_ref, b4_ref, prm4_ref, gs4_ref, gb4_ref)):
        taps, r_out, _ = g_ref.shape
        n_out = b_ref.shape[2]
        acc = jnp.zeros((r_out, n_out), f32)
        for t in range(taps):
            patch = jnp.dot(g_ref[t], y, preferred_element_type=f32)
            acc = acc + jnp.dot(patch, b_ref[t].astype(f32),
                                preferred_element_type=f32)
        y = _relu_bn(acc, prm_ref[...], gs_ref[...], gb_ref[...])

    # ---- AdaptiveAvgPool3d((1,1,1)) + flatten + Linear (prefused) ------------
    gap_rows = jnp.dot(navg_ref[...], y, preferred_element_type=f32)   # (n, w4*C)
    o_ref[...] = (jnp.dot(gap_rows, fcm_ref[...], preferred_element_type=f32)
                  + fcb_ref[...])


# -----------------------------------------------------------------------------
# One-time (per-params / per-geometry) preparation: banded weights, selection
# matrices, BN regroup matrices, prefused GAP+fc matrix.
# -----------------------------------------------------------------------------
def _conv_out(sz, k, s):
    return (sz - k) // s + 1


def _shift_matrix(kw, w_out, w_in, stride):
    """shift[t, u, v] = 1 iff v == stride*u + t."""
    shift = np.zeros((kw, w_out, w_in), np.float32)
    for t in range(kw):
        for u in range(w_out):
            shift[t, u, stride * u + t] = 1.0
    return shift


def _build_layer1_band(wconv, w_in, w_o):
    """Layer 1 (stride 2, C_in=1): band[(dd,hh,v), (wo,co)] = w[co,0,dd,hh,v-2*wo]."""
    _, _, (kd, kh, kw), s = _LAYER_CFG[0]
    shift = _shift_matrix(kw, w_o, w_in, s)                    # (kw, w_o, w_in)
    wr = jnp.transpose(wconv[:, 0], (1, 2, 3, 0))              # (kd, kh, kw, C)
    band = jnp.einsum('tuv,dhto->dhvuo', shift, wr).reshape(kd * kh * w_in, w_o * C)
    return band.astype(jnp.bfloat16)                           # weight-only bf16


def _build_band(wconv, w_in, w_o):
    """Stride-1 layer: per-(dd,hh) bands B[(v,ci),(wo,co)] = w[co,ci,dd,hh,v-wo]."""
    c_out, c_in, kd, kh, kw = wconv.shape
    shift = _shift_matrix(kw, w_o, w_in, 1)                    # (kw, w_o, w_in)
    wr = jnp.transpose(wconv, (2, 3, 4, 1, 0))                 # (kd, kh, kw, ci, co)
    band = jnp.einsum('tuv,dhtio->dhviuo', shift, wr)
    return band.reshape(kd * kh, w_in * c_in, w_o * c_out).astype(jnp.bfloat16)


def _build_row_select(n, d_i, h_i, d_o, h_o, kd, kh):
    """G[t=(dd,hh)] maps output row (nn,do,ho) -> input row (nn, do+dd, ho+hh)."""
    g = np.zeros((kd * kh, n * d_o * h_o, n * d_i * h_i), np.float32)
    t = 0
    for dd in range(kd):
        for hh in range(kh):
            for nn in range(n):
                for do in range(d_o):
                    for ho in range(h_o):
                        g[t, (nn * d_o + do) * h_o + ho,
                          (nn * d_i + do + dd) * h_i + ho + hh] = 1.0
            t += 1
    return g


def _build_regroup(w_sp, count):
    """(l, C) channel-sum (scaled by 1/count) and (C, l) channel-broadcast 0/1 maps."""
    l = w_sp * C
    gs = np.zeros((l, C), np.float32)
    gb = np.zeros((C, l), np.float32)
    for i in range(l):
        gs[i, i % C] = 1.0 / float(count)
        gb[i % C, i] = 1.0
    return gs, gb


def _tile_params(b, gamma, beta, w_o):
    return jnp.stack([jnp.tile(b, w_o), jnp.tile(gamma, w_o), jnp.tile(beta, w_o)])


def prepare_params(params, x_shape):
    """Everything that depends only on weights + static geometry.  Call once;
    the per-call forward only builds the (input-dependent) layer-1 patches."""
    n, _, d_in, h_in, w_in = x_shape
    prep = {}

    # --- layer 1 (stride 2, C_in = 1) ---
    _, _, (kd, kh, kw), s = _LAYER_CFG[0]
    d1, h1, w1 = _conv_out(d_in, kd, s), _conv_out(h_in, kh, s), _conv_out(w_in, kw, s)
    c1 = params["convs"][0]
    prep["w1b"] = _build_layer1_band(c1["w"], w_in, w1)
    prep["prm1"] = _tile_params(c1["b"], c1["gamma"], c1["beta"], w1)
    gs, gb = _build_regroup(w1, n * d1 * h1 * w1)
    prep["gs1"], prep["gb1"] = jnp.asarray(gs), jnp.asarray(gb)

    # --- layers 2..4 (stride 1) ---
    spatial = (d1, h1, w1)
    for i, (cfg, p) in enumerate(zip(_LAYER_CFG[1:], params["convs"][1:]), start=2):
        _, _, (kd, kh, kw), _ = cfg
        d_i, h_i, w_i = spatial
        d_o, h_o, w_o = d_i - kd + 1, h_i - kh + 1, w_i - kw + 1
        prep[f"g{i}"] = jnp.asarray(_build_row_select(n, d_i, h_i, d_o, h_o, kd, kh))
        prep[f"b{i}"] = _build_band(p["w"], w_i, w_o)
        prep[f"prm{i}"] = _tile_params(p["b"], p["gamma"], p["beta"], w_o)
        gs, gb = _build_regroup(w_o, n * d_o * h_o * w_o)
        prep[f"gs{i}"], prep[f"gb{i}"] = jnp.asarray(gs), jnp.asarray(gb)
        spatial = (d_o, h_o, w_o)

    # --- GAP + flatten + Linear, prefused ---
    d4, h4, w4 = spatial
    navg = np.zeros((n, n * d4 * h4), np.float32)
    for nn in range(n):
        navg[nn, nn * d4 * h4:(nn + 1) * d4 * h4] = 1.0 / float(d4 * h4)
    prep["navg"] = jnp.asarray(navg)
    prep["fcm"] = jnp.tile(params["fc_w"].T, (w4, 1)) * (1.0 / float(w4))  # (w4*C, cls)
    prep["fcb"] = params["fc_b"].reshape(1, NUM_CLASSES)
    return prep


# -----------------------------------------------------------------------------
# Per-call wrapper: build layer-1 row patches from x, launch the fused kernel.
# -----------------------------------------------------------------------------
def _build_layer1_patches(x):
    """rows = (n, do, ho); cols = (dd, hh, w_in) — matches the layer-1 band."""
    n = x.shape[0]
    _, _, (kd, kh, kw), s = _LAYER_CFG[0]
    d_in, h_in, w_in = x.shape[2], x.shape[3], x.shape[4]
    d_o, h_o = _conv_out(d_in, kd, s), _conv_out(h_in, kh, s)
    cols = []
    for dd in range(kd):
        for hh in range(kh):
            cols.append(x[:, 0,
                          dd:dd + s * (d_o - 1) + 1:s,
                          hh:hh + s * (h_o - 1) + 1:s, :])     # (n, d_o, h_o, w_in)
    return jnp.stack(cols, axis=3).reshape(n * d_o * h_o, kd * kh * w_in)


@jax.jit
def glaucoma3d_forward(prep, x):
    n = x.shape[0]
    p1 = _build_layer1_patches(x)
    vmem = pl.BlockSpec(memory_space=pltpu.MemorySpace.VMEM)
    args = (p1, prep["w1b"], prep["prm1"], prep["gs1"], prep["gb1"],
            prep["g2"], prep["b2"], prep["prm2"], prep["gs2"], prep["gb2"],
            prep["g3"], prep["b3"], prep["prm3"], prep["gs3"], prep["gb3"],
            prep["g4"], prep["b4"], prep["prm4"], prep["gs4"], prep["gb4"],
            prep["navg"], prep["fcm"], prep["fcb"])
    return pl.pallas_call(
        glaucoma3d_kernel,
        out_shape=jax.ShapeDtypeStruct((n, NUM_CLASSES), jnp.float32),
        in_specs=[vmem] * len(args),
        out_specs=vmem,
    )(*args)


# -----------------------------------------------------------------------------
# Deterministic synthetic parameters + plain-XLA reference for a self-check
# -----------------------------------------------------------------------------
def init_params(key):
    params = {"convs": []}
    for (ci, co, (kd, kh, kw), _s) in _LAYER_CFG:
        key, kw_, kb_, kg_, kbe_ = jax.random.split(key, 5)
        fan_in = ci * kd * kh * kw
        params["convs"].append(dict(
            w=jax.random.normal(kw_, (co, ci, kd, kh, kw), jnp.float32)
              * (1.0 / jnp.sqrt(fan_in)),
            b=jax.random.normal(kb_, (co,), jnp.float32) * 0.05,
            gamma=1.0 + 0.1 * jax.random.normal(kg_, (co,), jnp.float32),
            beta=0.05 * jax.random.normal(kbe_, (co,), jnp.float32),
        ))
    key, kfw, kfb = jax.random.split(key, 3)
    params["fc_w"] = jax.random.normal(kfw, (NUM_CLASSES, 32), jnp.float32) * (1.0 / jnp.sqrt(32.0))
    params["fc_b"] = jax.random.normal(kfb, (NUM_CLASSES,), jnp.float32) * 0.05
    return params


def _reference_forward(params, x):
    y = x
    for cfg, p in zip(_LAYER_CFG, params["convs"]):
        _, _, _, s = cfg
        y = jax.lax.conv_general_dilated(
            y, p["w"], window_strides=(s, s, s), padding="VALID",
            dimension_numbers=("NCDHW", "OIDHW", "NCDHW"),
            precision=jax.lax.Precision.HIGHEST)
        y = y + p["b"].reshape(1, -1, 1, 1, 1)
        y = jnp.maximum(y, 0.0)
        mu = jnp.mean(y, axis=(0, 2, 3, 4), keepdims=True)
        var = jnp.mean((y - mu) ** 2, axis=(0, 2, 3, 4), keepdims=True)
        y = (y - mu) * jax.lax.rsqrt(var + BN_EPS)
        y = y * p["gamma"].reshape(1, -1, 1, 1, 1) + p["beta"].reshape(1, -1, 1, 1, 1)
    gap = jnp.mean(y, axis=(2, 3, 4))
    return jnp.dot(gap, params["fc_w"].T,
                   precision=jax.lax.Precision.HIGHEST) + params["fc_b"]


if __name__ == "__main__":
    key = jax.random.PRNGKey(0)
    key, kx = jax.random.split(key)
    # Smallest spatial extent that survives all four conv layers:
    # (D, H, W) = (9, 23, 23) -> (4,9,9) -> (3,5,5) -> (2,3,3) -> (1,1,1)
    x = jax.random.normal(kx, (2, 1, 9, 23, 23), jnp.float32)
    params = init_params(key)

    prep = prepare_params(params, x.shape)        # one-time band/selection build
    out = jax.block_until_ready(glaucoma3d_forward(prep, x))
    assert out.shape == (2, NUM_CLASSES) and out.dtype == jnp.float32

    # Self-check: the kernel applies weight-only bf16 quantization to the conv
    # weights (perf-review item); compare against a plain-XLA reference run with
    # identically bf16-rounded conv weights so this validates the kernel's
    # banded-conv / BN / GAP / fc structure rather than quantization noise.
    params_q = {
        "convs": [dict(p, w=p["w"].astype(jnp.bfloat16).astype(jnp.float32))
                  for p in params["convs"]],
        "fc_w": params["fc_w"], "fc_b": params["fc_b"],
    }
    ref = jax.block_until_ready(_reference_forward(params_q, x))
    err = float(jnp.max(jnp.abs(out - ref)))
    assert err < 5e-2, f"mismatch vs reference: max|diff|={err}"
    print("KERNEL_OK")
</pallas_src>

<mosaic_0001>
module attributes {stable_mosaic.version = 11 : i64} {
  func.func @glaucoma3d_kernel(%arg0: memref<72x483xf32, #tpu.memory_space<vmem>>, %arg1: memref<483x288xbf16, #tpu.memory_space<vmem>>, %arg2: memref<3x288xf32, #tpu.memory_space<vmem>>, %arg3: memref<288x32xf32, #tpu.memory_space<vmem>>, %arg4: memref<32x288xf32, #tpu.memory_space<vmem>>, %arg5: memref<10x30x72xf32, #tpu.memory_space<vmem>>, %arg6: memref<10x288x160xbf16, #tpu.memory_space<vmem>>, %arg7: memref<3x160xf32, #tpu.memory_space<vmem>>, %arg8: memref<160x32xf32, #tpu.memory_space<vmem>>, %arg9: memref<32x160xf32, #tpu.memory_space<vmem>>, %arg10: memref<6x12x30xf32, #tpu.memory_space<vmem>>, %arg11: memref<6x160x96xbf16, #tpu.memory_space<vmem>>, %arg12: memref<3x96xf32, #tpu.memory_space<vmem>>, %arg13: memref<96x32xf32, #tpu.memory_space<vmem>>, %arg14: memref<32x96xf32, #tpu.memory_space<vmem>>, %arg15: memref<6x2x12xf32, #tpu.memory_space<vmem>>, %arg16: memref<6x96x32xbf16, #tpu.memory_space<vmem>>, %arg17: memref<3x32xf32, #tpu.memory_space<vmem>>, %arg18: memref<32x32xf32, #tpu.memory_space<vmem>>, %arg19: memref<32x32xf32, #tpu.memory_space<vmem>>, %arg20: memref<2x2xf32, #tpu.memory_space<vmem>>, %arg21: memref<32x2xf32, #tpu.memory_space<vmem>>, %arg22: memref<1x2xf32, #tpu.memory_space<vmem>>, %arg23: memref<2x2xf32, #tpu.memory_space<vmem>>) attributes {dimension_semantics = [], scalar_prefetch = 0 : i64, scratch_operands = 0 : i64, tpu.core_type = #tpu.core_type<tc>} {
    %c0 = arith.constant 0 : index
    %c0_0 = arith.constant 0 : index
    %0 = vector.load %arg0[%c0, %c0_0] : memref<72x483xf32, #tpu.memory_space<vmem>>, vector<72x483xf32>
    %c0_1 = arith.constant 0 : index
    %c0_2 = arith.constant 0 : index
    %1 = vector.load %arg1[%c0_1, %c0_2] : memref<483x288xbf16, #tpu.memory_space<vmem>>, vector<483x288xbf16>
    %2 = arith.extf %1 : vector<483x288xbf16> to vector<483x288xf32>
    %cst = arith.constant dense<0.000000e+00> : vector<72x288xf32>
    %3 = tpu.matmul %0, %2, %cst {dimension_numbers = #tpu.dot_dimension_numbers<[1], [0], [0], [1], [0, 0, 1, 1], [], []>} : vector<72x483xf32>, vector<483x288xf32>, vector<72x288xf32> -> vector<72x288xf32>
    %c0_3 = arith.constant 0 : index
    %c0_4 = arith.constant 0 : index
    %4 = vector.load %arg2[%c0_3, %c0_4] : memref<3x288xf32, #tpu.memory_space<vmem>>, vector<3x288xf32>
    %c0_5 = arith.constant 0 : index
    %c0_6 = arith.constant 0 : index
    %5 = vector.load %arg3[%c0_5, %c0_6] : memref<288x32xf32, #tpu.memory_space<vmem>>, vector<288x32xf32>
    %c0_7 = arith.constant 0 : index
    %c0_8 = arith.constant 0 : index
    %6 = vector.load %arg4[%c0_7, %c0_8] : memref<32x288xf32, #tpu.memory_space<vmem>>, vector<32x288xf32>
    %7 = vector.extract_strided_slice %4 {offsets = [0, 0], sizes = [1, 288], strides = [1, 1]} : vector<3x288xf32> to vector<1x288xf32>
    %8 = vector.broadcast %7 : vector<1x288xf32> to vector<72x288xf32>
    %9 = arith.addf %3, %8 : vector<72x288xf32>
    %cst_9 = arith.constant 0.000000e+00 : f32
    %10 = vector.broadcast %cst_9 : f32 to vector<72x288xf32>
    %11 = arith.maximumf %9, %10 : vector<72x288xf32>
    %cst_10 = arith.constant dense<0.000000e+00> : vector<288xf32>
    %12 = vector.multi_reduction <add>, %11, %cst_10 [0] : vector<72x288xf32> to vector<288xf32>
    %13 = vector.shape_cast %12 : vector<288xf32> to vector<1x288xf32>
    %cst_11 = arith.constant dense<0.000000e+00> : vector<1x32xf32>
    %14 = tpu.matmul %13, %5, %cst_11 {dimension_numbers = #tpu.dot_dimension_numbers<[1], [0], [0], [1], [0, 0, 1, 1], [], []>} : vector<1x288xf32>, vector<288x32xf32>, vector<1x32xf32> -> vector<1x32xf32>
    %cst_12 = arith.constant dense<0.000000e+00> : vector<1x288xf32>
    %15 = tpu.matmul %14, %6, %cst_12 {dimension_numbers = #tpu.dot_dimension_numbers<[1], [0], [0], [1], [0, 0, 1, 1], [], []>} : vector<1x32xf32>, vector<32x288xf32>, vector<1x288xf32> -> vector<1x288xf32>
    %16 = vector.broadcast %15 : vector<1x288xf32> to vector<72x288xf32>
    %17 = arith.subf %11, %16 : vector<72x288xf32>
    %18 = arith.mulf %17, %17 : vector<72x288xf32>
    %cst_13 = arith.constant dense<0.000000e+00> : vector<288xf32>
    %19 = vector.multi_reduction <add>, %18, %cst_13 [0] : vector<72x288xf32> to vector<288xf32>
    %20 = vector.shape_cast %19 : vector<288xf32> to vector<1x288xf32>
    %cst_14 = arith.constant dense<0.000000e+00> : vector<1x32xf32>
    %21 = tpu.matmul %20, %5, %cst_14 {dimension_numbers = #tpu.dot_dimension_numbers<[1], [0], [0], [1], [0, 0, 1, 1], [], []>} : vector<1x288xf32>, vector<288x32xf32>, vector<1x32xf32> -> vector<1x32xf32>
    %cst_15 = arith.constant 9.99999974E-6 : f32
    %22 = vector.broadcast %cst_15 : f32 to vector<1x32xf32>
    %23 = arith.addf %21, %22 : vector<1x32xf32>
    %24 = math.rsqrt %23 : vector<1x32xf32>
    %cst_16 = arith.constant dense<0.000000e+00> : vector<1x288xf32>
    %25 = tpu.matmul %24, %6, %cst_16 {dimension_numbers = #tpu.dot_dimension_numbers<[1], [0], [0], [1], [0, 0, 1, 1], [], []>} : vector<1x32xf32>, vector<32x288xf32>, vector<1x288xf32> -> vector<1x288xf32>
    %26 = vector.extract_strided_slice %4 {offsets = [1, 0], sizes = [1, 288], strides = [1, 1]} : vector<3x288xf32> to vector<1x288xf32>
    %27 = arith.mulf %25, %26 : vector<1x288xf32>
    %28 = vector.broadcast %27 : vector<1x288xf32> to vector<72x288xf32>
    %29 = arith.mulf %17, %28 : vector<72x288xf32>
    %30 = vector.extract_strided_slice %4 {offsets = [2, 0], sizes = [1, 288], strides = [1, 1]} : vector<3x288xf32> to vector<1x288xf32>
    %31 = vector.broadcast %30 : vector<1x288xf32> to vector<72x288xf32>
    %32 = arith.addf %29, %31 : vector<72x288xf32>
    %cst_17 = arith.constant 0.000000e+00 : f32
    %33 = vector.broadcast %cst_17 : f32 to vector<30x160xf32>
    %c0_18 = arith.constant 0 : index
    %c0_19 = arith.constant 0 : index
    %c0_20 = arith.constant 0 : index
    %34 = vector.load %arg5[%c0_18, %c0_19, %c0_20] : memref<10x30x72xf32, #tpu.memory_space<vmem>>, vector<1x30x72xf32>
    %35 = vector.shape_cast %34 : vector<1x30x72xf32> to vector<30x72xf32>
    %cst_21 = arith.constant dense<0.000000e+00> : vector<30x288xf32>
    %36 = tpu.matmul %35, %32, %cst_21 {dimension_numbers = #tpu.dot_dimension_numbers<[1], [0], [0], [1], [0, 0, 1, 1], [], []>} : vector<30x72xf32>, vector<72x288xf32>, vector<30x288xf32> -> vector<30x288xf32>
    %c0_22 = arith.constant 0 : index
    %c0_23 = arith.constant 0 : index
    %c0_24 = arith.constant 0 : index
    %37 = vector.load %arg6[%c0_22, %c0_23, %c0_24] : memref<10x288x160xbf16, #tpu.memory_space<vmem>>, vector<1x288x160xbf16>
    %38 = vector.shape_cast %37 : vector<1x288x160xbf16> to vector<288x160xbf16>
    %39 = arith.extf %38 : vector<288x160xbf16> to vector<288x160xf32>
    %cst_25 = arith.constant dense<0.000000e+00> : vector<30x160xf32>
    %40 = tpu.matmul %36, %39, %cst_25 {dimension_numbers = #tpu.dot_dimension_numbers<[1], [0], [0], [1], [0, 0, 1, 1], [], []>} : vector<30x288xf32>, vector<288x160xf32>, vector<30x160xf32> -> vector<30x160xf32>
    %41 = arith.addf %33, %40 : vector<30x160xf32>
    %c1 = arith.constant 1 : index
    %c0_26 = arith.constant 0 : index
    %c0_27 = arith.constant 0 : index
    %42 = vector.load %arg5[%c1, %c0_26, %c0_27] : memref<10x30x72xf32, #tpu.memory_space<vmem>>, vector<1x30x72xf32>
    %43 = vector.shape_cast %42 : vector<1x30x72xf32> to vector<30x72xf32>
    %cst_28 = arith.constant dense<0.000000e+00> : vector<30x288xf32>
    %44 = tpu.matmul %43, %32, %cst_28 {dimension_numbers = #tpu.dot_dimension_numbers<[1], [0], [0], [1], [0, 0, 1, 1], [], []>} : vector<30x72xf32>, vector<72x288xf32>, vector<30x288xf32> -> vector<30x288xf32>
    %c1_29 = arith.constant 1 : index
    %c0_30 = arith.constant 0 : index
    %c0_31 = arith.constant 0 : index
    %45 = vector.load %arg6[%c1_29, %c0_30, %c0_31] : memref<10x288x160xbf16, #tpu.memory_space<vmem>>, vector<1x288x160xbf16>
    %46 = vector.shape_cast %45 : vector<1x288x160xbf16> to vector<288x160xbf16>
    %47 = arith.extf %46 : vector<288x160xbf16> to vector<288x160xf32>
    %cst_32 = arith.constant dense<0.000000e+00> : vector<30x160xf32>
    %48 = tpu.matmul %44, %47, %cst_32 {dimension_numbers = #tpu.dot_dimension_numbers<[1], [0], [0], [1], [0, 0, 1, 1], [], []>} : vector<30x288xf32>, vector<288x160xf32>, vector<30x160xf32> -> vector<30x160xf32>
    %49 = arith.addf %41, %48 : vector<30x160xf32>
    %c2 = arith.constant 2 : index
    %c0_33 = arith.constant 0 : index
    %c0_34 = arith.constant 0 : index
    %50 = vector.load %arg5[%c2, %c0_33, %c0_34] : memref<10x30x72xf32, #tpu.memory_space<vmem>>, vector<1x30x72xf32>
    %51 = vector.shape_cast %50 : vector<1x30x72xf32> to vector<30x72xf32>
    %cst_35 = arith.constant dense<0.000000e+00> : vector<30x288xf32>
    %52 = tpu.matmul %51, %32, %cst_35 {dimension_numbers = #tpu.dot_dimension_numbers<[1], [0], [0], [1], [0, 0, 1, 1], [], []>} : vector<30x72xf32>, vector<72x288xf32>, vector<30x288xf32> -> vector<30x288xf32>
    %c2_36 = arith.constant 2 : index
    %c0_37 = arith.constant 0 : index
    %c0_38 = arith.constant 0 : index
    %53 = vector.load %arg6[%c2_36, %c0_37, %c0_38] : memref<10x288x160xbf16, #tpu.memory_space<vmem>>, vector<1x288x160xbf16>
    %54 = vector.shape_cast %53 : vector<1x288x160xbf16> to vector<288x160xbf16>
    %55 = arith.extf %54 : vector<288x160xbf16> to vector<288x160xf32>
    %cst_39 = arith.constant dense<0.000000e+00> : vector<30x160xf32>
    %56 = tpu.matmul %52, %55, %cst_39 {dimension_numbers = #tpu.dot_dimension_numbers<[1], [0], [0], [1], [0, 0, 1, 1], [], []>} : vector<30x288xf32>, vector<288x160xf32>, vector<30x160xf32> -> vector<30x160xf32>
    %57 = arith.addf %49, %56 : vector<30x160xf32>
    %c3 = arith.constant 3 : index
    %c0_40 = arith.constant 0 : index
    %c0_41 = arith.constant 0 : index
    %58 = vector.load %arg5[%c3, %c0_40, %c0_41] : memref<10x30x72xf32, #tpu.memory_space<vmem>>, vector<1x30x72xf32>
    %59 = vector.shape_cast %58 : vector<1x30x72xf32> to vector<30x72xf32>
    %cst_42 = arith.constant dense<0.000000e+00> : vector<30x288xf32>
    %60 = tpu.matmul %59, %32, %cst_42 {dimension_numbers = #tpu.dot_dimension_numbers<[1], [0], [0], [1], [0, 0, 1, 1], [], []>} : vector<30x72xf32>, vector<72x288xf32>, vector<30x288xf32> -> vector<30x288xf32>
    %c3_43 = arith.constant 3 : index
    %c0_44 = arith.constant 0 : index
    %c0_45 = arith.constant 0 : index
    %61 = vector.load %arg6[%c3_43, %c0_44, %c0_45] : memref<10x288x160xbf16, #tpu.memory_space<vmem>>, vector<1x288x160xbf16>
    %62 = vector.shape_cast %61 : vector<1x288x160xbf16> to vector<288x160xbf16>
    %63 = arith.extf %62 : vector<288x160xbf16> to vector<288x160xf32>
    %cst_46 = arith.constant dense<0.000000e+00> : vector<30x160xf32>
    %64 = tpu.matmul %60, %63, %cst_46 {dimension_numbers = #tpu.dot_dimension_numbers<[1], [0], [0], [1], [0, 0, 1, 1], [], []>} : vector<30x288xf32>, vector<288x160xf32>, vector<30x160xf32> -> vector<30x160xf32>
    %65 = arith.addf %57, %64 : vector<30x160xf32>
    %c4 = arith.constant 4 : index
    %c0_47 = arith.constant 0 : index
    %c0_48 = arith.constant 0 : index
    %66 = vector.load %arg5[%c4, %c0_47, %c0_48] : memref<10x30x72xf32, #tpu.memory_space<vmem>>, vector<1x30x72xf32>
    %67 = vector.shape_cast %66 : vector<1x30x72xf32> to vector<30x72xf32>
    %cst_49 = arith.constant dense<0.000000e+00> : vector<30x288xf32>
    %68 = tpu.matmul %67, %32, %cst_49 {dimension_numbers = #tpu.dot_dimension_numbers<[1], [0], [0], [1], [0, 0, 1, 1], [], []>} : vector<30x72xf32>, vector<72x288xf32>, vector<30x288xf32> -> vector<30x288xf32>
    %c4_50 = arith.constant 4 : index
    %c0_51 = arith.constant 0 : index
    %c0_52 = arith.constant 0 : index
    %69 = vector.load %arg6[%c4_50, %c0_51, %c0_52] : memref<10x288x160xbf16, #tpu.memory_space<vmem>>, vector<1x288x160xbf16>
    %70 = vector.shape_cast %69 : vector<1x288x160xbf16> to vector<288x160xbf16>
    %71 = arith.extf %70 : vector<288x160xbf16> to vector<288x160xf32>
    %cst_53 = arith.constant dense<0.000000e+00> : vector<30x160xf32>
    %72 = tpu.matmul %68, %71, %cst_53 {dimension_numbers = #tpu.dot_dimension_numbers<[1], [0], [0], [1], [0, 0, 1, 1], [], []>} : vector<30x288xf32>, vector<288x160xf32>, vector<30x160xf32> -> vector<30x160xf32>
    %73 = arith.addf %65, %72 : vector<30x160xf32>
    %c5 = arith.constant 5 : index
    %c0_54 = arith.constant 0 : index
    %c0_55 = arith.constant 0 : index
    %74 = vector.load %arg5[%c5, %c0_54, %c0_55] : memref<10x30x72xf32, #tpu.memory_space<vmem>>, vector<1x30x72xf32>
    %75 = vector.shape_cast %74 : vector<1x30x72xf32> to vector<30x72xf32>
    %cst_56 = arith.constant dense<0.000000e+00> : vector<30x288xf32>
    %76 = tpu.matmul %75, %32, %cst_56 {dimension_numbers = #tpu.dot_dimension_numbers<[1], [0], [0], [1], [0, 0, 1, 1], [], []>} : vector<30x72xf32>, vector<72x288xf32>, vector<30x288xf32> -> vector<30x288xf32>
    %c5_57 = arith.constant 5 : index
    %c0_58 = arith.constant 0 : index
    %c0_59 = arith.constant 0 : index
    %77 = vector.load %arg6[%c5_57, %c0_58, %c0_59] : memref<10x288x160xbf16, #tpu.memory_space<vmem>>, vector<1x288x160xbf16>
    %78 = vector.shape_cast %77 : vector<1x288x160xbf16> to vector<288x160xbf16>
    %79 = arith.extf %78 : vector<288x160xbf16> to vector<288x160xf32>
    %cst_60 = arith.constant dense<0.000000e+00> : vector<30x160xf32>
    %80 = tpu.matmul %76, %79, %cst_60 {dimension_numbers = #tpu.dot_dimension_numbers<[1], [0], [0], [1], [0, 0, 1, 1], [], []>} : vector<30x288xf32>, vector<288x160xf32>, vector<30x160xf32> -> vector<30x160xf32>
    %81 = arith.addf %73, %80 : vector<30x160xf32>
    %c6 = arith.constant 6 : index
    %c0_61 = arith.constant 0 : index
    %c0_62 = arith.constant 0 : index
    %82 = vector.load %arg5[%c6, %c0_61, %c0_62] : memref<10x30x72xf32, #tpu.memory_space<vmem>>, vector<1x30x72xf32>
    %83 = vector.shape_cast %82 : vector<1x30x72xf32> to vector<30x72xf32>
    %cst_63 = arith.constant dense<0.000000e+00> : vector<30x288xf32>
    %84 = tpu.matmul %83, %32, %cst_63 {dimension_numbers = #tpu.dot_dimension_numbers<[1], [0], [0], [1], [0, 0, 1, 1], [], []>} : vector<30x72xf32>, vector<72x288xf32>, vector<30x288xf32> -> vector<30x288xf32>
    %c6_64 = arith.constant 6 : index
    %c0_65 = arith.constant 0 : index
    %c0_66 = arith.constant 0 : index
    %85 = vector.load %arg6[%c6_64, %c0_65, %c0_66] : memref<10x288x160xbf16, #tpu.memory_space<vmem>>, vector<1x288x160xbf16>
    %86 = vector.shape_cast %85 : vector<1x288x160xbf16> to vector<288x160xbf16>
    %87 = arith.extf %86 : vector<288x160xbf16> to vector<288x160xf32>
    %cst_67 = arith.constant dense<0.000000e+00> : vector<30x160xf32>
    %88 = tpu.matmul %84, %87, %cst_67 {dimension_numbers = #tpu.dot_dimension_numbers<[1], [0], [0], [1], [0, 0, 1, 1], [], []>} : vector<30x288xf32>, vector<288x160xf32>, vector<30x160xf32> -> vector<30x160xf32>
    %89 = arith.addf %81, %88 : vector<30x160xf32>
    %c7 = arith.constant 7 : index
    %c0_68 = arith.constant 0 : index
    %c0_69 = arith.constant 0 : index
    %90 = vector.load %arg5[%c7, %c0_68, %c0_69] : memref<10x30x72xf32, #tpu.memory_space<vmem>>, vector<1x30x72xf32>
    %91 = vector.shape_cast %90 : vector<1x30x72xf32> to vector<30x72xf32>
    %cst_70 = arith.constant dense<0.000000e+00> : vector<30x288xf32>
    %92 = tpu.matmul %91, %32, %cst_70 {dimension_numbers = #tpu.dot_dimension_numbers<[1], [0], [0], [1], [0, 0, 1, 1], [], []>} : vector<30x72xf32>, vector<72x288xf32>, vector<30x288xf32> -> vector<30x288xf32>
    %c7_71 = arith.constant 7 : index
    %c0_72 = arith.constant 0 : index
    %c0_73 = arith.constant 0 : index
    %93 = vector.load %arg6[%c7_71, %c0_72, %c0_73] : memref<10x288x160xbf16, #tpu.memory_space<vmem>>, vector<1x288x160xbf16>
    %94 = vector.shape_cast %93 : vector<1x288x160xbf16> to vector<288x160xbf16>
    %95 = arith.extf %94 : vector<288x160xbf16> to vector<288x160xf32>
    %cst_74 = arith.constant dense<0.000000e+00> : vector<30x160xf32>
    %96 = tpu.matmul %92, %95, %cst_74 {dimension_numbers = #tpu.dot_dimension_numbers<[1], [0], [0], [1], [0, 0, 1, 1], [], []>} : vector<30x288xf32>, vector<288x160xf32>, vector<30x160xf32> -> vector<30x160xf32>
    %97 = arith.addf %89, %96 : vector<30x160xf32>
    %c8 = arith.constant 8 : index
    %c0_75 = arith.constant 0 : index
    %c0_76 = arith.constant 0 : index
    %98 = vector.load %arg5[%c8, %c0_75, %c0_76] : memref<10x30x72xf32, #tpu.memory_space<vmem>>, vector<1x30x72xf32>
    %99 = vector.shape_cast %98 : vector<1x30x72xf32> to vector<30x72xf32>
    %cst_77 = arith.constant dense<0.000000e+00> : vector<30x288xf32>
    %100 = tpu.matmul %99, %32, %cst_77 {dimension_numbers = #tpu.dot_dimension_numbers<[1], [0], [0], [1], [0, 0, 1, 1], [], []>} : vector<30x72xf32>, vector<72x288xf32>, vector<30x288xf32> -> vector<30x288xf32>
    %c8_78 = arith.constant 8 : index
    %c0_79 = arith.constant 0 : index
    %c0_80 = arith.constant 0 : index
    %101 = vector.load %arg6[%c8_78, %c0_79, %c0_80] : memref<10x288x160xbf16, #tpu.memory_space<vmem>>, vector<1x288x160xbf16>
    %102 = vector.shape_cast %101 : vector<1x288x160xbf16> to vector<288x160xbf16>
    %103 = arith.extf %102 : vector<288x160xbf16> to vector<288x160xf32>
    %cst_81 = arith.constant dense<0.000000e+00> : vector<30x160xf32>
    %104 = tpu.matmul %100, %103, %cst_81 {dimension_numbers = #tpu.dot_dimension_numbers<[1], [0], [0], [1], [0, 0, 1, 1], [], []>} : vector<30x288xf32>, vector<288x160xf32>, vector<30x160xf32> -> vector<30x160xf32>
    %105 = arith.addf %97, %104 : vector<30x160xf32>
    %c9 = arith.constant 9 : index
    %c0_82 = arith.constant 0 : index
    %c0_83 = arith.constant 0 : index
    %106 = vector.load %arg5[%c9, %c0_82, %c0_83] : memref<10x30x72xf32, #tpu.memory_space<vmem>>, vector<1x30x72xf32>
    %107 = vector.shape_cast %106 : vector<1x30x72xf32> to vector<30x72xf32>
    %cst_84 = arith.constant dense<0.000000e+00> : vector<30x288xf32>
    %108 = tpu.matmul %107, %32, %cst_84 {dimension_numbers = #tpu.dot_dimension_numbers<[1], [0], [0], [1], [0, 0, 1, 1], [], []>} : vector<30x72xf32>, vector<72x288xf32>, vector<30x288xf32> -> vector<30x288xf32>
    %c9_85 = arith.constant 9 : index
    %c0_86 = arith.constant 0 : index
    %c0_87 = arith.constant 0 : index
    %109 = vector.load %arg6[%c9_85, %c0_86, %c0_87] : memref<10x288x160xbf16, #tpu.memory_space<vmem>>, vector<1x288x160xbf16>
    %110 = vector.shape_cast %109 : vector<1x288x160xbf16> to vector<288x160xbf16>
    %111 = arith.extf %110 : vector<288x160xbf16> to vector<288x160xf32>
    %cst_88 = arith.constant dense<0.000000e+00> : vector<30x160xf32>
    %112 = tpu.matmul %108, %111, %cst_88 {dimension_numbers = #tpu.dot_dimension_numbers<[1], [0], [0], [1], [0, 0, 1, 1], [], []>} : vector<30x288xf32>, vector<288x160xf32>, vector<30x160xf32> -> vector<30x160xf32>
    %113 = arith.addf %105, %112 : vector<30x160xf32>
    %c0_89 = arith.constant 0 : index
    %c0_90 = arith.constant 0 : index
    %114 = vector.load %arg7[%c0_89, %c0_90] : memref<3x160xf32, #tpu.memory_space<vmem>>, vector<3x160xf32>
    %c0_91 = arith.constant 0 : index
    %c0_92 = arith.constant 0 : index
    %115 = vector.load %arg8[%c0_91, %c0_92] : memref<160x32xf32, #tpu.memory_space<vmem>>, vector<160x32xf32>
    %c0_93 = arith.constant 0 : index
    %c0_94 = arith.constant 0 : index
    %116 = vector.load %arg9[%c0_93, %c0_94] : memref<32x160xf32, #tpu.memory_space<vmem>>, vector<32x160xf32>
    %117 = vector.extract_strided_slice %114 {offsets = [0, 0], sizes = [1, 160], strides = [1, 1]} : vector<3x160xf32> to vector<1x160xf32>
    %118 = vector.broadcast %117 : vector<1x160xf32> to vector<30x160xf32>
    %119 = arith.addf %113, %118 : vector<30x160xf32>
    %cst_95 = arith.constant 0.000000e+00 : f32
    %120 = vector.broadcast %cst_95 : f32 to vector<30x160xf32>
    %121 = arith.maximumf %119, %120 : vector<30x160xf32>
    %cst_96 = arith.constant dense<0.000000e+00> : vector<160xf32>
    %122 = vector.multi_reduction <add>, %121, %cst_96 [0] : vector<30x160xf32> to vector<160xf32>
    %123 = vector.shape_cast %122 : vector<160xf32> to vector<1x160xf32>
    %cst_97 = arith.constant dense<0.000000e+00> : vector<1x32xf32>
    %124 = tpu.matmul %123, %115, %cst_97 {dimension_numbers = #tpu.dot_dimension_numbers<[1], [0], [0], [1], [0, 0, 1, 1], [], []>} : vector<1x160xf32>, vector<160x32xf32>, vector<1x32xf32> -> vector<1x32xf32>
    %cst_98 = arith.constant dense<0.000000e+00> : vector<1x160xf32>
    %125 = tpu.matmul %124, %116, %cst_98 {dimension_numbers = #tpu.dot_dimension_numbers<[1], [0], [0], [1], [0, 0, 1, 1], [], []>} : vector<1x32xf32>, vector<32x160xf32>, vector<1x160xf32> -> vector<1x160xf32>
    %126 = vector.broadcast %125 : vector<1x160xf32> to vector<30x160xf32>
    %127 = arith.subf %121, %126 : vector<30x160xf32>
    %128 = arith.mulf %127, %127 : vector<30x160xf32>
    %cst_99 = arith.constant dense<0.000000e+00> : vector<160xf32>
    %129 = vector.multi_reduction <add>, %128, %cst_99 [0] : vector<30x160xf32> to vector<160xf32>
    %130 = vector.shape_cast %129 : vector<160xf32> to vector<1x160xf32>
    %cst_100 = arith.constant dense<0.000000e+00> : vector<1x32xf32>
    %131 = tpu.matmul %130, %115, %cst_100 {dimension_numbers = #tpu.dot_dimension_numbers<[1], [0], [0], [1], [0, 0, 1, 1], [], []>} : vector<1x160xf32>, vector<160x32xf32>, vector<1x32xf32> -> vector<1x32xf32>
    %cst_101 = arith.constant 9.99999974E-6 : f32
    %132 = vector.broadcast %cst_101 : f32 to vector<1x32xf32>
    %133 = arith.addf %131, %132 : vector<1x32xf32>
    %134 = math.rsqrt %133 : vector<1x32xf32>
    %cst_102 = arith.constant dense<0.000000e+00> : vector<1x160xf32>
    %135 = tpu.matmul %134, %116, %cst_102 {dimension_numbers = #tpu.dot_dimension_numbers<[1], [0], [0], [1], [0, 0, 1, 1], [], []>} : vector<1x32xf32>, vector<32x160xf32>, vector<1x160xf32> -> vector<1x160xf32>
    %136 = vector.extract_strided_slice %114 {offsets = [1, 0], sizes = [1, 160], strides = [1, 1]} : vector<3x160xf32> to vector<1x160xf32>
    %137 = arith.mulf %135, %136 : vector<1x160xf32>
    %138 = vector.broadcast %137 : vector<1x160xf32> to vector<30x160xf32>
    %139 = arith.mulf %127, %138 : vector<30x160xf32>
    %140 = vector.extract_strided_slice %114 {offsets = [2, 0], sizes = [1, 160], strides = [1, 1]} : vector<3x160xf32> to vector<1x160xf32>
    %141 = vector.broadcast %140 : vector<1x160xf32> to vector<30x160xf32>
    %142 = arith.addf %139, %141 : vector<30x160xf32>
    %cst_103 = arith.constant 0.000000e+00 : f32
    %143 = vector.broadcast %cst_103 : f32 to vector<12x96xf32>
    %c0_104 = arith.constant 0 : index
    %c0_105 = arith.constant 0 : index
    %c0_106 = arith.constant 0 : index
    %144 = vector.load %arg10[%c0_104, %c0_105, %c0_106] : memref<6x12x30xf32, #tpu.memory_space<vmem>>, vector<1x12x30xf32>
    %145 = vector.shape_cast %144 : vector<1x12x30xf32> to vector<12x30xf32>
    %cst_107 = arith.constant dense<0.000000e+00> : vector<12x160xf32>
    %146 = tpu.matmul %145, %142, %cst_107 {dimension_numbers = #tpu.dot_dimension_numbers<[1], [0], [0], [1], [0, 0, 1, 1], [], []>} : vector<12x30xf32>, vector<30x160xf32>, vector<12x160xf32> -> vector<12x160xf32>
    %c0_108 = arith.constant 0 : index
    %c0_109 = arith.constant 0 : index
    %c0_110 = arith.constant 0 : index
    %147 = vector.load %arg11[%c0_108, %c0_109, %c0_110] : memref<6x160x96xbf16, #tpu.memory_space<vmem>>, vector<1x160x96xbf16>
    %148 = vector.shape_cast %147 : vector<1x160x96xbf16> to vector<160x96xbf16>
    %149 = arith.extf %148 : vector<160x96xbf16> to vector<160x96xf32>
    %cst_111 = arith.constant dense<0.000000e+00> : vector<12x96xf32>
    %150 = tpu.matmul %146, %149, %cst_111 {dimension_numbers = #tpu.dot_dimension_numbers<[1], [0], [0], [1], [0, 0, 1, 1], [], []>} : vector<12x160xf32>, vector<160x96xf32>, vector<12x96xf32> -> vector<12x96xf32>
    %151 = arith.addf %143, %150 : vector<12x96xf32>
    %c1_112 = arith.constant 1 : index
    %c0_113 = arith.constant 0 : index
    %c0_114 = arith.constant 0 : index
    %152 = vector.load %arg10[%c1_112, %c0_113, %c0_114] : memref<6x12x30xf32, #tpu.memory_space<vmem>>, vector<1x12x30xf32>
    %153 = vector.shape_cast %152 : vector<1x12x30xf32> to vector<12x30xf32>
    %cst_115 = arith.constant dense<0.000000e+00> : vector<12x160xf32>
    %154 = tpu.matmul %153, %142, %cst_115 {dimension_numbers = #tpu.dot_dimension_numbers<[1], [0], [0], [1], [0, 0, 1, 1], [], []>} : vector<12x30xf32>, vector<30x160xf32>, vector<12x160xf32> -> vector<12x160xf32>
    %c1_116 = arith.constant 1 : index
    %c0_117 = arith.constant 0 : index
    %c0_118 = arith.constant 0 : index
    %155 = vector.load %arg11[%c1_116, %c0_117, %c0_118] : memref<6x160x96xbf16, #tpu.memory_space<vmem>>, vector<1x160x96xbf16>
    %156 = vector.shape_cast %155 : vector<1x160x96xbf16> to vector<160x96xbf16>
    %157 = arith.extf %156 : vector<160x96xbf16> to vector<160x96xf32>
    %cst_119 = arith.constant dense<0.000000e+00> : vector<12x96xf32>
    %158 = tpu.matmul %154, %157, %cst_119 {dimension_numbers = #tpu.dot_dimension_numbers<[1], [0], [0], [1], [0, 0, 1, 1], [], []>} : vector<12x160xf32>, vector<160x96xf32>, vector<12x96xf32> -> vector<12x96xf32>
    %159 = arith.addf %151, %158 : vector<12x96xf32>
    %c2_120 = arith.constant 2 : index
    %c0_121 = arith.constant 0 : index
    %c0_122 = arith.constant 0 : index
    %160 = vector.load %arg10[%c2_120, %c0_121, %c0_122] : memref<6x12x30xf32, #tpu.memory_space<vmem>>, vector<1x12x30xf32>
    %161 = vector.shape_cast %160 : vector<1x12x30xf32> to vector<12x30xf32>
    %cst_123 = arith.constant dense<0.000000e+00> : vector<12x160xf32>
    %162 = tpu.matmul %161, %142, %cst_123 {dimension_numbers = #tpu.dot_dimension_numbers<[1], [0], [0], [1], [0, 0, 1, 1], [], []>} : vector<12x30xf32>, vector<30x160xf32>, vector<12x160xf32> -> vector<12x160xf32>
    %c2_124 = arith.constant 2 : index
    %c0_125 = arith.constant 0 : index
    %c0_126 = arith.constant 0 : index
    %163 = vector.load %arg11[%c2_124, %c0_125, %c0_126] : memref<6x160x96xbf16, #tpu.memory_space<vmem>>, vector<1x160x96xbf16>
    %164 = vector.shape_cast %163 : vector<1x160x96xbf16> to vector<160x96xbf16>
    %165 = arith.extf %164 : vector<160x96xbf16> to vector<160x96xf32>
    %cst_127 = arith.constant dense<0.000000e+00> : vector<12x96xf32>
    %166 = tpu.matmul %162, %165, %cst_127 {dimension_numbers = #tpu.dot_dimension_numbers<[1], [0], [0], [1], [0, 0, 1, 1], [], []>} : vector<12x160xf32>, vector<160x96xf32>, vector<12x96xf32> -> vector<12x96xf32>
    %167 = arith.addf %159, %166 : vector<12x96xf32>
    %c3_128 = arith.constant 3 : index
    %c0_129 = arith.constant 0 : index
    %c0_130 = arith.constant 0 : index
    %168 = vector.load %arg10[%c3_128, %c0_129, %c0_130] : memref<6x12x30xf32, #tpu.memory_space<vmem>>, vector<1x12x30xf32>
    %169 = vector.shape_cast %168 : vector<1x12x30xf32> to vector<12x30xf32>
    %cst_131 = arith.constant dense<0.000000e+00> : vector<12x160xf32>
    %170 = tpu.matmul %169, %142, %cst_131 {dimension_numbers = #tpu.dot_dimension_numbers<[1], [0], [0], [1], [0, 0, 1, 1], [], []>} : vector<12x30xf32>, vector<30x160xf32>, vector<12x160xf32> -> vector<12x160xf32>
    %c3_132 = arith.constant 3 : index
    %c0_133 = arith.constant 0 : index
    %c0_134 = arith.constant 0 : index
    %171 = vector.load %arg11[%c3_132, %c0_133, %c0_134] : memref<6x160x96xbf16, #tpu.memory_space<vmem>>, vector<1x160x96xbf16>
    %172 = vector.shape_cast %171 : vector<1x160x96xbf16> to vector<160x96xbf16>
    %173 = arith.extf %172 : vector<160x96xbf16> to vector<160x96xf32>
    %cst_135 = arith.constant dense<0.000000e+00> : vector<12x96xf32>
    %174 = tpu.matmul %170, %173, %cst_135 {dimension_numbers = #tpu.dot_dimension_numbers<[1], [0], [0], [1], [0, 0, 1, 1], [], []>} : vector<12x160xf32>, vector<160x96xf32>, vector<12x96xf32> -> vector<12x96xf32>
    %175 = arith.addf %167, %174 : vector<12x96xf32>
    %c4_136 = arith.constant 4 : index
    %c0_137 = arith.constant 0 : index
    %c0_138 = arith.constant 0 : index
    %176 = vector.load %arg10[%c4_136, %c0_137, %c0_138] : memref<6x12x30xf32, #tpu.memory_space<vmem>>, vector<1x12x30xf32>
    %177 = vector.shape_cast %176 : vector<1x12x30xf32> to vector<12x30xf32>
    %cst_139 = arith.constant dense<0.000000e+00> : vector<12x160xf32>
    %178 = tpu.matmul %177, %142, %cst_139 {dimension_numbers = #tpu.dot_dimension_numbers<[1], [0], [0], [1], [0, 0, 1, 1], [], []>} : vector<12x30xf32>, vector<30x160xf32>, vector<12x160xf32> -> vector<12x160xf32>
    %c4_140 = arith.constant 4 : index
    %c0_141 = arith.constant 0 : index
    %c0_142 = arith.constant 0 : index
    %179 = vector.load %arg11[%c4_140, %c0_141, %c0_142] : memref<6x160x96xbf16, #tpu.memory_space<vmem>>, vector<1x160x96xbf16>
    %180 = vector.shape_cast %179 : vector<1x160x96xbf16> to vector<160x96xbf16>
    %181 = arith.extf %180 : vector<160x96xbf16> to vector<160x96xf32>
    %cst_143 = arith.constant dense<0.000000e+00> : vector<12x96xf32>
    %182 = tpu.matmul %178, %181, %cst_143 {dimension_numbers = #tpu.dot_dimension_numbers<[1], [0], [0], [1], [0, 0, 1, 1], [], []>} : vector<12x160xf32>, vector<160x96xf32>, vector<12x96xf32> -> vector<12x96xf32>
    %183 = arith.addf %175, %182 : vector<12x96xf32>
    %c5_144 = arith.constant 5 : index
    %c0_145 = arith.constant 0 : index
    %c0_146 = arith.constant 0 : index
    %184 = vector.load %arg10[%c5_144, %c0_145, %c0_146] : memref<6x12x30xf32, #tpu.memory_space<vmem>>, vector<1x12x30xf32>
    %185 = vector.shape_cast %184 : vector<1x12x30xf32> to vector<12x30xf32>
    %cst_147 = arith.constant dense<0.000000e+00> : vector<12x160xf32>
    %186 = tpu.matmul %185, %142, %cst_147 {dimension_numbers = #tpu.dot_dimension_numbers<[1], [0], [0], [1], [0, 0, 1, 1], [], []>} : vector<12x30xf32>, vector<30x160xf32>, vector<12x160xf32> -> vector<12x160xf32>
    %c5_148 = arith.constant 5 : index
    %c0_149 = arith.constant 0 : index
    %c0_150 = arith.constant 0 : index
    %187 = vector.load %arg11[%c5_148, %c0_149, %c0_150] : memref<6x160x96xbf16, #tpu.memory_space<vmem>>, vector<1x160x96xbf16>
    %188 = vector.shape_cast %187 : vector<1x160x96xbf16> to vector<160x96xbf16>
    %189 = arith.extf %188 : vector<160x96xbf16> to vector<160x96xf32>
    %cst_151 = arith.constant dense<0.000000e+00> : vector<12x96xf32>
    %190 = tpu.matmul %186, %189, %cst_151 {dimension_numbers = #tpu.dot_dimension_numbers<[1], [0], [0], [1], [0, 0, 1, 1], [], []>} : vector<12x160xf32>, vector<160x96xf32>, vector<12x96xf32> -> vector<12x96xf32>
    %191 = arith.addf %183, %190 : vector<12x96xf32>
    %c0_152 = arith.constant 0 : index
    %c0_153 = arith.constant 0 : index
    %192 = vector.load %arg12[%c0_152, %c0_153] : memref<3x96xf32, #tpu.memory_space<vmem>>, vector<3x96xf32>
    %c0_154 = arith.constant 0 : index
    %c0_155 = arith.constant 0 : index
    %193 = vector.load %arg13[%c0_154, %c0_155] : memref<96x32xf32, #tpu.memory_space<vmem>>, vector<96x32xf32>
    %c0_156 = arith.constant 0 : index
    %c0_157 = arith.constant 0 : index
    %194 = vector.load %arg14[%c0_156, %c0_157] : memref<32x96xf32, #tpu.memory_space<vmem>>, vector<32x96xf32>
    %195 = vector.extract_strided_slice %192 {offsets = [0, 0], sizes = [1, 96], strides = [1, 1]} : vector<3x96xf32> to vector<1x96xf32>
    %196 = vector.broadcast %195 : vector<1x96xf32> to vector<12x96xf32>
    %197 = arith.addf %191, %196 : vector<12x96xf32>
    %cst_158 = arith.constant 0.000000e+00 : f32
    %198 = vector.broadcast %cst_158 : f32 to vector<12x96xf32>
    %199 = arith.maximumf %197, %198 : vector<12x96xf32>
    %cst_159 = arith.constant dense<0.000000e+00> : vector<96xf32>
    %200 = vector.multi_reduction <add>, %199, %cst_159 [0] : vector<12x96xf32> to vector<96xf32>
    %201 = vector.shape_cast %200 : vector<96xf32> to vector<1x96xf32>
    %cst_160 = arith.constant dense<0.000000e+00> : vector<1x32xf32>
    %202 = tpu.matmul %201, %193, %cst_160 {dimension_numbers = #tpu.dot_dimension_numbers<[1], [0], [0], [1], [0, 0, 1, 1], [], []>} : vector<1x96xf32>, vector<96x32xf32>, vector<1x32xf32> -> vector<1x32xf32>
    %cst_161 = arith.constant dense<0.000000e+00> : vector<1x96xf32>
    %203 = tpu.matmul %202, %194, %cst_161 {dimension_numbers = #tpu.dot_dimension_numbers<[1], [0], [0], [1], [0, 0, 1, 1], [], []>} : vector<1x32xf32>, vector<32x96xf32>, vector<1x96xf32> -> vector<1x96xf32>
    %204 = vector.broadcast %203 : vector<1x96xf32> to vector<12x96xf32>
    %205 = arith.subf %199, %204 : vector<12x96xf32>
    %206 = arith.mulf %205, %205 : vector<12x96xf32>
    %cst_162 = arith.constant dense<0.000000e+00> : vector<96xf32>
    %207 = vector.multi_reduction <add>, %206, %cst_162 [0] : vector<12x96xf32> to vector<96xf32>
    %208 = vector.shape_cast %207 : vector<96xf32> to vector<1x96xf32>
    %cst_163 = arith.constant dense<0.000000e+00> : vector<1x32xf32>
    %209 = tpu.matmul %208, %193, %cst_163 {dimension_numbers = #tpu.dot_dimension_numbers<[1], [0], [0], [1], [0, 0, 1, 1], [], []>} : vector<1x96xf32>, vector<96x32xf32>, vector<1x32xf32> -> vector<1x32xf32>
    %cst_164 = arith.constant 9.99999974E-6 : f32
    %210 = vector.broadcast %cst_164 : f32 to vector<1x32xf32>
    %211 = arith.addf %209, %210 : vector<1x32xf32>
    %212 = math.rsqrt %211 : vector<1x32xf32>
    %cst_165 = arith.constant dense<0.000000e+00> : vector<1x96xf32>
    %213 = tpu.matmul %212, %194, %cst_165 {dimension_numbers = #tpu.dot_dimension_numbers<[1], [0], [0], [1], [0, 0, 1, 1], [], []>} : vector<1x32xf32>, vector<32x96xf32>, vector<1x96xf32> -> vector<1x96xf32>
    %214 = vector.extract_strided_slice %192 {offsets = [1, 0], sizes = [1, 96], strides = [1, 1]} : vector<3x96xf32> to vector<1x96xf32>
    %215 = arith.mulf %213, %214 : vector<1x96xf32>
    %216 = vector.broadcast %215 : vector<1x96xf32> to vector<12x96xf32>
    %217 = arith.mulf %205, %216 : vector<12x96xf32>
    %218 = vector.extract_strided_slice %192 {offsets = [2, 0], sizes = [1, 96], strides = [1, 1]} : vector<3x96xf32> to vector<1x96xf32>
    %219 = vector.broadcast %218 : vector<1x96xf32> to vector<12x96xf32>
    %220 = arith.addf %217, %219 : vector<12x96xf32>
    %cst_166 = arith.constant 0.000000e+00 : f32
    %221 = vector.broadcast %cst_166 : f32 to vector<2x32xf32>
    %c0_167 = arith.constant 0 : index
    %c0_168 = arith.constant 0 : index
    %c0_169 = arith.constant 0 : index
    %222 = vector.load %arg15[%c0_167, %c0_168, %c0_169] : memref<6x2x12xf32, #tpu.memory_space<vmem>>, vector<1x2x12xf32>
    %223 = vector.shape_cast %222 : vector<1x2x12xf32> to vector<2x12xf32>
    %cst_170 = arith.constant dense<0.000000e+00> : vector<2x96xf32>
    %224 = tpu.matmul %223, %220, %cst_170 {dimension_numbers = #tpu.dot_dimension_numbers<[1], [0], [0], [1], [0, 0, 1, 1], [], []>} : vector<2x12xf32>, vector<12x96xf32>, vector<2x96xf32> -> vector<2x96xf32>
    %c0_171 = arith.constant 0 : index
    %c0_172 = arith.constant 0 : index
    %c0_173 = arith.constant 0 : index
    %225 = vector.load %arg16[%c0_171, %c0_172, %c0_173] : memref<6x96x32xbf16, #tpu.memory_space<vmem>>, vector<1x96x32xbf16>
    %226 = vector.shape_cast %225 : vector<1x96x32xbf16> to vector<96x32xbf16>
    %227 = arith.extf %226 : vector<96x32xbf16> to vector<96x32xf32>
    %cst_174 = arith.constant dense<0.000000e+00> : vector<2x32xf32>
    %228 = tpu.matmul %224, %227, %cst_174 {dimension_numbers = #tpu.dot_dimension_numbers<[1], [0], [0], [1], [0, 0, 1, 1], [], []>} : vector<2x96xf32>, vector<96x32xf32>, vector<2x32xf32> -> vector<2x32xf32>
    %229 = arith.addf %221, %228 : vector<2x32xf32>
    %c1_175 = arith.constant 1 : index
    %c0_176 = arith.constant 0 : index
    %c0_177 = arith.constant 0 : index
    %230 = vector.load %arg15[%c1_175, %c0_176, %c0_177] : memref<6x2x12xf32, #tpu.memory_space<vmem>>, vector<1x2x12xf32>
    %231 = vector.shape_cast %230 : vector<1x2x12xf32> to vector<2x12xf32>
    %cst_178 = arith.constant dense<0.000000e+00> : vector<2x96xf32>
    %232 = tpu.matmul %231, %220, %cst_178 {dimension_numbers = #tpu.dot_dimension_numbers<[1], [0], [0], [1], [0, 0, 1, 1], [], []>} : vector<2x12xf32>, vector<12x96xf32>, vector<2x96xf32> -> vector<2x96xf32>
    %c1_179 = arith.constant 1 : index
    %c0_180 = arith.constant 0 : index
    %c0_181 = arith.constant 0 : index
    %233 = vector.load %arg16[%c1_179, %c0_180, %c0_181] : memref<6x96x32xbf16, #tpu.memory_space<vmem>>, vector<1x96x32xbf16>
    %234 = vector.shape_cast %233 : vector<1x96x32xbf16> to vector<96x32xbf16>
    %235 = arith.extf %234 : vector<96x32xbf16> to vector<96x32xf32>
    %cst_182 = arith.constant dense<0.000000e+00> : vector<2x32xf32>
    %236 = tpu.matmul %232, %235, %cst_182 {dimension_numbers = #tpu.dot_dimension_numbers<[1], [0], [0], [1], [0, 0, 1, 1], [], []>} : vector<2x96xf32>, vector<96x32xf32>, vector<2x32xf32> -> vector<2x32xf32>
    %237 = arith.addf %229, %236 : vector<2x32xf32>
    %c2_183 = arith.constant 2 : index
    %c0_184 = arith.constant 0 : index
    %c0_185 = arith.constant 0 : index
    %238 = vector.load %arg15[%c2_183, %c0_184, %c0_185] : memref<6x2x12xf32, #tpu.memory_space<vmem>>, vector<1x2x12xf32>
    %239 = vector.shape_cast %238 : vector<1x2x12xf32> to vector<2x12xf32>
    %cst_186 = arith.constant dense<0.000000e+00> : vector<2x96xf32>
    %240 = tpu.matmul %239, %220, %cst_186 {dimension_numbers = #tpu.dot_dimension_numbers<[1], [0], [0], [1], [0, 0, 1, 1], [], []>} : vector<2x12xf32>, vector<12x96xf32>, vector<2x96xf32> -> vector<2x96xf32>
    %c2_187 = arith.constant 2 : index
    %c0_188 = arith.constant 0 : index
    %c0_189 = arith.constant 0 : index
    %241 = vector.load %arg16[%c2_187, %c0_188, %c0_189] : memref<6x96x32xbf16, #tpu.memory_space<vmem>>, vector<1x96x32xbf16>
    %242 = vector.shape_cast %241 : vector<1x96x32xbf16> to vector<96x32xbf16>
    %243 = arith.extf %242 : vector<96x32xbf16> to vector<96x32xf32>
    %cst_190 = arith.constant dense<0.000000e+00> : vector<2x32xf32>
    %244 = tpu.matmul %240, %243, %cst_190 {dimension_numbers = #tpu.dot_dimension_numbers<[1], [0], [0], [1], [0, 0, 1, 1], [], []>} : vector<2x96xf32>, vector<96x32xf32>, vector<2x32xf32> -> vector<2x32xf32>
    %245 = arith.addf %237, %244 : vector<2x32xf32>
    %c3_191 = arith.constant 3 : index
    %c0_192 = arith.constant 0 : index
    %c0_193 = arith.constant 0 : index
    %246 = vector.load %arg15[%c3_191, %c0_192, %c0_193] : memref<6x2x12xf32, #tpu.memory_space<vmem>>, vector<1x2x12xf32>
    %247 = vector.shape_cast %246 : vector<1x2x12xf32> to vector<2x12xf32>
    %cst_194 = arith.constant dense<0.000000e+00> : vector<2x96xf32>
    %248 = tpu.matmul %247, %220, %cst_194 {dimension_numbers = #tpu.dot_dimension_numbers<[1], [0], [0], [1], [0, 0, 1, 1], [], []>} : vector<2x12xf32>, vector<12x96xf32>, vector<2x96xf32> -> vector<2x96xf32>
    %c3_195 = arith.constant 3 : index
    %c0_196 = arith.constant 0 : index
    %c0_197 = arith.constant 0 : index
    %249 = vector.load %arg16[%c3_195, %c0_196, %c0_197] : memref<6x96x32xbf16, #tpu.memory_space<vmem>>, vector<1x96x32xbf16>
    %250 = vector.shape_cast %249 : vector<1x96x32xbf16> to vector<96x32xbf16>
    %251 = arith.extf %250 : vector<96x32xbf16> to vector<96x32xf32>
    %cst_198 = arith.constant dense<0.000000e+00> : vector<2x32xf32>
    %252 = tpu.matmul %248, %251, %cst_198 {dimension_numbers = #tpu.dot_dimension_numbers<[1], [0], [0], [1], [0, 0, 1, 1], [], []>} : vector<2x96xf32>, vector<96x32xf32>, vector<2x32xf32> -> vector<2x32xf32>
    %253 = arith.addf %245, %252 : vector<2x32xf32>
    %c4_199 = arith.constant 4 : index
    %c0_200 = arith.constant 0 : index
    %c0_201 = arith.constant 0 : index
    %254 = vector.load %arg15[%c4_199, %c0_200, %c0_201] : memref<6x2x12xf32, #tpu.memory_space<vmem>>, vector<1x2x12xf32>
    %255 = vector.shape_cast %254 : vector<1x2x12xf32> to vector<2x12xf32>
    %cst_202 = arith.constant dense<0.000000e+00> : vector<2x96xf32>
    %256 = tpu.matmul %255, %220, %cst_202 {dimension_numbers = #tpu.dot_dimension_numbers<[1], [0], [0], [1], [0, 0, 1, 1], [], []>} : vector<2x12xf32>, vector<12x96xf32>, vector<2x96xf32> -> vector<2x96xf32>
    %c4_203 = arith.constant 4 : index
    %c0_204 = arith.constant 0 : index
    %c0_205 = arith.constant 0 : index
    %257 = vector.load %arg16[%c4_203, %c0_204, %c0_205] : memref<6x96x32xbf16, #tpu.memory_space<vmem>>, vector<1x96x32xbf16>
    %258 = vector.shape_cast %257 : vector<1x96x32xbf16> to vector<96x32xbf16>
    %259 = arith.extf %258 : vector<96x32xbf16> to vector<96x32xf32>
    %cst_206 = arith.constant dense<0.000000e+00> : vector<2x32xf32>
    %260 = tpu.matmul %256, %259, %cst_206 {dimension_numbers = #tpu.dot_dimension_numbers<[1], [0], [0], [1], [0, 0, 1, 1], [], []>} : vector<2x96xf32>, vector<96x32xf32>, vector<2x32xf32> -> vector<2x32xf32>
    %261 = arith.addf %253, %260 : vector<2x32xf32>
    %c5_207 = arith.constant 5 : index
    %c0_208 = arith.constant 0 : index
    %c0_209 = arith.constant 0 : index
    %262 = vector.load %arg15[%c5_207, %c0_208, %c0_209] : memref<6x2x12xf32, #tpu.memory_space<vmem>>, vector<1x2x12xf32>
    %263 = vector.shape_cast %262 : vector<1x2x12xf32> to vector<2x12xf32>
    %cst_210 = arith.constant dense<0.000000e+00> : vector<2x96xf32>
    %264 = tpu.matmul %263, %220, %cst_210 {dimension_numbers = #tpu.dot_dimension_numbers<[1], [0], [0], [1], [0, 0, 1, 1], [], []>} : vector<2x12xf32>, vector<12x96xf32>, vector<2x96xf32> -> vector<2x96xf32>
    %c5_211 = arith.constant 5 : index
    %c0_212 = arith.constant 0 : index
    %c0_213 = arith.constant 0 : index
    %265 = vector.load %arg16[%c5_211, %c0_212, %c0_213] : memref<6x96x32xbf16, #tpu.memory_space<vmem>>, vector<1x96x32xbf16>
    %266 = vector.shape_cast %265 : vector<1x96x32xbf16> to vector<96x32xbf16>
    %267 = arith.extf %266 : vector<96x32xbf16> to vector<96x32xf32>
    %cst_214 = arith.constant dense<0.000000e+00> : vector<2x32xf32>
    %268 = tpu.matmul %264, %267, %cst_214 {dimension_numbers = #tpu.dot_dimension_numbers<[1], [0], [0], [1], [0, 0, 1, 1], [], []>} : vector<2x96xf32>, vector<96x32xf32>, vector<2x32xf32> -> vector<2x32xf32>
    %269 = arith.addf %261, %268 : vector<2x32xf32>
    %c0_215 = arith.constant 0 : index
    %c0_216 = arith.constant 0 : index
    %270 = vector.load %arg17[%c0_215, %c0_216] : memref<3x32xf32, #tpu.memory_space<vmem>>, vector<3x32xf32>
    %c0_217 = arith.constant 0 : index
    %c0_218 = arith.constant 0 : index
    %271 = vector.load %arg18[%c0_217, %c0_218] : memref<32x32xf32, #tpu.memory_space<vmem>>, vector<32x32xf32>
    %c0_219 = arith.constant 0 : index
    %c0_220 = arith.constant 0 : index
    %272 = vector.load %arg19[%c0_219, %c0_220] : memref<32x32xf32, #tpu.memory_space<vmem>>, vector<32x32xf32>
    %273 = vector.extract_strided_slice %270 {offsets = [0, 0], sizes = [1, 32], strides = [1, 1]} : vector<3x32xf32> to vector<1x32xf32>
    %274 = vector.broadcast %273 : vector<1x32xf32> to vector<2x32xf32>
    %275 = arith.addf %269, %274 : vector<2x32xf32>
    %cst_221 = arith.constant 0.000000e+00 : f32
    %276 = vector.broadcast %cst_221 : f32 to vector<2x32xf32>
    %277 = arith.maximumf %275, %276 : vector<2x32xf32>
    %cst_222 = arith.constant dense<0.000000e+00> : vector<32xf32>
    %278 = vector.multi_reduction <add>, %277, %cst_222 [0] : vector<2x32xf32> to vector<32xf32>
    %279 = vector.shape_cast %278 : vector<32xf32> to vector<1x32xf32>
    %cst_223 = arith.constant dense<0.000000e+00> : vector<1x32xf32>
    %280 = tpu.matmul %279, %271, %cst_223 {dimension_numbers = #tpu.dot_dimension_numbers<[1], [0], [0], [1], [0, 0, 1, 1], [], []>} : vector<1x32xf32>, vector<32x32xf32>, vector<1x32xf32> -> vector<1x32xf32>
    %cst_224 = arith.constant dense<0.000000e+00> : vector<1x32xf32>
    %281 = tpu.matmul %280, %272, %cst_224 {dimension_numbers = #tpu.dot_dimension_numbers<[1], [0], [0], [1], [0, 0, 1, 1], [], []>} : vector<1x32xf32>, vector<32x32xf32>, vector<1x32xf32> -> vector<1x32xf32>
    %282 = vector.broadcast %281 : vector<1x32xf32> to vector<2x32xf32>
    %283 = arith.subf %277, %282 : vector<2x32xf32>
    %284 = arith.mulf %283, %283 : vector<2x32xf32>
    %cst_225 = arith.constant dense<0.000000e+00> : vector<32xf32>
    %285 = vector.multi_reduction <add>, %284, %cst_225 [0] : vector<2x32xf32> to vector<32xf32>
    %286 = vector.shape_cast %285 : vector<32xf32> to vector<1x32xf32>
    %cst_226 = arith.constant dense<0.000000e+00> : vector<1x32xf32>
    %287 = tpu.matmul %286, %271, %cst_226 {dimension_numbers = #tpu.dot_dimension_numbers<[1], [0], [0], [1], [0, 0, 1, 1], [], []>} : vector<1x32xf32>, vector<32x32xf32>, vector<1x32xf32> -> vector<1x32xf32>
    %cst_227 = arith.constant 9.99999974E-6 : f32
    %288 = vector.broadcast %cst_227 : f32 to vector<1x32xf32>
    %289 = arith.addf %287, %288 : vector<1x32xf32>
    %290 = math.rsqrt %289 : vector<1x32xf32>
    %cst_228 = arith.constant dense<0.000000e+00> : vector<1x32xf32>
    %291 = tpu.matmul %290, %272, %cst_228 {dimension_numbers = #tpu.dot_dimension_numbers<[1], [0], [0], [1], [0, 0, 1, 1], [], []>} : vector<1x32xf32>, vector<32x32xf32>, vector<1x32xf32> -> vector<1x32xf32>
    %292 = vector.extract_strided_slice %270 {offsets = [1, 0], sizes = [1, 32], strides = [1, 1]} : vector<3x32xf32> to vector<1x32xf32>
    %293 = arith.mulf %291, %292 : vector<1x32xf32>
    %294 = vector.broadcast %293 : vector<1x32xf32> to vector<2x32xf32>
    %295 = arith.mulf %283, %294 : vector<2x32xf32>
    %296 = vector.extract_strided_slice %270 {offsets = [2, 0], sizes = [1, 32], strides = [1, 1]} : vector<3x32xf32> to vector<1x32xf32>
    %297 = vector.broadcast %296 : vector<1x32xf32> to vector<2x32xf32>
    %298 = arith.addf %295, %297 : vector<2x32xf32>
    %c0_229 = arith.constant 0 : index
    %c0_230 = arith.constant 0 : index
    %299 = vector.load %arg20[%c0_229, %c0_230] : memref<2x2xf32, #tpu.memory_space<vmem>>, vector<2x2xf32>
    %cst_231 = arith.constant dense<0.000000e+00> : vector<2x32xf32>
    %300 = tpu.matmul %299, %298, %cst_231 {dimension_numbers = #tpu.dot_dimension_numbers<[1], [0], [0], [1], [0, 0, 1, 1], [], []>} : vector<2x2xf32>, vector<2x32xf32>, vector<2x32xf32> -> vector<2x32xf32>
    %c0_232 = arith.constant 0 : index
    %c0_233 = arith.constant 0 : index
    %301 = vector.load %arg21[%c0_232, %c0_233] : memref<32x2xf32, #tpu.memory_space<vmem>>, vector<32x2xf32>
    %cst_234 = arith.constant dense<0.000000e+00> : vector<2x2xf32>
    %302 = tpu.matmul %300, %301, %cst_234 {dimension_numbers = #tpu.dot_dimension_numbers<[1], [0], [0], [1], [0, 0, 1, 1], [], []>} : vector<2x32xf32>, vector<32x2xf32>, vector<2x2xf32> -> vector<2x2xf32>
    %c0_235 = arith.constant 0 : index
    %c0_236 = arith.constant 0 : index
    %303 = vector.load %arg22[%c0_235, %c0_236] : memref<1x2xf32, #tpu.memory_space<vmem>>, vector<1x2xf32>
    %304 = vector.broadcast %303 : vector<1x2xf32> to vector<2x2xf32>
    %305 = arith.addf %302, %304 : vector<2x2xf32>
    %c0_237 = arith.constant 0 : index
    %c0_238 = arith.constant 0 : index
    %306 = vector.load %arg23[%c0_237, %c0_238] : memref<2x2xf32, #tpu.memory_space<vmem>>, vector<2x2xf32>
    tpu.vector_store %arg23[%c0_237, %c0_238], %305 {strides = array<i32>} : memref<2x2xf32, #tpu.memory_space<vmem>>, vector<2x2xf32>,
    return
  }
}

</mosaic_0001>

<llo_original>
// kernel: glaucoma3d_forward.1
$region0: #{glaucoma3d_forward.1}
  #allocation0 [shape = 'u32[]', space=smem, size = 0x4, offset = 0x4, fixed_abs, tag = 'smem constant byte address 0x4 - core index']
  #allocation1 [shape = 'u32[72,128]{1,0:T(1,128)}', space=vmem, size = 0x9000, scoped, tag = 'internal scratch']
  %s0 = inlined_call_operand.vmem [shape: f32[72,483], index: 0, kind: input, shape index: {}]
  %s1 = inlined_call_operand.vmem [shape: bf16[483,288], index: 1, kind: input, shape index: {}]
  %s2 = inlined_call_operand.vmem [shape: f32[3,288], index: 2, kind: input, shape index: {}]
  %s3 = inlined_call_operand.vmem [shape: f32[288,32], index: 3, kind: input, shape index: {}]
  %s4 = inlined_call_operand.vmem [shape: f32[32,288], index: 4, kind: input, shape index: {}]
  %s5 = inlined_call_operand.vmem [shape: f32[10,30,72], index: 5, kind: input, shape index: {}]
  %s6 = inlined_call_operand.vmem [shape: bf16[10,288,160], index: 6, kind: input, shape index: {}]
  %s7 = inlined_call_operand.vmem [shape: f32[3,160], index: 7, kind: input, shape index: {}]
  %s8 = inlined_call_operand.vmem [shape: f32[160,32], index: 8, kind: input, shape index: {}]
  %s9 = inlined_call_operand.vmem [shape: f32[32,160], index: 9, kind: input, shape index: {}]
  %s10 = inlined_call_operand.vmem [shape: f32[6,12,30], index: 10, kind: input, shape index: {}]
  %s11 = inlined_call_operand.vmem [shape: bf16[6,160,96], index: 11, kind: input, shape index: {}]
  %s12 = inlined_call_operand.vmem [shape: f32[3,96], index: 12, kind: input, shape index: {}]
  %s13 = inlined_call_operand.vmem [shape: f32[96,32], index: 13, kind: input, shape index: {}]
  %s14 = inlined_call_operand.vmem [shape: f32[32,96], index: 14, kind: input, shape index: {}]
  %s15 = inlined_call_operand.vmem [shape: f32[6,2,12], index: 15, kind: input, shape index: {}]
  %s16 = inlined_call_operand.vmem [shape: bf16[6,96,32], index: 16, kind: input, shape index: {}]
  %s17 = inlined_call_operand.vmem [shape: f32[3,32], index: 17, kind: input, shape index: {}]
  %s18 = inlined_call_operand.vmem [shape: f32[32,32], index: 18, kind: input, shape index: {}]
  %s19 = inlined_call_operand.vmem [shape: f32[32,32], index: 19, kind: input, shape index: {}]
  %s20 = inlined_call_operand.vmem [shape: f32[2,2], index: 20, kind: input, shape index: {}]
  %s21 = inlined_call_operand.vmem [shape: f32[32,2], index: 21, kind: input, shape index: {}]
  %s22 = inlined_call_operand.vmem [shape: f32[1,2], index: 22, kind: input, shape index: {}]
  %s23 = inlined_call_operand.hbm [shape: f32[2,2], index: 23, kind: output, shape index: {}]
  %s24 = sld [smem:[#allocation0]]
  $region102: #{glaucoma3d_forward.1} parent=0
    _
  %s26 = ssub.s32 1, %s24
  %s27 = scalar_select 0, %s26, %s24
  $region1: #{glaucoma3d_forward.1} parent=0
    #allocation2 [shape = 'u8[1024]{0}', space=vmem, size = 0x400, scoped, tag = 'output window, operand 0, single buffered']
    #allocation3 [shape = 's32[1]{0}', space=sflag, size = 0x4, scoped, tag = 'scoped memory for glaucoma3d_forward.1']
    %28 = vsyncpa [#allocation3], 0
    // Predicated region
    $region2: #{glaucoma3d_forward.1} parent=1 // pred_check
      _
    $region3: #{glaucoma3d_forward.1} parent=1 // pred_check_branch
      %30 = sbr.rel (0) target = $region5
    $region4: #{glaucoma3d_forward.1} parent=1 // pred_region
      _
    $region5: #{glaucoma3d_forward.1} parent=1 // pred_fallthru
      _
    // Predicated region
    $region6: #{glaucoma3d_forward.1} parent=1 // pred_check
      _
    $region7: #{glaucoma3d_forward.1} parent=1 // pred_check_branch
      %32 = sbr.rel (0) target = $region9
    $region8: #{glaucoma3d_forward.1} parent=1 // pred_region
      _
    $region9: #{glaucoma3d_forward.1} parent=1 // pred_fallthru
      _
    // Predicated region
    $region10: #{glaucoma3d_forward.1} parent=1 // pred_check
      _
    $region11: #{glaucoma3d_forward.1} parent=1 // pred_check_branch
      %34 = sbr.rel (0) target = $region13
    $region12: #{glaucoma3d_forward.1} parent=1 // pred_region
      _
    $region13: #{glaucoma3d_forward.1} parent=1 // pred_fallthru
      _
    // Predicated region
    $region14: #{glaucoma3d_forward.1} parent=1 // pred_check
      _
    $region15: #{glaucoma3d_forward.1} parent=1 // pred_check_branch
      %36 = sbr.rel (0) target = $region17
    $region16: #{glaucoma3d_forward.1} parent=1 // pred_region
      _
    $region17: #{glaucoma3d_forward.1} parent=1 // pred_fallthru
      _
    // Predicated region
    $region18: #{glaucoma3d_forward.1} parent=1 // pred_check
      _
    $region19: #{glaucoma3d_forward.1} parent=1 // pred_check_branch
      %38 = sbr.rel (0) target = $region21
    $region20: #{glaucoma3d_forward.1} parent=1 // pred_region
      _
    $region21: #{glaucoma3d_forward.1} parent=1 // pred_fallthru
      _
    // Predicated region
    $region22: #{glaucoma3d_forward.1} parent=1 // pred_check
      _
    $region23: #{glaucoma3d_forward.1} parent=1 // pred_check_branch
      %40 = sbr.rel (0) target = $region25
    $region24: #{glaucoma3d_forward.1} parent=1 // pred_region
      _
    $region25: #{glaucoma3d_forward.1} parent=1 // pred_fallthru
      _
    // Predicated region
    $region26: #{glaucoma3d_forward.1} parent=1 // pred_check
      _
    $region27: #{glaucoma3d_forward.1} parent=1 // pred_check_branch
      %42 = sbr.rel (0) target = $region29
    $region28: #{glaucoma3d_forward.1} parent=1 // pred_region
      _
    $region29: #{glaucoma3d_forward.1} parent=1 // pred_fallthru
      _
    // Predicated region
    $region30: #{glaucoma3d_forward.1} parent=1 // pred_check
      _
    $region31: #{glaucoma3d_forward.1} parent=1 // pred_check_branch
      %44 = sbr.rel (0) target = $region33
    $region32: #{glaucoma3d_forward.1} parent=1 // pred_region
      _
    $region33: #{glaucoma3d_forward.1} parent=1 // pred_fallthru
      _
    // Predicated region
    $region34: #{glaucoma3d_forward.1} parent=1 // pred_check
      _
    $region35: #{glaucoma3d_forward.1} parent=1 // pred_check_branch
      %46 = sbr.rel (0) target = $region37
    $region36: #{glaucoma3d_forward.1} parent=1 // pred_region
      _
    $region37: #{glaucoma3d_forward.1} parent=1 // pred_fallthru
      _
    // Predicated region
    $region38: #{glaucoma3d_forward.1} parent=1 // pred_check
      _
    $region39: #{glaucoma3d_forward.1} parent=1 // pred_check_branch
      %48 = sbr.rel (0) target = $region41
    $region40: #{glaucoma3d_forward.1} parent=1 // pred_region
      _
    $region41: #{glaucoma3d_forward.1} parent=1 // pred_fallthru
      _
    // Predicated region
    $region42: #{glaucoma3d_forward.1} parent=1 // pred_check
      _
    $region43: #{glaucoma3d_forward.1} parent=1 // pred_check_branch
      %50 = sbr.rel (0) target = $region45
    $region44: #{glaucoma3d_forward.1} parent=1 // pred_region
      _
    $region45: #{glaucoma3d_forward.1} parent=1 // pred_fallthru
      _
    // Predicated region
    $region46: #{glaucoma3d_forward.1} parent=1 // pred_check
      _
    $region47: #{glaucoma3d_forward.1} parent=1 // pred_check_branch
      %52 = sbr.rel (0) target = $region49
    $region48: #{glaucoma3d_forward.1} parent=1 // pred_region
      _
    $region49: #{glaucoma3d_forward.1} parent=1 // pred_fallthru
      _
    // Predicated region
    $region50: #{glaucoma3d_forward.1} parent=1 // pred_check
      _
    $region51: #{glaucoma3d_forward.1} parent=1 // pred_check_branch
      %54 = sbr.rel (0) target = $region53
    $region52: #{glaucoma3d_forward.1} parent=1 // pred_region
      _
    $region53: #{glaucoma3d_forward.1} parent=1 // pred_fallthru
      _
    // Predicated region
    $region54: #{glaucoma3d_forward.1} parent=1 // pred_check
      _
    $region55: #{glaucoma3d_forward.1} parent=1 // pred_check_branch
      %56 = sbr.rel (0) target = $region57
    $region56: #{glaucoma3d_forward.1} parent=1 // pred_region
      _
    $region57: #{glaucoma3d_forward.1} parent=1 // pred_fallthru
      _
    // Predicated region
    $region58: #{glaucoma3d_forward.1} parent=1 // pred_check
      _
    $region59: #{glaucoma3d_forward.1} parent=1 // pred_check_branch
      %58 = sbr.rel (0) target = $region61
    $region60: #{glaucoma3d_forward.1} parent=1 // pred_region
      _
    $region61: #{glaucoma3d_forward.1} parent=1 // pred_fallthru
      _
    // Predicated region
    $region62: #{glaucoma3d_forward.1} parent=1 // pred_check
      _
    $region63: #{glaucoma3d_forward.1} parent=1 // pred_check_branch
      %60 = sbr.rel (0) target = $region65
    $region64: #{glaucoma3d_forward.1} parent=1 // pred_region
      _
    $region65: #{glaucoma3d_forward.1} parent=1 // pred_fallthru
      _
    // Predicated region
    $region66: #{glaucoma3d_forward.1} parent=1 // pred_check
      _
    $region67: #{glaucoma3d_forward.1} parent=1 // pred_check_branch
      %62 = sbr.rel (0) target = $region69
    $region68: #{glaucoma3d_forward.1} parent=1 // pred_region
      _
    $region69: #{glaucoma3d_forward.1} parent=1 // pred_fallthru
      _
    // Predicated region
    $region70: #{glaucoma3d_forward.1} parent=1 // pred_check
      _
    $region71: #{glaucoma3d_forward.1} parent=1 // pred_check_branch
      %64 = sbr.rel (0) target = $region73
    $region72: #{glaucoma3d_forward.1} parent=1 // pred_region
      _
    $region73: #{glaucoma3d_forward.1} parent=1 // pred_fallthru
      _
    // Predicated region
    $region74: #{glaucoma3d_forward.1} parent=1 // pred_check
      _
    $region75: #{glaucoma3d_forward.1} parent=1 // pred_check_branch
      %66 = sbr.rel (0) target = $region77
    $region76: #{glaucoma3d_forward.1} parent=1 // pred_region
      _
    $region77: #{glaucoma3d_forward.1} parent=1 // pred_fallthru
      _
    // Predicated region
    $region78: #{glaucoma3d_forward.1} parent=1 // pred_check
      _
    $region79: #{glaucoma3d_forward.1} parent=1 // pred_check_branch
      %68 = sbr.rel (0) target = $region81
    $region80: #{glaucoma3d_forward.1} parent=1 // pred_region
      _
    $region81: #{glaucoma3d_forward.1} parent=1 // pred_fallthru
      _
    // Predicated region
    $region82: #{glaucoma3d_forward.1} parent=1 // pred_check
      _
    $region83: #{glaucoma3d_forward.1} parent=1 // pred_check_branch
      %70 = sbr.rel (0) target = $region85
    $region84: #{glaucoma3d_forward.1} parent=1 // pred_region
      _
    $region85: #{glaucoma3d_forward.1} parent=1 // pred_fallthru
      _
    // Predicated region
    $region86: #{glaucoma3d_forward.1} parent=1 // pred_check
      _
    $region87: #{glaucoma3d_forward.1} parent=1 // pred_check_branch
      %72 = sbr.rel (0) target = $region89
    $region88: #{glaucoma3d_forward.1} parent=1 // pred_region
      _
    $region89: #{glaucoma3d_forward.1} parent=1 // pred_fallthru
      _
    // Predicated region
    $region90: #{glaucoma3d_forward.1} parent=1 // pred_check
      _
    $region91: #{glaucoma3d_forward.1} parent=1 // pred_check_branch
      %74 = sbr.rel (0) target = $region93
    $region92: #{glaucoma3d_forward.1} parent=1 // pred_region
      _
    $region93: #{glaucoma3d_forward.1} parent=1 // pred_fallthru
      _
    %v75 = vld [vmem:[%s0] sm:$0xff]
    %v76 = vld [vmem:[%s0 + $0x8] sm:$0xff]
    %v77 = vld [vmem:[%s0 + $0x10] sm:$0xff]
    %v78 = vld [vmem:[%s0 + $0x18] sm:$0xff]
    %v79 = vld [vmem:[%s0 + $0x20] sm:$0xff]
    %v80 = vld [vmem:[%s0 + $0x28] sm:$0xff]
    %v81 = vld [vmem:[%s0 + $0x30] sm:$0xff]
    %v82 = vld [vmem:[%s0 + $0x38] sm:$0xff]
    %v83 = vld [vmem:[%s0 + $0x40] sm:$0xff]
    %v84 = vld [vmem:[%s0 + $0x48] sm:$0xff]
    %v85 = vld [vmem:[%s0 + $0x50] sm:$0xff]
    %v86 = vld [vmem:[%s0 + $0x58] sm:$0xff]
    %v87 = vld [vmem:[%s0 + $0x60] sm:$0xff]
    %v88 = vld [vmem:[%s0 + $0x68] sm:$0xff]
    %v89 = vld [vmem:[%s0 + $0x70] sm:$0xff]
    %v90 = vld [vmem:[%s0 + $0x78] sm:$0xff]
    %v91 = vld [vmem:[%s0 + $0x80] sm:$0xff]
    %v92 = vld [vmem:[%s0 + $0x88] sm:$0xff]
    %v93 = vld [vmem:[%s0 + $0x90] sm:$0xff]
    %v94 = vld [vmem:[%s0 + $0x98] sm:$0xff]
    %v95 = vld [vmem:[%s0 + $0xa0] sm:$0xff]
    %v96 = vld [vmem:[%s0 + $0xa8] sm:$0xff]
    %v97 = vld [vmem:[%s0 + $0xb0] sm:$0xff]
    %v98 = vld [vmem:[%s0 + $0xb8] sm:$0xff]
    %v99 = vld [vmem:[%s0 + $0xc0] sm:$0xff]
    %v100 = vld [vmem:[%s0 + $0xc8] sm:$0xff]
    %v101 = vld [vmem:[%s0 + $0xd0] sm:$0xff]
    %v102 = vld [vmem:[%s0 + $0xd8] sm:$0xff]
    %v103 = vld [vmem:[%s0 + $0xe0] sm:$0xff]
    %v104 = vld [vmem:[%s0 + $0xe8] sm:$0xff]
    %v105 = vld [vmem:[%s0 + $0xf0] sm:$0xff]
    %v106 = vld [vmem:[%s0 + $0xf8] sm:$0xff]
    %v107 = vld [vmem:[%s0 + $0x100] sm:$0xff]
    %v108 = vld [vmem:[%s0 + $0x108] sm:$0xff]
    %v109 = vld [vmem:[%s0 + $0x110] sm:$0xff]
    %v110 = vld [vmem:[%s0 + $0x118] sm:$0xff]
    %v111 = vld [vmem:[%s1] sm:$0xff]
    %v112 = vld [vmem:[%s1 + $0x8] sm:$0xf]
    %v113 = vld [vmem:[%s1 + $0xc] sm:$0xff]
    %v114 = vld [vmem:[%s1 + $0x14] sm:$0xf]
    %v115 = vld [vmem:[%s1 + $0x18] sm:$0xff]
    %v116 = vld [vmem:[%s1 + $0x20] sm:$0xf]
    %v117 = vld [vmem:[%s1 + $0x24] sm:$0xff]
    %v118 = vld [vmem:[%s1 + $0x2c] sm:$0xf]
    %v119 = vld [vmem:[%s1 + $0x30] sm:$0xff]
    %v120 = vld [vmem:[%s1 + $0x38] sm:$0xf]
    %v121 = vld [vmem:[%s1 + $0x3c] sm:$0xff]
    %v122 = vld [vmem:[%s1 + $0x44] sm:$0xf]
    %v123 = vld [vmem:[%s1 + $0x48] sm:$0xff]
    %v124 = vld [vmem:[%s1 + $0x50] sm:$0xf]
    %v125 = vld [vmem:[%s1 + $0x54] sm:$0xff]
    %v126 = vld [vmem:[%s1 + $0x5c] sm:$0xf]
    %v127 = vld [vmem:[%s1 + $0x60] sm:$0xff]
    %v128 = vld [vmem:[%s1 + $0x68] sm:$0xf]
    %v129 = vld [vmem:[%s1 + $0x6c] sm:$0xff]
    %v130 = vld [vmem:[%s1 + $0x74] sm:$0xf]
    %v131 = vld [vmem:[%s1 + $0x78] sm:$0xff]
    %v132 = vld [vmem:[%s1 + $0x80] sm:$0xf]
    %v133 = vld [vmem:[%s1 + $0x84] sm:$0xff]
    %v134 = vld [vmem:[%s1 + $0x8c] sm:$0xf]
    %v135 = vld [vmem:[%s1 + $0x90] sm:$0xff]
    %v136 = vld [vmem:[%s1 + $0x98] sm:$0xf]
    %v137 = vld [vmem:[%s1 + $0x9c] sm:$0xff]
    %v138 = vld [vmem:[%s1 + $0xa4] sm:$0xf]
    %v139 = vld [vmem:[%s1 + $0xa8] sm:$0xff]
    %v140 = vld [vmem:[%s1 + $0xb0] sm:$0xf]
    %v141 = vld [vmem:[%s1 + $0xb4] sm:$0xff]
    %v142 = vld [vmem:[%s1 + $0xbc] sm:$0xf]
    %v143 = vld [vmem:[%s1 + $0xc0] sm:$0xff]
    %v144 = vld [vmem:[%s1 + $0xc8] sm:$0xf]
    %v145 = vld [vmem:[%s1 + $0xcc] sm:$0xff]
    %v146 = vld [vmem:[%s1 + $0xd4] sm:$0xf]
    %v147 = vld [vmem:[%s1 + $0xd8] sm:$0xff]
    %v148 = vld [vmem:[%s1 + $0xe0] sm:$0xf]
    %v149 = vld [vmem:[%s1 + $0xe4] sm:$0xff]
    %v150 = vld [vmem:[%s1 + $0xec] sm:$0xf]
    %v151 = vld [vmem:[%s1 + $0xf0] sm:$0xff]
    %v152 = vld [vmem:[%s1 + $0xf8] sm:$0xf]
    %v153 = vld [vmem:[%s1 + $0xfc] sm:$0xff]
    %v154 = vld [vmem:[%s1 + $0x104] sm:$0xf]
    %v155 = vld [vmem:[%s1 + $0x108] sm:$0xff]
    %v156 = vld [vmem:[%s1 + $0x110] sm:$0xf]
    %v157 = vld [vmem:[%s1 + $0x114] sm:$0xff]
    %v158 = vld [vmem:[%s1 + $0x11c] sm:$0xf]
    %v159 = vld [vmem:[%s1 + $0x120] sm:$0xff]
    %v160 = vld [vmem:[%s1 + $0x128] sm:$0xf]
    %v161 = vld [vmem:[%s1 + $0x12c] sm:$0xff]
    %v162 = vld [vmem:[%s1 + $0x134] sm:$0xf]
    %v163 = vld [vmem:[%s1 + $0x138] sm:$0xff]
    %v164 = vld [vmem:[%s1 + $0x140] sm:$0xf]
    %v165 = vld [vmem:[%s1 + $0x144] sm:$0xff]
    %v166 = vld [vmem:[%s1 + $0x14c] sm:$0xf]
    %v167 = vld [vmem:[%s1 + $0x150] sm:$0xff]
    %v168 = vld [vmem:[%s1 + $0x158] sm:$0xf]
    %v169 = vld [vmem:[%s1 + $0x15c] sm:$0xff]
    %v170 = vld [vmem:[%s1 + $0x164] sm:$0xf]
    %v171 = vld [vmem:[%s1 + $0x168] sm:$0xff]
    %v172 = vld [vmem:[%s1 + $0x170] sm:$0xf]
    %v173 = vld [vmem:[%s1 + $0x174] sm:$0xff]
    %v174 = vld [vmem:[%s1 + $0x17c] sm:$0xf]
    %v175 = vld [vmem:[%s1 + $0x180] sm:$0xff]
    %v176 = vld [vmem:[%s1 + $0x188] sm:$0xf]
    %v177 = vld [vmem:[%s1 + $0x18c] sm:$0xff]
    %v178 = vld [vmem:[%s1 + $0x194] sm:$0xf]
    %v179 = vld [vmem:[%s1 + $0x198] sm:$0xff]
    %v180 = vld [vmem:[%s1 + $0x1a0] sm:$0xf]
    %v181 = vld [vmem:[%s1 + $0x1a4] sm:$0xff]
    %v182 = vld [vmem:[%s1 + $0x1ac] sm:$0xf]
    %v183 = vld [vmem:[%s1 + $0x1b0] sm:$0xff]
    %v184 = vld [vmem:[%s1 + $0x1b8] sm:$0xf]
    %v185 = vld [vmem:[%s1 + $0x1bc] sm:$0xff]
    %v186 = vld [vmem:[%s1 + $0x1c4] sm:$0xf]
    %v187 = vld [vmem:[%s1 + $0x1c8] sm:$0xff]
    %v188 = vld [vmem:[%s1 + $0x1d0] sm:$0xf]
    %v189 = vld [vmem:[%s1 + $0x1d4] sm:$0xff]
    %v190 = vld [vmem:[%s1 + $0x1dc] sm:$0xf]
    %v191 = vld [vmem:[%s1 + $0x1e0] sm:$0xff]
    %v192 = vld [vmem:[%s1 + $0x1e8] sm:$0xf]
    %v193 = vld [vmem:[%s1 + $0x1ec] sm:$0xff]
    %v194 = vld [vmem:[%s1 + $0x1f4] sm:$0xf]
    %v195 = vld [vmem:[%s1 + $0x1f8] sm:$0xff]
    %v196 = vld [vmem:[%s1 + $0x200] sm:$0xf]
    %v197 = vld [vmem:[%s1 + $0x204] sm:$0xff]
    %v198 = vld [vmem:[%s1 + $0x20c] sm:$0xf]
    %v199 = vld [vmem:[%s1 + $0x210] sm:$0xff]
    %v200 = vld [vmem:[%s1 + $0x218] sm:$0xf]
    %v201 = vld [vmem:[%s1 + $0x21c] sm:$0xff]
    %v202 = vld [vmem:[%s1 + $0x224] sm:$0xf]
    %v203 = vld [vmem:[%s1 + $0x228] sm:$0xff]
    %v204 = vld [vmem:[%s1 + $0x230] sm:$0xf]
    %v205 = vld [vmem:[%s1 + $0x234] sm:$0xff]
    %v206 = vld [vmem:[%s1 + $0x23c] sm:$0xf]
    %v207 = vld [vmem:[%s1 + $0x240] sm:$0xff]
    %v208 = vld [vmem:[%s1 + $0x248] sm:$0xf]
    %v209 = vld [vmem:[%s1 + $0x24c] sm:$0xff]
    %v210 = vld [vmem:[%s1 + $0x254] sm:$0xf]
    %v211 = vld [vmem:[%s1 + $0x258] sm:$0xff]
    %v212 = vld [vmem:[%s1 + $0x260] sm:$0xf]
    %v213 = vld [vmem:[%s1 + $0x264] sm:$0xff]
    %v214 = vld [vmem:[%s1 + $0x26c] sm:$0xf]
    %v215 = vld [vmem:[%s1 + $0x270] sm:$0xff]
    %v216 = vld [vmem:[%s1 + $0x278] sm:$0xf]
    %v217 = vld [vmem:[%s1 + $0x27c] sm:$0xff]
    %v218 = vld [vmem:[%s1 + $0x284] sm:$0xf]
    %v219 = vld [vmem:[%s1 + $0x288] sm:$0xff]
    %v220 = vld [vmem:[%s1 + $0x290] sm:$0xf]
    %v221 = vld [vmem:[%s1 + $0x294] sm:$0xff]
    %v222 = vld [vmem:[%s1 + $0x29c] sm:$0xf]
    %v223 = vld [vmem:[%s1 + $0x2a0] sm:$0xff]
    %v224 = vld [vmem:[%s1 + $0x2a8] sm:$0xf]
    %v225 = vld [vmem:[%s1 + $0x2ac] sm:$0xff]
    %v226 = vld [vmem:[%s1 + $0x2b4] sm:$0xf]
    %v227 = vld [vmem:[%s1 + $0x2b8] sm:$0xff]
    %v228 = vld [vmem:[%s1 + $0x2c0] sm:$0xf]
    %v229 = vld [vmem:[%s1 + $0x2c4] sm:$0xff]
    %v230 = vld [vmem:[%s1 + $0x2cc] sm:$0xf]
    %v231 = vld [vmem:[%s1 + $0x2d0] sm:$0x33]
    %v232 = vld [vmem:[%s1 + $0x2d8] sm:$0x3]
    %v233 = vunpack.c.l.bf16 %v111
    %v234 = vunpack.c.h.bf16 %v111
    %v235 = vunpack.c.l.bf16 %v112
    %v236 = vunpack.c.l.bf16 %v113
    %v237 = vunpack.c.h.bf16 %v113
    %v238 = vunpack.c.l.bf16 %v114
    %v239 = vunpack.c.l.bf16 %v115
    %v240 = vunpack.c.h.bf16 %v115
    %v241 = vunpack.c.l.bf16 %v116
    %v242 = vunpack.c.l.bf16 %v117
    %v243 = vunpack.c.h.bf16 %v117
    %v244 = vunpack.c.l.bf16 %v118
    %v245 = vunpack.c.l.bf16 %v119
    %v246 = vunpack.c.h.bf16 %v119
    %v247 = vunpack.c.l.bf16 %v120
    %v248 = vunpack.c.l.bf16 %v121
    %v249 = vunpack.c.h.bf16 %v121
    %v250 = vunpack.c.l.bf16 %v122
    %v251 = vunpack.c.l.bf16 %v123
    %v252 = vunpack.c.h.bf16 %v123
    %v253 = vunpack.c.l.bf16 %v124
    %v254 = vunpack.c.l.bf16 %v125
    %v255 = vunpack.c.h.bf16 %v125
    %v256 = vunpack.c.l.bf16 %v126
    %v257 = vunpack.c.l.bf16 %v127
    %v258 = vunpack.c.h.bf16 %v127
    %v259 = vunpack.c.l.bf16 %v128
    %v260 = vunpack.c.l.bf16 %v129
    %v261 = vunpack.c.h.bf16 %v129
    %v262 = vunpack.c.l.bf16 %v130
    %v263 = vunpack.c.l.bf16 %v131
    %v264 = vunpack.c.h.bf16 %v131
    %v265 = vunpack.c.l.bf16 %v132
    %v266 = vunpack.c.l.bf16 %v133
    %v267 = vunpack.c.h.bf16 %v133
    %v268 = vunpack.c.l.bf16 %v134
    %v269 = vunpack.c.l.bf16 %v135
    %v270 = vunpack.c.h.bf16 %v135
    %v271 = vunpack.c.l.bf16 %v136
    %v272 = vunpack.c.l.bf16 %v137
    %v273 = vunpack.c.h.bf16 %v137
    %v274 = vunpack.c.l.bf16 %v138
    %v275 = vunpack.c.l.bf16 %v139
    %v276 = vunpack.c.h.bf16 %v139
    %v277 = vunpack.c.l.bf16 %v140
    %v278 = vunpack.c.l.bf16 %v141
    %v279 = vunpack.c.h.bf16 %v141
    %v280 = vunpack.c.l.bf16 %v142
    %v281 = vunpack.c.l.bf16 %v143
    %v282 = vunpack.c.h.bf16 %v143
    %v283 = vunpack.c.l.bf16 %v144
    %v284 = vunpack.c.l.bf16 %v145
    %v285 = vunpack.c.h.bf16 %v145
    %v286 = vunpack.c.l.bf16 %v146
    %v287 = vunpack.c.l.bf16 %v147
    %v288 = vunpack.c.h.bf16 %v147
    %v289 = vunpack.c.l.bf16 %v148
    %v290 = vunpack.c.l.bf16 %v149
    %v291 = vunpack.c.h.bf16 %v149
    %v292 = vunpack.c.l.bf16 %v150
    %v293 = vunpack.c.l.bf16 %v151
    %v294 = vunpack.c.h.bf16 %v151
    %v295 = vunpack.c.l.bf16 %v152
    %v296 = vunpack.c.l.bf16 %v153
    %v297 = vunpack.c.h.bf16 %v153
    %v298 = vunpack.c.l.bf16 %v154
    %v299 = vunpack.c.l.bf16 %v155
    %v300 = vunpack.c.h.bf16 %v155
    %v301 = vunpack.c.l.bf16 %v156
    %v302 = vunpack.c.l.bf16 %v157
    %v303 = vunpack.c.h.bf16 %v157
    %v304 = vunpack.c.l.bf16 %v158
    %v305 = vunpack.c.l.bf16 %v159
    %v306 = vunpack.c.h.bf16 %v159
    %v307 = vunpack.c.l.bf16 %v160
    %v308 = vunpack.c.l.bf16 %v161
    %v309 = vunpack.c.h.bf16 %v161
    %v310 = vunpack.c.l.bf16 %v162
    %v311 = vunpack.c.l.bf16 %v163
    %v312 = vunpack.c.h.bf16 %v163
    %v313 = vunpack.c.l.bf16 %v164
    %v314 = vunpack.c.l.bf16 %v165
    %v315 = vunpack.c.h.bf16 %v165
    %v316 = vunpack.c.l.bf16 %v166
    %v317 = vunpack.c.l.bf16 %v167
    %v318 = vunpack.c.h.bf16 %v167
    %v319 = vunpack.c.l.bf16 %v168
    %v320 = vunpack.c.l.bf16 %v169
    %v321 = vunpack.c.h.bf16 %v169
    %v322 = vunpack.c.l.bf16 %v170
    %v323 = vunpack.c.l.bf16 %v171
    %v324 = vunpack.c.h.bf16 %v171
    %v325 = vunpack.c.l.bf16 %v172
    %v326 = vunpack.c.l.bf16 %v173
    %v327 = vunpack.c.h.bf16 %v173
    %v328 = vunpack.c.l.bf16 %v174
    %v329 = vunpack.c.l.bf16 %v175
    %v330 = vunpack.c.h.bf16 %v175
    %v331 = vunpack.c.l.bf16 %v176
    %v332 = vunpack.c.l.bf16 %v177
    %v333 = vunpack.c.h.bf16 %v177
    %v334 = vunpack.c.l.bf16 %v178
    %v335 = vunpack.c.l.bf16 %v179
    %v336 = vunpack.c.h.bf16 %v179
    %v337 = vunpack.c.l.bf16 %v180
    %v338 = vunpack.c.l.bf16 %v181
    %v339 = vunpack.c.h.bf16 %v181
    %v340 = vunpack.c.l.bf16 %v182
    %v341 = vunpack.c.l.bf16 %v183
    %v342 = vunpack.c.h.bf16 %v183
    %v343 = vunpack.c.l.bf16 %v184
    %v344 = vunpack.c.l.bf16 %v185
    %v345 = vunpack.c.h.bf16 %v185
    %v346 = vunpack.c.l.bf16 %v186
    %v347 = vunpack.c.l.bf16 %v187
    %v348 = vunpack.c.h.bf16 %v187
    %v349 = vunpack.c.l.bf16 %v188
    %v350 = vunpack.c.l.bf16 %v189
    %v351 = vunpack.c.h.bf16 %v189
    %v352 = vunpack.c.l.bf16 %v190
    %v353 = vunpack.c.l.bf16 %v191
    %v354 = vunpack.c.h.bf16 %v191
    %v355 = vunpack.c.l.bf16 %v192
    %v356 = vunpack.c.l.bf16 %v193
    %v357 = vunpack.c.h.bf16 %v193
    %v358 = vunpack.c.l.bf16 %v194
    %v359 = vunpack.c.l.bf16 %v195
    %v360 = vunpack.c.h.bf16 %v195
    %v361 = vunpack.c.l.bf16 %v196
    %v362 = vunpack.c.l.bf16 %v197
    %v363 = vunpack.c.h.bf16 %v197
    %v364 = vunpack.c.l.bf16 %v198
    %v365 = vunpack.c.l.bf16 %v199
    %v366 = vunpack.c.h.bf16 %v199
    %v367 = vunpack.c.l.bf16 %v200
    %v368 = vunpack.c.l.bf16 %v201
    %v369 = vunpack.c.h.bf16 %v201
    %v370 = vunpack.c.l.bf16 %v202
    %v371 = vunpack.c.l.bf16 %v203
    %v372 = vunpack.c.h.bf16 %v203
    %v373 = vunpack.c.l.bf16 %v204
    %v374 = vunpack.c.l.bf16 %v205
    %v375 = vunpack.c.h.bf16 %v205
    %v376 = vunpack.c.l.bf16 %v206
    %v377 = vunpack.c.l.bf16 %v207
    %v378 = vunpack.c.h.bf16 %v207
    %v379 = vunpack.c.l.bf16 %v208
    %v380 = vunpack.c.l.bf16 %v209
    %v381 = vunpack.c.h.bf16 %v209
    %v382 = vunpack.c.l.bf16 %v210
    %v383 = vunpack.c.l.bf16 %v211
    %v384 = vunpack.c.h.bf16 %v211
    %v385 = vunpack.c.l.bf16 %v212
    %v386 = vunpack.c.l.bf16 %v213
    %v387 = vunpack.c.h.bf16 %v213
    %v388 = vunpack.c.l.bf16 %v214
    %v389 = vunpack.c.l.bf16 %v215
    %v390 = vunpack.c.h.bf16 %v215
    %v391 = vunpack.c.l.bf16 %v216
    %v392 = vunpack.c.l.bf16 %v217
    %v393 = vunpack.c.h.bf16 %v217
    %v394 = vunpack.c.l.bf16 %v218
    %v395 = vunpack.c.l.bf16 %v219
    %v396 = vunpack.c.h.bf16 %v219
    %v397 = vunpack.c.l.bf16 %v220
    %v398 = vunpack.c.l.bf16 %v221
    %v399 = vunpack.c.h.bf16 %v221
    %v400 = vunpack.c.l.bf16 %v222
    %v401 = vunpack.c.l.bf16 %v223
    %v402 = vunpack.c.h.bf16 %v223
    %v403 = vunpack.c.l.bf16 %v224
    %v404 = vunpack.c.l.bf16 %v225
    %v405 = vunpack.c.h.bf16 %v225
    %v406 = vunpack.c.l.bf16 %v226
    %v407 = vunpack.c.l.bf16 %v227
    %v408 = vunpack.c.h.bf16 %v227
    %v409 = vunpack.c.l.bf16 %v228
    %v410 = vunpack.c.l.bf16 %v229
    %v411 = vunpack.c.h.bf16 %v229
    %v412 = vunpack.c.l.bf16 %v230
    %v413 = vunpack.c.l.bf16 %v231
    %v414 = vunpack.c.h.bf16 %v231
    %v415 = vunpack.c.l.bf16 %v232
    %v416 = vld [vmem:[%s2] sm:$0x77]
    %v417 = vld [vmem:[%s2 + $0x8] sm:$0x7]
    %v418 = vld [vmem:[%s3] sm:$0xff]
    %v419 = vld [vmem:[%s3 + $0x8] sm:$0xff]
    %v420 = vld [vmem:[%s3 + $0x10] sm:$0xff]
    %v421 = vld [vmem:[%s3 + $0x18] sm:$0xff]
    %v422 = vld [vmem:[%s3 + $0x20] sm:$0xff]
    %v423 = vld [vmem:[%s3 + $0x28] sm:$0xff]
    %v424 = vld [vmem:[%s3 + $0x30] sm:$0xff]
    %v425 = vld [vmem:[%s3 + $0x38] sm:$0xff]
    %v426 = vld [vmem:[%s3 + $0x40] sm:$0xff]
    %v427 = vld [vmem:[%s3 + $0x48] sm:$0xff]
    %v428 = vld [vmem:[%s3 + $0x50] sm:$0xff]
    %v429 = vld [vmem:[%s3 + $0x58] sm:$0xff]
    %v430 = vld [vmem:[%s3 + $0x60] sm:$0xff]
    %v431 = vld [vmem:[%s3 + $0x68] sm:$0xff]
    %v432 = vld [vmem:[%s3 + $0x70] sm:$0xff]
    %v433 = vld [vmem:[%s3 + $0x78] sm:$0xff]
    %v434 = vld [vmem:[%s3 + $0x80] sm:$0xff]
    %v435 = vld [vmem:[%s3 + $0x88] sm:$0xff]
    %v436 = vld [vmem:[%s3 + $0x90] sm:$0xff]
    %v437 = vld [vmem:[%s3 + $0x98] sm:$0xff]
    %v438 = vld [vmem:[%s3 + $0xa0] sm:$0xff]
    %v439 = vld [vmem:[%s3 + $0xa8] sm:$0xff]
    %v440 = vld [vmem:[%s3 + $0xb0] sm:$0xff]
    %v441 = vld [vmem:[%s3 + $0xb8] sm:$0xff]
    %v442 = vld [vmem:[%s3 + $0xc0] sm:$0xff]
    %v443 = vld [vmem:[%s3 + $0xc8] sm:$0xff]
    %v444 = vld [vmem:[%s3 + $0xd0] sm:$0xff]
    %v445 = vld [vmem:[%s3 + $0xd8] sm:$0xff]
    %v446 = vld [vmem:[%s3 + $0xe0] sm:$0xff]
    %v447 = vld [vmem:[%s3 + $0xe8] sm:$0xff]
    %v448 = vld [vmem:[%s3 + $0xf0] sm:$0xff]
    %v449 = vld [vmem:[%s3 + $0xf8] sm:$0xff]
    %v450 = vld [vmem:[%s3 + $0x100] sm:$0xff]
    %v451 = vld [vmem:[%s3 + $0x108] sm:$0xff]
    %v452 = vld [vmem:[%s3 + $0x110] sm:$0xff]
    %v453 = vld [vmem:[%s3 + $0x118] sm:$0xff]
    %v454 = vld [vmem:[%s4] sm:$0xff]
    %v455 = vld [vmem:[%s4 + $0x8] sm:$0xff]
    %v456 = vld [vmem:[%s4 + $0x10] sm:$0xff]
    %v457 = vld [vmem:[%s4 + $0x18] sm:$0xff]
    %v458 = vld [vmem:[%s4 + $0x20] sm:$0xff]
    %v459 = vld [vmem:[%s4 + $0x28] sm:$0xff]
    %v460 = vld [vmem:[%s4 + $0x30] sm:$0xff]
    %v461 = vld [vmem:[%s4 + $0x38] sm:$0xff]
    %v462 = vld [vmem:[%s4 + $0x40] sm:$0xff]
    %v463 = vld [vmem:[%s4 + $0x48] sm:$0xff]
    %v464 = vld [vmem:[%s4 + $0x50] sm:$0xff]
    %v465 = vld [vmem:[%s4 + $0x58] sm:$0xff]
    %v468 = vperm.slane %v416, 0
    %v469 = vperm.slane %v416, 4
    %v470 = vperm.slane %v417, 0
    %v474 = vperm.slane %v468, 0
    %v475 = vperm.slane %v469, 0
    %v476 = vperm.slane %v470, 0
    %vm477 = vcmask 809984
    %v479 = vsel %vm477, %v78, 0
    %v482 = vsel %vm477, %v82, 0
    %v485 = vsel %vm477, %v86, 0
    %v488 = vsel %vm477, %v90, 0
    %v491 = vsel %vm477, %v94, 0
    %v494 = vsel %vm477, %v98, 0
    %v497 = vsel %vm477, %v102, 0
    %v500 = vsel %vm477, %v106, 0
    %v503 = vsel %vm477, %v110, 0
    %vm505 = vcmask 1042432
    %v507 = vsel %vm505, %v413, 0
    %v510 = vsel %vm505, %v414, 0
    %v513 = vsel %vm505, %v415, 0
    %515 = vmatpush.msra.mxu0 %v278
    %516 = vmatpush.msra.mxu0 %v275
    %517 = vmatpush.msra.mxu0 %v272
    %518 = vmatpush.msra.mxu0 %v269
    %519 = vmatpush.msra.mxu0 %v266
    %520 = vmatpush.msra.mxu0 %v263
    %521 = vmatpush.msra.mxu0 %v260
    %522 = vmatpush.msra.mxu0 %v257
    %523 = vmatpush.msra.mxu0 %v254
    %524 = vmatpush.msra.mxu0 %v251
    %525 = vmatpush.msra.mxu0 %v248
    %526 = vmatpush.msra.mxu0 %v245
    %527 = vmatpush.msra.mxu0 %v242
    %528 = vmatpush.msra.mxu0 %v239
    %529 = vmatpush.msra.mxu0 %v236
    %530 = vmatpush.msra.mxu0 %v233
    %531 = vmatmul.f32.gmra.mxu0 %v75
    %v532 = vpop.f32.mrf.mxu0
    %v533 = vadd.f32 %v474, %v532
    %534 = vmatmul.f32.gmra.mxu0 %v79
    %v535 = vpop.f32.mrf.mxu0
    %v536 = vadd.f32 %v474, %v535
    %537 = vmatmul.f32.gmra.mxu0 %v83
    %v538 = vpop.f32.mrf.mxu0
    %v539 = vadd.f32 %v474, %v538
    %540 = vmatmul.f32.gmra.mxu0 %v87
    %v541 = vpop.f32.mrf.mxu0
    %v542 = vadd.f32 %v474, %v541
    %543 = vmatmul.f32.gmra.mxu0 %v91
    %v544 = vpop.f32.mrf.mxu0
    %v545 = vadd.f32 %v474, %v544
    %546 = vmatmul.f32.gmra.mxu0 %v95
    %v547 = vpop.f32.mrf.mxu0
    %v548 = vadd.f32 %v474, %v547
    %549 = vmatmul.f32.gmra.mxu0 %v99
    %v550 = vpop.f32.mrf.mxu0
    %v551 = vadd.f32 %v474, %v550
    %552 = vmatmul.f32.gmra.mxu0 %v103
    %v553 = vpop.f32.mrf.mxu0
    %v554 = vadd.f32 %v474, %v553
    %555 = vmatmul.f32.gmra.mxu0 %v107
    %v556 = vpop.f32.mrf.mxu0
    %v557 = vadd.f32 %v474, %v556
    %558 = vdwg.mxu0
    %559 = vmatpush.msra.mxu0 %v326
    %560 = vmatpush.msra.mxu0 %v323
    %561 = vmatpush.msra.mxu0 %v320
    %562 = vmatpush.msra.mxu0 %v317
    %563 = vmatpush.msra.mxu0 %v314
    %564 = vmatpush.msra.mxu0 %v311
    %565 = vmatpush.msra.mxu0 %v308
    %566 = vmatpush.msra.mxu0 %v305
    %567 = vmatpush.msra.mxu0 %v302
    %568 = vmatpush.msra.mxu0 %v299
    %569 = vmatpush.msra.mxu0 %v296
    %570 = vmatpush.msra.mxu0 %v293
    %571 = vmatpush.msra.mxu0 %v290
    %572 = vmatpush.msra.mxu0 %v287
    %573 = vmatpush.msra.mxu0 %v284
    %574 = vmatpush.msra.mxu0 %v281
    %575 = vmatmul.f32.gmra.mxu0 %v76
    %v576 = vpop.f32.mrf.mxu0
    %v577 = vadd.f32 %v533, %v576
    %578 = vmatmul.f32.gmra.mxu0 %v80
    %v579 = vpop.f32.mrf.mxu0
    %v580 = vadd.f32 %v536, %v579
    %581 = vmatmul.f32.gmra.mxu0 %v84
    %v582 = vpop.f32.mrf.mxu0
    %v583 = vadd.f32 %v539, %v582
    %584 = vmatmul.f32.gmra.mxu0 %v88
    %v585 = vpop.f32.mrf.mxu0
    %v586 = vadd.f32 %v542, %v585
    %587 = vmatmul.f32.gmra.mxu0 %v92
    %v588 = vpop.f32.mrf.mxu0
    %v589 = vadd.f32 %v545, %v588
    %590 = vmatmul.f32.gmra.mxu0 %v96
    %v591 = vpop.f32.mrf.mxu0
    %v592 = vadd.f32 %v548, %v591
    %593 = vmatmul.f32.gmra.mxu0 %v100
    %v594 = vpop.f32.mrf.mxu0
    %v595 = vadd.f32 %v551, %v594
    %596 = vmatmul.f32.gmra.mxu0 %v104
    %v597 = vpop.f32.mrf.mxu0
    %v598 = vadd.f32 %v554, %v597
    %599 = vmatmul.f32.gmra.mxu0 %v108
    %v600 = vpop.f32.mrf.mxu0
    %v601 = vadd.f32 %v557, %v600
    %602 = vdwg.mxu0
    %603 = vmatpush.msra.mxu0 %v374
    %604 = vmatpush.msra.mxu0 %v371
    %605 = vmatpush.msra.mxu0 %v368
    %606 = vmatpush.msra.mxu0 %v365
    %607 = vmatpush.msra.mxu0 %v362
    %608 = vmatpush.msra.mxu0 %v359
    %609 = vmatpush.msra.mxu0 %v356
    %610 = vmatpush.msra.mxu0 %v353
    %611 = vmatpush.msra.mxu0 %v350
    %612 = vmatpush.msra.mxu0 %v347
    %613 = vmatpush.msra.mxu0 %v344
    %614 = vmatpush.msra.mxu0 %v341
    %615 = vmatpush.msra.mxu0 %v338
    %616 = vmatpush.msra.mxu0 %v335
    %617 = vmatpush.msra.mxu0 %v332
    %618 = vmatpush.msra.mxu0 %v329
    %619 = vmatmul.f32.gmra.mxu0 %v77
    %v620 = vpop.f32.mrf.mxu0
    %v621 = vadd.f32 %v577, %v620
    %622 = vmatmul.f32.gmra.mxu0 %v81
    %v623 = vpop.f32.mrf.mxu0
    %v624 = vadd.f32 %v580, %v623
    %625 = vmatmul.f32.gmra.mxu0 %v85
    %v626 = vpop.f32.mrf.mxu0
    %v627 = vadd.f32 %v583, %v626
    %628 = vmatmul.f32.gmra.mxu0 %v89
    %v629 = vpop.f32.mrf.mxu0
    %v630 = vadd.f32 %v586, %v629
    %631 = vmatmul.f32.gmra.mxu0 %v93
    %v632 = vpop.f32.mrf.mxu0
    %v633 = vadd.f32 %v589, %v632
    %634 = vmatmul.f32.gmra.mxu0 %v97
    %v635 = vpop.f32.mrf.mxu0
    %v636 = vadd.f32 %v592, %v635
    %637 = vmatmul.f32.gmra.mxu0 %v101
    %v638 = vpop.f32.mrf.mxu0
    %v639 = vadd.f32 %v595, %v638
    %640 = vmatmul.f32.gmra.mxu0 %v105
    %v641 = vpop.f32.mrf.mxu0
    %v642 = vadd.f32 %v598, %v641
    %643 = vmatmul.f32.gmra.mxu0 %v109
    %v644 = vpop.f32.mrf.mxu0
    %v645 = vadd.f32 %v601, %v644
    %646 = vdwg.mxu0
    %647 = vmatpush.msra.mxu0 0.0
    %648 = vmatpush.msra.mxu0 0.0
    %649 = vmatpush.msra.mxu0 0.0
    %650 = vmatpush.msra.mxu0 %v507
    %651 = vmatpush.msra.mxu0 %v410
    %652 = vmatpush.msra.mxu0 %v407
    %653 = vmatpush.msra.mxu0 %v404
    %654 = vmatpush.msra.mxu0 %v401
    %655 = vmatpush.msra.mxu0 %v398
    %656 = vmatpush.msra.mxu0 %v395
    %657 = vmatpush.msra.mxu0 %v392
    %658 = vmatpush.msra.mxu0 %v389
    %659 = vmatpush.msra.mxu0 %v386
    %660 = vmatpush.msra.mxu0 %v383
    %661 = vmatpush.msra.mxu0 %v380
    %662 = vmatpush.msra.mxu0 %v377
    %663 = vmatmul.f32.gmra.mxu0 %v479
    %v664 = vpop.f32.mrf.mxu0
    %v665 = vadd.f32 %v621, %v664
    %666 = vmatmul.f32.gmra.mxu0 %v482
    %v667 = vpop.f32.mrf.mxu0
    %v668 = vadd.f32 %v624, %v667
    %669 = vmatmul.f32.gmra.mxu0 %v485
    %v670 = vpop.f32.mrf.mxu0
    %v671 = vadd.f32 %v627, %v670
    %672 = vmatmul.f32.gmra.mxu0 %v488
    %v673 = vpop.f32.mrf.mxu0
    %v674 = vadd.f32 %v630, %v673
    %675 = vmatmul.f32.gmra.mxu0 %v491
    %v676 = vpop.f32.mrf.mxu0
    %v677 = vadd.f32 %v633, %v676
    %678 = vmatmul.f32.gmra.mxu0 %v494
    %v679 = vpop.f32.mrf.mxu0
    %v680 = vadd.f32 %v636, %v679
    %681 = vmatmul.f32.gmra.mxu0 %v497
    %v682 = vpop.f32.mrf.mxu0
    %v683 = vadd.f32 %v639, %v682
    %684 = vmatmul.f32.gmra.mxu0 %v500
    %v685 = vpop.f32.mrf.mxu0
    %v686 = vadd.f32 %v642, %v685
    %687 = vmatmul.f32.gmra.mxu0 %v503
    %v688 = vpop.f32.mrf.mxu0
    %v689 = vadd.f32 %v645, %v688
    %690 = vdwg.mxu0
    %691 = vmatpush.msra.mxu0 %v279
    %692 = vmatpush.msra.mxu0 %v276
    %693 = vmatpush.msra.mxu0 %v273
    %694 = vmatpush.msra.mxu0 %v270
    %695 = vmatpush.msra.mxu0 %v267
    %696 = vmatpush.msra.mxu0 %v264
    %697 = vmatpush.msra.mxu0 %v261
    %698 = vmatpush.msra.mxu0 %v258
    %699 = vmatpush.msra.mxu0 %v255
    %700 = vmatpush.msra.mxu0 %v252
    %701 = vmatpush.msra.mxu0 %v249
    %702 = vmatpush.msra.mxu0 %v246
    %703 = vmatpush.msra.mxu0 %v243
    %704 = vmatpush.msra.mxu0 %v240
    %705 = vmatpush.msra.mxu0 %v237
    %706 = vmatpush.msra.mxu0 %v234
    %707 = vmatmul.f32.gmra.mxu0 %v75
    %v708 = vpop.f32.mrf.mxu0
    %v709 = vadd.f32 %v475, %v708
    %710 = vmatmul.f32.gmra.mxu0 %v79
    %v711 = vpop.f32.mrf.mxu0
    %v712 = vadd.f32 %v475, %v711
    %713 = vmatmul.f32.gmra.mxu0 %v83
    %v714 = vpop.f32.mrf.mxu0
    %v715 = vadd.f32 %v475, %v714
    %716 = vmatmul.f32.gmra.mxu0 %v87
    %v717 = vpop.f32.mrf.mxu0
    %v718 = vadd.f32 %v475, %v717
    %719 = vmatmul.f32.gmra.mxu0 %v91
    %v720 = vpop.f32.mrf.mxu0
    %v721 = vadd.f32 %v475, %v720
    %722 = vmatmul.f32.gmra.mxu0 %v95
    %v723 = vpop.f32.mrf.mxu0
    %v724 = vadd.f32 %v475, %v723
    %725 = vmatmul.f32.gmra.mxu0 %v99
    %v726 = vpop.f32.mrf.mxu0
    %v727 = vadd.f32 %v475, %v726
    %728 = vmatmul.f32.gmra.mxu0 %v103
    %v729 = vpop.f32.mrf.mxu0
    %v730 = vadd.f32 %v475, %v729
    %731 = vmatmul.f32.gmra.mxu0 %v107
    %v732 = vpop.f32.mrf.mxu0
    %v733 = vadd.f32 %v475, %v732
    %734 = vdwg.mxu0
    %735 = vmatpush.msra.mxu0 %v327
    %736 = vmatpush.msra.mxu0 %v324
    %737 = vmatpush.msra.mxu0 %v321
    %738 = vmatpush.msra.mxu0 %v318
    %739 = vmatpush.msra.mxu0 %v315
    %740 = vmatpush.msra.mxu0 %v312
    %741 = vmatpush.msra.mxu0 %v309
    %742 = vmatpush.msra.mxu0 %v306
    %743 = vmatpush.msra.mxu0 %v303
    %744 = vmatpush.msra.mxu0 %v300
    %745 = vmatpush.msra.mxu0 %v297
    %746 = vmatpush.msra.mxu0 %v294
    %747 = vmatpush.msra.mxu0 %v291
    %748 = vmatpush.msra.mxu0 %v288
    %749 = vmatpush.msra.mxu0 %v285
    %750 = vmatpush.msra.mxu0 %v282
    %751 = vmatmul.f32.gmra.mxu0 %v76
    %v752 = vpop.f32.mrf.mxu0
    %v753 = vadd.f32 %v709, %v752
    %754 = vmatmul.f32.gmra.mxu0 %v80
    %v755 = vpop.f32.mrf.mxu0
    %v756 = vadd.f32 %v712, %v755
    %757 = vmatmul.f32.gmra.mxu0 %v84
    %v758 = vpop.f32.mrf.mxu0
    %v759 = vadd.f32 %v715, %v758
    %760 = vmatmul.f32.gmra.mxu0 %v88
    %v761 = vpop.f32.mrf.mxu0
    %v762 = vadd.f32 %v718, %v761
    %763 = vmatmul.f32.gmra.mxu0 %v92
    %v764 = vpop.f32.mrf.mxu0
    %v765 = vadd.f32 %v721, %v764
    %766 = vmatmul.f32.gmra.mxu0 %v96
    %v767 = vpop.f32.mrf.mxu0
    %v768 = vadd.f32 %v724, %v767
    %769 = vmatmul.f32.gmra.mxu0 %v100
    %v770 = vpop.f32.mrf.mxu0
    %v771 = vadd.f32 %v727, %v770
    %772 = vmatmul.f32.gmra.mxu0 %v104
    %v773 = vpop.f32.mrf.mxu0
    %v774 = vadd.f32 %v730, %v773
    %775 = vmatmul.f32.gmra.mxu0 %v108
    %v776 = vpop.f32.mrf.mxu0
    %v777 = vadd.f32 %v733, %v776
    %778 = vdwg.mxu0
    %779 = vmatpush.msra.mxu0 %v375
    %780 = vmatpush.msra.mxu0 %v372
    %781 = vmatpush.msra.mxu0 %v369
    %782 = vmatpush.msra.mxu0 %v366
    %783 = vmatpush.msra.mxu0 %v363
    %784 = vmatpush.msra.mxu0 %v360
    %785 = vmatpush.msra.mxu0 %v357
    %786 = vmatpush.msra.mxu0 %v354
    %787 = vmatpush.msra.mxu0 %v351
    %788 = vmatpush.msra.mxu0 %v348
    %789 = vmatpush.msra.mxu0 %v345
    %790 = vmatpush.msra.mxu0 %v342
    %791 = vmatpush.msra.mxu0 %v339
    %792 = vmatpush.msra.mxu0 %v336
    %793 = vmatpush.msra.mxu0 %v333
    %794 = vmatpush.msra.mxu0 %v330
    %795 = vmatmul.f32.gmra.mxu0 %v77
    %v796 = vpop.f32.mrf.mxu0
    %v797 = vadd.f32 %v753, %v796
    %798 = vmatmul.f32.gmra.mxu0 %v81
    %v799 = vpop.f32.mrf.mxu0
    %v800 = vadd.f32 %v756, %v799
    %801 = vmatmul.f32.gmra.mxu0 %v85
    %v802 = vpop.f32.mrf.mxu0
    %v803 = vadd.f32 %v759, %v802
    %804 = vmatmul.f32.gmra.mxu0 %v89
    %v805 = vpop.f32.mrf.mxu0
    %v806 = vadd.f32 %v762, %v805
    %807 = vmatmul.f32.gmra.mxu0 %v93
    %v808 = vpop.f32.mrf.mxu0
    %v809 = vadd.f32 %v765, %v808
    %810 = vmatmul.f32.gmra.mxu0 %v97
    %v811 = vpop.f32.mrf.mxu0
    %v812 = vadd.f32 %v768, %v811
    %813 = vmatmul.f32.gmra.mxu0 %v101
    %v814 = vpop.f32.mrf.mxu0
    %v815 = vadd.f32 %v771, %v814
    %816 = vmatmul.f32.gmra.mxu0 %v105
    %v817 = vpop.f32.mrf.mxu0
    %v818 = vadd.f32 %v774, %v817
    %819 = vmatmul.f32.gmra.mxu0 %v109
    %v820 = vpop.f32.mrf.mxu0
    %v821 = vadd.f32 %v777, %v820
    %822 = vdwg.mxu0
    %823 = vmatpush.msra.mxu0 0.0
    %824 = vmatpush.msra.mxu0 0.0
    %825 = vmatpush.msra.mxu0 0.0
    %826 = vmatpush.msra.mxu0 %v510
    %827 = vmatpush.msra.mxu0 %v411
    %828 = vmatpush.msra.mxu0 %v408
    %829 = vmatpush.msra.mxu0 %v405
    %830 = vmatpush.msra.mxu0 %v402
    %831 = vmatpush.msra.mxu0 %v399
    %832 = vmatpush.msra.mxu0 %v396
    %833 = vmatpush.msra.mxu0 %v393
    %834 = vmatpush.msra.mxu0 %v390
    %835 = vmatpush.msra.mxu0 %v387
    %836 = vmatpush.msra.mxu0 %v384
    %837 = vmatpush.msra.mxu0 %v381
    %838 = vmatpush.msra.mxu0 %v378
    %839 = vmatmul.f32.gmra.mxu0 %v479
    %v840 = vpop.f32.mrf.mxu0
    %v841 = vadd.f32 %v797, %v840
    %842 = vmatmul.f32.gmra.mxu0 %v482
    %v843 = vpop.f32.mrf.mxu0
    %v844 = vadd.f32 %v800, %v843
    %845 = vmatmul.f32.gmra.mxu0 %v485
    %v846 = vpop.f32.mrf.mxu0
    %v847 = vadd.f32 %v803, %v846
    %848 = vmatmul.f32.gmra.mxu0 %v488
    %v849 = vpop.f32.mrf.mxu0
    %v850 = vadd.f32 %v806, %v849
    %851 = vmatmul.f32.gmra.mxu0 %v491
    %v852 = vpop.f32.mrf.mxu0
    %v853 = vadd.f32 %v809, %v852
    %854 = vmatmul.f32.gmra.mxu0 %v494
    %v855 = vpop.f32.mrf.mxu0
    %v856 = vadd.f32 %v812, %v855
    %857 = vmatmul.f32.gmra.mxu0 %v497
    %v858 = vpop.f32.mrf.mxu0
    %v859 = vadd.f32 %v815, %v858
    %860 = vmatmul.f32.gmra.mxu0 %v500
    %v861 = vpop.f32.mrf.mxu0
    %v862 = vadd.f32 %v818, %v861
    %863 = vmatmul.f32.gmra.mxu0 %v503
    %v864 = vpop.f32.mrf.mxu0
    %v865 = vadd.f32 %v821, %v864
    %866 = vdwg.mxu0
    %867 = vmatpush.msra.mxu0 %v280
    %868 = vmatpush.msra.mxu0 %v277
    %869 = vmatpush.msra.mxu0 %v274
    %870 = vmatpush.msra.mxu0 %v271
    %871 = vmatpush.msra.mxu0 %v268
    %872 = vmatpush.msra.mxu0 %v265
    %873 = vmatpush.msra.mxu0 %v262
    %874 = vmatpush.msra.mxu0 %v259
    %875 = vmatpush.msra.mxu0 %v256
    %876 = vmatpush.msra.mxu0 %v253
    %877 = vmatpush.msra.mxu0 %v250
    %878 = vmatpush.msra.mxu0 %v247
    %879 = vmatpush.msra.mxu0 %v244
    %880 = vmatpush.msra.mxu0 %v241
    %881 = vmatpush.msra.mxu0 %v238
    %882 = vmatpush.msra.mxu0 %v235
    %883 = vmatmul.f32.gmra.mxu0 %v75
    %v884 = vpop.f32.mrf.mxu0
    %v885 = vadd.f32 %v476, %v884
    %886 = vmatmul.f32.gmra.mxu0 %v79
    %v887 = vpop.f32.mrf.mxu0
    %v888 = vadd.f32 %v476, %v887
    %889 = vmatmul.f32.gmra.mxu0 %v83
    %v890 = vpop.f32.mrf.mxu0
    %v891 = vadd.f32 %v476, %v890
    %892 = vmatmul.f32.gmra.mxu0 %v87
    %v893 = vpop.f32.mrf.mxu0
    %v894 = vadd.f32 %v476, %v893
    %895 = vmatmul.f32.gmra.mxu0 %v91
    %v896 = vpop.f32.mrf.mxu0
    %v897 = vadd.f32 %v476, %v896
    %898 = vmatmul.f32.gmra.mxu0 %v95
    %v899 = vpop.f32.mrf.mxu0
    %v900 = vadd.f32 %v476, %v899
    %901 = vmatmul.f32.gmra.mxu0 %v99
    %v902 = vpop.f32.mrf.mxu0
    %v903 = vadd.f32 %v476, %v902
    %904 = vmatmul.f32.gmra.mxu0 %v103
    %v905 = vpop.f32.mrf.mxu0
    %v906 = vadd.f32 %v476, %v905
    %907 = vmatmul.f32.gmra.mxu0 %v107
    %v908 = vpop.f32.mrf.mxu0
    %v909 = vadd.f32 %v476, %v908
    %910 = vdwg.mxu0
    %911 = vmatpush.msra.mxu0 %v328
    %912 = vmatpush.msra.mxu0 %v325
    %913 = vmatpush.msra.mxu0 %v322
    %914 = vmatpush.msra.mxu0 %v319
    %915 = vmatpush.msra.mxu0 %v316
    %916 = vmatpush.msra.mxu0 %v313
    %917 = vmatpush.msra.mxu0 %v310
    %918 = vmatpush.msra.mxu0 %v307
    %919 = vmatpush.msra.mxu0 %v304
    %920 = vmatpush.msra.mxu0 %v301
    %921 = vmatpush.msra.mxu0 %v298
    %922 = vmatpush.msra.mxu0 %v295
    %923 = vmatpush.msra.mxu0 %v292
    %924 = vmatpush.msra.mxu0 %v289
    %925 = vmatpush.msra.mxu0 %v286
    %926 = vmatpush.msra.mxu0 %v283
    %927 = vmatmul.f32.gmra.mxu0 %v76
    %v928 = vpop.f32.mrf.mxu0
    %v929 = vadd.f32 %v885, %v928
    %930 = vmatmul.f32.gmra.mxu0 %v80
    %v931 = vpop.f32.mrf.mxu0
    %v932 = vadd.f32 %v888, %v931
    %933 = vmatmul.f32.gmra.mxu0 %v84
    %v934 = vpop.f32.mrf.mxu0
    %v935 = vadd.f32 %v891, %v934
    %936 = vmatmul.f32.gmra.mxu0 %v88
    %v937 = vpop.f32.mrf.mxu0
    %v938 = vadd.f32 %v894, %v937
    %939 = vmatmul.f32.gmra.mxu0 %v92
    %v940 = vpop.f32.mrf.mxu0
    %v941 = vadd.f32 %v897, %v940
    %942 = vmatmul.f32.gmra.mxu0 %v96
    %v943 = vpop.f32.mrf.mxu0
    %v944 = vadd.f32 %v900, %v943
    %945 = vmatmul.f32.gmra.mxu0 %v100
    %v946 = vpop.f32.mrf.mxu0
    %v947 = vadd.f32 %v903, %v946
    %948 = vmatmul.f32.gmra.mxu0 %v104
    %v949 = vpop.f32.mrf.mxu0
    %v950 = vadd.f32 %v906, %v949
    %951 = vmatmul.f32.gmra.mxu0 %v108
    %v952 = vpop.f32.mrf.mxu0
    %v953 = vadd.f32 %v909, %v952
    %954 = vdwg.mxu0
    %955 = vmatpush.msra.mxu0 %v376
    %956 = vmatpush.msra.mxu0 %v373
    %957 = vmatpush.msra.mxu0 %v370
    %958 = vmatpush.msra.mxu0 %v367
    %959 = vmatpush.msra.mxu0 %v364
    %960 = vmatpush.msra.mxu0 %v361
    %961 = vmatpush.msra.mxu0 %v358
    %962 = vmatpush.msra.mxu0 %v355
    %963 = vmatpush.msra.mxu0 %v352
    %964 = vmatpush.msra.mxu0 %v349
    %965 = vmatpush.msra.mxu0 %v346
    %966 = vmatpush.msra.mxu0 %v343
    %967 = vmatpush.msra.mxu0 %v340
    %968 = vmatpush.msra.mxu0 %v337
    %969 = vmatpush.msra.mxu0 %v334
    %970 = vmatpush.msra.mxu0 %v331
    %971 = vmatmul.f32.gmra.mxu0 %v77
    %v972 = vpop.f32.mrf.mxu0
    %v973 = vadd.f32 %v929, %v972
    %974 = vmatmul.f32.gmra.mxu0 %v81
    %v975 = vpop.f32.mrf.mxu0
    %v976 = vadd.f32 %v932, %v975
    %977 = vmatmul.f32.gmra.mxu0 %v85
    %v978 = vpop.f32.mrf.mxu0
    %v979 = vadd.f32 %v935, %v978
    %980 = vmatmul.f32.gmra.mxu0 %v89
    %v981 = vpop.f32.mrf.mxu0
    %v982 = vadd.f32 %v938, %v981
    %983 = vmatmul.f32.gmra.mxu0 %v93
    %v984 = vpop.f32.mrf.mxu0
    %v985 = vadd.f32 %v941, %v984
    %986 = vmatmul.f32.gmra.mxu0 %v97
    %v987 = vpop.f32.mrf.mxu0
    %v988 = vadd.f32 %v944, %v987
    %989 = vmatmul.f32.gmra.mxu0 %v101
    %v990 = vpop.f32.mrf.mxu0
    %v991 = vadd.f32 %v947, %v990
    %992 = vmatmul.f32.gmra.mxu0 %v105
    %v993 = vpop.f32.mrf.mxu0
    %v994 = vadd.f32 %v950, %v993
    %995 = vmatmul.f32.gmra.mxu0 %v109
    %v996 = vpop.f32.mrf.mxu0
    %v997 = vadd.f32 %v953, %v996
    %998 = vdwg.mxu0
    %999 = vmatpush.msra.mxu0 0.0
    %1000 = vmatpush.msra.mxu0 0.0
    %1001 = vmatpush.msra.mxu0 0.0
    %1002 = vmatpush.msra.mxu0 %v513
    %1003 = vmatpush.msra.mxu0 %v412
    %1004 = vmatpush.msra.mxu0 %v409
    %1005 = vmatpush.msra.mxu0 %v406
    %1006 = vmatpush.msra.mxu0 %v403
    %1007 = vmatpush.msra.mxu0 %v400
    %1008 = vmatpush.msra.mxu0 %v397
    %1009 = vmatpush.msra.mxu0 %v394
    %1010 = vmatpush.msra.mxu0 %v391
    %1011 = vmatpush.msra.mxu0 %v388
    %1012 = vmatpush.msra.mxu0 %v385
    %1013 = vmatpush.msra.mxu0 %v382
    %1014 = vmatpush.msra.mxu0 %v379
    %1015 = vmatmul.f32.gmra.mxu0 %v479
    %v1016 = vpop.f32.mrf.mxu0
    %v1017 = vadd.f32 %v973, %v1016
    %1018 = vmatmul.f32.gmra.mxu0 %v482
    %v1019 = vpop.f32.mrf.mxu0
    %v1020 = vadd.f32 %v976, %v1019
    %1021 = vmatmul.f32.gmra.mxu0 %v485
    %v1022 = vpop.f32.mrf.mxu0
    %v1023 = vadd.f32 %v979, %v1022
    %1024 = vmatmul.f32.gmra.mxu0 %v488
    %v1025 = vpop.f32.mrf.mxu0
    %v1026 = vadd.f32 %v982, %v1025
    %1027 = vmatmul.f32.gmra.mxu0 %v491
    %v1028 = vpop.f32.mrf.mxu0
    %v1029 = vadd.f32 %v985, %v1028
    %1030 = vmatmul.f32.gmra.mxu0 %v494
    %v1031 = vpop.f32.mrf.mxu0
    %v1032 = vadd.f32 %v988, %v1031
    %1033 = vmatmul.f32.gmra.mxu0 %v497
    %v1034 = vpop.f32.mrf.mxu0
    %v1035 = vadd.f32 %v991, %v1034
    %1036 = vmatmul.f32.gmra.mxu0 %v500
    %v1037 = vpop.f32.mrf.mxu0
    %v1038 = vadd.f32 %v994, %v1037
    %1039 = vmatmul.f32.gmra.mxu0 %v503
    %v1040 = vpop.f32.mrf.mxu0
    %v1041 = vadd.f32 %v997, %v1040
    %1042 = vdwg.mxu0
    %v1043 = vmax.f32 %v665, 0.0
    %v1044 = vmax.f32 %v841, 0.0
    %v1045 = vmax.f32 %v1017, 0.0
    %v1046 = vmax.f32 %v668, 0.0
    %v1047 = vmax.f32 %v844, 0.0
    %v1048 = vmax.f32 %v1020, 0.0
    %v1049 = vmax.f32 %v671, 0.0
    %v1050 = vmax.f32 %v847, 0.0
    %v1051 = vmax.f32 %v1023, 0.0
    %v1052 = vmax.f32 %v674, 0.0
    %v1053 = vmax.f32 %v850, 0.0
    %v1054 = vmax.f32 %v1026, 0.0
    %v1055 = vmax.f32 %v677, 0.0
    %v1056 = vmax.f32 %v853, 0.0
    %v1057 = vmax.f32 %v1029, 0.0
    %v1058 = vmax.f32 %v680, 0.0
    %v1059 = vmax.f32 %v856, 0.0
    %v1060 = vmax.f32 %v1032, 0.0
    %v1061 = vmax.f32 %v683, 0.0
    %v1062 = vmax.f32 %v859, 0.0
    %v1063 = vmax.f32 %v1035, 0.0
    %v1064 = vmax.f32 %v686, 0.0
    %v1065 = vmax.f32 %v862, 0.0
    %v1066 = vmax.f32 %v1038, 0.0
    %v1067 = vmax.f32 %v689, 0.0
    %v1068 = vmax.f32 %v865, 0.0
    %v1069 = vmax.f32 %v1041, 0.0
    %v1070 = vadd.f32 %v1043, %v1046
    %v1071 = vadd.f32 %v1070, %v1049
    %v1072 = vadd.f32 %v1071, %v1052
    %v1073 = vadd.f32 %v1072, %v1055
    %v1074 = vadd.f32 %v1073, %v1058
    %v1075 = vadd.f32 %v1074, %v1061
    %v1076 = vadd.f32 %v1075, %v1064
    %v1077 = vadd.f32 %v1076, %v1067
    %v1078 = vrot.slane %v1077, 4
    %v1079 = vadd.f32 %v1077, %v1078
    %v1080 = vrot.slane %v1079, 2
    %v1081 = vadd.f32 %v1079, %v1080
    %v1082 = vrot.slane %v1081, 1
    %v1083 = vadd.f32 %v1081, %v1082
    %v1084 = vadd.f32 %v1044, %v1047
    %v1085 = vadd.f32 %v1084, %v1050
    %v1086 = vadd.f32 %v1085, %v1053
    %v1087 = vadd.f32 %v1086, %v1056
    %v1088 = vadd.f32 %v1087, %v1059
    %v1089 = vadd.f32 %v1088, %v1062
    %v1090 = vadd.f32 %v1089, %v1065
    %v1091 = vadd.f32 %v1090, %v1068
    %v1092 = vrot.slane %v1091, 4
    %v1093 = vadd.f32 %v1091, %v1092
    %v1094 = vrot.slane %v1093, 2
    %v1095 = vadd.f32 %v1093, %v1094
    %v1096 = vrot.slane %v1095, 1
    %v1097 = vadd.f32 %v1095, %v1096
    %vm1098 = vcmask 261120
    %v1099 = vsel %vm1098, %v1045, 0.0
    %v1100 = vsel %vm1098, %v1048, 0.0
    %v1101 = vadd.f32 %v1099, %v1100
    %v1102 = vsel %vm1098, %v1051, 0.0
    %v1103 = vadd.f32 %v1101, %v1102
    %v1104 = vsel %vm1098, %v1054, 0.0
    %v1105 = vadd.f32 %v1103, %v1104
    %v1106 = vsel %vm1098, %v1057, 0.0
    %v1107 = vadd.f32 %v1105, %v1106
    %v1108 = vsel %vm1098, %v1060, 0.0
    %v1109 = vadd.f32 %v1107, %v1108
    %v1110 = vsel %vm1098, %v1063, 0.0
    %v1111 = vadd.f32 %v1109, %v1110
    %v1112 = vsel %vm1098, %v1066, 0.0
    %v1113 = vadd.f32 %v1111, %v1112
    %v1114 = vsel %vm1098, %v1069, 0.0
    %v1115 = vadd.f32 %v1113, %v1114
    %v1116 = vrot.slane %v1115, 4
    %v1117 = vadd.f32 %v1115, %v1116
    %v1118 = vrot.slane %v1117, 2
    %v1119 = vadd.f32 %v1117, %v1118
    %v1120 = vrot.slane %v1119, 1
    %v1121 = vadd.f32 %v1119, %v1120
    %v1123 = vsel %vm1098, %v1121, 0
    %1125 = vmatpush.msra.mxu0 %v433
    %1126 = vmatpush.msra.mxu0 %v432
    %1127 = vmatpush.msra.mxu0 %v431
    %1128 = vmatpush.msra.mxu0 %v430
    %1129 = vmatpush.msra.mxu0 %v429
    %1130 = vmatpush.msra.mxu0 %v428
    %1131 = vmatpush.msra.mxu0 %v427
    %1132 = vmatpush.msra.mxu0 %v426
    %1133 = vmatpush.msra.mxu0 %v425
    %1134 = vmatpush.msra.mxu0 %v424
    %1135 = vmatpush.msra.mxu0 %v423
    %1136 = vmatpush.msra.mxu0 %v422
    %1137 = vmatpush.msra.mxu0 %v421
    %1138 = vmatpush.msra.mxu0 %v420
    %1139 = vmatpush.msra.mxu0 %v419
    %1140 = vmatpush.msra.mxu0 %v418
    %1141 = vmatmul.f32.gmra.mxu0 %v1083
    %v1142 = vpop.f32.mrf.mxu0
    %v1143 = vadd.f32 0.0, %v1142
    %1144 = vdwg.mxu0
    %1145 = vmatpush.msra.mxu0 %v449
    %1146 = vmatpush.msra.mxu0 %v448
    %1147 = vmatpush.msra.mxu0 %v447
    %1148 = vmatpush.msra.mxu0 %v446
    %1149 = vmatpush.msra.mxu0 %v445
    %1150 = vmatpush.msra.mxu0 %v444
    %1151 = vmatpush.msra.mxu0 %v443
    %1152 = vmatpush.msra.mxu0 %v442
    %1153 = vmatpush.msra.mxu0 %v441
    %1154 = vmatpush.msra.mxu0 %v440
    %1155 = vmatpush.msra.mxu0 %v439
    %1156 = vmatpush.msra.mxu0 %v438
    %1157 = vmatpush.msra.mxu0 %v437
    %1158 = vmatpush.msra.mxu0 %v436
    %1159 = vmatpush.msra.mxu0 %v435
    %1160 = vmatpush.msra.mxu0 %v434
    %1161 = vmatmul.f32.gmra.mxu0 %v1097
    %v1162 = vpop.f32.mrf.mxu0
    %v1163 = vadd.f32 %v1143, %v1162
    %1164 = vdwg.mxu0
    %1165 = vmatpush.msra.mxu0 0.0
    %1166 = vmatpush.msra.mxu0 0.0
    %1167 = vmatpush.msra.mxu0 0.0
    %1168 = vmatpush.msra.mxu0 0.0
    %1169 = vmatpush.msra.mxu0 0.0
    %1170 = vmatpush.msra.mxu0 0.0
    %1171 = vmatpush.msra.mxu0 0.0
    %1172 = vmatpush.msra.mxu0 0.0
    %1173 = vmatpush.msra.mxu0 0.0
    %1174 = vmatpush.msra.mxu0 0.0
    %1175 = vmatpush.msra.mxu0 0.0
    %1176 = vmatpush.msra.mxu0 0.0
    %1177 = vmatpush.msra.mxu0 %v453
    %1178 = vmatpush.msra.mxu0 %v452
    %1179 = vmatpush.msra.mxu0 %v451
    %1180 = vmatpush.msra.mxu0 %v450
    %1181 = vmatmul.f32.gmra.mxu0 %v1123
    %v1182 = vpop.f32.mrf.mxu0
    %v1183 = vadd.f32 %v1163, %v1182
    %1184 = vdwg.mxu0
    %v1186 = vsel %vm1098, %v1183, 0
    %1188 = vmatpush.msra.mxu0 0.0
    %1189 = vmatpush.msra.mxu0 0.0
    %1190 = vmatpush.msra.mxu0 0.0
    %1191 = vmatpush.msra.mxu0 0.0
    %1192 = vmatpush.msra.mxu0 0.0
    %1193 = vmatpush.msra.mxu0 0.0
    %1194 = vmatpush.msra.mxu0 0.0
    %1195 = vmatpush.msra.mxu0 0.0
    %1196 = vmatpush.msra.mxu0 0.0
    %1197 = vmatpush.msra.mxu0 0.0
    %1198 = vmatpush.msra.mxu0 0.0
    %1199 = vmatpush.msra.mxu0 0.0
    %1200 = vmatpush.msra.mxu0 %v463
    %1201 = vmatpush.msra.mxu0 %v460
    %1202 = vmatpush.msra.mxu0 %v457
    %1203 = vmatpush.msra.mxu0 %v454
    %1204 = vmatmul.f32.gmra.mxu0 %v1186
    %v1205 = vpop.f32.mrf.mxu0
    %v1206 = vadd.f32 0.0, %v1205
    %1207 = vdwg.mxu0
    %1208 = vmatpush.msra.mxu0 0.0
    %1209 = vmatpush.msra.mxu0 0.0
    %1210 = vmatpush.msra.mxu0 0.0
    %1211 = vmatpush.msra.mxu0 0.0
    %1212 = vmatpush.msra.mxu0 0.0
    %1213 = vmatpush.msra.mxu0 0.0
    %1214 = vmatpush.msra.mxu0 0.0
    %1215 = vmatpush.msra.mxu0 0.0
    %1216 = vmatpush.msra.mxu0 0.0
    %1217 = vmatpush.msra.mxu0 0.0
    %1218 = vmatpush.msra.mxu0 0.0
    %1219 = vmatpush.msra.mxu0 0.0
    %1220 = vmatpush.msra.mxu0 %v464
    %1221 = vmatpush.msra.mxu0 %v461
    %1222 = vmatpush.msra.mxu0 %v458
    %1223 = vmatpush.msra.mxu0 %v455
    %1224 = vmatmul.f32.gmra.mxu0 %v1186
    %v1225 = vpop.f32.mrf.mxu0
    %v1226 = vadd.f32 0.0, %v1225
    %1227 = vdwg.mxu0
    %1228 = vmatpush.msra.mxu0 0.0
    %1229 = vmatpush.msra.mxu0 0.0
    %1230 = vmatpush.msra.mxu0 0.0
    %1231 = vmatpush.msra.mxu0 0.0
    %1232 = vmatpush.msra.mxu0 0.0
    %1233 = vmatpush.msra.mxu0 0.0
    %1234 = vmatpush.msra.mxu0 0.0
    %1235 = vmatpush.msra.mxu0 0.0
    %1236 = vmatpush.msra.mxu0 0.0
    %1237 = vmatpush.msra.mxu0 0.0
    %1238 = vmatpush.msra.mxu0 0.0
    %1239 = vmatpush.msra.mxu0 0.0
    %1240 = vmatpush.msra.mxu0 %v465
    %1241 = vmatpush.msra.mxu0 %v462
    %1242 = vmatpush.msra.mxu0 %v459
    %1243 = vmatpush.msra.mxu0 %v456
    %1244 = vmatmul.f32.gmra.mxu0 %v1186
    %v1245 = vpop.f32.mrf.mxu0
    %v1246 = vadd.f32 0.0, %v1245
    %1247 = vdwg.mxu0
    %v1248 = vperm.slane %v1206, 0
    %v1249 = vperm.slane %v1226, 0
    %v1250 = vperm.slane %v1246, 0
    %v1251 = vsub.f32 %v1043, %v1248
    %v1252 = vsub.f32 %v1044, %v1249
    %v1253 = vsub.f32 %v1045, %v1250
    %v1254 = vsub.f32 %v1046, %v1248
    %v1255 = vsub.f32 %v1047, %v1249
    %v1256 = vsub.f32 %v1048, %v1250
    %v1257 = vsub.f32 %v1049, %v1248
    %v1258 = vsub.f32 %v1050, %v1249
    %v1259 = vsub.f32 %v1051, %v1250
    %v1260 = vsub.f32 %v1052, %v1248
    %v1261 = vsub.f32 %v1053, %v1249
    %v1262 = vsub.f32 %v1054, %v1250
    %v1263 = vsub.f32 %v1055, %v1248
    %v1264 = vsub.f32 %v1056, %v1249
    %v1265 = vsub.f32 %v1057, %v1250
    %v1266 = vsub.f32 %v1058, %v1248
    %v1267 = vsub.f32 %v1059, %v1249
    %v1268 = vsub.f32 %v1060, %v1250
    %v1269 = vsub.f32 %v1061, %v1248
    %v1270 = vsub.f32 %v1062, %v1249
    %v1271 = vsub.f32 %v1063, %v1250
    %v1272 = vsub.f32 %v1064, %v1248
    %v1273 = vsub.f32 %v1065, %v1249
    %v1274 = vsub.f32 %v1066, %v1250
    %v1275 = vsub.f32 %v1067, %v1248
    %v1276 = vsub.f32 %v1068, %v1249
    %v1277 = vsub.f32 %v1069, %v1250
    %v1278 = vmul.f32 %v1251, %v1251
    %v1279 = vmul.f32 %v1252, %v1252
    %v1280 = vmul.f32 %v1253, %v1253
    %v1281 = vmul.f32 %v1254, %v1254
    %v1282 = vmul.f32 %v1255, %v1255
    %v1283 = vmul.f32 %v1256, %v1256
    %v1284 = vmul.f32 %v1257, %v1257
    %v1285 = vmul.f32 %v1258, %v1258
    %v1286 = vmul.f32 %v1259, %v1259
    %v1287 = vmul.f32 %v1260, %v1260
    %v1288 = vmul.f32 %v1261, %v1261
    %v1289 = vmul.f32 %v1262, %v1262
    %v1290 = vmul.f32 %v1263, %v1263
    %v1291 = vmul.f32 %v1264, %v1264
    %v1292 = vmul.f32 %v1265, %v1265
    %v1293 = vmul.f32 %v1266, %v1266
    %v1294 = vmul.f32 %v1267, %v1267
    %v1295 = vmul.f32 %v1268, %v1268
    %v1296 = vmul.f32 %v1269, %v1269
    %v1297 = vmul.f32 %v1270, %v1270
    %v1298 = vmul.f32 %v1271, %v1271
    %v1299 = vmul.f32 %v1272, %v1272
    %v1300 = vmul.f32 %v1273, %v1273
    %v1301 = vmul.f32 %v1274, %v1274
    %v1302 = vmul.f32 %v1275, %v1275
    %v1303 = vmul.f32 %v1276, %v1276
    %v1304 = vmul.f32 %v1277, %v1277
    %v1305 = vadd.f32 %v1278, %v1281
    %v1306 = vadd.f32 %v1305, %v1284
    %v1307 = vadd.f32 %v1306, %v1287
    %v1308 = vadd.f32 %v1307, %v1290
    %v1309 = vadd.f32 %v1308, %v1293
    %v1310 = vadd.f32 %v1309, %v1296
    %v1311 = vadd.f32 %v1310, %v1299
    %v1312 = vadd.f32 %v1311, %v1302
    %v1313 = vrot.slane %v1312, 4
    %v1314 = vadd.f32 %v1312, %v1313
    %v1315 = vrot.slane %v1314, 2
    %v1316 = vadd.f32 %v1314, %v1315
    %v1317 = vrot.slane %v1316, 1
    %v1318 = vadd.f32 %v1316, %v1317
    %v1319 = vadd.f32 %v1279, %v1282
    %v1320 = vadd.f32 %v1319, %v1285
    %v1321 = vadd.f32 %v1320, %v1288
    %v1322 = vadd.f32 %v1321, %v1291
    %v1323 = vadd.f32 %v1322, %v1294
    %v1324 = vadd.f32 %v1323, %v1297
    %v1325 = vadd.f32 %v1324, %v1300
    %v1326 = vadd.f32 %v1325, %v1303
    %v1327 = vrot.slane %v1326, 4
    %v1328 = vadd.f32 %v1326, %v1327
    %v1329 = vrot.slane %v1328, 2
    %v1330 = vadd.f32 %v1328, %v1329
    %v1331 = vrot.slane %v1330, 1
    %v1332 = vadd.f32 %v1330, %v1331
    %v1333 = vsel %vm1098, %v1280, 0.0
    %v1334 = vsel %vm1098, %v1283, 0.0
    %v1335 = vadd.f32 %v1333, %v1334
    %v1336 = vsel %vm1098, %v1286, 0.0
    %v1337 = vadd.f32 %v1335, %v1336
    %v1338 = vsel %vm1098, %v1289, 0.0
    %v1339 = vadd.f32 %v1337, %v1338
    %v1340 = vsel %vm1098, %v1292, 0.0
    %v1341 = vadd.f32 %v1339, %v1340
    %v1342 = vsel %vm1098, %v1295, 0.0
    %v1343 = vadd.f32 %v1341, %v1342
    %v1344 = vsel %vm1098, %v1298, 0.0
    %v1345 = vadd.f32 %v1343, %v1344
    %v1346 = vsel %vm1098, %v1301, 0.0
    %v1347 = vadd.f32 %v1345, %v1346
    %v1348 = vsel %vm1098, %v1304, 0.0
    %v1349 = vadd.f32 %v1347, %v1348
    %v1350 = vrot.slane %v1349, 4
    %v1351 = vadd.f32 %v1349, %v1350
    %v1352 = vrot.slane %v1351, 2
    %v1353 = vadd.f32 %v1351, %v1352
    %v1354 = vrot.slane %v1353, 1
    %v1355 = vadd.f32 %v1353, %v1354
    %v1357 = vsel %vm1098, %v1355, 0
    %1359 = vmatpush.msra.mxu0 %v433
    %1360 = vmatpush.msra.mxu0 %v432
    %1361 = vmatpush.msra.mxu0 %v431
    %1362 = vmatpush.msra.mxu0 %v430
    %1363 = vmatpush.msra.mxu0 %v429
    %1364 = vmatpush.msra.mxu0 %v428
    %1365 = vmatpush.msra.mxu0 %v427
    %1366 = vmatpush.msra.mxu0 %v426
    %1367 = vmatpush.msra.mxu0 %v425
    %1368 = vmatpush.msra.mxu0 %v424
    %1369 = vmatpush.msra.mxu0 %v423
    %1370 = vmatpush.msra.mxu0 %v422
    %1371 = vmatpush.msra.mxu0 %v421
    %1372 = vmatpush.msra.mxu0 %v420
    %1373 = vmatpush.msra.mxu0 %v419
    %1374 = vmatpush.msra.mxu0 %v418
    %1375 = vmatmul.f32.gmra.mxu0 %v1318
    %v1376 = vpop.f32.mrf.mxu0
    %v1377 = vadd.f32 1e-05, %v1376
    %1378 = vdwg.mxu0
    %1379 = vmatpush.msra.mxu0 %v449
    %1380 = vmatpush.msra.mxu0 %v448
    %1381 = vmatpush.msra.mxu0 %v447
    %1382 = vmatpush.msra.mxu0 %v446
    %1383 = vmatpush.msra.mxu0 %v445
    %1384 = vmatpush.msra.mxu0 %v444
    %1385 = vmatpush.msra.mxu0 %v443
    %1386 = vmatpush.msra.mxu0 %v442
    %1387 = vmatpush.msra.mxu0 %v441
    %1388 = vmatpush.msra.mxu0 %v440
    %1389 = vmatpush.msra.mxu0 %v439
    %1390 = vmatpush.msra.mxu0 %v438
    %1391 = vmatpush.msra.mxu0 %v437
    %1392 = vmatpush.msra.mxu0 %v436
    %1393 = vmatpush.msra.mxu0 %v435
    %1394 = vmatpush.msra.mxu0 %v434
    %1395 = vmatmul.f32.gmra.mxu0 %v1332
    %v1396 = vpop.f32.mrf.mxu0
    %v1397 = vadd.f32 %v1377, %v1396
    %1398 = vdwg.mxu0
    %1399 = vmatpush.msra.mxu0 0.0
    %1400 = vmatpush.msra.mxu0 0.0
    %1401 = vmatpush.msra.mxu0 0.0
    %1402 = vmatpush.msra.mxu0 0.0
    %1403 = vmatpush.msra.mxu0 0.0
    %1404 = vmatpush.msra.mxu0 0.0
    %1405 = vmatpush.msra.mxu0 0.0
    %1406 = vmatpush.msra.mxu0 0.0
    %1407 = vmatpush.msra.mxu0 0.0
    %1408 = vmatpush.msra.mxu0 0.0
    %1409 = vmatpush.msra.mxu0 0.0
    %1410 = vmatpush.msra.mxu0 0.0
    %1411 = vmatpush.msra.mxu0 %v453
    %1412 = vmatpush.msra.mxu0 %v452
    %1413 = vmatpush.msra.mxu0 %v451
    %1414 = vmatpush.msra.mxu0 %v450
    %1415 = vmatmul.f32.gmra.mxu0 %v1357
    %v1416 = vpop.f32.mrf.mxu0
    %v1417 = vadd.f32 %v1397, %v1416
    %1418 = vdwg.mxu0
    %v1419 = vrsqrt.pop %v1417
    %v1420 = vmul.f32 %v1419, %v1417
    %v1421 = vmul.f32 %v1420, %v1419
    %v1422 = vmul.f32 0.5, %v1421
    %v1423 = vsub.f32 1.5, %v1422
    %v1424 = vmul.f32 %v1419, %v1423
    %vm1425 = vweird.f32 %v1417
    %vm1426 = vweird.f32 %v1419
    %vm1427 = vmor %vm1425, %vm1426
    %v1428 = vsel %vm1427, %v1419, %v1424
    %v1430 = vsel %vm1098, %v1428, 0
    %1432 = vmatpush.msra.mxu0 0.0
    %1433 = vmatpush.msra.mxu0 0.0
    %1434 = vmatpush.msra.mxu0 0.0
    %1435 = vmatpush.msra.mxu0 0.0
    %1436 = vmatpush.msra.mxu0 0.0
    %1437 = vmatpush.msra.mxu0 0.0
    %1438 = vmatpush.msra.mxu0 0.0
    %1439 = vmatpush.msra.mxu0 0.0
    %1440 = vmatpush.msra.mxu0 0.0
    %1441 = vmatpush.msra.mxu0 0.0
    %1442 = vmatpush.msra.mxu0 0.0
    %1443 = vmatpush.msra.mxu0 0.0
    %1444 = vmatpush.msra.mxu0 %v463
    %1445 = vmatpush.msra.mxu0 %v460
    %1446 = vmatpush.msra.mxu0 %v457
    %1447 = vmatpush.msra.mxu0 %v454
    %1448 = vmatmul.f32.gmra.mxu0 %v1430
    %v1449 = vpop.f32.mrf.mxu0
    %v1450 = vadd.f32 0.0, %v1449
    %1451 = vdwg.mxu0
    %1452 = vmatpush.msra.mxu0 0.0
    %1453 = vmatpush.msra.mxu0 0.0
    %1454 = vmatpush.msra.mxu0 0.0
    %1455 = vmatpush.msra.mxu0 0.0
    %1456 = vmatpush.msra.mxu0 0.0
    %1457 = vmatpush.msra.mxu0 0.0
    %1458 = vmatpush.msra.mxu0 0.0
    %1459 = vmatpush.msra.mxu0 0.0
    %1460 = vmatpush.msra.mxu0 0.0
    %1461 = vmatpush.msra.mxu0 0.0
    %1462 = vmatpush.msra.mxu0 0.0
    %1463 = vmatpush.msra.mxu0 0.0
    %1464 = vmatpush.msra.mxu0 %v464
    %1465 = vmatpush.msra.mxu0 %v461
    %1466 = vmatpush.msra.mxu0 %v458
    %1467 = vmatpush.msra.mxu0 %v455
    %1468 = vmatmul.f32.gmra.mxu0 %v1430
    %v1469 = vpop.f32.mrf.mxu0
    %v1470 = vadd.f32 0.0, %v1469
    %1471 = vdwg.mxu0
    %1472 = vmatpush.msra.mxu0 0.0
    %1473 = vmatpush.msra.mxu0 0.0
    %1474 = vmatpush.msra.mxu0 0.0
    %1475 = vmatpush.msra.mxu0 0.0
    %1476 = vmatpush.msra.mxu0 0.0
    %1477 = vmatpush.msra.mxu0 0.0
    %1478 = vmatpush.msra.mxu0 0.0
    %1479 = vmatpush.msra.mxu0 0.0
    %1480 = vmatpush.msra.mxu0 0.0
    %1481 = vmatpush.msra.mxu0 0.0
    %1482 = vmatpush.msra.mxu0 0.0
    %1483 = vmatpush.msra.mxu0 0.0
    %1484 = vmatpush.msra.mxu0 %v465
    %1485 = vmatpush.msra.mxu0 %v462
    %1486 = vmatpush.msra.mxu0 %v459
    %1487 = vmatpush.msra.mxu0 %v456
    %1488 = vmatmul.f32.gmra.mxu0 %v1430
    %v1489 = vpop.f32.mrf.mxu0
    %v1490 = vadd.f32 0.0, %v1489
    %1491 = vdwg.mxu0
    %v1492 = vperm.slane %v416, 1
    %v1493 = vperm.slane %v416, 5
    %v1494 = vperm.slane %v417, 1
    %v1498 = vmul.f32 %v1450, %v1492
    %v1499 = vmul.f32 %v1470, %v1493
    %v1500 = vmul.f32 %v1490, %v1494
    %v1501 = vperm.slane %v1498, 0
    %v1502 = vperm.slane %v1499, 0
    %v1503 = vperm.slane %v1500, 0
    %v1504 = vmul.f32 %v1251, %v1501
    %v1505 = vmul.f32 %v1252, %v1502
    %v1506 = vmul.f32 %v1253, %v1503
    %v1507 = vmul.f32 %v1254, %v1501
    %v1508 = vmul.f32 %v1255, %v1502
    %v1509 = vmul.f32 %v1256, %v1503
    %v1510 = vmul.f32 %v1257, %v1501
    %v1511 = vmul.f32 %v1258, %v1502
    %v1512 = vmul.f32 %v1259, %v1503
    %v1513 = vmul.f32 %v1260, %v1501
    %v1514 = vmul.f32 %v1261, %v1502
    %v1515 = vmul.f32 %v1262, %v1503
    %v1516 = vmul.f32 %v1263, %v1501
    %v1517 = vmul.f32 %v1264, %v1502
    %v1518 = vmul.f32 %v1265, %v1503
    %v1519 = vmul.f32 %v1266, %v1501
    %v1520 = vmul.f32 %v1267, %v1502
    %v1521 = vmul.f32 %v1268, %v1503
    %v1522 = vmul.f32 %v1269, %v1501
    %v1523 = vmul.f32 %v1270, %v1502
    %v1524 = vmul.f32 %v1271, %v1503
    %v1525 = vmul.f32 %v1272, %v1501
    %v1526 = vmul.f32 %v1273, %v1502
    %v1527 = vmul.f32 %v1274, %v1503
    %v1528 = vmul.f32 %v1275, %v1501
    %v1529 = vmul.f32 %v1276, %v1502
    %v1530 = vmul.f32 %v1277, %v1503
    %v1531 = vperm.slane %v416, 2
    %v1532 = vperm.slane %v416, 6
    %v1533 = vperm.slane %v417, 2
    %v1537 = vperm.slane %v1531, 2
    %v1538 = vperm.slane %v1532, 2
    %v1539 = vperm.slane %v1533, 2
    %v1540 = vadd.f32 %v1504, %v1537
    %v1541 = vadd.f32 %v1505, %v1538
    %v1542 = vadd.f32 %v1506, %v1539
    %v1543 = vadd.f32 %v1507, %v1537
    %v1544 = vadd.f32 %v1508, %v1538
    %v1545 = vadd.f32 %v1509, %v1539
    %v1546 = vadd.f32 %v1510, %v1537
    %v1547 = vadd.f32 %v1511, %v1538
    %v1548 = vadd.f32 %v1512, %v1539
    %v1549 = vadd.f32 %v1513, %v1537
    %v1550 = vadd.f32 %v1514, %v1538
    %v1551 = vadd.f32 %v1515, %v1539
    %v1552 = vadd.f32 %v1516, %v1537
    %v1553 = vadd.f32 %v1517, %v1538
    %v1554 = vadd.f32 %v1518, %v1539
    %v1555 = vadd.f32 %v1519, %v1537
    %v1556 = vadd.f32 %v1520, %v1538
    %v1557 = vadd.f32 %v1521, %v1539
    %v1558 = vadd.f32 %v1522, %v1537
    %v1559 = vadd.f32 %v1523, %v1538
    %v1560 = vadd.f32 %v1524, %v1539
    %v1561 = vadd.f32 %v1525, %v1537
    %v1562 = vadd.f32 %v1526, %v1538
    %v1563 = vadd.f32 %v1527, %v1539
    %v1564 = vadd.f32 %v1528, %v1537
    %v1565 = vadd.f32 %v1529, %v1538
    %v1566 = vadd.f32 %v1530, %v1539
    %v1567 = vld [vmem:[%s5] sm:$0xff]
    %v1568 = vld [vmem:[%s5 + $0x8] sm:$0xff]
    %v1569 = vld [vmem:[%s5 + $0x10] sm:$0xff]
    %v1570 = vld [vmem:[%s5 + $0x18] sm:$0x3f]
    %vm1571 = vcmask 588800
    %v1573 = vsel %vm1571, %v1567, 0
    %v1576 = vsel %vm1571, %v1568, 0
    %v1579 = vsel %vm1571, %v1569, 0
    %v1582 = vsel %vm1571, %v1570, 0
    %1584 = vmatpush.msra.mxu0 0.0
    %1585 = vmatpush.msra.mxu0 0.0
    %1586 = vmatpush.msra.mxu0 0.0
    %1587 = vmatpush.msra.mxu0 0.0
    %1588 = vmatpush.msra.mxu0 0.0
    %1589 = vmatpush.msra.mxu0 0.0
    %1590 = vmatpush.msra.mxu0 0.0
    %1591 = vmatpush.msra.mxu0 %v1564
    %1592 = vmatpush.msra.mxu0 %v1561
    %1593 = vmatpush.msra.mxu0 %v1558
    %1594 = vmatpush.msra.mxu0 %v1555
    %1595 = vmatpush.msra.mxu0 %v1552
    %1596 = vmatpush.msra.mxu0 %v1549
    %1597 = vmatpush.msra.mxu0 %v1546
    %1598 = vmatpush.msra.mxu0 %v1543
    %1599 = vmatpush.msra.mxu0 %v1540
    %1600 = vmatmul.f32.gmra.mxu0 %v1573
    %v1601 = vpop.f32.mrf.mxu0
    %v1602 = vadd.f32 0.0, %v1601
    %1603 = vmatmul.f32.gmra.mxu0 %v1576
    %v1604 = vpop.f32.mrf.mxu0
    %v1605 = vadd.f32 0.0, %v1604
    %1606 = vmatmul.f32.gmra.mxu0 %v1579
    %v1607 = vpop.f32.mrf.mxu0
    %v1608 = vadd.f32 0.0, %v1607
    %1609 = vmatmul.f32.gmra.mxu0 %v1582
    %v1610 = vpop.f32.mrf.mxu0
    %v1611 = vadd.f32 0.0, %v1610
    %1612 = vdwg.mxu0
    %1613 = vmatpush.msra.mxu0 0.0
    %1614 = vmatpush.msra.mxu0 0.0
    %1615 = vmatpush.msra.mxu0 0.0
    %1616 = vmatpush.msra.mxu0 0.0
    %1617 = vmatpush.msra.mxu0 0.0
    %1618 = vmatpush.msra.mxu0 0.0
    %1619 = vmatpush.msra.mxu0 0.0
    %1620 = vmatpush.msra.mxu0 %v1565
    %1621 = vmatpush.msra.mxu0 %v1562
    %1622 = vmatpush.msra.mxu0 %v1559
    %1623 = vmatpush.msra.mxu0 %v1556
    %1624 = vmatpush.msra.mxu0 %v1553
    %1625 = vmatpush.msra.mxu0 %v1550
    %1626 = vmatpush.msra.mxu0 %v1547
    %1627 = vmatpush.msra.mxu0 %v1544
    %1628 = vmatpush.msra.mxu0 %v1541
    %1629 = vmatmul.f32.gmra.mxu0 %v1573
    %v1630 = vpop.f32.mrf.mxu0
    %v1631 = vadd.f32 0.0, %v1630
    %1632 = vmatmul.f32.gmra.mxu0 %v1576
    %v1633 = vpop.f32.mrf.mxu0
    %v1634 = vadd.f32 0.0, %v1633
    %1635 = vmatmul.f32.gmra.mxu0 %v1579
    %v1636 = vpop.f32.mrf.mxu0
    %v1637 = vadd.f32 0.0, %v1636
    %1638 = vmatmul.f32.gmra.mxu0 %v1582
    %v1639 = vpop.f32.mrf.mxu0
    %v1640 = vadd.f32 0.0, %v1639
    %1641 = vdwg.mxu0
    %1642 = vmatpush.msra.mxu0 0.0
    %1643 = vmatpush.msra.mxu0 0.0
    %1644 = vmatpush.msra.mxu0 0.0
    %1645 = vmatpush.msra.mxu0 0.0
    %1646 = vmatpush.msra.mxu0 0.0
    %1647 = vmatpush.msra.mxu0 0.0
    %1648 = vmatpush.msra.mxu0 0.0
    %1649 = vmatpush.msra.mxu0 %v1566
    %1650 = vmatpush.msra.mxu0 %v1563
    %1651 = vmatpush.msra.mxu0 %v1560
    %1652 = vmatpush.msra.mxu0 %v1557
    %1653 = vmatpush.msra.mxu0 %v1554
    %1654 = vmatpush.msra.mxu0 %v1551
    %1655 = vmatpush.msra.mxu0 %v1548
    %1656 = vmatpush.msra.mxu0 %v1545
    %1657 = vmatpush.msra.mxu0 %v1542
    %1658 = vmatmul.f32.gmra.mxu0 %v1573
    %v1659 = vpop.f32.mrf.mxu0
    %v1660 = vadd.f32 0.0, %v1659
    %1661 = vmatmul.f32.gmra.mxu0 %v1576
    %v1662 = vpop.f32.mrf.mxu0
    %v1663 = vadd.f32 0.0, %v1662
    %1664 = vmatmul.f32.gmra.mxu0 %v1579
    %v1665 = vpop.f32.mrf.mxu0
    %v1666 = vadd.f32 0.0, %v1665
    %1667 = vmatmul.f32.gmra.mxu0 %v1582
    %v1668 = vpop.f32.mrf.mxu0
    %v1669 = vadd.f32 0.0, %v1668
    %1670 = vdwg.mxu0
    %v1671 = vld [vmem:[%s6] sm:$0xff]
    %v1672 = vld [vmem:[%s6 + $0x8] sm:$0xff]
    %v1673 = vld [vmem:[%s6 + $0x10] sm:$0xff]
    %v1674 = vld [vmem:[%s6 + $0x18] sm:$0xff]
    %v1675 = vld [vmem:[%s6 + $0x20] sm:$0xff]
    %v1676 = vld [vmem:[%s6 + $0x28] sm:$0xff]
    %v1677 = vld [vmem:[%s6 + $0x30] sm:$0xff]
    %v1678 = vld [vmem:[%s6 + $0x38] sm:$0xff]
    %v1679 = vld [vmem:[%s6 + $0x40] sm:$0xff]
    %v1680 = vld [vmem:[%s6 + $0x48] sm:$0xff]
    %v1681 = vld [vmem:[%s6 + $0x50] sm:$0xff]
    %v1682 = vld [vmem:[%s6 + $0x58] sm:$0xff]
    %v1683 = vld [vmem:[%s6 + $0x60] sm:$0xff]
    %v1684 = vld [vmem:[%s6 + $0x68] sm:$0xff]
    %v1685 = vld [vmem:[%s6 + $0x70] sm:$0xff]
    %v1686 = vld [vmem:[%s6 + $0x78] sm:$0xff]
    %v1687 = vld [vmem:[%s6 + $0x80] sm:$0xff]
    %v1688 = vld [vmem:[%s6 + $0x88] sm:$0xff]
    %v1689 = vld [vmem:[%s6 + $0x90] sm:$0xff]
    %v1690 = vld [vmem:[%s6 + $0x98] sm:$0xff]
    %v1691 = vld [vmem:[%s6 + $0xa0] sm:$0xff]
    %v1692 = vld [vmem:[%s6 + $0xa8] sm:$0xff]
    %v1693 = vld [vmem:[%s6 + $0xb0] sm:$0xff]
    %v1694 = vld [vmem:[%s6 + $0xb8] sm:$0xff]
    %v1695 = vld [vmem:[%s6 + $0xc0] sm:$0xff]
    %v1696 = vld [vmem:[%s6 + $0xc8] sm:$0xff]
    %v1697 = vld [vmem:[%s6 + $0xd0] sm:$0xff]
    %v1698 = vld [vmem:[%s6 + $0xd8] sm:$0xff]
    %v1699 = vld [vmem:[%s6 + $0xe0] sm:$0xff]
    %v1700 = vld [vmem:[%s6 + $0xe8] sm:$0xff]
    %v1701 = vld [vmem:[%s6 + $0xf0] sm:$0xff]
    %v1702 = vld [vmem:[%s6 + $0xf8] sm:$0xff]
    %v1703 = vld [vmem:[%s6 + $0x100] sm:$0xff]
    %v1704 = vld [vmem:[%s6 + $0x108] sm:$0xff]
    %v1705 = vld [vmem:[%s6 + $0x110] sm:$0xff]
    %v1706 = vld [vmem:[%s6 + $0x118] sm:$0xff]
    %v1707 = vunpack.c.l.bf16 %v1671
    %v1708 = vunpack.c.h.bf16 %v1671
    %v1709 = vunpack.c.l.bf16 %v1672
    %v1710 = vunpack.c.h.bf16 %v1672
    %v1711 = vunpack.c.l.bf16 %v1673
    %v1712 = vunpack.c.h.bf16 %v1673
    %v1713 = vunpack.c.l.bf16 %v1674
    %v1714 = vunpack.c.h.bf16 %v1674
    %v1715 = vunpack.c.l.bf16 %v1675
    %v1716 = vunpack.c.h.bf16 %v1675
    %v1717 = vunpack.c.l.bf16 %v1676
    %v1718 = vunpack.c.h.bf16 %v1676
    %v1719 = vunpack.c.l.bf16 %v1677
    %v1720 = vunpack.c.h.bf16 %v1677
    %v1721 = vunpack.c.l.bf16 %v1678
    %v1722 = vunpack.c.h.bf16 %v1678
    %v1723 = vunpack.c.l.bf16 %v1679
    %v1724 = vunpack.c.h.bf16 %v1679
    %v1725 = vunpack.c.l.bf16 %v1680
    %v1726 = vunpack.c.h.bf16 %v1680
    %v1727 = vunpack.c.l.bf16 %v1681
    %v1728 = vunpack.c.h.bf16 %v1681
    %v1729 = vunpack.c.l.bf16 %v1682
    %v1730 = vunpack.c.h.bf16 %v1682
    %v1731 = vunpack.c.l.bf16 %v1683
    %v1732 = vunpack.c.h.bf16 %v1683
    %v1733 = vunpack.c.l.bf16 %v1684
    %v1734 = vunpack.c.h.bf16 %v1684
    %v1735 = vunpack.c.l.bf16 %v1685
    %v1736 = vunpack.c.h.bf16 %v1685
    %v1737 = vunpack.c.l.bf16 %v1686
    %v1738 = vunpack.c.h.bf16 %v1686
    %v1739 = vunpack.c.l.bf16 %v1687
    %v1740 = vunpack.c.h.bf16 %v1687
    %v1741 = vunpack.c.l.bf16 %v1688
    %v1742 = vunpack.c.h.bf16 %v1688
    %v1743 = vunpack.c.l.bf16 %v1689
    %v1744 = vunpack.c.h.bf16 %v1689
    %v1745 = vunpack.c.l.bf16 %v1690
    %v1746 = vunpack.c.h.bf16 %v1690
    %v1747 = vunpack.c.l.bf16 %v1691
    %v1748 = vunpack.c.h.bf16 %v1691
    %v1749 = vunpack.c.l.bf16 %v1692
    %v1750 = vunpack.c.h.bf16 %v1692
    %v1751 = vunpack.c.l.bf16 %v1693
    %v1752 = vunpack.c.h.bf16 %v1693
    %v1753 = vunpack.c.l.bf16 %v1694
    %v1754 = vunpack.c.h.bf16 %v1694
    %v1755 = vunpack.c.l.bf16 %v1695
    %v1756 = vunpack.c.h.bf16 %v1695
    %v1757 = vunpack.c.l.bf16 %v1696
    %v1758 = vunpack.c.h.bf16 %v1696
    %v1759 = vunpack.c.l.bf16 %v1697
    %v1760 = vunpack.c.h.bf16 %v1697
    %v1761 = vunpack.c.l.bf16 %v1698
    %v1762 = vunpack.c.h.bf16 %v1698
    %v1763 = vunpack.c.l.bf16 %v1699
    %v1764 = vunpack.c.h.bf16 %v1699
    %v1765 = vunpack.c.l.bf16 %v1700
    %v1766 = vunpack.c.h.bf16 %v1700
    %v1767 = vunpack.c.l.bf16 %v1701
    %v1768 = vunpack.c.h.bf16 %v1701
    %v1769 = vunpack.c.l.bf16 %v1702
    %v1770 = vunpack.c.h.bf16 %v1702
    %v1771 = vunpack.c.l.bf16 %v1703
    %v1772 = vunpack.c.h.bf16 %v1703
    %v1773 = vunpack.c.l.bf16 %v1704
    %v1774 = vunpack.c.h.bf16 %v1704
    %v1775 = vunpack.c.l.bf16 %v1705
    %v1776 = vunpack.c.h.bf16 %v1705
    %v1777 = vunpack.c.l.bf16 %v1706
    %v1778 = vunpack.c.h.bf16 %v1706
    %s1779 = scalar_lea.vmem %s5, 32
    %v1780 = vld [vmem:[%s1779] sm:$0xff]
    %v1781 = vld [vmem:[%s1779 + $0x8] sm:$0xff]
    %v1782 = vld [vmem:[%s1779 + $0x10] sm:$0xff]
    %v1783 = vld [vmem:[%s1779 + $0x18] sm:$0x3f]
    %v1785 = vsel %vm1571, %v1780, 0
    %v1788 = vsel %vm1571, %v1781, 0
    %v1791 = vsel %vm1571, %v1782, 0
    %v1794 = vsel %vm1571, %v1783, 0
    %1796 = vmatpush.msra.mxu0 0.0
    %1797 = vmatpush.msra.mxu0 0.0
    %1798 = vmatpush.msra.mxu0 0.0
    %1799 = vmatpush.msra.mxu0 0.0
    %1800 = vmatpush.msra.mxu0 0.0
    %1801 = vmatpush.msra.mxu0 0.0
    %1802 = vmatpush.msra.mxu0 0.0
    %1803 = vmatpush.msra.mxu0 %v1564
    %1804 = vmatpush.msra.mxu0 %v1561
    %1805 = vmatpush.msra.mxu0 %v1558
    %1806 = vmatpush.msra.mxu0 %v1555
    %1807 = vmatpush.msra.mxu0 %v1552
    %1808 = vmatpush.msra.mxu0 %v1549
    %1809 = vmatpush.msra.mxu0 %v1546
    %1810 = vmatpush.msra.mxu0 %v1543
    %1811 = vmatpush.msra.mxu0 %v1540
    %1812 = vmatmul.f32.gmra.mxu0 %v1785
    %v1813 = vpop.f32.mrf.mxu0
    %v1814 = vadd.f32 0.0, %v1813
    %1815 = vmatmul.f32.gmra.mxu0 %v1788
    %v1816 = vpop.f32.mrf.mxu0
    %v1817 = vadd.f32 0.0, %v1816
    %1818 = vmatmul.f32.gmra.mxu0 %v1791
    %v1819 = vpop.f32.mrf.mxu0
    %v1820 = vadd.f32 0.0, %v1819
    %1821 = vmatmul.f32.gmra.mxu0 %v1794
    %v1822 = vpop.f32.mrf.mxu0
    %v1823 = vadd.f32 0.0, %v1822
    %1824 = vdwg.mxu0
    %1825 = vmatpush.msra.mxu0 0.0
    %1826 = vmatpush.msra.mxu0 0.0
    %1827 = vmatpush.msra.mxu0 0.0
    %1828 = vmatpush.msra.mxu0 0.0
    %1829 = vmatpush.msra.mxu0 0.0
    %1830 = vmatpush.msra.mxu0 0.0
    %1831 = vmatpush.msra.mxu0 0.0
    %1832 = vmatpush.msra.mxu0 %v1565
    %1833 = vmatpush.msra.mxu0 %v1562
    %1834 = vmatpush.msra.mxu0 %v1559
    %1835 = vmatpush.msra.mxu0 %v1556
    %1836 = vmatpush.msra.mxu0 %v1553
    %1837 = vmatpush.msra.mxu0 %v1550
    %1838 = vmatpush.msra.mxu0 %v1547
    %1839 = vmatpush.msra.mxu0 %v1544
    %1840 = vmatpush.msra.mxu0 %v1541
    %1841 = vmatmul.f32.gmra.mxu0 %v1785
    %v1842 = vpop.f32.mrf.mxu0
    %v1843 = vadd.f32 0.0, %v1842
    %1844 = vmatmul.f32.gmra.mxu0 %v1788
    %v1845 = vpop.f32.mrf.mxu0
    %v1846 = vadd.f32 0.0, %v1845
    %1847 = vmatmul.f32.gmra.mxu0 %v1791
    %v1848 = vpop.f32.mrf.mxu0
    %v1849 = vadd.f32 0.0, %v1848
    %1850 = vmatmul.f32.gmra.mxu0 %v1794
    %v1851 = vpop.f32.mrf.mxu0
    %v1852 = vadd.f32 0.0, %v1851
    %1853 = vdwg.mxu0
    %1854 = vmatpush.msra.mxu0 0.0
    %1855 = vmatpush.msra.mxu0 0.0
    %1856 = vmatpush.msra.mxu0 0.0
    %1857 = vmatpush.msra.mxu0 0.0
    %1858 = vmatpush.msra.mxu0 0.0
    %1859 = vmatpush.msra.mxu0 0.0
    %1860 = vmatpush.msra.mxu0 0.0
    %1861 = vmatpush.msra.mxu0 %v1566
    %1862 = vmatpush.msra.mxu0 %v1563
    %1863 = vmatpush.msra.mxu0 %v1560
    %1864 = vmatpush.msra.mxu0 %v1557
    %1865 = vmatpush.msra.mxu0 %v1554
    %1866 = vmatpush.msra.mxu0 %v1551
    %1867 = vmatpush.msra.mxu0 %v1548
    %1868 = vmatpush.msra.mxu0 %v1545
    %1869 = vmatpush.msra.mxu0 %v1542
    %1870 = vmatmul.f32.gmra.mxu0 %v1785
    %v1871 = vpop.f32.mrf.mxu0
    %v1872 = vadd.f32 0.0, %v1871
    %1873 = vmatmul.f32.gmra.mxu0 %v1788
    %v1874 = vpop.f32.mrf.mxu0
    %v1875 = vadd.f32 0.0, %v1874
    %1876 = vmatmul.f32.gmra.mxu0 %v1791
    %v1877 = vpop.f32.mrf.mxu0
    %v1878 = vadd.f32 0.0, %v1877
    %1879 = vmatmul.f32.gmra.mxu0 %v1794
    %v1880 = vpop.f32.mrf.mxu0
    %v1881 = vadd.f32 0.0, %v1880
    %1882 = vdwg.mxu0
    %s1883 = scalar_lea.vmem %s6, 288
    %v1884 = vld [vmem:[%s1883] sm:$0xff]
    %v1885 = vld [vmem:[%s1883 + $0x8] sm:$0xff]
    %v1886 = vld [vmem:[%s1883 + $0x10] sm:$0xff]
    %v1887 = vld [vmem:[%s1883 + $0x18] sm:$0xff]
    %v1888 = vld [vmem:[%s1883 + $0x20] sm:$0xff]
    %v1889 = vld [vmem:[%s1883 + $0x28] sm:$0xff]
    %v1890 = vld [vmem:[%s1883 + $0x30] sm:$0xff]
    %v1891 = vld [vmem:[%s1883 + $0x38] sm:$0xff]
    %v1892 = vld [vmem:[%s1883 + $0x40] sm:$0xff]
    %v1893 = vld [vmem:[%s1883 + $0x48] sm:$0xff]
    %v1894 = vld [vmem:[%s1883 + $0x50] sm:$0xff]
    %v1895 = vld [vmem:[%s1883 + $0x58] sm:$0xff]
    %v1896 = vld [vmem:[%s1883 + $0x60] sm:$0xff]
    %v1897 = vld [vmem:[%s1883 + $0x68] sm:$0xff]
    %v1898 = vld [vmem:[%s1883 + $0x70] sm:$0xff]
    %v1899 = vld [vmem:[%s1883 + $0x78] sm:$0xff]
    %v1900 = vld [vmem:[%s1883 + $0x80] sm:$0xff]
    %v1901 = vld [vmem:[%s1883 + $0x88] sm:$0xff]
    %v1902 = vld [vmem:[%s1883 + $0x90] sm:$0xff]
    %v1903 = vld [vmem:[%s1883 + $0x98] sm:$0xff]
    %v1904 = vld [vmem:[%s1883 + $0xa0] sm:$0xff]
    %v1905 = vld [vmem:[%s1883 + $0xa8] sm:$0xff]
    %v1906 = vld [vmem:[%s1883 + $0xb0] sm:$0xff]
    %v1907 = vld [vmem:[%s1883 + $0xb8] sm:$0xff]
    %v1908 = vld [vmem:[%s1883 + $0xc0] sm:$0xff]
    %v1909 = vld [vmem:[%s1883 + $0xc8] sm:$0xff]
    %v1910 = vld [vmem:[%s1883 + $0xd0] sm:$0xff]
    %v1911 = vld [vmem:[%s1883 + $0xd8] sm:$0xff]
    %v1912 = vld [vmem:[%s1883 + $0xe0] sm:$0xff]
    %v1913 = vld [vmem:[%s1883 + $0xe8] sm:$0xff]
    %v1914 = vld [vmem:[%s1883 + $0xf0] sm:$0xff]
    %v1915 = vld [vmem:[%s1883 + $0xf8] sm:$0xff]
    %v1916 = vld [vmem:[%s1883 + $0x100] sm:$0xff]
    %v1917 = vld [vmem:[%s1883 + $0x108] sm:$0xff]
    %v1918 = vld [vmem:[%s1883 + $0x110] sm:$0xff]
    %v1919 = vld [vmem:[%s1883 + $0x118] sm:$0xff]
    %v1920 = vunpack.c.l.bf16 %v1884
    %v1921 = vunpack.c.h.bf16 %v1884
    %v1922 = vunpack.c.l.bf16 %v1885
    %v1923 = vunpack.c.h.bf16 %v1885
    %v1924 = vunpack.c.l.bf16 %v1886
    %v1925 = vunpack.c.h.bf16 %v1886
    %v1926 = vunpack.c.l.bf16 %v1887
    %v1927 = vunpack.c.h.bf16 %v1887
    %v1928 = vunpack.c.l.bf16 %v1888
    %v1929 = vunpack.c.h.bf16 %v1888
    %v1930 = vunpack.c.l.bf16 %v1889
    %v1931 = vunpack.c.h.bf16 %v1889
    %v1932 = vunpack.c.l.bf16 %v1890
    %v1933 = vunpack.c.h.bf16 %v1890
    %v1934 = vunpack.c.l.bf16 %v1891
    %v1935 = vunpack.c.h.bf16 %v1891
    %v1936 = vunpack.c.l.bf16 %v1892
    %v1937 = vunpack.c.h.bf16 %v1892
    %v1938 = vunpack.c.l.bf16 %v1893
    %v1939 = vunpack.c.h.bf16 %v1893
    %v1940 = vunpack.c.l.bf16 %v1894
    %v1941 = vunpack.c.h.bf16 %v1894
    %v1942 = vunpack.c.l.bf16 %v1895
    %v1943 = vunpack.c.h.bf16 %v1895
    %v1944 = vunpack.c.l.bf16 %v1896
    %v1945 = vunpack.c.h.bf16 %v1896
    %v1946 = vunpack.c.l.bf16 %v1897
    %v1947 = vunpack.c.h.bf16 %v1897
    %v1948 = vunpack.c.l.bf16 %v1898
    %v1949 = vunpack.c.h.bf16 %v1898
    %v1950 = vunpack.c.l.bf16 %v1899
    %v1951 = vunpack.c.h.bf16 %v1899
    %v1952 = vunpack.c.l.bf16 %v1900
    %v1953 = vunpack.c.h.bf16 %v1900
    %v1954 = vunpack.c.l.bf16 %v1901
    %v1955 = vunpack.c.h.bf16 %v1901
    %v1956 = vunpack.c.l.bf16 %v1902
    %v1957 = vunpack.c.h.bf16 %v1902
    %v1958 = vunpack.c.l.bf16 %v1903
    %v1959 = vunpack.c.h.bf16 %v1903
    %v1960 = vunpack.c.l.bf16 %v1904
    %v1961 = vunpack.c.h.bf16 %v1904
    %v1962 = vunpack.c.l.bf16 %v1905
    %v1963 = vunpack.c.h.bf16 %v1905
    %v1964 = vunpack.c.l.bf16 %v1906
    %v1965 = vunpack.c.h.bf16 %v1906
    %v1966 = vunpack.c.l.bf16 %v1907
    %v1967 = vunpack.c.h.bf16 %v1907
    %v1968 = vunpack.c.l.bf16 %v1908
    %v1969 = vunpack.c.h.bf16 %v1908
    %v1970 = vunpack.c.l.bf16 %v1909
    %v1971 = vunpack.c.h.bf16 %v1909
    %v1972 = vunpack.c.l.bf16 %v1910
    %v1973 = vunpack.c.h.bf16 %v1910
    %v1974 = vunpack.c.l.bf16 %v1911
    %v1975 = vunpack.c.h.bf16 %v1911
    %v1976 = vunpack.c.l.bf16 %v1912
    %v1977 = vunpack.c.h.bf16 %v1912
    %v1978 = vunpack.c.l.bf16 %v1913
    %v1979 = vunpack.c.h.bf16 %v1913
    %v1980 = vunpack.c.l.bf16 %v1914
    %v1981 = vunpack.c.h.bf16 %v1914
    %v1982 = vunpack.c.l.bf16 %v1915
    %v1983 = vunpack.c.h.bf16 %v1915
    %v1984 = vunpack.c.l.bf16 %v1916
    %v1985 = vunpack.c.h.bf16 %v1916
    %v1986 = vunpack.c.l.bf16 %v1917
    %v1987 = vunpack.c.h.bf16 %v1917
    %v1988 = vunpack.c.l.bf16 %v1918
    %v1989 = vunpack.c.h.bf16 %v1918
    %v1990 = vunpack.c.l.bf16 %v1919
    %v1991 = vunpack.c.h.bf16 %v1919
    %v1993 = vsel %vm1098, %v1872, 0
    %v1996 = vsel %vm1098, %v1875, 0
    %v1999 = vsel %vm1098, %v1878, 0
    %v2002 = vsel %vm1098, %v1881, 0
    %2004 = vmatpush.msra.mxu0 %v1950
    %2005 = vmatpush.msra.mxu0 %v1948
    %2006 = vmatpush.msra.mxu0 %v1946
    %2007 = vmatpush.msra.mxu0 %v1944
    %2008 = vmatpush.msra.mxu0 %v1942
    %2009 = vmatpush.msra.mxu0 %v1940
    %2010 = vmatpush.msra.mxu0 %v1938
    %2011 = vmatpush.msra.mxu0 %v1936
    %2012 = vmatpush.msra.mxu0 %v1934
    %2013 = vmatpush.msra.mxu0 %v1932
    %2014 = vmatpush.msra.mxu0 %v1930
    %2015 = vmatpush.msra.mxu0 %v1928
    %2016 = vmatpush.msra.mxu0 %v1926
    %2017 = vmatpush.msra.mxu0 %v1924
    %2018 = vmatpush.msra.mxu0 %v1922
    %2019 = vmatpush.msra.mxu0 %v1920
    %2020 = vmatmul.f32.gmra.mxu0 %v1814
    %v2021 = vpop.f32.mrf.mxu0
    %v2022 = vadd.f32 0.0, %v2021
    %2023 = vmatmul.f32.gmra.mxu0 %v1817
    %v2024 = vpop.f32.mrf.mxu0
    %v2025 = vadd.f32 0.0, %v2024
    %2026 = vmatmul.f32.gmra.mxu0 %v1820
    %v2027 = vpop.f32.mrf.mxu0
    %v2028 = vadd.f32 0.0, %v2027
    %2029 = vmatmul.f32.gmra.mxu0 %v1823
    %v2030 = vpop.f32.mrf.mxu0
    %v2031 = vadd.f32 0.0, %v2030
    %2032 = vdwg.mxu0
    %2033 = vmatpush.msra.mxu0 %v1982
    %2034 = vmatpush.msra.mxu0 %v1980
    %2035 = vmatpush.msra.mxu0 %v1978
    %2036 = vmatpush.msra.mxu0 %v1976
    %2037 = vmatpush.msra.mxu0 %v1974
    %2038 = vmatpush.msra.mxu0 %v1972
    %2039 = vmatpush.msra.mxu0 %v1970
    %2040 = vmatpush.msra.mxu0 %v1968
    %2041 = vmatpush.msra.mxu0 %v1966
    %2042 = vmatpush.msra.mxu0 %v1964
    %2043 = vmatpush.msra.mxu0 %v1962
    %2044 = vmatpush.msra.mxu0 %v1960
    %2045 = vmatpush.msra.mxu0 %v1958
    %2046 = vmatpush.msra.mxu0 %v1956
    %2047 = vmatpush.msra.mxu0 %v1954
    %2048 = vmatpush.msra.mxu0 %v1952
    %2049 = vmatmul.f32.gmra.mxu0 %v1843
    %v2050 = vpop.f32.mrf.mxu0
    %v2051 = vadd.f32 %v2022, %v2050
    %2052 = vmatmul.f32.gmra.mxu0 %v1846
    %v2053 = vpop.f32.mrf.mxu0
    %v2054 = vadd.f32 %v2025, %v2053
    %2055 = vmatmul.f32.gmra.mxu0 %v1849
    %v2056 = vpop.f32.mrf.mxu0
    %v2057 = vadd.f32 %v2028, %v2056
    %2058 = vmatmul.f32.gmra.mxu0 %v1852
    %v2059 = vpop.f32.mrf.mxu0
    %v2060 = vadd.f32 %v2031, %v2059
    %2061 = vdwg.mxu0
    %2062 = vmatpush.msra.mxu0 0.0
    %2063 = vmatpush.msra.mxu0 0.0
    %2064 = vmatpush.msra.mxu0 0.0
    %2065 = vmatpush.msra.mxu0 0.0
    %2066 = vmatpush.msra.mxu0 0.0
    %2067 = vmatpush.msra.mxu0 0.0
    %2068 = vmatpush.msra.mxu0 0.0
    %2069 = vmatpush.msra.mxu0 0.0
    %2070 = vmatpush.msra.mxu0 0.0
    %2071 = vmatpush.msra.mxu0 0.0
    %2072 = vmatpush.msra.mxu0 0.0
    %2073 = vmatpush.msra.mxu0 0.0
    %2074 = vmatpush.msra.mxu0 %v1990
    %2075 = vmatpush.msra.mxu0 %v1988
    %2076 = vmatpush.msra.mxu0 %v1986
    %2077 = vmatpush.msra.mxu0 %v1984
    %2078 = vmatmul.f32.gmra.mxu0 %v1993
    %v2079 = vpop.f32.mrf.mxu0
    %v2080 = vadd.f32 %v2051, %v2079
    %2081 = vmatmul.f32.gmra.mxu0 %v1996
    %v2082 = vpop.f32.mrf.mxu0
    %v2083 = vadd.f32 %v2054, %v2082
    %2084 = vmatmul.f32.gmra.mxu0 %v1999
    %v2085 = vpop.f32.mrf.mxu0
    %v2086 = vadd.f32 %v2057, %v2085
    %2087 = vmatmul.f32.gmra.mxu0 %v2002
    %v2088 = vpop.f32.mrf.mxu0
    %v2089 = vadd.f32 %v2060, %v2088
    %2090 = vdwg.mxu0
    %2091 = vmatpush.msra.mxu0 %v1951
    %2092 = vmatpush.msra.mxu0 %v1949
    %2093 = vmatpush.msra.mxu0 %v1947
    %2094 = vmatpush.msra.mxu0 %v1945
    %2095 = vmatpush.msra.mxu0 %v1943
    %2096 = vmatpush.msra.mxu0 %v1941
    %2097 = vmatpush.msra.mxu0 %v1939
    %2098 = vmatpush.msra.mxu0 %v1937
    %2099 = vmatpush.msra.mxu0 %v1935
    %2100 = vmatpush.msra.mxu0 %v1933
    %2101 = vmatpush.msra.mxu0 %v1931
    %2102 = vmatpush.msra.mxu0 %v1929
    %2103 = vmatpush.msra.mxu0 %v1927
    %2104 = vmatpush.msra.mxu0 %v1925
    %2105 = vmatpush.msra.mxu0 %v1923
    %2106 = vmatpush.msra.mxu0 %v1921
    %2107 = vmatmul.f32.gmra.mxu0 %v1814
    %v2108 = vpop.f32.mrf.mxu0
    %v2109 = vadd.f32 0.0, %v2108
    %2110 = vmatmul.f32.gmra.mxu0 %v1817
    %v2111 = vpop.f32.mrf.mxu0
    %v2112 = vadd.f32 0.0, %v2111
    %2113 = vmatmul.f32.gmra.mxu0 %v1820
    %v2114 = vpop.f32.mrf.mxu0
    %v2115 = vadd.f32 0.0, %v2114
    %2116 = vmatmul.f32.gmra.mxu0 %v1823
    %v2117 = vpop.f32.mrf.mxu0
    %v2118 = vadd.f32 0.0, %v2117
    %2119 = vdwg.mxu0
    %2120 = vmatpush.msra.mxu0 %v1983
    %2121 = vmatpush.msra.mxu0 %v1981
    %2122 = vmatpush.msra.mxu0 %v1979
    %2123 = vmatpush.msra.mxu0 %v1977
    %2124 = vmatpush.msra.mxu0 %v1975
    %2125 = vmatpush.msra.mxu0 %v1973
    %2126 = vmatpush.msra.mxu0 %v1971
    %2127 = vmatpush.msra.mxu0 %v1969
    %2128 = vmatpush.msra.mxu0 %v1967
    %2129 = vmatpush.msra.mxu0 %v1965
    %2130 = vmatpush.msra.mxu0 %v1963
    %2131 = vmatpush.msra.mxu0 %v1961
    %2132 = vmatpush.msra.mxu0 %v1959
    %2133 = vmatpush.msra.mxu0 %v1957
    %2134 = vmatpush.msra.mxu0 %v1955
    %2135 = vmatpush.msra.mxu0 %v1953
    %2136 = vmatmul.f32.gmra.mxu0 %v1843
    %v2137 = vpop.f32.mrf.mxu0
    %v2138 = vadd.f32 %v2109, %v2137
    %2139 = vmatmul.f32.gmra.mxu0 %v1846
    %v2140 = vpop.f32.mrf.mxu0
    %v2141 = vadd.f32 %v2112, %v2140
    %2142 = vmatmul.f32.gmra.mxu0 %v1849
    %v2143 = vpop.f32.mrf.mxu0
    %v2144 = vadd.f32 %v2115, %v2143
    %2145 = vmatmul.f32.gmra.mxu0 %v1852
    %v2146 = vpop.f32.mrf.mxu0
    %v2147 = vadd.f32 %v2118, %v2146
    %2148 = vdwg.mxu0
    %2149 = vmatpush.msra.mxu0 0.0
    %2150 = vmatpush.msra.mxu0 0.0
    %2151 = vmatpush.msra.mxu0 0.0
    %2152 = vmatpush.msra.mxu0 0.0
    %2153 = vmatpush.msra.mxu0 0.0
    %2154 = vmatpush.msra.mxu0 0.0
    %2155 = vmatpush.msra.mxu0 0.0
    %2156 = vmatpush.msra.mxu0 0.0
    %2157 = vmatpush.msra.mxu0 0.0
    %2158 = vmatpush.msra.mxu0 0.0
    %2159 = vmatpush.msra.mxu0 0.0
    %2160 = vmatpush.msra.mxu0 0.0
    %2161 = vmatpush.msra.mxu0 %v1991
    %2162 = vmatpush.msra.mxu0 %v1989
    %2163 = vmatpush.msra.mxu0 %v1987
    %2164 = vmatpush.msra.mxu0 %v1985
    %2165 = vmatmul.f32.gmra.mxu0 %v1993
    %v2166 = vpop.f32.mrf.mxu0
    %v2167 = vadd.f32 %v2138, %v2166
    %2168 = vmatmul.f32.gmra.mxu0 %v1996
    %v2169 = vpop.f32.mrf.mxu0
    %v2170 = vadd.f32 %v2141, %v2169
    %2171 = vmatmul.f32.gmra.mxu0 %v1999
    %v2172 = vpop.f32.mrf.mxu0
    %v2173 = vadd.f32 %v2144, %v2172
    %2174 = vmatmul.f32.gmra.mxu0 %v2002
    %v2175 = vpop.f32.mrf.mxu0
    %v2176 = vadd.f32 %v2147, %v2175
    %2177 = vdwg.mxu0
    %v2179 = vsel %vm1098, %v1660, 0
    %v2182 = vsel %vm1098, %v1663, 0
    %v2185 = vsel %vm1098, %v1666, 0
    %v2188 = vsel %vm1098, %v1669, 0
    %2190 = vmatpush.msra.mxu0 %v1737
    %2191 = vmatpush.msra.mxu0 %v1735
    %2192 = vmatpush.msra.mxu0 %v1733
    %2193 = vmatpush.msra.mxu0 %v1731
    %2194 = vmatpush.msra.mxu0 %v1729
    %2195 = vmatpush.msra.mxu0 %v1727
    %2196 = vmatpush.msra.mxu0 %v1725
    %2197 = vmatpush.msra.mxu0 %v1723
    %2198 = vmatpush.msra.mxu0 %v1721
    %2199 = vmatpush.msra.mxu0 %v1719
    %2200 = vmatpush.msra.mxu0 %v1717
    %2201 = vmatpush.msra.mxu0 %v1715
    %2202 = vmatpush.msra.mxu0 %v1713
    %2203 = vmatpush.msra.mxu0 %v1711
    %2204 = vmatpush.msra.mxu0 %v1709
    %2205 = vmatpush.msra.mxu0 %v1707
    %2206 = vmatmul.f32.gmra.mxu0 %v1602
    %v2207 = vpop.f32.mrf.mxu0
    %v2208 = vadd.f32 %v2080, %v2207
    %2209 = vmatmul.f32.gmra.mxu0 %v1605
    %v2210 = vpop.f32.mrf.mxu0
    %v2211 = vadd.f32 %v2083, %v2210
    %2212 = vmatmul.f32.gmra.mxu0 %v1608
    %v2213 = vpop.f32.mrf.mxu0
    %v2214 = vadd.f32 %v2086, %v2213
    %2215 = vmatmul.f32.gmra.mxu0 %v1611
    %v2216 = vpop.f32.mrf.mxu0
    %v2217 = vadd.f32 %v2089, %v2216
    %2218 = vdwg.mxu0
    %2219 = vmatpush.msra.mxu0 %v1769
    %2220 = vmatpush.msra.mxu0 %v1767
    %2221 = vmatpush.msra.mxu0 %v1765
    %2222 = vmatpush.msra.mxu0 %v1763
    %2223 = vmatpush.msra.mxu0 %v1761
    %2224 = vmatpush.msra.mxu0 %v1759
    %2225 = vmatpush.msra.mxu0 %v1757
    %2226 = vmatpush.msra.mxu0 %v1755
    %2227 = vmatpush.msra.mxu0 %v1753
    %2228 = vmatpush.msra.mxu0 %v1751
    %2229 = vmatpush.msra.mxu0 %v1749
    %2230 = vmatpush.msra.mxu0 %v1747
    %2231 = vmatpush.msra.mxu0 %v1745
    %2232 = vmatpush.msra.mxu0 %v1743
    %2233 = vmatpush.msra.mxu0 %v1741
    %2234 = vmatpush.msra.mxu0 %v1739
    %2235 = vmatmul.f32.gmra.mxu0 %v1631
    %v2236 = vpop.f32.mrf.mxu0
    %v2237 = vadd.f32 %v2208, %v2236
    %2238 = vmatmul.f32.gmra.mxu0 %v1634
    %v2239 = vpop.f32.mrf.mxu0
    %v2240 = vadd.f32 %v2211, %v2239
    %2241 = vmatmul.f32.gmra.mxu0 %v1637
    %v2242 = vpop.f32.mrf.mxu0
    %v2243 = vadd.f32 %v2214, %v2242
    %2244 = vmatmul.f32.gmra.mxu0 %v1640
    %v2245 = vpop.f32.mrf.mxu0
    %v2246 = vadd.f32 %v2217, %v2245
    %2247 = vdwg.mxu0
    %2248 = vmatpush.msra.mxu0 0.0
    %2249 = vmatpush.msra.mxu0 0.0
    %2250 = vmatpush.msra.mxu0 0.0
    %2251 = vmatpush.msra.mxu0 0.0
    %2252 = vmatpush.msra.mxu0 0.0
    %2253 = vmatpush.msra.mxu0 0.0
    %2254 = vmatpush.msra.mxu0 0.0
    %2255 = vmatpush.msra.mxu0 0.0
    %2256 = vmatpush.msra.mxu0 0.0
    %2257 = vmatpush.msra.mxu0 0.0
    %2258 = vmatpush.msra.mxu0 0.0
    %2259 = vmatpush.msra.mxu0 0.0
    %2260 = vmatpush.msra.mxu0 %v1777
    %2261 = vmatpush.msra.mxu0 %v1775
    %2262 = vmatpush.msra.mxu0 %v1773
    %2263 = vmatpush.msra.mxu0 %v1771
    %2264 = vmatmul.f32.gmra.mxu0 %v2179
    %v2265 = vpop.f32.mrf.mxu0
    %v2266 = vadd.f32 %v2237, %v2265
    %2267 = vmatmul.f32.gmra.mxu0 %v2182
    %v2268 = vpop.f32.mrf.mxu0
    %v2269 = vadd.f32 %v2240, %v2268
    %2270 = vmatmul.f32.gmra.mxu0 %v2185
    %v2271 = vpop.f32.mrf.mxu0
    %v2272 = vadd.f32 %v2243, %v2271
    %2273 = vmatmul.f32.gmra.mxu0 %v2188
    %v2274 = vpop.f32.mrf.mxu0
    %v2275 = vadd.f32 %v2246, %v2274
    %2276 = vdwg.mxu0
    %2277 = vmatpush.msra.mxu0 %v1738
    %2278 = vmatpush.msra.mxu0 %v1736
    %2279 = vmatpush.msra.mxu0 %v1734
    %2280 = vmatpush.msra.mxu0 %v1732
    %2281 = vmatpush.msra.mxu0 %v1730
    %2282 = vmatpush.msra.mxu0 %v1728
    %2283 = vmatpush.msra.mxu0 %v1726
    %2284 = vmatpush.msra.mxu0 %v1724
    %2285 = vmatpush.msra.mxu0 %v1722
    %2286 = vmatpush.msra.mxu0 %v1720
    %2287 = vmatpush.msra.mxu0 %v1718
    %2288 = vmatpush.msra.mxu0 %v1716
    %2289 = vmatpush.msra.mxu0 %v1714
    %2290 = vmatpush.msra.mxu0 %v1712
    %2291 = vmatpush.msra.mxu0 %v1710
    %2292 = vmatpush.msra.mxu0 %v1708
    %2293 = vmatmul.f32.gmra.mxu0 %v1602
    %v2294 = vpop.f32.mrf.mxu0
    %v2295 = vadd.f32 %v2167, %v2294
    %2296 = vmatmul.f32.gmra.mxu0 %v1605
    %v2297 = vpop.f32.mrf.mxu0
    %v2298 = vadd.f32 %v2170, %v2297
    %2299 = vmatmul.f32.gmra.mxu0 %v1608
    %v2300 = vpop.f32.mrf.mxu0
    %v2301 = vadd.f32 %v2173, %v2300
    %2302 = vmatmul.f32.gmra.mxu0 %v1611
    %v2303 = vpop.f32.mrf.mxu0
    %v2304 = vadd.f32 %v2176, %v2303
    %2305 = vdwg.mxu0
    %2306 = vmatpush.msra.mxu0 %v1770
    %2307 = vmatpush.msra.mxu0 %v1768
    %2308 = vmatpush.msra.mxu0 %v1766
    %2309 = vmatpush.msra.mxu0 %v1764
    %2310 = vmatpush.msra.mxu0 %v1762
    %2311 = vmatpush.msra.mxu0 %v1760
    %2312 = vmatpush.msra.mxu0 %v1758
    %2313 = vmatpush.msra.mxu0 %v1756
    %2314 = vmatpush.msra.mxu0 %v1754
    %2315 = vmatpush.msra.mxu0 %v1752
    %2316 = vmatpush.msra.mxu0 %v1750
    %2317 = vmatpush.msra.mxu0 %v1748
    %2318 = vmatpush.msra.mxu0 %v1746
    %2319 = vmatpush.msra.mxu0 %v1744
    %2320 = vmatpush.msra.mxu0 %v1742
    %2321 = vmatpush.msra.mxu0 %v1740
    %2322 = vmatmul.f32.gmra.mxu0 %v1631
    %v2323 = vpop.f32.mrf.mxu0
    %v2324 = vadd.f32 %v2295, %v2323
    %2325 = vmatmul.f32.gmra.mxu0 %v1634
    %v2326 = vpop.f32.mrf.mxu0
    %v2327 = vadd.f32 %v2298, %v2326
    %2328 = vmatmul.f32.gmra.mxu0 %v1637
    %v2329 = vpop.f32.mrf.mxu0
    %v2330 = vadd.f32 %v2301, %v2329
    %2331 = vmatmul.f32.gmra.mxu0 %v1640
    %v2332 = vpop.f32.mrf.mxu0
    %v2333 = vadd.f32 %v2304, %v2332
    %2334 = vdwg.mxu0
    %2335 = vmatpush.msra.mxu0 0.0
    %2336 = vmatpush.msra.mxu0 0.0
    %2337 = vmatpush.msra.mxu0 0.0
    %2338 = vmatpush.msra.mxu0 0.0
    %2339 = vmatpush.msra.mxu0 0.0
    %2340 = vmatpush.msra.mxu0 0.0
    %2341 = vmatpush.msra.mxu0 0.0
    %2342 = vmatpush.msra.mxu0 0.0
    %2343 = vmatpush.msra.mxu0 0.0
    %2344 = vmatpush.msra.mxu0 0.0
    %2345 = vmatpush.msra.mxu0 0.0
    %2346 = vmatpush.msra.mxu0 0.0
    %2347 = vmatpush.msra.mxu0 %v1778
    %2348 = vmatpush.msra.mxu0 %v1776
    %2349 = vmatpush.msra.mxu0 %v1774
    %2350 = vmatpush.msra.mxu0 %v1772
    %2351 = vmatmul.f32.gmra.mxu0 %v2179
    %v2352 = vpop.f32.mrf.mxu0
    %v2353 = vadd.f32 %v2324, %v2352
    %2354 = vmatmul.f32.gmra.mxu0 %v2182
    %v2355 = vpop.f32.mrf.mxu0
    %v2356 = vadd.f32 %v2327, %v2355
    %2357 = vmatmul.f32.gmra.mxu0 %v2185
    %v2358 = vpop.f32.mrf.mxu0
    %v2359 = vadd.f32 %v2330, %v2358
    %2360 = vmatmul.f32.gmra.mxu0 %v2188
    %v2361 = vpop.f32.mrf.mxu0
    %v2362 = vadd.f32 %v2333, %v2361
    %2363 = vdwg.mxu0
    %s2364 = scalar_lea.vmem %s5, 64
    %v2365 = vld [vmem:[%s2364] sm:$0xff]
    %v2366 = vld [vmem:[%s2364 + $0x8] sm:$0xff]
    %v2367 = vld [vmem:[%s2364 + $0x10] sm:$0xff]
    %v2368 = vld [vmem:[%s2364 + $0x18] sm:$0x3f]
    %v2370 = vsel %vm1571, %v2365, 0
    %v2373 = vsel %vm1571, %v2366, 0
    %v2376 = vsel %vm1571, %v2367, 0
    %v2379 = vsel %vm1571, %v2368, 0
    %2381 = vmatpush.msra.mxu0 0.0
    %2382 = vmatpush.msra.mxu0 0.0
    %2383 = vmatpush.msra.mxu0 0.0
    %2384 = vmatpush.msra.mxu0 0.0
    %2385 = vmatpush.msra.mxu0 0.0
    %2386 = vmatpush.msra.mxu0 0.0
    %2387 = vmatpush.msra.mxu0 0.0
    %2388 = vmatpush.msra.mxu0 %v1564
    %2389 = vmatpush.msra.mxu0 %v1561
    %2390 = vmatpush.msra.mxu0 %v1558
    %2391 = vmatpush.msra.mxu0 %v1555
    %2392 = vmatpush.msra.mxu0 %v1552
    %2393 = vmatpush.msra.mxu0 %v1549
    %2394 = vmatpush.msra.mxu0 %v1546
    %2395 = vmatpush.msra.mxu0 %v1543
    %2396 = vmatpush.msra.mxu0 %v1540
    %2397 = vmatmul.f32.gmra.mxu0 %v2370
    %v2398 = vpop.f32.mrf.mxu0
    %v2399 = vadd.f32 0.0, %v2398
    %2400 = vmatmul.f32.gmra.mxu0 %v2373
    %v2401 = vpop.f32.mrf.mxu0
    %v2402 = vadd.f32 0.0, %v2401
    %2403 = vmatmul.f32.gmra.mxu0 %v2376
    %v2404 = vpop.f32.mrf.mxu0
    %v2405 = vadd.f32 0.0, %v2404
    %2406 = vmatmul.f32.gmra.mxu0 %v2379
    %v2407 = vpop.f32.mrf.mxu0
    %v2408 = vadd.f32 0.0, %v2407
    %2409 = vdwg.mxu0
    %2410 = vmatpush.msra.mxu0 0.0
    %2411 = vmatpush.msra.mxu0 0.0
    %2412 = vmatpush.msra.mxu0 0.0
    %2413 = vmatpush.msra.mxu0 0.0
    %2414 = vmatpush.msra.mxu0 0.0
    %2415 = vmatpush.msra.mxu0 0.0
    %2416 = vmatpush.msra.mxu0 0.0
    %2417 = vmatpush.msra.mxu0 %v1565
    %2418 = vmatpush.msra.mxu0 %v1562
    %2419 = vmatpush.msra.mxu0 %v1559
    %2420 = vmatpush.msra.mxu0 %v1556
    %2421 = vmatpush.msra.mxu0 %v1553
    %2422 = vmatpush.msra.mxu0 %v1550
    %2423 = vmatpush.msra.mxu0 %v1547
    %2424 = vmatpush.msra.mxu0 %v1544
    %2425 = vmatpush.msra.mxu0 %v1541
    %2426 = vmatmul.f32.gmra.mxu0 %v2370
    %v2427 = vpop.f32.mrf.mxu0
    %v2428 = vadd.f32 0.0, %v2427
    %2429 = vmatmul.f32.gmra.mxu0 %v2373
    %v2430 = vpop.f32.mrf.mxu0
    %v2431 = vadd.f32 0.0, %v2430
    %2432 = vmatmul.f32.gmra.mxu0 %v2376
    %v2433 = vpop.f32.mrf.mxu0
    %v2434 = vadd.f32 0.0, %v2433
    %2435 = vmatmul.f32.gmra.mxu0 %v2379
    %v2436 = vpop.f32.mrf.mxu0
    %v2437 = vadd.f32 0.0, %v2436
    %2438 = vdwg.mxu0
    %2439 = vmatpush.msra.mxu0 0.0
    %2440 = vmatpush.msra.mxu0 0.0
    %2441 = vmatpush.msra.mxu0 0.0
    %2442 = vmatpush.msra.mxu0 0.0
    %2443 = vmatpush.msra.mxu0 0.0
    %2444 = vmatpush.msra.mxu0 0.0
    %2445 = vmatpush.msra.mxu0 0.0
    %2446 = vmatpush.msra.mxu0 %v1566
    %2447 = vmatpush.msra.mxu0 %v1563
    %2448 = vmatpush.msra.mxu0 %v1560
    %2449 = vmatpush.msra.mxu0 %v1557
    %2450 = vmatpush.msra.mxu0 %v1554
    %2451 = vmatpush.msra.mxu0 %v1551
    %2452 = vmatpush.msra.mxu0 %v1548
    %2453 = vmatpush.msra.mxu0 %v1545
    %2454 = vmatpush.msra.mxu0 %v1542
    %2455 = vmatmul.f32.gmra.mxu0 %v2370
    %v2456 = vpop.f32.mrf.mxu0
    %v2457 = vadd.f32 0.0, %v2456
    %2458 = vmatmul.f32.gmra.mxu0 %v2373
    %v2459 = vpop.f32.mrf.mxu0
    %v2460 = vadd.f32 0.0, %v2459
    %2461 = vmatmul.f32.gmra.mxu0 %v2376
    %v2462 = vpop.f32.mrf.mxu0
    %v2463 = vadd.f32 0.0, %v2462
    %2464 = vmatmul.f32.gmra.mxu0 %v2379
    %v2465 = vpop.f32.mrf.mxu0
    %v2466 = vadd.f32 0.0, %v2465
    %2467 = vdwg.mxu0
    %s2468 = scalar_lea.vmem %s6, 576
    %v2469 = vld [vmem:[%s2468] sm:$0xff]
    %v2470 = vld [vmem:[%s2468 + $0x8] sm:$0xff]
    %v2471 = vld [vmem:[%s2468 + $0x10] sm:$0xff]
    %v2472 = vld [vmem:[%s2468 + $0x18] sm:$0xff]
    %v2473 = vld [vmem:[%s2468 + $0x20] sm:$0xff]
    %v2474 = vld [vmem:[%s2468 + $0x28] sm:$0xff]
    %v2475 = vld [vmem:[%s2468 + $0x30] sm:$0xff]
    %v2476 = vld [vmem:[%s2468 + $0x38] sm:$0xff]
    %v2477 = vld [vmem:[%s2468 + $0x40] sm:$0xff]
    %v2478 = vld [vmem:[%s2468 + $0x48] sm:$0xff]
    %v2479 = vld [vmem:[%s2468 + $0x50] sm:$0xff]
    %v2480 = vld [vmem:[%s2468 + $0x58] sm:$0xff]
    %v2481 = vld [vmem:[%s2468 + $0x60] sm:$0xff]
    %v2482 = vld [vmem:[%s2468 + $0x68] sm:$0xff]
    %v2483 = vld [vmem:[%s2468 + $0x70] sm:$0xff]
    %v2484 = vld [vmem:[%s2468 + $0x78] sm:$0xff]
    %v2485 = vld [vmem:[%s2468 + $0x80] sm:$0xff]
    %v2486 = vld [vmem:[%s2468 + $0x88] sm:$0xff]
    %v2487 = vld [vmem:[%s2468 + $0x90] sm:$0xff]
    %v2488 = vld [vmem:[%s2468 + $0x98] sm:$0xff]
    %v2489 = vld [vmem:[%s2468 + $0xa0] sm:$0xff]
    %v2490 = vld [vmem:[%s2468 + $0xa8] sm:$0xff]
    %v2491 = vld [vmem:[%s2468 + $0xb0] sm:$0xff]
    %v2492 = vld [vmem:[%s2468 + $0xb8] sm:$0xff]
    %v2493 = vld [vmem:[%s2468 + $0xc0] sm:$0xff]
    %v2494 = vld [vmem:[%s2468 + $0xc8] sm:$0xff]
    %v2495 = vld [vmem:[%s2468 + $0xd0] sm:$0xff]
    %v2496 = vld [vmem:[%s2468 + $0xd8] sm:$0xff]
    %v2497 = vld [vmem:[%s2468 + $0xe0] sm:$0xff]
    %v2498 = vld [vmem:[%s2468 + $0xe8] sm:$0xff]
    %v2499 = vld [vmem:[%s2468 + $0xf0] sm:$0xff]
    %v2500 = vld [vmem:[%s2468 + $0xf8] sm:$0xff]
    %v2501 = vld [vmem:[%s2468 + $0x100] sm:$0xff]
    %v2502 = vld [vmem:[%s2468 + $0x108] sm:$0xff]
    %v2503 = vld [vmem:[%s2468 + $0x110] sm:$0xff]
    %v2504 = vld [vmem:[%s2468 + $0x118] sm:$0xff]
    %v2505 = vunpack.c.l.bf16 %v2469
    %v2506 = vunpack.c.h.bf16 %v2469
    %v2507 = vunpack.c.l.bf16 %v2470
    %v2508 = vunpack.c.h.bf16 %v2470
    %v2509 = vunpack.c.l.bf16 %v2471
    %v2510 = vunpack.c.h.bf16 %v2471
    %v2511 = vunpack.c.l.bf16 %v2472
    %v2512 = vunpack.c.h.bf16 %v2472
    %v2513 = vunpack.c.l.bf16 %v2473
    %v2514 = vunpack.c.h.bf16 %v2473
    %v2515 = vunpack.c.l.bf16 %v2474
    %v2516 = vunpack.c.h.bf16 %v2474
    %v2517 = vunpack.c.l.bf16 %v2475
    %v2518 = vunpack.c.h.bf16 %v2475
    %v2519 = vunpack.c.l.bf16 %v2476
    %v2520 = vunpack.c.h.bf16 %v2476
    %v2521 = vunpack.c.l.bf16 %v2477
    %v2522 = vunpack.c.h.bf16 %v2477
    %v2523 = vunpack.c.l.bf16 %v2478
    %v2524 = vunpack.c.h.bf16 %v2478
    %v2525 = vunpack.c.l.bf16 %v2479
    %v2526 = vunpack.c.h.bf16 %v2479
    %v2527 = vunpack.c.l.bf16 %v2480
    %v2528 = vunpack.c.h.bf16 %v2480
    %v2529 = vunpack.c.l.bf16 %v2481
    %v2530 = vunpack.c.h.bf16 %v2481
    %v2531 = vunpack.c.l.bf16 %v2482
    %v2532 = vunpack.c.h.bf16 %v2482
    %v2533 = vunpack.c.l.bf16 %v2483
    %v2534 = vunpack.c.h.bf16 %v2483
    %v2535 = vunpack.c.l.bf16 %v2484
    %v2536 = vunpack.c.h.bf16 %v2484
    %v2537 = vunpack.c.l.bf16 %v2485
    %v2538 = vunpack.c.h.bf16 %v2485
    %v2539 = vunpack.c.l.bf16 %v2486
    %v2540 = vunpack.c.h.bf16 %v2486
    %v2541 = vunpack.c.l.bf16 %v2487
    %v2542 = vunpack.c.h.bf16 %v2487
    %v2543 = vunpack.c.l.bf16 %v2488
    %v2544 = vunpack.c.h.bf16 %v2488
    %v2545 = vunpack.c.l.bf16 %v2489
    %v2546 = vunpack.c.h.bf16 %v2489
    %v2547 = vunpack.c.l.bf16 %v2490
    %v2548 = vunpack.c.h.bf16 %v2490
    %v2549 = vunpack.c.l.bf16 %v2491
    %v2550 = vunpack.c.h.bf16 %v2491
    %v2551 = vunpack.c.l.bf16 %v2492
    %v2552 = vunpack.c.h.bf16 %v2492
    %v2553 = vunpack.c.l.bf16 %v2493
    %v2554 = vunpack.c.h.bf16 %v2493
    %v2555 = vunpack.c.l.bf16 %v2494
    %v2556 = vunpack.c.h.bf16 %v2494
    %v2557 = vunpack.c.l.bf16 %v2495
    %v2558 = vunpack.c.h.bf16 %v2495
    %v2559 = vunpack.c.l.bf16 %v2496
    %v2560 = vunpack.c.h.bf16 %v2496
    %v2561 = vunpack.c.l.bf16 %v2497
    %v2562 = vunpack.c.h.bf16 %v2497
    %v2563 = vunpack.c.l.bf16 %v2498
    %v2564 = vunpack.c.h.bf16 %v2498
    %v2565 = vunpack.c.l.bf16 %v2499
    %v2566 = vunpack.c.h.bf16 %v2499
    %v2567 = vunpack.c.l.bf16 %v2500
    %v2568 = vunpack.c.h.bf16 %v2500
    %v2569 = vunpack.c.l.bf16 %v2501
    %v2570 = vunpack.c.h.bf16 %v2501
    %v2571 = vunpack.c.l.bf16 %v2502
    %v2572 = vunpack.c.h.bf16 %v2502
    %v2573 = vunpack.c.l.bf16 %v2503
    %v2574 = vunpack.c.h.bf16 %v2503
    %v2575 = vunpack.c.l.bf16 %v2504
    %v2576 = vunpack.c.h.bf16 %v2504
    %v2578 = vsel %vm1098, %v2457, 0
    %v2581 = vsel %vm1098, %v2460, 0
    %v2584 = vsel %vm1098, %v2463, 0
    %v2587 = vsel %vm1098, %v2466, 0
    %2589 = vmatpush.msra.mxu0 %v2535
    %2590 = vmatpush.msra.mxu0 %v2533
    %2591 = vmatpush.msra.mxu0 %v2531
    %2592 = vmatpush.msra.mxu0 %v2529
    %2593 = vmatpush.msra.mxu0 %v2527
    %2594 = vmatpush.msra.mxu0 %v2525
    %2595 = vmatpush.msra.mxu0 %v2523
    %2596 = vmatpush.msra.mxu0 %v2521
    %2597 = vmatpush.msra.mxu0 %v2519
    %2598 = vmatpush.msra.mxu0 %v2517
    %2599 = vmatpush.msra.mxu0 %v2515
    %2600 = vmatpush.msra.mxu0 %v2513
    %2601 = vmatpush.msra.mxu0 %v2511
    %2602 = vmatpush.msra.mxu0 %v2509
    %2603 = vmatpush.msra.mxu0 %v2507
    %2604 = vmatpush.msra.mxu0 %v2505
    %2605 = vmatmul.f32.gmra.mxu0 %v2399
    %v2606 = vpop.f32.mrf.mxu0
    %v2607 = vadd.f32 0.0, %v2606
    %2608 = vmatmul.f32.gmra.mxu0 %v2402
    %v2609 = vpop.f32.mrf.mxu0
    %v2610 = vadd.f32 0.0, %v2609
    %2611 = vmatmul.f32.gmra.mxu0 %v2405
    %v2612 = vpop.f32.mrf.mxu0
    %v2613 = vadd.f32 0.0, %v2612
    %2614 = vmatmul.f32.gmra.mxu0 %v2408
    %v2615 = vpop.f32.mrf.mxu0
    %v2616 = vadd.f32 0.0, %v2615
    %2617 = vdwg.mxu0
    %2618 = vmatpush.msra.mxu0 %v2567
    %2619 = vmatpush.msra.mxu0 %v2565
    %2620 = vmatpush.msra.mxu0 %v2563
    %2621 = vmatpush.msra.mxu0 %v2561
    %2622 = vmatpush.msra.mxu0 %v2559
    %2623 = vmatpush.msra.mxu0 %v2557
    %2624 = vmatpush.msra.mxu0 %v2555
    %2625 = vmatpush.msra.mxu0 %v2553
    %2626 = vmatpush.msra.mxu0 %v2551
    %2627 = vmatpush.msra.mxu0 %v2549
    %2628 = vmatpush.msra.mxu0 %v2547
    %2629 = vmatpush.msra.mxu0 %v2545
    %2630 = vmatpush.msra.mxu0 %v2543
    %2631 = vmatpush.msra.mxu0 %v2541
    %2632 = vmatpush.msra.mxu0 %v2539
    %2633 = vmatpush.msra.mxu0 %v2537
    %2634 = vmatmul.f32.gmra.mxu0 %v2428
    %v2635 = vpop.f32.mrf.mxu0
    %v2636 = vadd.f32 %v2607, %v2635
    %2637 = vmatmul.f32.gmra.mxu0 %v2431
    %v2638 = vpop.f32.mrf.mxu0
    %v2639 = vadd.f32 %v2610, %v2638
    %2640 = vmatmul.f32.gmra.mxu0 %v2434
    %v2641 = vpop.f32.mrf.mxu0
    %v2642 = vadd.f32 %v2613, %v2641
    %2643 = vmatmul.f32.gmra.mxu0 %v2437
    %v2644 = vpop.f32.mrf.mxu0
    %v2645 = vadd.f32 %v2616, %v2644
    %2646 = vdwg.mxu0
    %2647 = vmatpush.msra.mxu0 0.0
    %2648 = vmatpush.msra.mxu0 0.0
    %2649 = vmatpush.msra.mxu0 0.0
    %2650 = vmatpush.msra.mxu0 0.0
    %2651 = vmatpush.msra.mxu0 0.0
    %2652 = vmatpush.msra.mxu0 0.0
    %2653 = vmatpush.msra.mxu0 0.0
    %2654 = vmatpush.msra.mxu0 0.0
    %2655 = vmatpush.msra.mxu0 0.0
    %2656 = vmatpush.msra.mxu0 0.0
    %2657 = vmatpush.msra.mxu0 0.0
    %2658 = vmatpush.msra.mxu0 0.0
    %2659 = vmatpush.msra.mxu0 %v2575
    %2660 = vmatpush.msra.mxu0 %v2573
    %2661 = vmatpush.msra.mxu0 %v2571
    %2662 = vmatpush.msra.mxu0 %v2569
    %2663 = vmatmul.f32.gmra.mxu0 %v2578
    %v2664 = vpop.f32.mrf.mxu0
    %v2665 = vadd.f32 %v2636, %v2664
    %2666 = vmatmul.f32.gmra.mxu0 %v2581
    %v2667 = vpop.f32.mrf.mxu0
    %v2668 = vadd.f32 %v2639, %v2667
    %2669 = vmatmul.f32.gmra.mxu0 %v2584
    %v2670 = vpop.f32.mrf.mxu0
    %v2671 = vadd.f32 %v2642, %v2670
    %2672 = vmatmul.f32.gmra.mxu0 %v2587
    %v2673 = vpop.f32.mrf.mxu0
    %v2674 = vadd.f32 %v2645, %v2673
    %2675 = vdwg.mxu0
    %2676 = vmatpush.msra.mxu0 %v2536
    %2677 = vmatpush.msra.mxu0 %v2534
    %2678 = vmatpush.msra.mxu0 %v2532
    %2679 = vmatpush.msra.mxu0 %v2530
    %2680 = vmatpush.msra.mxu0 %v2528
    %2681 = vmatpush.msra.mxu0 %v2526
    %2682 = vmatpush.msra.mxu0 %v2524
    %2683 = vmatpush.msra.mxu0 %v2522
    %2684 = vmatpush.msra.mxu0 %v2520
    %2685 = vmatpush.msra.mxu0 %v2518
    %2686 = vmatpush.msra.mxu0 %v2516
    %2687 = vmatpush.msra.mxu0 %v2514
    %2688 = vmatpush.msra.mxu0 %v2512
    %2689 = vmatpush.msra.mxu0 %v2510
    %2690 = vmatpush.msra.mxu0 %v2508
    %2691 = vmatpush.msra.mxu0 %v2506
    %2692 = vmatmul.f32.gmra.mxu0 %v2399
    %v2693 = vpop.f32.mrf.mxu0
    %v2694 = vadd.f32 0.0, %v2693
    %2695 = vmatmul.f32.gmra.mxu0 %v2402
    %v2696 = vpop.f32.mrf.mxu0
    %v2697 = vadd.f32 0.0, %v2696
    %2698 = vmatmul.f32.gmra.mxu0 %v2405
    %v2699 = vpop.f32.mrf.mxu0
    %v2700 = vadd.f32 0.0, %v2699
    %2701 = vmatmul.f32.gmra.mxu0 %v2408
    %v2702 = vpop.f32.mrf.mxu0
    %v2703 = vadd.f32 0.0, %v2702
    %2704 = vdwg.mxu0
    %2705 = vmatpush.msra.mxu0 %v2568
    %2706 = vmatpush.msra.mxu0 %v2566
    %2707 = vmatpush.msra.mxu0 %v2564
    %2708 = vmatpush.msra.mxu0 %v2562
    %2709 = vmatpush.msra.mxu0 %v2560
    %2710 = vmatpush.msra.mxu0 %v2558
    %2711 = vmatpush.msra.mxu0 %v2556
    %2712 = vmatpush.msra.mxu0 %v2554
    %2713 = vmatpush.msra.mxu0 %v2552
    %2714 = vmatpush.msra.mxu0 %v2550
    %2715 = vmatpush.msra.mxu0 %v2548
    %2716 = vmatpush.msra.mxu0 %v2546
    %2717 = vmatpush.msra.mxu0 %v2544
    %2718 = vmatpush.msra.mxu0 %v2542
    %2719 = vmatpush.msra.mxu0 %v2540
    %2720 = vmatpush.msra.mxu0 %v2538
    %2721 = vmatmul.f32.gmra.mxu0 %v2428
    %v2722 = vpop.f32.mrf.mxu0
    %v2723 = vadd.f32 %v2694, %v2722
    %2724 = vmatmul.f32.gmra.mxu0 %v2431
    %v2725 = vpop.f32.mrf.mxu0
    %v2726 = vadd.f32 %v2697, %v2725
    %2727 = vmatmul.f32.gmra.mxu0 %v2434
    %v2728 = vpop.f32.mrf.mxu0
    %v2729 = vadd.f32 %v2700, %v2728
    %2730 = vmatmul.f32.gmra.mxu0 %v2437
    %v2731 = vpop.f32.mrf.mxu0
    %v2732 = vadd.f32 %v2703, %v2731
    %2733 = vdwg.mxu0
    %2734 = vmatpush.msra.mxu0 0.0
    %2735 = vmatpush.msra.mxu0 0.0
    %2736 = vmatpush.msra.mxu0 0.0
    %2737 = vmatpush.msra.mxu0 0.0
    %2738 = vmatpush.msra.mxu0 0.0
    %2739 = vmatpush.msra.mxu0 0.0
    %2740 = vmatpush.msra.mxu0 0.0
    %2741 = vmatpush.msra.mxu0 0.0
    %2742 = vmatpush.msra.mxu0 0.0
    %2743 = vmatpush.msra.mxu0 0.0
    %2744 = vmatpush.msra.mxu0 0.0
    %2745 = vmatpush.msra.mxu0 0.0
    %2746 = vmatpush.msra.mxu0 %v2576
    %2747 = vmatpush.msra.mxu0 %v2574
    %2748 = vmatpush.msra.mxu0 %v2572
    %2749 = vmatpush.msra.mxu0 %v2570
    %2750 = vmatmul.f32.gmra.mxu0 %v2578
    %v2751 = vpop.f32.mrf.mxu0
    %v2752 = vadd.f32 %v2723, %v2751
    %2753 = vmatmul.f32.gmra.mxu0 %v2581
    %v2754 = vpop.f32.mrf.mxu0
    %v2755 = vadd.f32 %v2726, %v2754
    %2756 = vmatmul.f32.gmra.mxu0 %v2584
    %v2757 = vpop.f32.mrf.mxu0
    %v2758 = vadd.f32 %v2729, %v2757
    %2759 = vmatmul.f32.gmra.mxu0 %v2587
    %v2760 = vpop.f32.mrf.mxu0
    %v2761 = vadd.f32 %v2732, %v2760
    %2762 = vdwg.mxu0
    %v2763 = vadd.f32 %v2266, %v2665
    %v2764 = vadd.f32 %v2353, %v2752
    %v2765 = vadd.f32 %v2269, %v2668
    %v2766 = vadd.f32 %v2356, %v2755
    %v2767 = vadd.f32 %v2272, %v2671
    %v2768 = vadd.f32 %v2359, %v2758
    %v2769 = vadd.f32 %v2275, %v2674
    %v2770 = vadd.f32 %v2362, %v2761
    %s2771 = scalar_lea.vmem %s5, 96
    %v2772 = vld [vmem:[%s2771] sm:$0xff]
    %v2773 = vld [vmem:[%s2771 + $0x8] sm:$0xff]
    %v2774 = vld [vmem:[%s2771 + $0x10] sm:$0xff]
    %v2775 = vld [vmem:[%s2771 + $0x18] sm:$0x3f]
    %v2777 = vsel %vm1571, %v2772, 0
    %v2780 = vsel %vm1571, %v2773, 0
    %v2783 = vsel %vm1571, %v2774, 0
    %v2786 = vsel %vm1571, %v2775, 0
    %2788 = vmatpush.msra.mxu0 0.0
    %2789 = vmatpush.msra.mxu0 0.0
    %2790 = vmatpush.msra.mxu0 0.0
    %2791 = vmatpush.msra.mxu0 0.0
    %2792 = vmatpush.msra.mxu0 0.0
    %2793 = vmatpush.msra.mxu0 0.0
    %2794 = vmatpush.msra.mxu0 0.0
    %2795 = vmatpush.msra.mxu0 %v1564
    %2796 = vmatpush.msra.mxu0 %v1561
    %2797 = vmatpush.msra.mxu0 %v1558
    %2798 = vmatpush.msra.mxu0 %v1555
    %2799 = vmatpush.msra.mxu0 %v1552
    %2800 = vmatpush.msra.mxu0 %v1549
    %2801 = vmatpush.msra.mxu0 %v1546
    %2802 = vmatpush.msra.mxu0 %v1543
    %2803 = vmatpush.msra.mxu0 %v1540
    %2804 = vmatmul.f32.gmra.mxu0 %v2777
    %v2805 = vpop.f32.mrf.mxu0
    %v2806 = vadd.f32 0.0, %v2805
    %2807 = vmatmul.f32.gmra.mxu0 %v2780
    %v2808 = vpop.f32.mrf.mxu0
    %v2809 = vadd.f32 0.0, %v2808
    %2810 = vmatmul.f32.gmra.mxu0 %v2783
    %v2811 = vpop.f32.mrf.mxu0
    %v2812 = vadd.f32 0.0, %v2811
    %2813 = vmatmul.f32.gmra.mxu0 %v2786
    %v2814 = vpop.f32.mrf.mxu0
    %v2815 = vadd.f32 0.0, %v2814
    %2816 = vdwg.mxu0
    %2817 = vmatpush.msra.mxu0 0.0
    %2818 = vmatpush.msra.mxu0 0.0
    %2819 = vmatpush.msra.mxu0 0.0
    %2820 = vmatpush.msra.mxu0 0.0
    %2821 = vmatpush.msra.mxu0 0.0
    %2822 = vmatpush.msra.mxu0 0.0
    %2823 = vmatpush.msra.mxu0 0.0
    %2824 = vmatpush.msra.mxu0 %v1565
    %2825 = vmatpush.msra.mxu0 %v1562
    %2826 = vmatpush.msra.mxu0 %v1559
    %2827 = vmatpush.msra.mxu0 %v1556
    %2828 = vmatpush.msra.mxu0 %v1553
    %2829 = vmatpush.msra.mxu0 %v1550
    %2830 = vmatpush.msra.mxu0 %v1547
    %2831 = vmatpush.msra.mxu0 %v1544
    %2832 = vmatpush.msra.mxu0 %v1541
    %2833 = vmatmul.f32.gmra.mxu0 %v2777
    %v2834 = vpop.f32.mrf.mxu0
    %v2835 = vadd.f32 0.0, %v2834
    %2836 = vmatmul.f32.gmra.mxu0 %v2780
    %v2837 = vpop.f32.mrf.mxu0
    %v2838 = vadd.f32 0.0, %v2837
    %2839 = vmatmul.f32.gmra.mxu0 %v2783
    %v2840 = vpop.f32.mrf.mxu0
    %v2841 = vadd.f32 0.0, %v2840
    %2842 = vmatmul.f32.gmra.mxu0 %v2786
    %v2843 = vpop.f32.mrf.mxu0
    %v2844 = vadd.f32 0.0, %v2843
    %2845 = vdwg.mxu0
    %2846 = vmatpush.msra.mxu0 0.0
    %2847 = vmatpush.msra.mxu0 0.0
    %2848 = vmatpush.msra.mxu0 0.0
    %2849 = vmatpush.msra.mxu0 0.0
    %2850 = vmatpush.msra.mxu0 0.0
    %2851 = vmatpush.msra.mxu0 0.0
    %2852 = vmatpush.msra.mxu0 0.0
    %2853 = vmatpush.msra.mxu0 %v1566
    %2854 = vmatpush.msra.mxu0 %v1563
    %2855 = vmatpush.msra.mxu0 %v1560
    %2856 = vmatpush.msra.mxu0 %v1557
    %2857 = vmatpush.msra.mxu0 %v1554
    %2858 = vmatpush.msra.mxu0 %v1551
    %2859 = vmatpush.msra.mxu0 %v1548
    %2860 = vmatpush.msra.mxu0 %v1545
    %2861 = vmatpush.msra.mxu0 %v1542
    %2862 = vmatmul.f32.gmra.mxu0 %v2777
    %v2863 = vpop.f32.mrf.mxu0
    %v2864 = vadd.f32 0.0, %v2863
    %2865 = vmatmul.f32.gmra.mxu0 %v2780
    %v2866 = vpop.f32.mrf.mxu0
    %v2867 = vadd.f32 0.0, %v2866
    %2868 = vmatmul.f32.gmra.mxu0 %v2783
    %v2869 = vpop.f32.mrf.mxu0
    %v2870 = vadd.f32 0.0, %v2869
    %2871 = vmatmul.f32.gmra.mxu0 %v2786
    %v2872 = vpop.f32.mrf.mxu0
    %v2873 = vadd.f32 0.0, %v2872
    %2874 = vdwg.mxu0
    %s2875 = scalar_lea.vmem %s6, 864
    %v2876 = vld [vmem:[%s2875] sm:$0xff]
    %v2877 = vld [vmem:[%s2875 + $0x8] sm:$0xff]
    %v2878 = vld [vmem:[%s2875 + $0x10] sm:$0xff]
    %v2879 = vld [vmem:[%s2875 + $0x18] sm:$0xff]
    %v2880 = vld [vmem:[%s2875 + $0x20] sm:$0xff]
    %v2881 = vld [vmem:[%s2875 + $0x28] sm:$0xff]
    %v2882 = vld [vmem:[%s2875 + $0x30] sm:$0xff]
    %v2883 = vld [vmem:[%s2875 + $0x38] sm:$0xff]
    %v2884 = vld [vmem:[%s2875 + $0x40] sm:$0xff]
    %v2885 = vld [vmem:[%s2875 + $0x48] sm:$0xff]
    %v2886 = vld [vmem:[%s2875 + $0x50] sm:$0xff]
    %v2887 = vld [vmem:[%s2875 + $0x58] sm:$0xff]
    %v2888 = vld [vmem:[%s2875 + $0x60] sm:$0xff]
    %v2889 = vld [vmem:[%s2875 + $0x68] sm:$0xff]
    %v2890 = vld [vmem:[%s2875 + $0x70] sm:$0xff]
    %v2891 = vld [vmem:[%s2875 + $0x78] sm:$0xff]
    %v2892 = vld [vmem:[%s2875 + $0x80] sm:$0xff]
    %v2893 = vld [vmem:[%s2875 + $0x88] sm:$0xff]
    %v2894 = vld [vmem:[%s2875 + $0x90] sm:$0xff]
    %v2895 = vld [vmem:[%s2875 + $0x98] sm:$0xff]
    %v2896 = vld [vmem:[%s2875 + $0xa0] sm:$0xff]
    %v2897 = vld [vmem:[%s2875 + $0xa8] sm:$0xff]
    %v2898 = vld [vmem:[%s2875 + $0xb0] sm:$0xff]
    %v2899 = vld [vmem:[%s2875 + $0xb8] sm:$0xff]
    %v2900 = vld [vmem:[%s2875 + $0xc0] sm:$0xff]
    %v2901 = vld [vmem:[%s2875 + $0xc8] sm:$0xff]
    %v2902 = vld [vmem:[%s2875 + $0xd0] sm:$0xff]
    %v2903 = vld [vmem:[%s2875 + $0xd8] sm:$0xff]
    %v2904 = vld [vmem:[%s2875 + $0xe0] sm:$0xff]
    %v2905 = vld [vmem:[%s2875 + $0xe8] sm:$0xff]
    %v2906 = vld [vmem:[%s2875 + $0xf0] sm:$0xff]
    %v2907 = vld [vmem:[%s2875 + $0xf8] sm:$0xff]
    %v2908 = vld [vmem:[%s2875 + $0x100] sm:$0xff]
    %v2909 = vld [vmem:[%s2875 + $0x108] sm:$0xff]
    %v2910 = vld [vmem:[%s2875 + $0x110] sm:$0xff]
    %v2911 = vld [vmem:[%s2875 + $0x118] sm:$0xff]
    %v2912 = vunpack.c.l.bf16 %v2876
    %v2913 = vunpack.c.h.bf16 %v2876
    %v2914 = vunpack.c.l.bf16 %v2877
    %v2915 = vunpack.c.h.bf16 %v2877
    %v2916 = vunpack.c.l.bf16 %v2878
    %v2917 = vunpack.c.h.bf16 %v2878
    %v2918 = vunpack.c.l.bf16 %v2879
    %v2919 = vunpack.c.h.bf16 %v2879
    %v2920 = vunpack.c.l.bf16 %v2880
    %v2921 = vunpack.c.h.bf16 %v2880
    %v2922 = vunpack.c.l.bf16 %v2881
    %v2923 = vunpack.c.h.bf16 %v2881
    %v2924 = vunpack.c.l.bf16 %v2882
    %v2925 = vunpack.c.h.bf16 %v2882
    %v2926 = vunpack.c.l.bf16 %v2883
    %v2927 = vunpack.c.h.bf16 %v2883
    %v2928 = vunpack.c.l.bf16 %v2884
    %v2929 = vunpack.c.h.bf16 %v2884
    %v2930 = vunpack.c.l.bf16 %v2885
    %v2931 = vunpack.c.h.bf16 %v2885
    %v2932 = vunpack.c.l.bf16 %v2886
    %v2933 = vunpack.c.h.bf16 %v2886
    %v2934 = vunpack.c.l.bf16 %v2887
    %v2935 = vunpack.c.h.bf16 %v2887
    %v2936 = vunpack.c.l.bf16 %v2888
    %v2937 = vunpack.c.h.bf16 %v2888
    %v2938 = vunpack.c.l.bf16 %v2889
    %v2939 = vunpack.c.h.bf16 %v2889
    %v2940 = vunpack.c.l.bf16 %v2890
    %v2941 = vunpack.c.h.bf16 %v2890
    %v2942 = vunpack.c.l.bf16 %v2891
    %v2943 = vunpack.c.h.bf16 %v2891
    %v2944 = vunpack.c.l.bf16 %v2892
    %v2945 = vunpack.c.h.bf16 %v2892
    %v2946 = vunpack.c.l.bf16 %v2893
    %v2947 = vunpack.c.h.bf16 %v2893
    %v2948 = vunpack.c.l.bf16 %v2894
    %v2949 = vunpack.c.h.bf16 %v2894
    %v2950 = vunpack.c.l.bf16 %v2895
    %v2951 = vunpack.c.h.bf16 %v2895
    %v2952 = vunpack.c.l.bf16 %v2896
    %v2953 = vunpack.c.h.bf16 %v2896
    %v2954 = vunpack.c.l.bf16 %v2897
    %v2955 = vunpack.c.h.bf16 %v2897
    %v2956 = vunpack.c.l.bf16 %v2898
    %v2957 = vunpack.c.h.bf16 %v2898
    %v2958 = vunpack.c.l.bf16 %v2899
    %v2959 = vunpack.c.h.bf16 %v2899
    %v2960 = vunpack.c.l.bf16 %v2900
    %v2961 = vunpack.c.h.bf16 %v2900
    %v2962 = vunpack.c.l.bf16 %v2901
    %v2963 = vunpack.c.h.bf16 %v2901
    %v2964 = vunpack.c.l.bf16 %v2902
    %v2965 = vunpack.c.h.bf16 %v2902
    %v2966 = vunpack.c.l.bf16 %v2903
    %v2967 = vunpack.c.h.bf16 %v2903
    %v2968 = vunpack.c.l.bf16 %v2904
    %v2969 = vunpack.c.h.bf16 %v2904
    %v2970 = vunpack.c.l.bf16 %v2905
    %v2971 = vunpack.c.h.bf16 %v2905
    %v2972 = vunpack.c.l.bf16 %v2906
    %v2973 = vunpack.c.h.bf16 %v2906
    %v2974 = vunpack.c.l.bf16 %v2907
    %v2975 = vunpack.c.h.bf16 %v2907
    %v2976 = vunpack.c.l.bf16 %v2908
    %v2977 = vunpack.c.h.bf16 %v2908
    %v2978 = vunpack.c.l.bf16 %v2909
    %v2979 = vunpack.c.h.bf16 %v2909
    %v2980 = vunpack.c.l.bf16 %v2910
    %v2981 = vunpack.c.h.bf16 %v2910
    %v2982 = vunpack.c.l.bf16 %v2911
    %v2983 = vunpack.c.h.bf16 %v2911
    %v2985 = vsel %vm1098, %v2864, 0
    %v2988 = vsel %vm1098, %v2867, 0
    %v2991 = vsel %vm1098, %v2870, 0
    %v2994 = vsel %vm1098, %v2873, 0
    %2996 = vmatpush.msra.mxu0 %v2942
    %2997 = vmatpush.msra.mxu0 %v2940
    %2998 = vmatpush.msra.mxu0 %v2938
    %2999 = vmatpush.msra.mxu0 %v2936
    %3000 = vmatpush.msra.mxu0 %v2934
    %3001 = vmatpush.msra.mxu0 %v2932
    %3002 = vmatpush.msra.mxu0 %v2930
    %3003 = vmatpush.msra.mxu0 %v2928
    %3004 = vmatpush.msra.mxu0 %v2926
    %3005 = vmatpush.msra.mxu0 %v2924
    %3006 = vmatpush.msra.mxu0 %v2922
    %3007 = vmatpush.msra.mxu0 %v2920
    %3008 = vmatpush.msra.mxu0 %v2918
    %3009 = vmatpush.msra.mxu0 %v2916
    %3010 = vmatpush.msra.mxu0 %v2914
    %3011 = vmatpush.msra.mxu0 %v2912
    %3012 = vmatmul.f32.gmra.mxu0 %v2806
    %v3013 = vpop.f32.mrf.mxu0
    %v3014 = vadd.f32 0.0, %v3013
    %3015 = vmatmul.f32.gmra.mxu0 %v2809
    %v3016 = vpop.f32.mrf.mxu0
    %v3017 = vadd.f32 0.0, %v3016
    %3018 = vmatmul.f32.gmra.mxu0 %v2812
    %v3019 = vpop.f32.mrf.mxu0
    %v3020 = vadd.f32 0.0, %v3019
    %3021 = vmatmul.f32.gmra.mxu0 %v2815
    %v3022 = vpop.f32.mrf.mxu0
    %v3023 = vadd.f32 0.0, %v3022
    %3024 = vdwg.mxu0
    %3025 = vmatpush.msra.mxu0 %v2974
    %3026 = vmatpush.msra.mxu0 %v2972
    %3027 = vmatpush.msra.mxu0 %v2970
    %3028 = vmatpush.msra.mxu0 %v2968
    %3029 = vmatpush.msra.mxu0 %v2966
    %3030 = vmatpush.msra.mxu0 %v2964
    %3031 = vmatpush.msra.mxu0 %v2962
    %3032 = vmatpush.msra.mxu0 %v2960
    %3033 = vmatpush.msra.mxu0 %v2958
    %3034 = vmatpush.msra.mxu0 %v2956
    %3035 = vmatpush.msra.mxu0 %v2954
    %3036 = vmatpush.msra.mxu0 %v2952
    %3037 = vmatpush.msra.mxu0 %v2950
    %3038 = vmatpush.msra.mxu0 %v2948
    %3039 = vmatpush.msra.mxu0 %v2946
    %3040 = vmatpush.msra.mxu0 %v2944
    %3041 = vmatmul.f32.gmra.mxu0 %v2835
    %v3042 = vpop.f32.mrf.mxu0
    %v3043 = vadd.f32 %v3014, %v3042
    %3044 = vmatmul.f32.gmra.mxu0 %v2838
    %v3045 = vpop.f32.mrf.mxu0
    %v3046 = vadd.f32 %v3017, %v3045
    %3047 = vmatmul.f32.gmra.mxu0 %v2841
    %v3048 = vpop.f32.mrf.mxu0
    %v3049 = vadd.f32 %v3020, %v3048
    %3050 = vmatmul.f32.gmra.mxu0 %v2844
    %v3051 = vpop.f32.mrf.mxu0
    %v3052 = vadd.f32 %v3023, %v3051
    %3053 = vdwg.mxu0
    %3054 = vmatpush.msra.mxu0 0.0
    %3055 = vmatpush.msra.mxu0 0.0
    %3056 = vmatpush.msra.mxu0 0.0
    %3057 = vmatpush.msra.mxu0 0.0
    %3058 = vmatpush.msra.mxu0 0.0
    %3059 = vmatpush.msra.mxu0 0.0
    %3060 = vmatpush.msra.mxu0 0.0
    %3061 = vmatpush.msra.mxu0 0.0
    %3062 = vmatpush.msra.mxu0 0.0
    %3063 = vmatpush.msra.mxu0 0.0
    %3064 = vmatpush.msra.mxu0 0.0
    %3065 = vmatpush.msra.mxu0 0.0
    %3066 = vmatpush.msra.mxu0 %v2982
    %3067 = vmatpush.msra.mxu0 %v2980
    %3068 = vmatpush.msra.mxu0 %v2978
    %3069 = vmatpush.msra.mxu0 %v2976
    %3070 = vmatmul.f32.gmra.mxu0 %v2985
    %v3071 = vpop.f32.mrf.mxu0
    %v3072 = vadd.f32 %v3043, %v3071
    %3073 = vmatmul.f32.gmra.mxu0 %v2988
    %v3074 = vpop.f32.mrf.mxu0
    %v3075 = vadd.f32 %v3046, %v3074
    %3076 = vmatmul.f32.gmra.mxu0 %v2991
    %v3077 = vpop.f32.mrf.mxu0
    %v3078 = vadd.f32 %v3049, %v3077
    %3079 = vmatmul.f32.gmra.mxu0 %v2994
    %v3080 = vpop.f32.mrf.mxu0
    %v3081 = vadd.f32 %v3052, %v3080
    %3082 = vdwg.mxu0
    %3083 = vmatpush.msra.mxu0 %v2943
    %3084 = vmatpush.msra.mxu0 %v2941
    %3085 = vmatpush.msra.mxu0 %v2939
    %3086 = vmatpush.msra.mxu0 %v2937
    %3087 = vmatpush.msra.mxu0 %v2935
    %3088 = vmatpush.msra.mxu0 %v2933
    %3089 = vmatpush.msra.mxu0 %v2931
    %3090 = vmatpush.msra.mxu0 %v2929
    %3091 = vmatpush.msra.mxu0 %v2927
    %3092 = vmatpush.msra.mxu0 %v2925
    %3093 = vmatpush.msra.mxu0 %v2923
    %3094 = vmatpush.msra.mxu0 %v2921
    %3095 = vmatpush.msra.mxu0 %v2919
    %3096 = vmatpush.msra.mxu0 %v2917
    %3097 = vmatpush.msra.mxu0 %v2915
    %3098 = vmatpush.msra.mxu0 %v2913
    %3099 = vmatmul.f32.gmra.mxu0 %v2806
    %v3100 = vpop.f32.mrf.mxu0
    %v3101 = vadd.f32 0.0, %v3100
    %3102 = vmatmul.f32.gmra.mxu0 %v2809
    %v3103 = vpop.f32.mrf.mxu0
    %v3104 = vadd.f32 0.0, %v3103
    %3105 = vmatmul.f32.gmra.mxu0 %v2812
    %v3106 = vpop.f32.mrf.mxu0
    %v3107 = vadd.f32 0.0, %v3106
    %3108 = vmatmul.f32.gmra.mxu0 %v2815
    %v3109 = vpop.f32.mrf.mxu0
    %v3110 = vadd.f32 0.0, %v3109
    %3111 = vdwg.mxu0
    %3112 = vmatpush.msra.mxu0 %v2975
    %3113 = vmatpush.msra.mxu0 %v2973
    %3114 = vmatpush.msra.mxu0 %v2971
    %3115 = vmatpush.msra.mxu0 %v2969
    %3116 = vmatpush.msra.mxu0 %v2967
    %3117 = vmatpush.msra.mxu0 %v2965
    %3118 = vmatpush.msra.mxu0 %v2963
    %3119 = vmatpush.msra.mxu0 %v2961
    %3120 = vmatpush.msra.mxu0 %v2959
    %3121 = vmatpush.msra.mxu0 %v2957
    %3122 = vmatpush.msra.mxu0 %v2955
    %3123 = vmatpush.msra.mxu0 %v2953
    %3124 = vmatpush.msra.mxu0 %v2951
    %3125 = vmatpush.msra.mxu0 %v2949
    %3126 = vmatpush.msra.mxu0 %v2947
    %3127 = vmatpush.msra.mxu0 %v2945
    %3128 = vmatmul.f32.gmra.mxu0 %v2835
    %v3129 = vpop.f32.mrf.mxu0
    %v3130 = vadd.f32 %v3101, %v3129
    %3131 = vmatmul.f32.gmra.mxu0 %v2838
    %v3132 = vpop.f32.mrf.mxu0
    %v3133 = vadd.f32 %v3104, %v3132
    %3134 = vmatmul.f32.gmra.mxu0 %v2841
    %v3135 = vpop.f32.mrf.mxu0
    %v3136 = vadd.f32 %v3107, %v3135
    %3137 = vmatmul.f32.gmra.mxu0 %v2844
    %v3138 = vpop.f32.mrf.mxu0
    %v3139 = vadd.f32 %v3110, %v3138
    %3140 = vdwg.mxu0
    %3141 = vmatpush.msra.mxu0 0.0
    %3142 = vmatpush.msra.mxu0 0.0
    %3143 = vmatpush.msra.mxu0 0.0
    %3144 = vmatpush.msra.mxu0 0.0
    %3145 = vmatpush.msra.mxu0 0.0
    %3146 = vmatpush.msra.mxu0 0.0
    %3147 = vmatpush.msra.mxu0 0.0
    %3148 = vmatpush.msra.mxu0 0.0
    %3149 = vmatpush.msra.mxu0 0.0
    %3150 = vmatpush.msra.mxu0 0.0
    %3151 = vmatpush.msra.mxu0 0.0
    %3152 = vmatpush.msra.mxu0 0.0
    %3153 = vmatpush.msra.mxu0 %v2983
    %3154 = vmatpush.msra.mxu0 %v2981
    %3155 = vmatpush.msra.mxu0 %v2979
    %3156 = vmatpush.msra.mxu0 %v2977
    %3157 = vmatmul.f32.gmra.mxu0 %v2985
    %v3158 = vpop.f32.mrf.mxu0
    %v3159 = vadd.f32 %v3130, %v3158
    %3160 = vmatmul.f32.gmra.mxu0 %v2988
    %v3161 = vpop.f32.mrf.mxu0
    %v3162 = vadd.f32 %v3133, %v3161
    %3163 = vmatmul.f32.gmra.mxu0 %v2991
    %v3164 = vpop.f32.mrf.mxu0
    %v3165 = vadd.f32 %v3136, %v3164
    %3166 = vmatmul.f32.gmra.mxu0 %v2994
    %v3167 = vpop.f32.mrf.mxu0
    %v3168 = vadd.f32 %v3139, %v3167
    %3169 = vdwg.mxu0
    %v3170 = vadd.f32 %v2763, %v3072
    %v3171 = vadd.f32 %v2764, %v3159
    %v3172 = vadd.f32 %v2765, %v3075
    %v3173 = vadd.f32 %v2766, %v3162
    %v3174 = vadd.f32 %v2767, %v3078
    %v3175 = vadd.f32 %v2768, %v3165
    %v3176 = vadd.f32 %v2769, %v3081
    %v3177 = vadd.f32 %v2770, %v3168
    %s3178 = scalar_lea.vmem %s5, 128
    %v3179 = vld [vmem:[%s3178] sm:$0xff]
    %v3180 = vld [vmem:[%s3178 + $0x8] sm:$0xff]
    %v3181 = vld [vmem:[%s3178 + $0x10] sm:$0xff]
    %v3182 = vld [vmem:[%s3178 + $0x18] sm:$0x3f]
    %v3184 = vsel %vm1571, %v3179, 0
    %v3187 = vsel %vm1571, %v3180, 0
    %v3190 = vsel %vm1571, %v3181, 0
    %v3193 = vsel %vm1571, %v3182, 0
    %3195 = vmatpush.msra.mxu0 0.0
    %3196 = vmatpush.msra.mxu0 0.0
    %3197 = vmatpush.msra.mxu0 0.0
    %3198 = vmatpush.msra.mxu0 0.0
    %3199 = vmatpush.msra.mxu0 0.0
    %3200 = vmatpush.msra.mxu0 0.0
    %3201 = vmatpush.msra.mxu0 0.0
    %3202 = vmatpush.msra.mxu0 %v1564
    %3203 = vmatpush.msra.mxu0 %v1561
    %3204 = vmatpush.msra.mxu0 %v1558
    %3205 = vmatpush.msra.mxu0 %v1555
    %3206 = vmatpush.msra.mxu0 %v1552
    %3207 = vmatpush.msra.mxu0 %v1549
    %3208 = vmatpush.msra.mxu0 %v1546
    %3209 = vmatpush.msra.mxu0 %v1543
    %3210 = vmatpush.msra.mxu0 %v1540
    %3211 = vmatmul.f32.gmra.mxu0 %v3184
    %v3212 = vpop.f32.mrf.mxu0
    %v3213 = vadd.f32 0.0, %v3212
    %3214 = vmatmul.f32.gmra.mxu0 %v3187
    %v3215 = vpop.f32.mrf.mxu0
    %v3216 = vadd.f32 0.0, %v3215
    %3217 = vmatmul.f32.gmra.mxu0 %v3190
    %v3218 = vpop.f32.mrf.mxu0
    %v3219 = vadd.f32 0.0, %v3218
    %3220 = vmatmul.f32.gmra.mxu0 %v3193
    %v3221 = vpop.f32.mrf.mxu0
    %v3222 = vadd.f32 0.0, %v3221
    %3223 = vdwg.mxu0
    %3224 = vmatpush.msra.mxu0 0.0
    %3225 = vmatpush.msra.mxu0 0.0
    %3226 = vmatpush.msra.mxu0 0.0
    %3227 = vmatpush.msra.mxu0 0.0
    %3228 = vmatpush.msra.mxu0 0.0
    %3229 = vmatpush.msra.mxu0 0.0
    %3230 = vmatpush.msra.mxu0 0.0
    %3231 = vmatpush.msra.mxu0 %v1565
    %3232 = vmatpush.msra.mxu0 %v1562
    %3233 = vmatpush.msra.mxu0 %v1559
    %3234 = vmatpush.msra.mxu0 %v1556
    %3235 = vmatpush.msra.mxu0 %v1553
    %3236 = vmatpush.msra.mxu0 %v1550
    %3237 = vmatpush.msra.mxu0 %v1547
    %3238 = vmatpush.msra.mxu0 %v1544
    %3239 = vmatpush.msra.mxu0 %v1541
    %3240 = vmatmul.f32.gmra.mxu0 %v3184
    %v3241 = vpop.f32.mrf.mxu0
    %v3242 = vadd.f32 0.0, %v3241
    %3243 = vmatmul.f32.gmra.mxu0 %v3187
    %v3244 = vpop.f32.mrf.mxu0
    %v3245 = vadd.f32 0.0, %v3244
    %3246 = vmatmul.f32.gmra.mxu0 %v3190
    %v3247 = vpop.f32.mrf.mxu0
    %v3248 = vadd.f32 0.0, %v3247
    %3249 = vmatmul.f32.gmra.mxu0 %v3193
    %v3250 = vpop.f32.mrf.mxu0
    %v3251 = vadd.f32 0.0, %v3250
    %3252 = vdwg.mxu0
    %3253 = vmatpush.msra.mxu0 0.0
    %3254 = vmatpush.msra.mxu0 0.0
    %3255 = vmatpush.msra.mxu0 0.0
    %3256 = vmatpush.msra.mxu0 0.0
    %3257 = vmatpush.msra.mxu0 0.0
    %3258 = vmatpush.msra.mxu0 0.0
    %3259 = vmatpush.msra.mxu0 0.0
    %3260 = vmatpush.msra.mxu0 %v1566
    %3261 = vmatpush.msra.mxu0 %v1563
    %3262 = vmatpush.msra.mxu0 %v1560
    %3263 = vmatpush.msra.mxu0 %v1557
    %3264 = vmatpush.msra.mxu0 %v1554
    %3265 = vmatpush.msra.mxu0 %v1551
    %3266 = vmatpush.msra.mxu0 %v1548
    %3267 = vmatpush.msra.mxu0 %v1545
    %3268 = vmatpush.msra.mxu0 %v1542
    %3269 = vmatmul.f32.gmra.mxu0 %v3184
    %v3270 = vpop.f32.mrf.mxu0
    %v3271 = vadd.f32 0.0, %v3270
    %3272 = vmatmul.f32.gmra.mxu0 %v3187
    %v3273 = vpop.f32.mrf.mxu0
    %v3274 = vadd.f32 0.0, %v3273
    %3275 = vmatmul.f32.gmra.mxu0 %v3190
    %v3276 = vpop.f32.mrf.mxu0
    %v3277 = vadd.f32 0.0, %v3276
    %3278 = vmatmul.f32.gmra.mxu0 %v3193
    %v3279 = vpop.f32.mrf.mxu0
    %v3280 = vadd.f32 0.0, %v3279
    %3281 = vdwg.mxu0
    %s3282 = scalar_lea.vmem %s6, 1152
    %v3283 = vld [vmem:[%s3282] sm:$0xff]
    %v3284 = vld [vmem:[%s3282 + $0x8] sm:$0xff]
    %v3285 = vld [vmem:[%s3282 + $0x10] sm:$0xff]
    %v3286 = vld [vmem:[%s3282 + $0x18] sm:$0xff]
    %v3287 = vld [vmem:[%s3282 + $0x20] sm:$0xff]
    %v3288 = vld [vmem:[%s3282 + $0x28] sm:$0xff]
    %v3289 = vld [vmem:[%s3282 + $0x30] sm:$0xff]
    %v3290 = vld [vmem:[%s3282 + $0x38] sm:$0xff]
    %v3291 = vld [vmem:[%s3282 + $0x40] sm:$0xff]
    %v3292 = vld [vmem:[%s3282 + $0x48] sm:$0xff]
    %v3293 = vld [vmem:[%s3282 + $0x50] sm:$0xff]
    %v3294 = vld [vmem:[%s3282 + $0x58] sm:$0xff]
    %v3295 = vld [vmem:[%s3282 + $0x60] sm:$0xff]
    %v3296 = vld [vmem:[%s3282 + $0x68] sm:$0xff]
    %v3297 = vld [vmem:[%s3282 + $0x70] sm:$0xff]
    %v3298 = vld [vmem:[%s3282 + $0x78] sm:$0xff]
    %v3299 = vld [vmem:[%s3282 + $0x80] sm:$0xff]
    %v3300 = vld [vmem:[%s3282 + $0x88] sm:$0xff]
    %v3301 = vld [vmem:[%s3282 + $0x90] sm:$0xff]
    %v3302 = vld [vmem:[%s3282 + $0x98] sm:$0xff]
    %v3303 = vld [vmem:[%s3282 + $0xa0] sm:$0xff]
    %v3304 = vld [vmem:[%s3282 + $0xa8] sm:$0xff]
    %v3305 = vld [vmem:[%s3282 + $0xb0] sm:$0xff]
    %v3306 = vld [vmem:[%s3282 + $0xb8] sm:$0xff]
    %v3307 = vld [vmem:[%s3282 + $0xc0] sm:$0xff]
    %v3308 = vld [vmem:[%s3282 + $0xc8] sm:$0xff]
    %v3309 = vld [vmem:[%s3282 + $0xd0] sm:$0xff]
    %v3310 = vld [vmem:[%s3282 + $0xd8] sm:$0xff]
    %v3311 = vld [vmem:[%s3282 + $0xe0] sm:$0xff]
    %v3312 = vld [vmem:[%s3282 + $0xe8] sm:$0xff]
    %v3313 = vld [vmem:[%s3282 + $0xf0] sm:$0xff]
    %v3314 = vld [vmem:[%s3282 + $0xf8] sm:$0xff]
    %v3315 = vld [vmem:[%s3282 + $0x100] sm:$0xff]
    %v3316 = vld [vmem:[%s3282 + $0x108] sm:$0xff]
    %v3317 = vld [vmem:[%s3282 + $0x110] sm:$0xff]
    %v3318 = vld [vmem:[%s3282 + $0x118] sm:$0xff]
    %v3319 = vunpack.c.l.bf16 %v3283
    %v3320 = vunpack.c.h.bf16 %v3283
    %v3321 = vunpack.c.l.bf16 %v3284
    %v3322 = vunpack.c.h.bf16 %v3284
    %v3323 = vunpack.c.l.bf16 %v3285
    %v3324 = vunpack.c.h.bf16 %v3285
    %v3325 = vunpack.c.l.bf16 %v3286
    %v3326 = vunpack.c.h.bf16 %v3286
    %v3327 = vunpack.c.l.bf16 %v3287
    %v3328 = vunpack.c.h.bf16 %v3287
    %v3329 = vunpack.c.l.bf16 %v3288
    %v3330 = vunpack.c.h.bf16 %v3288
    %v3331 = vunpack.c.l.bf16 %v3289
    %v3332 = vunpack.c.h.bf16 %v3289
    %v3333 = vunpack.c.l.bf16 %v3290
    %v3334 = vunpack.c.h.bf16 %v3290
    %v3335 = vunpack.c.l.bf16 %v3291
    %v3336 = vunpack.c.h.bf16 %v3291
    %v3337 = vunpack.c.l.bf16 %v3292
    %v3338 = vunpack.c.h.bf16 %v3292
    %v3339 = vunpack.c.l.bf16 %v3293
    %v3340 = vunpack.c.h.bf16 %v3293
    %v3341 = vunpack.c.l.bf16 %v3294
    %v3342 = vunpack.c.h.bf16 %v3294
    %v3343 = vunpack.c.l.bf16 %v3295
    %v3344 = vunpack.c.h.bf16 %v3295
    %v3345 = vunpack.c.l.bf16 %v3296
    %v3346 = vunpack.c.h.bf16 %v3296
    %v3347 = vunpack.c.l.bf16 %v3297
    %v3348 = vunpack.c.h.bf16 %v3297
    %v3349 = vunpack.c.l.bf16 %v3298
    %v3350 = vunpack.c.h.bf16 %v3298
    %v3351 = vunpack.c.l.bf16 %v3299
    %v3352 = vunpack.c.h.bf16 %v3299
    %v3353 = vunpack.c.l.bf16 %v3300
    %v3354 = vunpack.c.h.bf16 %v3300
    %v3355 = vunpack.c.l.bf16 %v3301
    %v3356 = vunpack.c.h.bf16 %v3301
    %v3357 = vunpack.c.l.bf16 %v3302
    %v3358 = vunpack.c.h.bf16 %v3302
    %v3359 = vunpack.c.l.bf16 %v3303
    %v3360 = vunpack.c.h.bf16 %v3303
    %v3361 = vunpack.c.l.bf16 %v3304
    %v3362 = vunpack.c.h.bf16 %v3304
    %v3363 = vunpack.c.l.bf16 %v3305
    %v3364 = vunpack.c.h.bf16 %v3305
    %v3365 = vunpack.c.l.bf16 %v3306
    %v3366 = vunpack.c.h.bf16 %v3306
    %v3367 = vunpack.c.l.bf16 %v3307
    %v3368 = vunpack.c.h.bf16 %v3307
    %v3369 = vunpack.c.l.bf16 %v3308
    %v3370 = vunpack.c.h.bf16 %v3308
    %v3371 = vunpack.c.l.bf16 %v3309
    %v3372 = vunpack.c.h.bf16 %v3309
    %v3373 = vunpack.c.l.bf16 %v3310
    %v3374 = vunpack.c.h.bf16 %v3310
    %v3375 = vunpack.c.l.bf16 %v3311
    %v3376 = vunpack.c.h.bf16 %v3311
    %v3377 = vunpack.c.l.bf16 %v3312
    %v3378 = vunpack.c.h.bf16 %v3312
    %v3379 = vunpack.c.l.bf16 %v3313
    %v3380 = vunpack.c.h.bf16 %v3313
    %v3381 = vunpack.c.l.bf16 %v3314
    %v3382 = vunpack.c.h.bf16 %v3314
    %v3383 = vunpack.c.l.bf16 %v3315
    %v3384 = vunpack.c.h.bf16 %v3315
    %v3385 = vunpack.c.l.bf16 %v3316
    %v3386 = vunpack.c.h.bf16 %v3316
    %v3387 = vunpack.c.l.bf16 %v3317
    %v3388 = vunpack.c.h.bf16 %v3317
    %v3389 = vunpack.c.l.bf16 %v3318
    %v3390 = vunpack.c.h.bf16 %v3318
    %v3392 = vsel %vm1098, %v3271, 0
    %v3395 = vsel %vm1098, %v3274, 0
    %v3398 = vsel %vm1098, %v3277, 0
    %v3401 = vsel %vm1098, %v3280, 0
    %3403 = vmatpush.msra.mxu0 %v3349
    %3404 = vmatpush.msra.mxu0 %v3347
    %3405 = vmatpush.msra.mxu0 %v3345
    %3406 = vmatpush.msra.mxu0 %v3343
    %3407 = vmatpush.msra.mxu0 %v3341
    %3408 = vmatpush.msra.mxu0 %v3339
    %3409 = vmatpush.msra.mxu0 %v3337
    %3410 = vmatpush.msra.mxu0 %v3335
    %3411 = vmatpush.msra.mxu0 %v3333
    %3412 = vmatpush.msra.mxu0 %v3331
    %3413 = vmatpush.msra.mxu0 %v3329
    %3414 = vmatpush.msra.mxu0 %v3327
    %3415 = vmatpush.msra.mxu0 %v3325
    %3416 = vmatpush.msra.mxu0 %v3323
    %3417 = vmatpush.msra.mxu0 %v3321
    %3418 = vmatpush.msra.mxu0 %v3319
    %3419 = vmatmul.f32.gmra.mxu0 %v3213
    %v3420 = vpop.f32.mrf.mxu0
    %v3421 = vadd.f32 0.0, %v3420
    %3422 = vmatmul.f32.gmra.mxu0 %v3216
    %v3423 = vpop.f32.mrf.mxu0
    %v3424 = vadd.f32 0.0, %v3423
    %3425 = vmatmul.f32.gmra.mxu0 %v3219
    %v3426 = vpop.f32.mrf.mxu0
    %v3427 = vadd.f32 0.0, %v3426
    %3428 = vmatmul.f32.gmra.mxu0 %v3222
    %v3429 = vpop.f32.mrf.mxu0
    %v3430 = vadd.f32 0.0, %v3429
    %3431 = vdwg.mxu0
    %3432 = vmatpush.msra.mxu0 %v3381
    %3433 = vmatpush.msra.mxu0 %v3379
    %3434 = vmatpush.msra.mxu0 %v3377
    %3435 = vmatpush.msra.mxu0 %v3375
    %3436 = vmatpush.msra.mxu0 %v3373
    %3437 = vmatpush.msra.mxu0 %v3371
    %3438 = vmatpush.msra.mxu0 %v3369
    %3439 = vmatpush.msra.mxu0 %v3367
    %3440 = vmatpush.msra.mxu0 %v3365
    %3441 = vmatpush.msra.mxu0 %v3363
    %3442 = vmatpush.msra.mxu0 %v3361
    %3443 = vmatpush.msra.mxu0 %v3359
    %3444 = vmatpush.msra.mxu0 %v3357
    %3445 = vmatpush.msra.mxu0 %v3355
    %3446 = vmatpush.msra.mxu0 %v3353
    %3447 = vmatpush.msra.mxu0 %v3351
    %3448 = vmatmul.f32.gmra.mxu0 %v3242
    %v3449 = vpop.f32.mrf.mxu0
    %v3450 = vadd.f32 %v3421, %v3449
    %3451 = vmatmul.f32.gmra.mxu0 %v3245
    %v3452 = vpop.f32.mrf.mxu0
    %v3453 = vadd.f32 %v3424, %v3452
    %3454 = vmatmul.f32.gmra.mxu0 %v3248
    %v3455 = vpop.f32.mrf.mxu0
    %v3456 = vadd.f32 %v3427, %v3455
    %3457 = vmatmul.f32.gmra.mxu0 %v3251
    %v3458 = vpop.f32.mrf.mxu0
    %v3459 = vadd.f32 %v3430, %v3458
    %3460 = vdwg.mxu0
    %3461 = vmatpush.msra.mxu0 0.0
    %3462 = vmatpush.msra.mxu0 0.0
    %3463 = vmatpush.msra.mxu0 0.0
    %3464 = vmatpush.msra.mxu0 0.0
    %3465 = vmatpush.msra.mxu0 0.0
    %3466 = vmatpush.msra.mxu0 0.0
    %3467 = vmatpush.msra.mxu0 0.0
    %3468 = vmatpush.msra.mxu0 0.0
    %3469 = vmatpush.msra.mxu0 0.0
    %3470 = vmatpush.msra.mxu0 0.0
    %3471 = vmatpush.msra.mxu0 0.0
    %3472 = vmatpush.msra.mxu0 0.0
    %3473 = vmatpush.msra.mxu0 %v3389
    %3474 = vmatpush.msra.mxu0 %v3387
    %3475 = vmatpush.msra.mxu0 %v3385
    %3476 = vmatpush.msra.mxu0 %v3383
    %3477 = vmatmul.f32.gmra.mxu0 %v3392
    %v3478 = vpop.f32.mrf.mxu0
    %v3479 = vadd.f32 %v3450, %v3478
    %3480 = vmatmul.f32.gmra.mxu0 %v3395
    %v3481 = vpop.f32.mrf.mxu0
    %v3482 = vadd.f32 %v3453, %v3481
    %3483 = vmatmul.f32.gmra.mxu0 %v3398
    %v3484 = vpop.f32.mrf.mxu0
    %v3485 = vadd.f32 %v3456, %v3484
    %3486 = vmatmul.f32.gmra.mxu0 %v3401
    %v3487 = vpop.f32.mrf.mxu0
    %v3488 = vadd.f32 %v3459, %v3487
    %3489 = vdwg.mxu0
    %3490 = vmatpush.msra.mxu0 %v3350
    %3491 = vmatpush.msra.mxu0 %v3348
    %3492 = vmatpush.msra.mxu0 %v3346
    %3493 = vmatpush.msra.mxu0 %v3344
    %3494 = vmatpush.msra.mxu0 %v3342
    %3495 = vmatpush.msra.mxu0 %v3340
    %3496 = vmatpush.msra.mxu0 %v3338
    %3497 = vmatpush.msra.mxu0 %v3336
    %3498 = vmatpush.msra.mxu0 %v3334
    %3499 = vmatpush.msra.mxu0 %v3332
    %3500 = vmatpush.msra.mxu0 %v3330
    %3501 = vmatpush.msra.mxu0 %v3328
    %3502 = vmatpush.msra.mxu0 %v3326
    %3503 = vmatpush.msra.mxu0 %v3324
    %3504 = vmatpush.msra.mxu0 %v3322
    %3505 = vmatpush.msra.mxu0 %v3320
    %3506 = vmatmul.f32.gmra.mxu0 %v3213
    %v3507 = vpop.f32.mrf.mxu0
    %v3508 = vadd.f32 0.0, %v3507
    %3509 = vmatmul.f32.gmra.mxu0 %v3216
    %v3510 = vpop.f32.mrf.mxu0
    %v3511 = vadd.f32 0.0, %v3510
    %3512 = vmatmul.f32.gmra.mxu0 %v3219
    %v3513 = vpop.f32.mrf.mxu0
    %v3514 = vadd.f32 0.0, %v3513
    %3515 = vmatmul.f32.gmra.mxu0 %v3222
    %v3516 = vpop.f32.mrf.mxu0
    %v3517 = vadd.f32 0.0, %v3516
    %3518 = vdwg.mxu0
    %3519 = vmatpush.msra.mxu0 %v3382
    %3520 = vmatpush.msra.mxu0 %v3380
    %3521 = vmatpush.msra.mxu0 %v3378
    %3522 = vmatpush.msra.mxu0 %v3376
    %3523 = vmatpush.msra.mxu0 %v3374
    %3524 = vmatpush.msra.mxu0 %v3372
    %3525 = vmatpush.msra.mxu0 %v3370
    %3526 = vmatpush.msra.mxu0 %v3368
    %3527 = vmatpush.msra.mxu0 %v3366
    %3528 = vmatpush.msra.mxu0 %v3364
    %3529 = vmatpush.msra.mxu0 %v3362
    %3530 = vmatpush.msra.mxu0 %v3360
    %3531 = vmatpush.msra.mxu0 %v3358
    %3532 = vmatpush.msra.mxu0 %v3356
    %3533 = vmatpush.msra.mxu0 %v3354
    %3534 = vmatpush.msra.mxu0 %v3352
    %3535 = vmatmul.f32.gmra.mxu0 %v3242
    %v3536 = vpop.f32.mrf.mxu0
    %v3537 = vadd.f32 %v3508, %v3536
    %3538 = vmatmul.f32.gmra.mxu0 %v3245
    %v3539 = vpop.f32.mrf.mxu0
    %v3540 = vadd.f32 %v3511, %v3539
    %3541 = vmatmul.f32.gmra.mxu0 %v3248
    %v3542 = vpop.f32.mrf.mxu0
    %v3543 = vadd.f32 %v3514, %v3542
    %3544 = vmatmul.f32.gmra.mxu0 %v3251
    %v3545 = vpop.f32.mrf.mxu0
    %v3546 = vadd.f32 %v3517, %v3545
    %3547 = vdwg.mxu0
    %3548 = vmatpush.msra.mxu0 0.0
    %3549 = vmatpush.msra.mxu0 0.0
    %3550 = vmatpush.msra.mxu0 0.0
    %3551 = vmatpush.msra.mxu0 0.0
    %3552 = vmatpush.msra.mxu0 0.0
    %3553 = vmatpush.msra.mxu0 0.0
    %3554 = vmatpush.msra.mxu0 0.0
    %3555 = vmatpush.msra.mxu0 0.0
    %3556 = vmatpush.msra.mxu0 0.0
    %3557 = vmatpush.msra.mxu0 0.0
    %3558 = vmatpush.msra.mxu0 0.0
    %3559 = vmatpush.msra.mxu0 0.0
    %3560 = vmatpush.msra.mxu0 %v3390
    %3561 = vmatpush.msra.mxu0 %v3388
    %3562 = vmatpush.msra.mxu0 %v3386
    %3563 = vmatpush.msra.mxu0 %v3384
    %3564 = vmatmul.f32.gmra.mxu0 %v3392
    %v3565 = vpop.f32.mrf.mxu0
    %v3566 = vadd.f32 %v3537, %v3565
    %3567 = vmatmul.f32.gmra.mxu0 %v3395
    %v3568 = vpop.f32.mrf.mxu0
    %v3569 = vadd.f32 %v3540, %v3568
    %3570 = vmatmul.f32.gmra.mxu0 %v3398
    %v3571 = vpop.f32.mrf.mxu0
    %v3572 = vadd.f32 %v3543, %v3571
    %3573 = vmatmul.f32.gmra.mxu0 %v3401
    %v3574 = vpop.f32.mrf.mxu0
    %v3575 = vadd.f32 %v3546, %v3574
    %3576 = vdwg.mxu0
    %v3577 = vadd.f32 %v3170, %v3479
    %v3578 = vadd.f32 %v3171, %v3566
    %v3579 = vadd.f32 %v3172, %v3482
    %v3580 = vadd.f32 %v3173, %v3569
    %v3581 = vadd.f32 %v3174, %v3485
    %v3582 = vadd.f32 %v3175, %v3572
    %v3583 = vadd.f32 %v3176, %v3488
    %v3584 = vadd.f32 %v3177, %v3575
    %s3585 = scalar_lea.vmem %s5, 160
    %v3586 = vld [vmem:[%s3585] sm:$0xff]
    %v3587 = vld [vmem:[%s3585 + $0x8] sm:$0xff]
    %v3588 = vld [vmem:[%s3585 + $0x10] sm:$0xff]
    %v3589 = vld [vmem:[%s3585 + $0x18] sm:$0x3f]
    %v3591 = vsel %vm1571, %v3586, 0
    %v3594 = vsel %vm1571, %v3587, 0
    %v3597 = vsel %vm1571, %v3588, 0
    %v3600 = vsel %vm1571, %v3589, 0
    %3602 = vmatpush.msra.mxu0 0.0
    %3603 = vmatpush.msra.mxu0 0.0
    %3604 = vmatpush.msra.mxu0 0.0
    %3605 = vmatpush.msra.mxu0 0.0
    %3606 = vmatpush.msra.mxu0 0.0
    %3607 = vmatpush.msra.mxu0 0.0
    %3608 = vmatpush.msra.mxu0 0.0
    %3609 = vmatpush.msra.mxu0 %v1564
    %3610 = vmatpush.msra.mxu0 %v1561
    %3611 = vmatpush.msra.mxu0 %v1558
    %3612 = vmatpush.msra.mxu0 %v1555
    %3613 = vmatpush.msra.mxu0 %v1552
    %3614 = vmatpush.msra.mxu0 %v1549
    %3615 = vmatpush.msra.mxu0 %v1546
    %3616 = vmatpush.msra.mxu0 %v1543
    %3617 = vmatpush.msra.mxu0 %v1540
    %3618 = vmatmul.f32.gmra.mxu0 %v3591
    %v3619 = vpop.f32.mrf.mxu0
    %v3620 = vadd.f32 0.0, %v3619
    %3621 = vmatmul.f32.gmra.mxu0 %v3594
    %v3622 = vpop.f32.mrf.mxu0
    %v3623 = vadd.f32 0.0, %v3622
    %3624 = vmatmul.f32.gmra.mxu0 %v3597
    %v3625 = vpop.f32.mrf.mxu0
    %v3626 = vadd.f32 0.0, %v3625
    %3627 = vmatmul.f32.gmra.mxu0 %v3600
    %v3628 = vpop.f32.mrf.mxu0
    %v3629 = vadd.f32 0.0, %v3628
    %3630 = vdwg.mxu0
    %3631 = vmatpush.msra.mxu0 0.0
    %3632 = vmatpush.msra.mxu0 0.0
    %3633 = vmatpush.msra.mxu0 0.0
    %3634 = vmatpush.msra.mxu0 0.0
    %3635 = vmatpush.msra.mxu0 0.0
    %3636 = vmatpush.msra.mxu0 0.0
    %3637 = vmatpush.msra.mxu0 0.0
    %3638 = vmatpush.msra.mxu0 %v1565
    %3639 = vmatpush.msra.mxu0 %v1562
    %3640 = vmatpush.msra.mxu0 %v1559
    %3641 = vmatpush.msra.mxu0 %v1556
    %3642 = vmatpush.msra.mxu0 %v1553
    %3643 = vmatpush.msra.mxu0 %v1550
    %3644 = vmatpush.msra.mxu0 %v1547
    %3645 = vmatpush.msra.mxu0 %v1544
    %3646 = vmatpush.msra.mxu0 %v1541
    %3647 = vmatmul.f32.gmra.mxu0 %v3591
    %v3648 = vpop.f32.mrf.mxu0
    %v3649 = vadd.f32 0.0, %v3648
    %3650 = vmatmul.f32.gmra.mxu0 %v3594
    %v3651 = vpop.f32.mrf.mxu0
    %v3652 = vadd.f32 0.0, %v3651
    %3653 = vmatmul.f32.gmra.mxu0 %v3597
    %v3654 = vpop.f32.mrf.mxu0
    %v3655 = vadd.f32 0.0, %v3654
    %3656 = vmatmul.f32.gmra.mxu0 %v3600
    %v3657 = vpop.f32.mrf.mxu0
    %v3658 = vadd.f32 0.0, %v3657
    %3659 = vdwg.mxu0
    %3660 = vmatpush.msra.mxu0 0.0
    %3661 = vmatpush.msra.mxu0 0.0
    %3662 = vmatpush.msra.mxu0 0.0
    %3663 = vmatpush.msra.mxu0 0.0
    %3664 = vmatpush.msra.mxu0 0.0
    %3665 = vmatpush.msra.mxu0 0.0
    %3666 = vmatpush.msra.mxu0 0.0
    %3667 = vmatpush.msra.mxu0 %v1566
    %3668 = vmatpush.msra.mxu0 %v1563
    %3669 = vmatpush.msra.mxu0 %v1560
    %3670 = vmatpush.msra.mxu0 %v1557
    %3671 = vmatpush.msra.mxu0 %v1554
    %3672 = vmatpush.msra.mxu0 %v1551
    %3673 = vmatpush.msra.mxu0 %v1548
    %3674 = vmatpush.msra.mxu0 %v1545
    %3675 = vmatpush.msra.mxu0 %v1542
    %3676 = vmatmul.f32.gmra.mxu0 %v3591
    %v3677 = vpop.f32.mrf.mxu0
    %v3678 = vadd.f32 0.0, %v3677
    %3679 = vmatmul.f32.gmra.mxu0 %v3594
    %v3680 = vpop.f32.mrf.mxu0
    %v3681 = vadd.f32 0.0, %v3680
    %3682 = vmatmul.f32.gmra.mxu0 %v3597
    %v3683 = vpop.f32.mrf.mxu0
    %v3684 = vadd.f32 0.0, %v3683
    %3685 = vmatmul.f32.gmra.mxu0 %v3600
    %v3686 = vpop.f32.mrf.mxu0
    %v3687 = vadd.f32 0.0, %v3686
    %3688 = vdwg.mxu0
    %s3689 = scalar_lea.vmem %s6, 1440
    %v3690 = vld [vmem:[%s3689] sm:$0xff]
    %v3691 = vld [vmem:[%s3689 + $0x8] sm:$0xff]
    %v3692 = vld [vmem:[%s3689 + $0x10] sm:$0xff]
    %v3693 = vld [vmem:[%s3689 + $0x18] sm:$0xff]
    %v3694 = vld [vmem:[%s3689 + $0x20] sm:$0xff]
    %v3695 = vld [vmem:[%s3689 + $0x28] sm:$0xff]
    %v3696 = vld [vmem:[%s3689 + $0x30] sm:$0xff]
    %v3697 = vld [vmem:[%s3689 + $0x38] sm:$0xff]
    %v3698 = vld [vmem:[%s3689 + $0x40] sm:$0xff]
    %v3699 = vld [vmem:[%s3689 + $0x48] sm:$0xff]
    %v3700 = vld [vmem:[%s3689 + $0x50] sm:$0xff]
    %v3701 = vld [vmem:[%s3689 + $0x58] sm:$0xff]
    %v3702 = vld [vmem:[%s3689 + $0x60] sm:$0xff]
    %v3703 = vld [vmem:[%s3689 + $0x68] sm:$0xff]
    %v3704 = vld [vmem:[%s3689 + $0x70] sm:$0xff]
    %v3705 = vld [vmem:[%s3689 + $0x78] sm:$0xff]
    %v3706 = vld [vmem:[%s3689 + $0x80] sm:$0xff]
    %v3707 = vld [vmem:[%s3689 + $0x88] sm:$0xff]
    %v3708 = vld [vmem:[%s3689 + $0x90] sm:$0xff]
    %v3709 = vld [vmem:[%s3689 + $0x98] sm:$0xff]
    %v3710 = vld [vmem:[%s3689 + $0xa0] sm:$0xff]
    %v3711 = vld [vmem:[%s3689 + $0xa8] sm:$0xff]
    %v3712 = vld [vmem:[%s3689 + $0xb0] sm:$0xff]
    %v3713 = vld [vmem:[%s3689 + $0xb8] sm:$0xff]
    %v3714 = vld [vmem:[%s3689 + $0xc0] sm:$0xff]
    %v3715 = vld [vmem:[%s3689 + $0xc8] sm:$0xff]
    %v3716 = vld [vmem:[%s3689 + $0xd0] sm:$0xff]
    %v3717 = vld [vmem:[%s3689 + $0xd8] sm:$0xff]
    %v3718 = vld [vmem:[%s3689 + $0xe0] sm:$0xff]
    %v3719 = vld [vmem:[%s3689 + $0xe8] sm:$0xff]
    %v3720 = vld [vmem:[%s3689 + $0xf0] sm:$0xff]
    %v3721 = vld [vmem:[%s3689 + $0xf8] sm:$0xff]
    %v3722 = vld [vmem:[%s3689 + $0x100] sm:$0xff]
    %v3723 = vld [vmem:[%s3689 + $0x108] sm:$0xff]
    %v3724 = vld [vmem:[%s3689 + $0x110] sm:$0xff]
    %v3725 = vld [vmem:[%s3689 + $0x118] sm:$0xff]
    %v3726 = vunpack.c.l.bf16 %v3690
    %v3727 = vunpack.c.h.bf16 %v3690
    %v3728 = vunpack.c.l.bf16 %v3691
    %v3729 = vunpack.c.h.bf16 %v3691
    %v3730 = vunpack.c.l.bf16 %v3692
    %v3731 = vunpack.c.h.bf16 %v3692
    %v3732 = vunpack.c.l.bf16 %v3693
    %v3733 = vunpack.c.h.bf16 %v3693
    %v3734 = vunpack.c.l.bf16 %v3694
    %v3735 = vunpack.c.h.bf16 %v3694
    %v3736 = vunpack.c.l.bf16 %v3695
    %v3737 = vunpack.c.h.bf16 %v3695
    %v3738 = vunpack.c.l.bf16 %v3696
    %v3739 = vunpack.c.h.bf16 %v3696
    %v3740 = vunpack.c.l.bf16 %v3697
    %v3741 = vunpack.c.h.bf16 %v3697
    %v3742 = vunpack.c.l.bf16 %v3698
    %v3743 = vunpack.c.h.bf16 %v3698
    %v3744 = vunpack.c.l.bf16 %v3699
    %v3745 = vunpack.c.h.bf16 %v3699
    %v3746 = vunpack.c.l.bf16 %v3700
    %v3747 = vunpack.c.h.bf16 %v3700
    %v3748 = vunpack.c.l.bf16 %v3701
    %v3749 = vunpack.c.h.bf16 %v3701
    %v3750 = vunpack.c.l.bf16 %v3702
    %v3751 = vunpack.c.h.bf16 %v3702
    %v3752 = vunpack.c.l.bf16 %v3703
    %v3753 = vunpack.c.h.bf16 %v3703
    %v3754 = vunpack.c.l.bf16 %v3704
    %v3755 = vunpack.c.h.bf16 %v3704
    %v3756 = vunpack.c.l.bf16 %v3705
    %v3757 = vunpack.c.h.bf16 %v3705
    %v3758 = vunpack.c.l.bf16 %v3706
    %v3759 = vunpack.c.h.bf16 %v3706
    %v3760 = vunpack.c.l.bf16 %v3707
    %v3761 = vunpack.c.h.bf16 %v3707
    %v3762 = vunpack.c.l.bf16 %v3708
    %v3763 = vunpack.c.h.bf16 %v3708
    %v3764 = vunpack.c.l.bf16 %v3709
    %v3765 = vunpack.c.h.bf16 %v3709
    %v3766 = vunpack.c.l.bf16 %v3710
    %v3767 = vunpack.c.h.bf16 %v3710
    %v3768 = vunpack.c.l.bf16 %v3711
    %v3769 = vunpack.c.h.bf16 %v3711
    %v3770 = vunpack.c.l.bf16 %v3712
    %v3771 = vunpack.c.h.bf16 %v3712
    %v3772 = vunpack.c.l.bf16 %v3713
    %v3773 = vunpack.c.h.bf16 %v3713
    %v3774 = vunpack.c.l.bf16 %v3714
    %v3775 = vunpack.c.h.bf16 %v3714
    %v3776 = vunpack.c.l.bf16 %v3715
    %v3777 = vunpack.c.h.bf16 %v3715
    %v3778 = vunpack.c.l.bf16 %v3716
    %v3779 = vunpack.c.h.bf16 %v3716
    %v3780 = vunpack.c.l.bf16 %v3717
    %v3781 = vunpack.c.h.bf16 %v3717
    %v3782 = vunpack.c.l.bf16 %v3718
    %v3783 = vunpack.c.h.bf16 %v3718
    %v3784 = vunpack.c.l.bf16 %v3719
    %v3785 = vunpack.c.h.bf16 %v3719
    %v3786 = vunpack.c.l.bf16 %v3720
    %v3787 = vunpack.c.h.bf16 %v3720
    %v3788 = vunpack.c.l.bf16 %v3721
    %v3789 = vunpack.c.h.bf16 %v3721
    %v3790 = vunpack.c.l.bf16 %v3722
    %v3791 = vunpack.c.h.bf16 %v3722
    %v3792 = vunpack.c.l.bf16 %v3723
    %v3793 = vunpack.c.h.bf16 %v3723
    %v3794 = vunpack.c.l.bf16 %v3724
    %v3795 = vunpack.c.h.bf16 %v3724
    %v3796 = vunpack.c.l.bf16 %v3725
    %v3797 = vunpack.c.h.bf16 %v3725
    %v3799 = vsel %vm1098, %v3678, 0
    %v3802 = vsel %vm1098, %v3681, 0
    %v3805 = vsel %vm1098, %v3684, 0
    %v3808 = vsel %vm1098, %v3687, 0
    %3810 = vmatpush.msra.mxu0 %v3756
    %3811 = vmatpush.msra.mxu0 %v3754
    %3812 = vmatpush.msra.mxu0 %v3752
    %3813 = vmatpush.msra.mxu0 %v3750
    %3814 = vmatpush.msra.mxu0 %v3748
    %3815 = vmatpush.msra.mxu0 %v3746
    %3816 = vmatpush.msra.mxu0 %v3744
    %3817 = vmatpush.msra.mxu0 %v3742
    %3818 = vmatpush.msra.mxu0 %v3740
    %3819 = vmatpush.msra.mxu0 %v3738
    %3820 = vmatpush.msra.mxu0 %v3736
    %3821 = vmatpush.msra.mxu0 %v3734
    %3822 = vmatpush.msra.mxu0 %v3732
    %3823 = vmatpush.msra.mxu0 %v3730
    %3824 = vmatpush.msra.mxu0 %v3728
    %3825 = vmatpush.msra.mxu0 %v3726
    %3826 = vmatmul.f32.gmra.mxu0 %v3620
    %v3827 = vpop.f32.mrf.mxu0
    %v3828 = vadd.f32 0.0, %v3827
    %3829 = vmatmul.f32.gmra.mxu0 %v3623
    %v3830 = vpop.f32.mrf.mxu0
    %v3831 = vadd.f32 0.0, %v3830
    %3832 = vmatmul.f32.gmra.mxu0 %v3626
    %v3833 = vpop.f32.mrf.mxu0
    %v3834 = vadd.f32 0.0, %v3833
    %3835 = vmatmul.f32.gmra.mxu0 %v3629
    %v3836 = vpop.f32.mrf.mxu0
    %v3837 = vadd.f32 0.0, %v3836
    %3838 = vdwg.mxu0
    %3839 = vmatpush.msra.mxu0 %v3788
    %3840 = vmatpush.msra.mxu0 %v3786
    %3841 = vmatpush.msra.mxu0 %v3784
    %3842 = vmatpush.msra.mxu0 %v3782
    %3843 = vmatpush.msra.mxu0 %v3780
    %3844 = vmatpush.msra.mxu0 %v3778
    %3845 = vmatpush.msra.mxu0 %v3776
    %3846 = vmatpush.msra.mxu0 %v3774
    %3847 = vmatpush.msra.mxu0 %v3772
    %3848 = vmatpush.msra.mxu0 %v3770
    %3849 = vmatpush.msra.mxu0 %v3768
    %3850 = vmatpush.msra.mxu0 %v3766
    %3851 = vmatpush.msra.mxu0 %v3764
    %3852 = vmatpush.msra.mxu0 %v3762
    %3853 = vmatpush.msra.mxu0 %v3760
    %3854 = vmatpush.msra.mxu0 %v3758
    %3855 = vmatmul.f32.gmra.mxu0 %v3649
    %v3856 = vpop.f32.mrf.mxu0
    %v3857 = vadd.f32 %v3828, %v3856
    %3858 = vmatmul.f32.gmra.mxu0 %v3652
    %v3859 = vpop.f32.mrf.mxu0
    %v3860 = vadd.f32 %v3831, %v3859
    %3861 = vmatmul.f32.gmra.mxu0 %v3655
    %v3862 = vpop.f32.mrf.mxu0
    %v3863 = vadd.f32 %v3834, %v3862
    %3864 = vmatmul.f32.gmra.mxu0 %v3658
    %v3865 = vpop.f32.mrf.mxu0
    %v3866 = vadd.f32 %v3837, %v3865
    %3867 = vdwg.mxu0
    %3868 = vmatpush.msra.mxu0 0.0
    %3869 = vmatpush.msra.mxu0 0.0
    %3870 = vmatpush.msra.mxu0 0.0
    %3871 = vmatpush.msra.mxu0 0.0
    %3872 = vmatpush.msra.mxu0 0.0
    %3873 = vmatpush.msra.mxu0 0.0
    %3874 = vmatpush.msra.mxu0 0.0
    %3875 = vmatpush.msra.mxu0 0.0
    %3876 = vmatpush.msra.mxu0 0.0
    %3877 = vmatpush.msra.mxu0 0.0
    %3878 = vmatpush.msra.mxu0 0.0
    %3879 = vmatpush.msra.mxu0 0.0
    %3880 = vmatpush.msra.mxu0 %v3796
    %3881 = vmatpush.msra.mxu0 %v3794
    %3882 = vmatpush.msra.mxu0 %v3792
    %3883 = vmatpush.msra.mxu0 %v3790
    %3884 = vmatmul.f32.gmra.mxu0 %v3799
    %v3885 = vpop.f32.mrf.mxu0
    %v3886 = vadd.f32 %v3857, %v3885
    %3887 = vmatmul.f32.gmra.mxu0 %v3802
    %v3888 = vpop.f32.mrf.mxu0
    %v3889 = vadd.f32 %v3860, %v3888
    %3890 = vmatmul.f32.gmra.mxu0 %v3805
    %v3891 = vpop.f32.mrf.mxu0
    %v3892 = vadd.f32 %v3863, %v3891
    %3893 = vmatmul.f32.gmra.mxu0 %v3808
    %v3894 = vpop.f32.mrf.mxu0
    %v3895 = vadd.f32 %v3866, %v3894
    %3896 = vdwg.mxu0
    %3897 = vmatpush.msra.mxu0 %v3757
    %3898 = vmatpush.msra.mxu0 %v3755
    %3899 = vmatpush.msra.mxu0 %v3753
    %3900 = vmatpush.msra.mxu0 %v3751
    %3901 = vmatpush.msra.mxu0 %v3749
    %3902 = vmatpush.msra.mxu0 %v3747
    %3903 = vmatpush.msra.mxu0 %v3745
    %3904 = vmatpush.msra.mxu0 %v3743
    %3905 = vmatpush.msra.mxu0 %v3741
    %3906 = vmatpush.msra.mxu0 %v3739
    %3907 = vmatpush.msra.mxu0 %v3737
    %3908 = vmatpush.msra.mxu0 %v3735
    %3909 = vmatpush.msra.mxu0 %v3733
    %3910 = vmatpush.msra.mxu0 %v3731
    %3911 = vmatpush.msra.mxu0 %v3729
    %3912 = vmatpush.msra.mxu0 %v3727
    %3913 = vmatmul.f32.gmra.mxu0 %v3620
    %v3914 = vpop.f32.mrf.mxu0
    %v3915 = vadd.f32 0.0, %v3914
    %3916 = vmatmul.f32.gmra.mxu0 %v3623
    %v3917 = vpop.f32.mrf.mxu0
    %v3918 = vadd.f32 0.0, %v3917
    %3919 = vmatmul.f32.gmra.mxu0 %v3626
    %v3920 = vpop.f32.mrf.mxu0
    %v3921 = vadd.f32 0.0, %v3920
    %3922 = vmatmul.f32.gmra.mxu0 %v3629
    %v3923 = vpop.f32.mrf.mxu0
    %v3924 = vadd.f32 0.0, %v3923
    %3925 = vdwg.mxu0
    %3926 = vmatpush.msra.mxu0 %v3789
    %3927 = vmatpush.msra.mxu0 %v3787
    %3928 = vmatpush.msra.mxu0 %v3785
    %3929 = vmatpush.msra.mxu0 %v3783
    %3930 = vmatpush.msra.mxu0 %v3781
    %3931 = vmatpush.msra.mxu0 %v3779
    %3932 = vmatpush.msra.mxu0 %v3777
    %3933 = vmatpush.msra.mxu0 %v3775
    %3934 = vmatpush.msra.mxu0 %v3773
    %3935 = vmatpush.msra.mxu0 %v3771
    %3936 = vmatpush.msra.mxu0 %v3769
    %3937 = vmatpush.msra.mxu0 %v3767
    %3938 = vmatpush.msra.mxu0 %v3765
    %3939 = vmatpush.msra.mxu0 %v3763
    %3940 = vmatpush.msra.mxu0 %v3761
    %3941 = vmatpush.msra.mxu0 %v3759
    %3942 = vmatmul.f32.gmra.mxu0 %v3649
    %v3943 = vpop.f32.mrf.mxu0
    %v3944 = vadd.f32 %v3915, %v3943
    %3945 = vmatmul.f32.gmra.mxu0 %v3652
    %v3946 = vpop.f32.mrf.mxu0
    %v3947 = vadd.f32 %v3918, %v3946
    %3948 = vmatmul.f32.gmra.mxu0 %v3655
    %v3949 = vpop.f32.mrf.mxu0
    %v3950 = vadd.f32 %v3921, %v3949
    %3951 = vmatmul.f32.gmra.mxu0 %v3658
    %v3952 = vpop.f32.mrf.mxu0
    %v3953 = vadd.f32 %v3924, %v3952
    %3954 = vdwg.mxu0
    %3955 = vmatpush.msra.mxu0 0.0
    %3956 = vmatpush.msra.mxu0 0.0
    %3957 = vmatpush.msra.mxu0 0.0
    %3958 = vmatpush.msra.mxu0 0.0
    %3959 = vmatpush.msra.mxu0 0.0
    %3960 = vmatpush.msra.mxu0 0.0
    %3961 = vmatpush.msra.mxu0 0.0
    %3962 = vmatpush.msra.mxu0 0.0
    %3963 = vmatpush.msra.mxu0 0.0
    %3964 = vmatpush.msra.mxu0 0.0
    %3965 = vmatpush.msra.mxu0 0.0
    %3966 = vmatpush.msra.mxu0 0.0
    %3967 = vmatpush.msra.mxu0 %v3797
    %3968 = vmatpush.msra.mxu0 %v3795
    %3969 = vmatpush.msra.mxu0 %v3793
    %3970 = vmatpush.msra.mxu0 %v3791
    %3971 = vmatmul.f32.gmra.mxu0 %v3799
    %v3972 = vpop.f32.mrf.mxu0
    %v3973 = vadd.f32 %v3944, %v3972
    %3974 = vmatmul.f32.gmra.mxu0 %v3802
    %v3975 = vpop.f32.mrf.mxu0
    %v3976 = vadd.f32 %v3947, %v3975
    %3977 = vmatmul.f32.gmra.mxu0 %v3805
    %v3978 = vpop.f32.mrf.mxu0
    %v3979 = vadd.f32 %v3950, %v3978
    %3980 = vmatmul.f32.gmra.mxu0 %v3808
    %v3981 = vpop.f32.mrf.mxu0
    %v3982 = vadd.f32 %v3953, %v3981
    %3983 = vdwg.mxu0
    %v3984 = vadd.f32 %v3577, %v3886
    %v3985 = vadd.f32 %v3578, %v3973
    %v3986 = vadd.f32 %v3579, %v3889
    %v3987 = vadd.f32 %v3580, %v3976
    %v3988 = vadd.f32 %v3581, %v3892
    %v3989 = vadd.f32 %v3582, %v3979
    %v3990 = vadd.f32 %v3583, %v3895
    %v3991 = vadd.f32 %v3584, %v3982
    %s3992 = scalar_lea.vmem %s5, 192
    %v3993 = vld [vmem:[%s3992] sm:$0xff]
    %v3994 = vld [vmem:[%s3992 + $0x8] sm:$0xff]
    %v3995 = vld [vmem:[%s3992 + $0x10] sm:$0xff]
    %v3996 = vld [vmem:[%s3992 + $0x18] sm:$0x3f]
    %v3998 = vsel %vm1571, %v3993, 0
    %v4001 = vsel %vm1571, %v3994, 0
    %v4004 = vsel %vm1571, %v3995, 0
    %v4007 = vsel %vm1571, %v3996, 0
    %4009 = vmatpush.msra.mxu0 0.0
    %4010 = vmatpush.msra.mxu0 0.0
    %4011 = vmatpush.msra.mxu0 0.0
    %4012 = vmatpush.msra.mxu0 0.0
    %4013 = vmatpush.msra.mxu0 0.0
    %4014 = vmatpush.msra.mxu0 0.0
    %4015 = vmatpush.msra.mxu0 0.0
    %4016 = vmatpush.msra.mxu0 %v1564
    %4017 = vmatpush.msra.mxu0 %v1561
    %4018 = vmatpush.msra.mxu0 %v1558
    %4019 = vmatpush.msra.mxu0 %v1555
    %4020 = vmatpush.msra.mxu0 %v1552
    %4021 = vmatpush.msra.mxu0 %v1549
    %4022 = vmatpush.msra.mxu0 %v1546
    %4023 = vmatpush.msra.mxu0 %v1543
    %4024 = vmatpush.msra.mxu0 %v1540
    %4025 = vmatmul.f32.gmra.mxu0 %v3998
    %v4026 = vpop.f32.mrf.mxu0
    %v4027 = vadd.f32 0.0, %v4026
    %4028 = vmatmul.f32.gmra.mxu0 %v4001
    %v4029 = vpop.f32.mrf.mxu0
    %v4030 = vadd.f32 0.0, %v4029
    %4031 = vmatmul.f32.gmra.mxu0 %v4004
    %v4032 = vpop.f32.mrf.mxu0
    %v4033 = vadd.f32 0.0, %v4032
    %4034 = vmatmul.f32.gmra.mxu0 %v4007
    %v4035 = vpop.f32.mrf.mxu0
    %v4036 = vadd.f32 0.0, %v4035
    %4037 = vdwg.mxu0
    %4038 = vmatpush.msra.mxu0 0.0
    %4039 = vmatpush.msra.mxu0 0.0
    %4040 = vmatpush.msra.mxu0 0.0
    %4041 = vmatpush.msra.mxu0 0.0
    %4042 = vmatpush.msra.mxu0 0.0
    %4043 = vmatpush.msra.mxu0 0.0
    %4044 = vmatpush.msra.mxu0 0.0
    %4045 = vmatpush.msra.mxu0 %v1565
    %4046 = vmatpush.msra.mxu0 %v1562
    %4047 = vmatpush.msra.mxu0 %v1559
    %4048 = vmatpush.msra.mxu0 %v1556
    %4049 = vmatpush.msra.mxu0 %v1553
    %4050 = vmatpush.msra.mxu0 %v1550
    %4051 = vmatpush.msra.mxu0 %v1547
    %4052 = vmatpush.msra.mxu0 %v1544
    %4053 = vmatpush.msra.mxu0 %v1541
    %4054 = vmatmul.f32.gmra.mxu0 %v3998
    %v4055 = vpop.f32.mrf.mxu0
    %v4056 = vadd.f32 0.0, %v4055
    %4057 = vmatmul.f32.gmra.mxu0 %v4001
    %v4058 = vpop.f32.mrf.mxu0
    %v4059 = vadd.f32 0.0, %v4058
    %4060 = vmatmul.f32.gmra.mxu0 %v4004
    %v4061 = vpop.f32.mrf.mxu0
    %v4062 = vadd.f32 0.0, %v4061
    %4063 = vmatmul.f32.gmra.mxu0 %v4007
    %v4064 = vpop.f32.mrf.mxu0
    %v4065 = vadd.f32 0.0, %v4064
    %4066 = vdwg.mxu0
    %4067 = vmatpush.msra.mxu0 0.0
    %4068 = vmatpush.msra.mxu0 0.0
    %4069 = vmatpush.msra.mxu0 0.0
    %4070 = vmatpush.msra.mxu0 0.0
    %4071 = vmatpush.msra.mxu0 0.0
    %4072 = vmatpush.msra.mxu0 0.0
    %4073 = vmatpush.msra.mxu0 0.0
    %4074 = vmatpush.msra.mxu0 %v1566
    %4075 = vmatpush.msra.mxu0 %v1563
    %4076 = vmatpush.msra.mxu0 %v1560
    %4077 = vmatpush.msra.mxu0 %v1557
    %4078 = vmatpush.msra.mxu0 %v1554
    %4079 = vmatpush.msra.mxu0 %v1551
    %4080 = vmatpush.msra.mxu0 %v1548
    %4081 = vmatpush.msra.mxu0 %v1545
    %4082 = vmatpush.msra.mxu0 %v1542
    %4083 = vmatmul.f32.gmra.mxu0 %v3998
    %v4084 = vpop.f32.mrf.mxu0
    %v4085 = vadd.f32 0.0, %v4084
    %4086 = vmatmul.f32.gmra.mxu0 %v4001
    %v4087 = vpop.f32.mrf.mxu0
    %v4088 = vadd.f32 0.0, %v4087
    %4089 = vmatmul.f32.gmra.mxu0 %v4004
    %v4090 = vpop.f32.mrf.mxu0
    %v4091 = vadd.f32 0.0, %v4090
    %4092 = vmatmul.f32.gmra.mxu0 %v4007
    %v4093 = vpop.f32.mrf.mxu0
    %v4094 = vadd.f32 0.0, %v4093
    %4095 = vdwg.mxu0
    %s4096 = scalar_lea.vmem %s6, 1728
    %v4097 = vld [vmem:[%s4096] sm:$0xff]
    %v4098 = vld [vmem:[%s4096 + $0x8] sm:$0xff]
    %v4099 = vld [vmem:[%s4096 + $0x10] sm:$0xff]
    %v4100 = vld [vmem:[%s4096 + $0x18] sm:$0xff]
    %v4101 = vld [vmem:[%s4096 + $0x20] sm:$0xff]
    %v4102 = vld [vmem:[%s4096 + $0x28] sm:$0xff]
    %v4103 = vld [vmem:[%s4096 + $0x30] sm:$0xff]
    %v4104 = vld [vmem:[%s4096 + $0x38] sm:$0xff]
    %v4105 = vld [vmem:[%s4096 + $0x40] sm:$0xff]
    %v4106 = vld [vmem:[%s4096 + $0x48] sm:$0xff]
    %v4107 = vld [vmem:[%s4096 + $0x50] sm:$0xff]
    %v4108 = vld [vmem:[%s4096 + $0x58] sm:$0xff]
    %v4109 = vld [vmem:[%s4096 + $0x60] sm:$0xff]
    %v4110 = vld [vmem:[%s4096 + $0x68] sm:$0xff]
    %v4111 = vld [vmem:[%s4096 + $0x70] sm:$0xff]
    %v4112 = vld [vmem:[%s4096 + $0x78] sm:$0xff]
    %v4113 = vld [vmem:[%s4096 + $0x80] sm:$0xff]
    %v4114 = vld [vmem:[%s4096 + $0x88] sm:$0xff]
    %v4115 = vld [vmem:[%s4096 + $0x90] sm:$0xff]
    %v4116 = vld [vmem:[%s4096 + $0x98] sm:$0xff]
    %v4117 = vld [vmem:[%s4096 + $0xa0] sm:$0xff]
    %v4118 = vld [vmem:[%s4096 + $0xa8] sm:$0xff]
    %v4119 = vld [vmem:[%s4096 + $0xb0] sm:$0xff]
    %v4120 = vld [vmem:[%s4096 + $0xb8] sm:$0xff]
    %v4121 = vld [vmem:[%s4096 + $0xc0] sm:$0xff]
    %v4122 = vld [vmem:[%s4096 + $0xc8] sm:$0xff]
    %v4123 = vld [vmem:[%s4096 + $0xd0] sm:$0xff]
    %v4124 = vld [vmem:[%s4096 + $0xd8] sm:$0xff]
    %v4125 = vld [vmem:[%s4096 + $0xe0] sm:$0xff]
    %v4126 = vld [vmem:[%s4096 + $0xe8] sm:$0xff]
    %v4127 = vld [vmem:[%s4096 + $0xf0] sm:$0xff]
    %v4128 = vld [vmem:[%s4096 + $0xf8] sm:$0xff]
    %v4129 = vld [vmem:[%s4096 + $0x100] sm:$0xff]
    %v4130 = vld [vmem:[%s4096 + $0x108] sm:$0xff]
    %v4131 = vld [vmem:[%s4096 + $0x110] sm:$0xff]
    %v4132 = vld [vmem:[%s4096 + $0x118] sm:$0xff]
    %v4133 = vunpack.c.l.bf16 %v4097
    %v4134 = vunpack.c.h.bf16 %v4097
    %v4135 = vunpack.c.l.bf16 %v4098
    %v4136 = vunpack.c.h.bf16 %v4098
    %v4137 = vunpack.c.l.bf16 %v4099
    %v4138 = vunpack.c.h.bf16 %v4099
    %v4139 = vunpack.c.l.bf16 %v4100
    %v4140 = vunpack.c.h.bf16 %v4100
    %v4141 = vunpack.c.l.bf16 %v4101
    %v4142 = vunpack.c.h.bf16 %v4101
    %v4143 = vunpack.c.l.bf16 %v4102
    %v4144 = vunpack.c.h.bf16 %v4102
    %v4145 = vunpack.c.l.bf16 %v4103
    %v4146 = vunpack.c.h.bf16 %v4103
    %v4147 = vunpack.c.l.bf16 %v4104
    %v4148 = vunpack.c.h.bf16 %v4104
    %v4149 = vunpack.c.l.bf16 %v4105
    %v4150 = vunpack.c.h.bf16 %v4105
    %v4151 = vunpack.c.l.bf16 %v4106
    %v4152 = vunpack.c.h.bf16 %v4106
    %v4153 = vunpack.c.l.bf16 %v4107
    %v4154 = vunpack.c.h.bf16 %v4107
    %v4155 = vunpack.c.l.bf16 %v4108
    %v4156 = vunpack.c.h.bf16 %v4108
    %v4157 = vunpack.c.l.bf16 %v4109
    %v4158 = vunpack.c.h.bf16 %v4109
    %v4159 = vunpack.c.l.bf16 %v4110
    %v4160 = vunpack.c.h.bf16 %v4110
    %v4161 = vunpack.c.l.bf16 %v4111
    %v4162 = vunpack.c.h.bf16 %v4111
    %v4163 = vunpack.c.l.bf16 %v4112
    %v4164 = vunpack.c.h.bf16 %v4112
    %v4165 = vunpack.c.l.bf16 %v4113
    %v4166 = vunpack.c.h.bf16 %v4113
    %v4167 = vunpack.c.l.bf16 %v4114
    %v4168 = vunpack.c.h.bf16 %v4114
    %v4169 = vunpack.c.l.bf16 %v4115
    %v4170 = vunpack.c.h.bf16 %v4115
    %v4171 = vunpack.c.l.bf16 %v4116
    %v4172 = vunpack.c.h.bf16 %v4116
    %v4173 = vunpack.c.l.bf16 %v4117
    %v4174 = vunpack.c.h.bf16 %v4117
    %v4175 = vunpack.c.l.bf16 %v4118
    %v4176 = vunpack.c.h.bf16 %v4118
    %v4177 = vunpack.c.l.bf16 %v4119
    %v4178 = vunpack.c.h.bf16 %v4119
    %v4179 = vunpack.c.l.bf16 %v4120
    %v4180 = vunpack.c.h.bf16 %v4120
    %v4181 = vunpack.c.l.bf16 %v4121
    %v4182 = vunpack.c.h.bf16 %v4121
    %v4183 = vunpack.c.l.bf16 %v4122
    %v4184 = vunpack.c.h.bf16 %v4122
    %v4185 = vunpack.c.l.bf16 %v4123
    %v4186 = vunpack.c.h.bf16 %v4123
    %v4187 = vunpack.c.l.bf16 %v4124
    %v4188 = vunpack.c.h.bf16 %v4124
    %v4189 = vunpack.c.l.bf16 %v4125
    %v4190 = vunpack.c.h.bf16 %v4125
    %v4191 = vunpack.c.l.bf16 %v4126
    %v4192 = vunpack.c.h.bf16 %v4126
    %v4193 = vunpack.c.l.bf16 %v4127
    %v4194 = vunpack.c.h.bf16 %v4127
    %v4195 = vunpack.c.l.bf16 %v4128
    %v4196 = vunpack.c.h.bf16 %v4128
    %v4197 = vunpack.c.l.bf16 %v4129
    %v4198 = vunpack.c.h.bf16 %v4129
    %v4199 = vunpack.c.l.bf16 %v4130
    %v4200 = vunpack.c.h.bf16 %v4130
    %v4201 = vunpack.c.l.bf16 %v4131
    %v4202 = vunpack.c.h.bf16 %v4131
    %v4203 = vunpack.c.l.bf16 %v4132
    %v4204 = vunpack.c.h.bf16 %v4132
    %v4206 = vsel %vm1098, %v4085, 0
    %v4209 = vsel %vm1098, %v4088, 0
    %v4212 = vsel %vm1098, %v4091, 0
    %v4215 = vsel %vm1098, %v4094, 0
    %4217 = vmatpush.msra.mxu0 %v4163
    %4218 = vmatpush.msra.mxu0 %v4161
    %4219 = vmatpush.msra.mxu0 %v4159
    %4220 = vmatpush.msra.mxu0 %v4157
    %4221 = vmatpush.msra.mxu0 %v4155
    %4222 = vmatpush.msra.mxu0 %v4153
    %4223 = vmatpush.msra.mxu0 %v4151
    %4224 = vmatpush.msra.mxu0 %v4149
    %4225 = vmatpush.msra.mxu0 %v4147
    %4226 = vmatpush.msra.mxu0 %v4145
    %4227 = vmatpush.msra.mxu0 %v4143
    %4228 = vmatpush.msra.mxu0 %v4141
    %4229 = vmatpush.msra.mxu0 %v4139
    %4230 = vmatpush.msra.mxu0 %v4137
    %4231 = vmatpush.msra.mxu0 %v4135
    %4232 = vmatpush.msra.mxu0 %v4133
    %4233 = vmatmul.f32.gmra.mxu0 %v4027
    %v4234 = vpop.f32.mrf.mxu0
    %v4235 = vadd.f32 0.0, %v4234
    %4236 = vmatmul.f32.gmra.mxu0 %v4030
    %v4237 = vpop.f32.mrf.mxu0
    %v4238 = vadd.f32 0.0, %v4237
    %4239 = vmatmul.f32.gmra.mxu0 %v4033
    %v4240 = vpop.f32.mrf.mxu0
    %v4241 = vadd.f32 0.0, %v4240
    %4242 = vmatmul.f32.gmra.mxu0 %v4036
    %v4243 = vpop.f32.mrf.mxu0
    %v4244 = vadd.f32 0.0, %v4243
    %4245 = vdwg.mxu0
    %4246 = vmatpush.msra.mxu0 %v4195
    %4247 = vmatpush.msra.mxu0 %v4193
    %4248 = vmatpush.msra.mxu0 %v4191
    %4249 = vmatpush.msra.mxu0 %v4189
    %4250 = vmatpush.msra.mxu0 %v4187
    %4251 = vmatpush.msra.mxu0 %v4185
    %4252 = vmatpush.msra.mxu0 %v4183
    %4253 = vmatpush.msra.mxu0 %v4181
    %4254 = vmatpush.msra.mxu0 %v4179
    %4255 = vmatpush.msra.mxu0 %v4177
    %4256 = vmatpush.msra.mxu0 %v4175
    %4257 = vmatpush.msra.mxu0 %v4173
    %4258 = vmatpush.msra.mxu0 %v4171
    %4259 = vmatpush.msra.mxu0 %v4169
    %4260 = vmatpush.msra.mxu0 %v4167
    %4261 = vmatpush.msra.mxu0 %v4165
    %4262 = vmatmul.f32.gmra.mxu0 %v4056
    %v4263 = vpop.f32.mrf.mxu0
    %v4264 = vadd.f32 %v4235, %v4263
    %4265 = vmatmul.f32.gmra.mxu0 %v4059
    %v4266 = vpop.f32.mrf.mxu0
    %v4267 = vadd.f32 %v4238, %v4266
    %4268 = vmatmul.f32.gmra.mxu0 %v4062
    %v4269 = vpop.f32.mrf.mxu0
    %v4270 = vadd.f32 %v4241, %v4269
    %4271 = vmatmul.f32.gmra.mxu0 %v4065
    %v4272 = vpop.f32.mrf.mxu0
    %v4273 = vadd.f32 %v4244, %v4272
    %4274 = vdwg.mxu0
    %4275 = vmatpush.msra.mxu0 0.0
    %4276 = vmatpush.msra.mxu0 0.0
    %4277 = vmatpush.msra.mxu0 0.0
    %4278 = vmatpush.msra.mxu0 0.0
    %4279 = vmatpush.msra.mxu0 0.0
    %4280 = vmatpush.msra.mxu0 0.0
    %4281 = vmatpush.msra.mxu0 0.0
    %4282 = vmatpush.msra.mxu0 0.0
    %4283 = vmatpush.msra.mxu0 0.0
    %4284 = vmatpush.msra.mxu0 0.0
    %4285 = vmatpush.msra.mxu0 0.0
    %4286 = vmatpush.msra.mxu0 0.0
    %4287 = vmatpush.msra.mxu0 %v4203
    %4288 = vmatpush.msra.mxu0 %v4201
    %4289 = vmatpush.msra.mxu0 %v4199
    %4290 = vmatpush.msra.mxu0 %v4197
    %4291 = vmatmul.f32.gmra.mxu0 %v4206
    %v4292 = vpop.f32.mrf.mxu0
    %v4293 = vadd.f32 %v4264, %v4292
    %4294 = vmatmul.f32.gmra.mxu0 %v4209
    %v4295 = vpop.f32.mrf.mxu0
    %v4296 = vadd.f32 %v4267, %v4295
    %4297 = vmatmul.f32.gmra.mxu0 %v4212
    %v4298 = vpop.f32.mrf.mxu0
    %v4299 = vadd.f32 %v4270, %v4298
    %4300 = vmatmul.f32.gmra.mxu0 %v4215
    %v4301 = vpop.f32.mrf.mxu0
    %v4302 = vadd.f32 %v4273, %v4301
    %4303 = vdwg.mxu0
    %4304 = vmatpush.msra.mxu0 %v4164
    %4305 = vmatpush.msra.mxu0 %v4162
    %4306 = vmatpush.msra.mxu0 %v4160
    %4307 = vmatpush.msra.mxu0 %v4158
    %4308 = vmatpush.msra.mxu0 %v4156
    %4309 = vmatpush.msra.mxu0 %v4154
    %4310 = vmatpush.msra.mxu0 %v4152
    %4311 = vmatpush.msra.mxu0 %v4150
    %4312 = vmatpush.msra.mxu0 %v4148
    %4313 = vmatpush.msra.mxu0 %v4146
    %4314 = vmatpush.msra.mxu0 %v4144
    %4315 = vmatpush.msra.mxu0 %v4142
    %4316 = vmatpush.msra.mxu0 %v4140
    %4317 = vmatpush.msra.mxu0 %v4138
    %4318 = vmatpush.msra.mxu0 %v4136
    %4319 = vmatpush.msra.mxu0 %v4134
    %4320 = vmatmul.f32.gmra.mxu0 %v4027
    %v4321 = vpop.f32.mrf.mxu0
    %v4322 = vadd.f32 0.0, %v4321
    %4323 = vmatmul.f32.gmra.mxu0 %v4030
    %v4324 = vpop.f32.mrf.mxu0
    %v4325 = vadd.f32 0.0, %v4324
    %4326 = vmatmul.f32.gmra.mxu0 %v4033
    %v4327 = vpop.f32.mrf.mxu0
    %v4328 = vadd.f32 0.0, %v4327
    %4329 = vmatmul.f32.gmra.mxu0 %v4036
    %v4330 = vpop.f32.mrf.mxu0
    %v4331 = vadd.f32 0.0, %v4330
    %4332 = vdwg.mxu0
    %4333 = vmatpush.msra.mxu0 %v4196
    %4334 = vmatpush.msra.mxu0 %v4194
    %4335 = vmatpush.msra.mxu0 %v4192
    %4336 = vmatpush.msra.mxu0 %v4190
    %4337 = vmatpush.msra.mxu0 %v4188
    %4338 = vmatpush.msra.mxu0 %v4186
    %4339 = vmatpush.msra.mxu0 %v4184
    %4340 = vmatpush.msra.mxu0 %v4182
    %4341 = vmatpush.msra.mxu0 %v4180
    %4342 = vmatpush.msra.mxu0 %v4178
    %4343 = vmatpush.msra.mxu0 %v4176
    %4344 = vmatpush.msra.mxu0 %v4174
    %4345 = vmatpush.msra.mxu0 %v4172
    %4346 = vmatpush.msra.mxu0 %v4170
    %4347 = vmatpush.msra.mxu0 %v4168
    %4348 = vmatpush.msra.mxu0 %v4166
    %4349 = vmatmul.f32.gmra.mxu0 %v4056
    %v4350 = vpop.f32.mrf.mxu0
    %v4351 = vadd.f32 %v4322, %v4350
    %4352 = vmatmul.f32.gmra.mxu0 %v4059
    %v4353 = vpop.f32.mrf.mxu0
    %v4354 = vadd.f32 %v4325, %v4353
    %4355 = vmatmul.f32.gmra.mxu0 %v4062
    %v4356 = vpop.f32.mrf.mxu0
    %v4357 = vadd.f32 %v4328, %v4356
    %4358 = vmatmul.f32.gmra.mxu0 %v4065
    %v4359 = vpop.f32.mrf.mxu0
    %v4360 = vadd.f32 %v4331, %v4359
    %4361 = vdwg.mxu0
    %4362 = vmatpush.msra.mxu0 0.0
    %4363 = vmatpush.msra.mxu0 0.0
    %4364 = vmatpush.msra.mxu0 0.0
    %4365 = vmatpush.msra.mxu0 0.0
    %4366 = vmatpush.msra.mxu0 0.0
    %4367 = vmatpush.msra.mxu0 0.0
    %4368 = vmatpush.msra.mxu0 0.0
    %4369 = vmatpush.msra.mxu0 0.0
    %4370 = vmatpush.msra.mxu0 0.0
    %4371 = vmatpush.msra.mxu0 0.0
    %4372 = vmatpush.msra.mxu0 0.0
    %4373 = vmatpush.msra.mxu0 0.0
    %4374 = vmatpush.msra.mxu0 %v4204
    %4375 = vmatpush.msra.mxu0 %v4202
    %4376 = vmatpush.msra.mxu0 %v4200
    %4377 = vmatpush.msra.mxu0 %v4198
    %4378 = vmatmul.f32.gmra.mxu0 %v4206
    %v4379 = vpop.f32.mrf.mxu0
    %v4380 = vadd.f32 %v4351, %v4379
    %4381 = vmatmul.f32.gmra.mxu0 %v4209
    %v4382 = vpop.f32.mrf.mxu0
    %v4383 = vadd.f32 %v4354, %v4382
    %4384 = vmatmul.f32.gmra.mxu0 %v4212
    %v4385 = vpop.f32.mrf.mxu0
    %v4386 = vadd.f32 %v4357, %v4385
    %4387 = vmatmul.f32.gmra.mxu0 %v4215
    %v4388 = vpop.f32.mrf.mxu0
    %v4389 = vadd.f32 %v4360, %v4388
    %4390 = vdwg.mxu0
    %v4391 = vadd.f32 %v3984, %v4293
    %v4392 = vadd.f32 %v3985, %v4380
    %v4393 = vadd.f32 %v3986, %v4296
    %v4394 = vadd.f32 %v3987, %v4383
    %v4395 = vadd.f32 %v3988, %v4299
    %v4396 = vadd.f32 %v3989, %v4386
    %v4397 = vadd.f32 %v3990, %v4302
    %v4398 = vadd.f32 %v3991, %v4389
    %s4399 = scalar_lea.vmem %s5, 224
    %v4400 = vld [vmem:[%s4399] sm:$0xff]
    %v4401 = vld [vmem:[%s4399 + $0x8] sm:$0xff]
    %v4402 = vld [vmem:[%s4399 + $0x10] sm:$0xff]
    %v4403 = vld [vmem:[%s4399 + $0x18] sm:$0x3f]
    %v4405 = vsel %vm1571, %v4400, 0
    %v4408 = vsel %vm1571, %v4401, 0
    %v4411 = vsel %vm1571, %v4402, 0
    %v4414 = vsel %vm1571, %v4403, 0
    %4416 = vmatpush.msra.mxu0 0.0
    %4417 = vmatpush.msra.mxu0 0.0
    %4418 = vmatpush.msra.mxu0 0.0
    %4419 = vmatpush.msra.mxu0 0.0
    %4420 = vmatpush.msra.mxu0 0.0
    %4421 = vmatpush.msra.mxu0 0.0
    %4422 = vmatpush.msra.mxu0 0.0
    %4423 = vmatpush.msra.mxu0 %v1564
    %4424 = vmatpush.msra.mxu0 %v1561
    %4425 = vmatpush.msra.mxu0 %v1558
    %4426 = vmatpush.msra.mxu0 %v1555
    %4427 = vmatpush.msra.mxu0 %v1552
    %4428 = vmatpush.msra.mxu0 %v1549
    %4429 = vmatpush.msra.mxu0 %v1546
    %4430 = vmatpush.msra.mxu0 %v1543
    %4431 = vmatpush.msra.mxu0 %v1540
    %4432 = vmatmul.f32.gmra.mxu0 %v4405
    %v4433 = vpop.f32.mrf.mxu0
    %v4434 = vadd.f32 0.0, %v4433
    %4435 = vmatmul.f32.gmra.mxu0 %v4408
    %v4436 = vpop.f32.mrf.mxu0
    %v4437 = vadd.f32 0.0, %v4436
    %4438 = vmatmul.f32.gmra.mxu0 %v4411
    %v4439 = vpop.f32.mrf.mxu0
    %v4440 = vadd.f32 0.0, %v4439
    %4441 = vmatmul.f32.gmra.mxu0 %v4414
    %v4442 = vpop.f32.mrf.mxu0
    %v4443 = vadd.f32 0.0, %v4442
    %4444 = vdwg.mxu0
    %4445 = vmatpush.msra.mxu0 0.0
    %4446 = vmatpush.msra.mxu0 0.0
    %4447 = vmatpush.msra.mxu0 0.0
    %4448 = vmatpush.msra.mxu0 0.0
    %4449 = vmatpush.msra.mxu0 0.0
    %4450 = vmatpush.msra.mxu0 0.0
    %4451 = vmatpush.msra.mxu0 0.0
    %4452 = vmatpush.msra.mxu0 %v1565
    %4453 = vmatpush.msra.mxu0 %v1562
    %4454 = vmatpush.msra.mxu0 %v1559
    %4455 = vmatpush.msra.mxu0 %v1556
    %4456 = vmatpush.msra.mxu0 %v1553
    %4457 = vmatpush.msra.mxu0 %v1550
    %4458 = vmatpush.msra.mxu0 %v1547
    %4459 = vmatpush.msra.mxu0 %v1544
    %4460 = vmatpush.msra.mxu0 %v1541
    %4461 = vmatmul.f32.gmra.mxu0 %v4405
    %v4462 = vpop.f32.mrf.mxu0
    %v4463 = vadd.f32 0.0, %v4462
    %4464 = vmatmul.f32.gmra.mxu0 %v4408
    %v4465 = vpop.f32.mrf.mxu0
    %v4466 = vadd.f32 0.0, %v4465
    %4467 = vmatmul.f32.gmra.mxu0 %v4411
    %v4468 = vpop.f32.mrf.mxu0
    %v4469 = vadd.f32 0.0, %v4468
    %4470 = vmatmul.f32.gmra.mxu0 %v4414
    %v4471 = vpop.f32.mrf.mxu0
    %v4472 = vadd.f32 0.0, %v4471
    %4473 = vdwg.mxu0
    %4474 = vmatpush.msra.mxu0 0.0
    %4475 = vmatpush.msra.mxu0 0.0
    %4476 = vmatpush.msra.mxu0 0.0
    %4477 = vmatpush.msra.mxu0 0.0
    %4478 = vmatpush.msra.mxu0 0.0
    %4479 = vmatpush.msra.mxu0 0.0
    %4480 = vmatpush.msra.mxu0 0.0
    %4481 = vmatpush.msra.mxu0 %v1566
    %4482 = vmatpush.msra.mxu0 %v1563
    %4483 = vmatpush.msra.mxu0 %v1560
    %4484 = vmatpush.msra.mxu0 %v1557
    %4485 = vmatpush.msra.mxu0 %v1554
    %4486 = vmatpush.msra.mxu0 %v1551
    %4487 = vmatpush.msra.mxu0 %v1548
    %4488 = vmatpush.msra.mxu0 %v1545
    %4489 = vmatpush.msra.mxu0 %v1542
    %4490 = vmatmul.f32.gmra.mxu0 %v4405
    %v4491 = vpop.f32.mrf.mxu0
    %v4492 = vadd.f32 0.0, %v4491
    %4493 = vmatmul.f32.gmra.mxu0 %v4408
    %v4494 = vpop.f32.mrf.mxu0
    %v4495 = vadd.f32 0.0, %v4494
    %4496 = vmatmul.f32.gmra.mxu0 %v4411
    %v4497 = vpop.f32.mrf.mxu0
    %v4498 = vadd.f32 0.0, %v4497
    %4499 = vmatmul.f32.gmra.mxu0 %v4414
    %v4500 = vpop.f32.mrf.mxu0
    %v4501 = vadd.f32 0.0, %v4500
    %4502 = vdwg.mxu0
    %s4503 = scalar_lea.vmem %s6, 2016
    %v4504 = vld [vmem:[%s4503] sm:$0xff]
    %v4505 = vld [vmem:[%s4503 + $0x8] sm:$0xff]
    %v4506 = vld [vmem:[%s4503 + $0x10] sm:$0xff]
    %v4507 = vld [vmem:[%s4503 + $0x18] sm:$0xff]
    %v4508 = vld [vmem:[%s4503 + $0x20] sm:$0xff]
    %v4509 = vld [vmem:[%s4503 + $0x28] sm:$0xff]
    %v4510 = vld [vmem:[%s4503 + $0x30] sm:$0xff]
    %v4511 = vld [vmem:[%s4503 + $0x38] sm:$0xff]
    %v4512 = vld [vmem:[%s4503 + $0x40] sm:$0xff]
    %v4513 = vld [vmem:[%s4503 + $0x48] sm:$0xff]
    %v4514 = vld [vmem:[%s4503 + $0x50] sm:$0xff]
    %v4515 = vld [vmem:[%s4503 + $0x58] sm:$0xff]
    %v4516 = vld [vmem:[%s4503 + $0x60] sm:$0xff]
    %v4517 = vld [vmem:[%s4503 + $0x68] sm:$0xff]
    %v4518 = vld [vmem:[%s4503 + $0x70] sm:$0xff]
    %v4519 = vld [vmem:[%s4503 + $0x78] sm:$0xff]
    %v4520 = vld [vmem:[%s4503 + $0x80] sm:$0xff]
    %v4521 = vld [vmem:[%s4503 + $0x88] sm:$0xff]
    %v4522 = vld [vmem:[%s4503 + $0x90] sm:$0xff]
    %v4523 = vld [vmem:[%s4503 + $0x98] sm:$0xff]
    %v4524 = vld [vmem:[%s4503 + $0xa0] sm:$0xff]
    %v4525 = vld [vmem:[%s4503 + $0xa8] sm:$0xff]
    %v4526 = vld [vmem:[%s4503 + $0xb0] sm:$0xff]
    %v4527 = vld [vmem:[%s4503 + $0xb8] sm:$0xff]
    %v4528 = vld [vmem:[%s4503 + $0xc0] sm:$0xff]
    %v4529 = vld [vmem:[%s4503 + $0xc8] sm:$0xff]
    %v4530 = vld [vmem:[%s4503 + $0xd0] sm:$0xff]
    %v4531 = vld [vmem:[%s4503 + $0xd8] sm:$0xff]
    %v4532 = vld [vmem:[%s4503 + $0xe0] sm:$0xff]
    %v4533 = vld [vmem:[%s4503 + $0xe8] sm:$0xff]
    %v4534 = vld [vmem:[%s4503 + $0xf0] sm:$0xff]
    %v4535 = vld [vmem:[%s4503 + $0xf8] sm:$0xff]
    %v4536 = vld [vmem:[%s4503 + $0x100] sm:$0xff]
    %v4537 = vld [vmem:[%s4503 + $0x108] sm:$0xff]
    %v4538 = vld [vmem:[%s4503 + $0x110] sm:$0xff]
    %v4539 = vld [vmem:[%s4503 + $0x118] sm:$0xff]
    %v4540 = vunpack.c.l.bf16 %v4504
    %v4541 = vunpack.c.h.bf16 %v4504
    %v4542 = vunpack.c.l.bf16 %v4505
    %v4543 = vunpack.c.h.bf16 %v4505
    %v4544 = vunpack.c.l.bf16 %v4506
    %v4545 = vunpack.c.h.bf16 %v4506
    %v4546 = vunpack.c.l.bf16 %v4507
    %v4547 = vunpack.c.h.bf16 %v4507
    %v4548 = vunpack.c.l.bf16 %v4508
    %v4549 = vunpack.c.h.bf16 %v4508
    %v4550 = vunpack.c.l.bf16 %v4509
    %v4551 = vunpack.c.h.bf16 %v4509
    %v4552 = vunpack.c.l.bf16 %v4510
    %v4553 = vunpack.c.h.bf16 %v4510
    %v4554 = vunpack.c.l.bf16 %v4511
    %v4555 = vunpack.c.h.bf16 %v4511
    %v4556 = vunpack.c.l.bf16 %v4512
    %v4557 = vunpack.c.h.bf16 %v4512
    %v4558 = vunpack.c.l.bf16 %v4513
    %v4559 = vunpack.c.h.bf16 %v4513
    %v4560 = vunpack.c.l.bf16 %v4514
    %v4561 = vunpack.c.h.bf16 %v4514
    %v4562 = vunpack.c.l.bf16 %v4515
    %v4563 = vunpack.c.h.bf16 %v4515
    %v4564 = vunpack.c.l.bf16 %v4516
    %v4565 = vunpack.c.h.bf16 %v4516
    %v4566 = vunpack.c.l.bf16 %v4517
    %v4567 = vunpack.c.h.bf16 %v4517
    %v4568 = vunpack.c.l.bf16 %v4518
    %v4569 = vunpack.c.h.bf16 %v4518
    %v4570 = vunpack.c.l.bf16 %v4519
    %v4571 = vunpack.c.h.bf16 %v4519
    %v4572 = vunpack.c.l.bf16 %v4520
    %v4573 = vunpack.c.h.bf16 %v4520
    %v4574 = vunpack.c.l.bf16 %v4521
    %v4575 = vunpack.c.h.bf16 %v4521
    %v4576 = vunpack.c.l.bf16 %v4522
    %v4577 = vunpack.c.h.bf16 %v4522
    %v4578 = vunpack.c.l.bf16 %v4523
    %v4579 = vunpack.c.h.bf16 %v4523
    %v4580 = vunpack.c.l.bf16 %v4524
    %v4581 = vunpack.c.h.bf16 %v4524
    %v4582 = vunpack.c.l.bf16 %v4525
    %v4583 = vunpack.c.h.bf16 %v4525
    %v4584 = vunpack.c.l.bf16 %v4526
    %v4585 = vunpack.c.h.bf16 %v4526
    %v4586 = vunpack.c.l.bf16 %v4527
    %v4587 = vunpack.c.h.bf16 %v4527
    %v4588 = vunpack.c.l.bf16 %v4528
    %v4589 = vunpack.c.h.bf16 %v4528
    %v4590 = vunpack.c.l.bf16 %v4529
    %v4591 = vunpack.c.h.bf16 %v4529
    %v4592 = vunpack.c.l.bf16 %v4530
    %v4593 = vunpack.c.h.bf16 %v4530
    %v4594 = vunpack.c.l.bf16 %v4531
    %v4595 = vunpack.c.h.bf16 %v4531
    %v4596 = vunpack.c.l.bf16 %v4532
    %v4597 = vunpack.c.h.bf16 %v4532
    %v4598 = vunpack.c.l.bf16 %v4533
    %v4599 = vunpack.c.h.bf16 %v4533
    %v4600 = vunpack.c.l.bf16 %v4534
    %v4601 = vunpack.c.h.bf16 %v4534
    %v4602 = vunpack.c.l.bf16 %v4535
    %v4603 = vunpack.c.h.bf16 %v4535
    %v4604 = vunpack.c.l.bf16 %v4536
    %v4605 = vunpack.c.h.bf16 %v4536
    %v4606 = vunpack.c.l.bf16 %v4537
    %v4607 = vunpack.c.h.bf16 %v4537
    %v4608 = vunpack.c.l.bf16 %v4538
    %v4609 = vunpack.c.h.bf16 %v4538
    %v4610 = vunpack.c.l.bf16 %v4539
    %v4611 = vunpack.c.h.bf16 %v4539
    %v4613 = vsel %vm1098, %v4492, 0
    %v4616 = vsel %vm1098, %v4495, 0
    %v4619 = vsel %vm1098, %v4498, 0
    %v4622 = vsel %vm1098, %v4501, 0
    %4624 = vmatpush.msra.mxu0 %v4570
    %4625 = vmatpush.msra.mxu0 %v4568
    %4626 = vmatpush.msra.mxu0 %v4566
    %4627 = vmatpush.msra.mxu0 %v4564
    %4628 = vmatpush.msra.mxu0 %v4562
    %4629 = vmatpush.msra.mxu0 %v4560
    %4630 = vmatpush.msra.mxu0 %v4558
    %4631 = vmatpush.msra.mxu0 %v4556
    %4632 = vmatpush.msra.mxu0 %v4554
    %4633 = vmatpush.msra.mxu0 %v4552
    %4634 = vmatpush.msra.mxu0 %v4550
    %4635 = vmatpush.msra.mxu0 %v4548
    %4636 = vmatpush.msra.mxu0 %v4546
    %4637 = vmatpush.msra.mxu0 %v4544
    %4638 = vmatpush.msra.mxu0 %v4542
    %4639 = vmatpush.msra.mxu0 %v4540
    %4640 = vmatmul.f32.gmra.mxu0 %v4434
    %v4641 = vpop.f32.mrf.mxu0
    %v4642 = vadd.f32 0.0, %v4641
    %4643 = vmatmul.f32.gmra.mxu0 %v4437
    %v4644 = vpop.f32.mrf.mxu0
    %v4645 = vadd.f32 0.0, %v4644
    %4646 = vmatmul.f32.gmra.mxu0 %v4440
    %v4647 = vpop.f32.mrf.mxu0
    %v4648 = vadd.f32 0.0, %v4647
    %4649 = vmatmul.f32.gmra.mxu0 %v4443
    %v4650 = vpop.f32.mrf.mxu0
    %v4651 = vadd.f32 0.0, %v4650
    %4652 = vdwg.mxu0
    %4653 = vmatpush.msra.mxu0 %v4602
    %4654 = vmatpush.msra.mxu0 %v4600
    %4655 = vmatpush.msra.mxu0 %v4598
    %4656 = vmatpush.msra.mxu0 %v4596
    %4657 = vmatpush.msra.mxu0 %v4594
    %4658 = vmatpush.msra.mxu0 %v4592
    %4659 = vmatpush.msra.mxu0 %v4590
    %4660 = vmatpush.msra.mxu0 %v4588
    %4661 = vmatpush.msra.mxu0 %v4586
    %4662 = vmatpush.msra.mxu0 %v4584
    %4663 = vmatpush.msra.mxu0 %v4582
    %4664 = vmatpush.msra.mxu0 %v4580
    %4665 = vmatpush.msra.mxu0 %v4578
    %4666 = vmatpush.msra.mxu0 %v4576
    %4667 = vmatpush.msra.mxu0 %v4574
    %4668 = vmatpush.msra.mxu0 %v4572
    %4669 = vmatmul.f32.gmra.mxu0 %v4463
    %v4670 = vpop.f32.mrf.mxu0
    %v4671 = vadd.f32 %v4642, %v4670
    %4672 = vmatmul.f32.gmra.mxu0 %v4466
    %v4673 = vpop.f32.mrf.mxu0
    %v4674 = vadd.f32 %v4645, %v4673
    %4675 = vmatmul.f32.gmra.mxu0 %v4469
    %v4676 = vpop.f32.mrf.mxu0
    %v4677 = vadd.f32 %v4648, %v4676
    %4678 = vmatmul.f32.gmra.mxu0 %v4472
    %v4679 = vpop.f32.mrf.mxu0
    %v4680 = vadd.f32 %v4651, %v4679
    %4681 = vdwg.mxu0
    %4682 = vmatpush.msra.mxu0 0.0
    %4683 = vmatpush.msra.mxu0 0.0
    %4684 = vmatpush.msra.mxu0 0.0
    %4685 = vmatpush.msra.mxu0 0.0
    %4686 = vmatpush.msra.mxu0 0.0
    %4687 = vmatpush.msra.mxu0 0.0
    %4688 = vmatpush.msra.mxu0 0.0
    %4689 = vmatpush.msra.mxu0 0.0
    %4690 = vmatpush.msra.mxu0 0.0
    %4691 = vmatpush.msra.mxu0 0.0
    %4692 = vmatpush.msra.mxu0 0.0
    %4693 = vmatpush.msra.mxu0 0.0
    %4694 = vmatpush.msra.mxu0 %v4610
    %4695 = vmatpush.msra.mxu0 %v4608
    %4696 = vmatpush.msra.mxu0 %v4606
    %4697 = vmatpush.msra.mxu0 %v4604
    %4698 = vmatmul.f32.gmra.mxu0 %v4613
    %v4699 = vpop.f32.mrf.mxu0
    %v4700 = vadd.f32 %v4671, %v4699
    %4701 = vmatmul.f32.gmra.mxu0 %v4616
    %v4702 = vpop.f32.mrf.mxu0
    %v4703 = vadd.f32 %v4674, %v4702
    %4704 = vmatmul.f32.gmra.mxu0 %v4619
    %v4705 = vpop.f32.mrf.mxu0
    %v4706 = vadd.f32 %v4677, %v4705
    %4707 = vmatmul.f32.gmra.mxu0 %v4622
    %v4708 = vpop.f32.mrf.mxu0
    %v4709 = vadd.f32 %v4680, %v4708
    %4710 = vdwg.mxu0
    %4711 = vmatpush.msra.mxu0 %v4571
    %4712 = vmatpush.msra.mxu0 %v4569
    %4713 = vmatpush.msra.mxu0 %v4567
    %4714 = vmatpush.msra.mxu0 %v4565
    %4715 = vmatpush.msra.mxu0 %v4563
    %4716 = vmatpush.msra.mxu0 %v4561
    %4717 = vmatpush.msra.mxu0 %v4559
    %4718 = vmatpush.msra.mxu0 %v4557
    %4719 = vmatpush.msra.mxu0 %v4555
    %4720 = vmatpush.msra.mxu0 %v4553
    %4721 = vmatpush.msra.mxu0 %v4551
    %4722 = vmatpush.msra.mxu0 %v4549
    %4723 = vmatpush.msra.mxu0 %v4547
    %4724 = vmatpush.msra.mxu0 %v4545
    %4725 = vmatpush.msra.mxu0 %v4543
    %4726 = vmatpush.msra.mxu0 %v4541
    %4727 = vmatmul.f32.gmra.mxu0 %v4434
    %v4728 = vpop.f32.mrf.mxu0
    %v4729 = vadd.f32 0.0, %v4728
    %4730 = vmatmul.f32.gmra.mxu0 %v4437
    %v4731 = vpop.f32.mrf.mxu0
    %v4732 = vadd.f32 0.0, %v4731
    %4733 = vmatmul.f32.gmra.mxu0 %v4440
    %v4734 = vpop.f32.mrf.mxu0
    %v4735 = vadd.f32 0.0, %v4734
    %4736 = vmatmul.f32.gmra.mxu0 %v4443
    %v4737 = vpop.f32.mrf.mxu0
    %v4738 = vadd.f32 0.0, %v4737
    %4739 = vdwg.mxu0
    %4740 = vmatpush.msra.mxu0 %v4603
    %4741 = vmatpush.msra.mxu0 %v4601
    %4742 = vmatpush.msra.mxu0 %v4599
    %4743 = vmatpush.msra.mxu0 %v4597
    %4744 = vmatpush.msra.mxu0 %v4595
    %4745 = vmatpush.msra.mxu0 %v4593
    %4746 = vmatpush.msra.mxu0 %v4591
    %4747 = vmatpush.msra.mxu0 %v4589
    %4748 = vmatpush.msra.mxu0 %v4587
    %4749 = vmatpush.msra.mxu0 %v4585
    %4750 = vmatpush.msra.mxu0 %v4583
    %4751 = vmatpush.msra.mxu0 %v4581
    %4752 = vmatpush.msra.mxu0 %v4579
    %4753 = vmatpush.msra.mxu0 %v4577
    %4754 = vmatpush.msra.mxu0 %v4575
    %4755 = vmatpush.msra.mxu0 %v4573
    %4756 = vmatmul.f32.gmra.mxu0 %v4463
    %v4757 = vpop.f32.mrf.mxu0
    %v4758 = vadd.f32 %v4729, %v4757
    %4759 = vmatmul.f32.gmra.mxu0 %v4466
    %v4760 = vpop.f32.mrf.mxu0
    %v4761 = vadd.f32 %v4732, %v4760
    %4762 = vmatmul.f32.gmra.mxu0 %v4469
    %v4763 = vpop.f32.mrf.mxu0
    %v4764 = vadd.f32 %v4735, %v4763
    %4765 = vmatmul.f32.gmra.mxu0 %v4472
    %v4766 = vpop.f32.mrf.mxu0
    %v4767 = vadd.f32 %v4738, %v4766
    %4768 = vdwg.mxu0
    %4769 = vmatpush.msra.mxu0 0.0
    %4770 = vmatpush.msra.mxu0 0.0
    %4771 = vmatpush.msra.mxu0 0.0
    %4772 = vmatpush.msra.mxu0 0.0
    %4773 = vmatpush.msra.mxu0 0.0
    %4774 = vmatpush.msra.mxu0 0.0
    %4775 = vmatpush.msra.mxu0 0.0
    %4776 = vmatpush.msra.mxu0 0.0
    %4777 = vmatpush.msra.mxu0 0.0
    %4778 = vmatpush.msra.mxu0 0.0
    %4779 = vmatpush.msra.mxu0 0.0
    %4780 = vmatpush.msra.mxu0 0.0
    %4781 = vmatpush.msra.mxu0 %v4611
    %4782 = vmatpush.msra.mxu0 %v4609
    %4783 = vmatpush.msra.mxu0 %v4607
    %4784 = vmatpush.msra.mxu0 %v4605
    %4785 = vmatmul.f32.gmra.mxu0 %v4613
    %v4786 = vpop.f32.mrf.mxu0
    %v4787 = vadd.f32 %v4758, %v4786
    %4788 = vmatmul.f32.gmra.mxu0 %v4616
    %v4789 = vpop.f32.mrf.mxu0
    %v4790 = vadd.f32 %v4761, %v4789
    %4791 = vmatmul.f32.gmra.mxu0 %v4619
    %v4792 = vpop.f32.mrf.mxu0
    %v4793 = vadd.f32 %v4764, %v4792
    %4794 = vmatmul.f32.gmra.mxu0 %v4622
    %v4795 = vpop.f32.mrf.mxu0
    %v4796 = vadd.f32 %v4767, %v4795
    %4797 = vdwg.mxu0
    %v4798 = vadd.f32 %v4391, %v4700
    %v4799 = vadd.f32 %v4392, %v4787
    %v4800 = vadd.f32 %v4393, %v4703
    %v4801 = vadd.f32 %v4394, %v4790
    %v4802 = vadd.f32 %v4395, %v4706
    %v4803 = vadd.f32 %v4396, %v4793
    %v4804 = vadd.f32 %v4397, %v4709
    %v4805 = vadd.f32 %v4398, %v4796
    %s4806 = scalar_lea.vmem %s5, 256
    %v4807 = vld [vmem:[%s4806] sm:$0xff]
    %v4808 = vld [vmem:[%s4806 + $0x8] sm:$0xff]
    %v4809 = vld [vmem:[%s4806 + $0x10] sm:$0xff]
    %v4810 = vld [vmem:[%s4806 + $0x18] sm:$0x3f]
    %v4812 = vsel %vm1571, %v4807, 0
    %v4815 = vsel %vm1571, %v4808, 0
    %v4818 = vsel %vm1571, %v4809, 0
    %v4821 = vsel %vm1571, %v4810, 0
    %4823 = vmatpush.msra.mxu0 0.0
    %4824 = vmatpush.msra.mxu0 0.0
    %4825 = vmatpush.msra.mxu0 0.0
    %4826 = vmatpush.msra.mxu0 0.0
    %4827 = vmatpush.msra.mxu0 0.0
    %4828 = vmatpush.msra.mxu0 0.0
    %4829 = vmatpush.msra.mxu0 0.0
    %4830 = vmatpush.msra.mxu0 %v1564
    %4831 = vmatpush.msra.mxu0 %v1561
    %4832 = vmatpush.msra.mxu0 %v1558
    %4833 = vmatpush.msra.mxu0 %v1555
    %4834 = vmatpush.msra.mxu0 %v1552
    %4835 = vmatpush.msra.mxu0 %v1549
    %4836 = vmatpush.msra.mxu0 %v1546
    %4837 = vmatpush.msra.mxu0 %v1543
    %4838 = vmatpush.msra.mxu0 %v1540
    %4839 = vmatmul.f32.gmra.mxu0 %v4812
    %v4840 = vpop.f32.mrf.mxu0
    %v4841 = vadd.f32 0.0, %v4840
    %4842 = vmatmul.f32.gmra.mxu0 %v4815
    %v4843 = vpop.f32.mrf.mxu0
    %v4844 = vadd.f32 0.0, %v4843
    %4845 = vmatmul.f32.gmra.mxu0 %v4818
    %v4846 = vpop.f32.mrf.mxu0
    %v4847 = vadd.f32 0.0, %v4846
    %4848 = vmatmul.f32.gmra.mxu0 %v4821
    %v4849 = vpop.f32.mrf.mxu0
    %v4850 = vadd.f32 0.0, %v4849
    %4851 = vdwg.mxu0
    %4852 = vmatpush.msra.mxu0 0.0
    %4853 = vmatpush.msra.mxu0 0.0
    %4854 = vmatpush.msra.mxu0 0.0
    %4855 = vmatpush.msra.mxu0 0.0
    %4856 = vmatpush.msra.mxu0 0.0
    %4857 = vmatpush.msra.mxu0 0.0
    %4858 = vmatpush.msra.mxu0 0.0
    %4859 = vmatpush.msra.mxu0 %v1565
    %4860 = vmatpush.msra.mxu0 %v1562
    %4861 = vmatpush.msra.mxu0 %v1559
    %4862 = vmatpush.msra.mxu0 %v1556
    %4863 = vmatpush.msra.mxu0 %v1553
    %4864 = vmatpush.msra.mxu0 %v1550
    %4865 = vmatpush.msra.mxu0 %v1547
    %4866 = vmatpush.msra.mxu0 %v1544
    %4867 = vmatpush.msra.mxu0 %v1541
    %4868 = vmatmul.f32.gmra.mxu0 %v4812
    %v4869 = vpop.f32.mrf.mxu0
    %v4870 = vadd.f32 0.0, %v4869
    %4871 = vmatmul.f32.gmra.mxu0 %v4815
    %v4872 = vpop.f32.mrf.mxu0
    %v4873 = vadd.f32 0.0, %v4872
    %4874 = vmatmul.f32.gmra.mxu0 %v4818
    %v4875 = vpop.f32.mrf.mxu0
    %v4876 = vadd.f32 0.0, %v4875
    %4877 = vmatmul.f32.gmra.mxu0 %v4821
    %v4878 = vpop.f32.mrf.mxu0
    %v4879 = vadd.f32 0.0, %v4878
    %4880 = vdwg.mxu0
    %4881 = vmatpush.msra.mxu0 0.0
    %4882 = vmatpush.msra.mxu0 0.0
    %4883 = vmatpush.msra.mxu0 0.0
    %4884 = vmatpush.msra.mxu0 0.0
    %4885 = vmatpush.msra.mxu0 0.0
    %4886 = vmatpush.msra.mxu0 0.0
    %4887 = vmatpush.msra.mxu0 0.0
    %4888 = vmatpush.msra.mxu0 %v1566
    %4889 = vmatpush.msra.mxu0 %v1563
    %4890 = vmatpush.msra.mxu0 %v1560
    %4891 = vmatpush.msra.mxu0 %v1557
    %4892 = vmatpush.msra.mxu0 %v1554
    %4893 = vmatpush.msra.mxu0 %v1551
    %4894 = vmatpush.msra.mxu0 %v1548
    %4895 = vmatpush.msra.mxu0 %v1545
    %4896 = vmatpush.msra.mxu0 %v1542
    %4897 = vmatmul.f32.gmra.mxu0 %v4812
    %v4898 = vpop.f32.mrf.mxu0
    %v4899 = vadd.f32 0.0, %v4898
    %4900 = vmatmul.f32.gmra.mxu0 %v4815
    %v4901 = vpop.f32.mrf.mxu0
    %v4902 = vadd.f32 0.0, %v4901
    %4903 = vmatmul.f32.gmra.mxu0 %v4818
    %v4904 = vpop.f32.mrf.mxu0
    %v4905 = vadd.f32 0.0, %v4904
    %4906 = vmatmul.f32.gmra.mxu0 %v4821
    %v4907 = vpop.f32.mrf.mxu0
    %v4908 = vadd.f32 0.0, %v4907
    %4909 = vdwg.mxu0
    %s4910 = scalar_lea.vmem %s6, 2304
    %v4911 = vld [vmem:[%s4910] sm:$0xff]
    %v4912 = vld [vmem:[%s4910 + $0x8] sm:$0xff]
    %v4913 = vld [vmem:[%s4910 + $0x10] sm:$0xff]
    %v4914 = vld [vmem:[%s4910 + $0x18] sm:$0xff]
    %v4915 = vld [vmem:[%s4910 + $0x20] sm:$0xff]
    %v4916 = vld [vmem:[%s4910 + $0x28] sm:$0xff]
    %v4917 = vld [vmem:[%s4910 + $0x30] sm:$0xff]
    %v4918 = vld [vmem:[%s4910 + $0x38] sm:$0xff]
    %v4919 = vld [vmem:[%s4910 + $0x40] sm:$0xff]
    %v4920 = vld [vmem:[%s4910 + $0x48] sm:$0xff]
    %v4921 = vld [vmem:[%s4910 + $0x50] sm:$0xff]
    %v4922 = vld [vmem:[%s4910 + $0x58] sm:$0xff]
    %v4923 = vld [vmem:[%s4910 + $0x60] sm:$0xff]
    %v4924 = vld [vmem:[%s4910 + $0x68] sm:$0xff]
    %v4925 = vld [vmem:[%s4910 + $0x70] sm:$0xff]
    %v4926 = vld [vmem:[%s4910 + $0x78] sm:$0xff]
    %v4927 = vld [vmem:[%s4910 + $0x80] sm:$0xff]
    %v4928 = vld [vmem:[%s4910 + $0x88] sm:$0xff]
    %v4929 = vld [vmem:[%s4910 + $0x90] sm:$0xff]
    %v4930 = vld [vmem:[%s4910 + $0x98] sm:$0xff]
    %v4931 = vld [vmem:[%s4910 + $0xa0] sm:$0xff]
    %v4932 = vld [vmem:[%s4910 + $0xa8] sm:$0xff]
    %v4933 = vld [vmem:[%s4910 + $0xb0] sm:$0xff]
    %v4934 = vld [vmem:[%s4910 + $0xb8] sm:$0xff]
    %v4935 = vld [vmem:[%s4910 + $0xc0] sm:$0xff]
    %v4936 = vld [vmem:[%s4910 + $0xc8] sm:$0xff]
    %v4937 = vld [vmem:[%s4910 + $0xd0] sm:$0xff]
    %v4938 = vld [vmem:[%s4910 + $0xd8] sm:$0xff]
    %v4939 = vld [vmem:[%s4910 + $0xe0] sm:$0xff]
    %v4940 = vld [vmem:[%s4910 + $0xe8] sm:$0xff]
    %v4941 = vld [vmem:[%s4910 + $0xf0] sm:$0xff]
    %v4942 = vld [vmem:[%s4910 + $0xf8] sm:$0xff]
    %v4943 = vld [vmem:[%s4910 + $0x100] sm:$0xff]
    %v4944 = vld [vmem:[%s4910 + $0x108] sm:$0xff]
    %v4945 = vld [vmem:[%s4910 + $0x110] sm:$0xff]
    %v4946 = vld [vmem:[%s4910 + $0x118] sm:$0xff]
    %v4947 = vunpack.c.l.bf16 %v4911
    %v4948 = vunpack.c.h.bf16 %v4911
    %v4949 = vunpack.c.l.bf16 %v4912
    %v4950 = vunpack.c.h.bf16 %v4912
    %v4951 = vunpack.c.l.bf16 %v4913
    %v4952 = vunpack.c.h.bf16 %v4913
    %v4953 = vunpack.c.l.bf16 %v4914
    %v4954 = vunpack.c.h.bf16 %v4914
    %v4955 = vunpack.c.l.bf16 %v4915
    %v4956 = vunpack.c.h.bf16 %v4915
    %v4957 = vunpack.c.l.bf16 %v4916
    %v4958 = vunpack.c.h.bf16 %v4916
    %v4959 = vunpack.c.l.bf16 %v4917
    %v4960 = vunpack.c.h.bf16 %v4917
    %v4961 = vunpack.c.l.bf16 %v4918
    %v4962 = vunpack.c.h.bf16 %v4918
    %v4963 = vunpack.c.l.bf16 %v4919
    %v4964 = vunpack.c.h.bf16 %v4919
    %v4965 = vunpack.c.l.bf16 %v4920
    %v4966 = vunpack.c.h.bf16 %v4920
    %v4967 = vunpack.c.l.bf16 %v4921
    %v4968 = vunpack.c.h.bf16 %v4921
    %v4969 = vunpack.c.l.bf16 %v4922
    %v4970 = vunpack.c.h.bf16 %v4922
    %v4971 = vunpack.c.l.bf16 %v4923
    %v4972 = vunpack.c.h.bf16 %v4923
    %v4973 = vunpack.c.l.bf16 %v4924
    %v4974 = vunpack.c.h.bf16 %v4924
    %v4975 = vunpack.c.l.bf16 %v4925
    %v4976 = vunpack.c.h.bf16 %v4925
    %v4977 = vunpack.c.l.bf16 %v4926
    %v4978 = vunpack.c.h.bf16 %v4926
    %v4979 = vunpack.c.l.bf16 %v4927
    %v4980 = vunpack.c.h.bf16 %v4927
    %v4981 = vunpack.c.l.bf16 %v4928
    %v4982 = vunpack.c.h.bf16 %v4928
    %v4983 = vunpack.c.l.bf16 %v4929
    %v4984 = vunpack.c.h.bf16 %v4929
    %v4985 = vunpack.c.l.bf16 %v4930
    %v4986 = vunpack.c.h.bf16 %v4930
    %v4987 = vunpack.c.l.bf16 %v4931
    %v4988 = vunpack.c.h.bf16 %v4931
    %v4989 = vunpack.c.l.bf16 %v4932
    %v4990 = vunpack.c.h.bf16 %v4932
    %v4991 = vunpack.c.l.bf16 %v4933
    %v4992 = vunpack.c.h.bf16 %v4933
    %v4993 = vunpack.c.l.bf16 %v4934
    %v4994 = vunpack.c.h.bf16 %v4934
    %v4995 = vunpack.c.l.bf16 %v4935
    %v4996 = vunpack.c.h.bf16 %v4935
    %v4997 = vunpack.c.l.bf16 %v4936
    %v4998 = vunpack.c.h.bf16 %v4936
    %v4999 = vunpack.c.l.bf16 %v4937
    %v5000 = vunpack.c.h.bf16 %v4937
    %v5001 = vunpack.c.l.bf16 %v4938
    %v5002 = vunpack.c.h.bf16 %v4938
    %v5003 = vunpack.c.l.bf16 %v4939
    %v5004 = vunpack.c.h.bf16 %v4939
    %v5005 = vunpack.c.l.bf16 %v4940
    %v5006 = vunpack.c.h.bf16 %v4940
    %v5007 = vunpack.c.l.bf16 %v4941
    %v5008 = vunpack.c.h.bf16 %v4941
    %v5009 = vunpack.c.l.bf16 %v4942
    %v5010 = vunpack.c.h.bf16 %v4942
    %v5011 = vunpack.c.l.bf16 %v4943
    %v5012 = vunpack.c.h.bf16 %v4943
    %v5013 = vunpack.c.l.bf16 %v4944
    %v5014 = vunpack.c.h.bf16 %v4944
    %v5015 = vunpack.c.l.bf16 %v4945
    %v5016 = vunpack.c.h.bf16 %v4945
    %v5017 = vunpack.c.l.bf16 %v4946
    %v5018 = vunpack.c.h.bf16 %v4946
    %v5020 = vsel %vm1098, %v4899, 0
    %v5023 = vsel %vm1098, %v4902, 0
    %v5026 = vsel %vm1098, %v4905, 0
    %v5029 = vsel %vm1098, %v4908, 0
    %5031 = vmatpush.msra.mxu0 %v4977
    %5032 = vmatpush.msra.mxu0 %v4975
    %5033 = vmatpush.msra.mxu0 %v4973
    %5034 = vmatpush.msra.mxu0 %v4971
    %5035 = vmatpush.msra.mxu0 %v4969
    %5036 = vmatpush.msra.mxu0 %v4967
    %5037 = vmatpush.msra.mxu0 %v4965
    %5038 = vmatpush.msra.mxu0 %v4963
    %5039 = vmatpush.msra.mxu0 %v4961
    %5040 = vmatpush.msra.mxu0 %v4959
    %5041 = vmatpush.msra.mxu0 %v4957
    %5042 = vmatpush.msra.mxu0 %v4955
    %5043 = vmatpush.msra.mxu0 %v4953
    %5044 = vmatpush.msra.mxu0 %v4951
    %5045 = vmatpush.msra.mxu0 %v4949
    %5046 = vmatpush.msra.mxu0 %v4947
    %5047 = vmatmul.f32.gmra.mxu0 %v4841
    %v5048 = vpop.f32.mrf.mxu0
    %v5049 = vadd.f32 0.0, %v5048
    %5050 = vmatmul.f32.gmra.mxu0 %v4844
    %v5051 = vpop.f32.mrf.mxu0
    %v5052 = vadd.f32 0.0, %v5051
    %5053 = vmatmul.f32.gmra.mxu0 %v4847
    %v5054 = vpop.f32.mrf.mxu0
    %v5055 = vadd.f32 0.0, %v5054
    %5056 = vmatmul.f32.gmra.mxu0 %v4850
    %v5057 = vpop.f32.mrf.mxu0
    %v5058 = vadd.f32 0.0, %v5057
    %5059 = vdwg.mxu0
    %5060 = vmatpush.msra.mxu0 %v5009
    %5061 = vmatpush.msra.mxu0 %v5007
    %5062 = vmatpush.msra.mxu0 %v5005
    %5063 = vmatpush.msra.mxu0 %v5003
    %5064 = vmatpush.msra.mxu0 %v5001
    %5065 = vmatpush.msra.mxu0 %v4999
    %5066 = vmatpush.msra.mxu0 %v4997
    %5067 = vmatpush.msra.mxu0 %v4995
    %5068 = vmatpush.msra.mxu0 %v4993
    %5069 = vmatpush.msra.mxu0 %v4991
    %5070 = vmatpush.msra.mxu0 %v4989
    %5071 = vmatpush.msra.mxu0 %v4987
    %5072 = vmatpush.msra.mxu0 %v4985
    %5073 = vmatpush.msra.mxu0 %v4983
    %5074 = vmatpush.msra.mxu0 %v4981
    %5075 = vmatpush.msra.mxu0 %v4979
    %5076 = vmatmul.f32.gmra.mxu0 %v4870
    %v5077 = vpop.f32.mrf.mxu0
    %v5078 = vadd.f32 %v5049, %v5077
    %5079 = vmatmul.f32.gmra.mxu0 %v4873
    %v5080 = vpop.f32.mrf.mxu0
    %v5081 = vadd.f32 %v5052, %v5080
    %5082 = vmatmul.f32.gmra.mxu0 %v4876
    %v5083 = vpop.f32.mrf.mxu0
    %v5084 = vadd.f32 %v5055, %v5083
    %5085 = vmatmul.f32.gmra.mxu0 %v4879
    %v5086 = vpop.f32.mrf.mxu0
    %v5087 = vadd.f32 %v5058, %v5086
    %5088 = vdwg.mxu0
    %5089 = vmatpush.msra.mxu0 0.0
    %5090 = vmatpush.msra.mxu0 0.0
    %5091 = vmatpush.msra.mxu0 0.0
    %5092 = vmatpush.msra.mxu0 0.0
    %5093 = vmatpush.msra.mxu0 0.0
    %5094 = vmatpush.msra.mxu0 0.0
    %5095 = vmatpush.msra.mxu0 0.0
    %5096 = vmatpush.msra.mxu0 0.0
    %5097 = vmatpush.msra.mxu0 0.0
    %5098 = vmatpush.msra.mxu0 0.0
    %5099 = vmatpush.msra.mxu0 0.0
    %5100 = vmatpush.msra.mxu0 0.0
    %5101 = vmatpush.msra.mxu0 %v5017
    %5102 = vmatpush.msra.mxu0 %v5015
    %5103 = vmatpush.msra.mxu0 %v5013
    %5104 = vmatpush.msra.mxu0 %v5011
    %5105 = vmatmul.f32.gmra.mxu0 %v5020
    %v5106 = vpop.f32.mrf.mxu0
    %v5107 = vadd.f32 %v5078, %v5106
    %5108 = vmatmul.f32.gmra.mxu0 %v5023
    %v5109 = vpop.f32.mrf.mxu0
    %v5110 = vadd.f32 %v5081, %v5109
    %5111 = vmatmul.f32.gmra.mxu0 %v5026
    %v5112 = vpop.f32.mrf.mxu0
    %v5113 = vadd.f32 %v5084, %v5112
    %5114 = vmatmul.f32.gmra.mxu0 %v5029
    %v5115 = vpop.f32.mrf.mxu0
    %v5116 = vadd.f32 %v5087, %v5115
    %5117 = vdwg.mxu0
    %5118 = vmatpush.msra.mxu0 %v4978
    %5119 = vmatpush.msra.mxu0 %v4976
    %5120 = vmatpush.msra.mxu0 %v4974
    %5121 = vmatpush.msra.mxu0 %v4972
    %5122 = vmatpush.msra.mxu0 %v4970
    %5123 = vmatpush.msra.mxu0 %v4968
    %5124 = vmatpush.msra.mxu0 %v4966
    %5125 = vmatpush.msra.mxu0 %v4964
    %5126 = vmatpush.msra.mxu0 %v4962
    %5127 = vmatpush.msra.mxu0 %v4960
    %5128 = vmatpush.msra.mxu0 %v4958
    %5129 = vmatpush.msra.mxu0 %v4956
    %5130 = vmatpush.msra.mxu0 %v4954
    %5131 = vmatpush.msra.mxu0 %v4952
    %5132 = vmatpush.msra.mxu0 %v4950
    %5133 = vmatpush.msra.mxu0 %v4948
    %5134 = vmatmul.f32.gmra.mxu0 %v4841
    %v5135 = vpop.f32.mrf.mxu0
    %v5136 = vadd.f32 0.0, %v5135
    %5137 = vmatmul.f32.gmra.mxu0 %v4844
    %v5138 = vpop.f32.mrf.mxu0
    %v5139 = vadd.f32 0.0, %v5138
    %5140 = vmatmul.f32.gmra.mxu0 %v4847
    %v5141 = vpop.f32.mrf.mxu0
    %v5142 = vadd.f32 0.0, %v5141
    %5143 = vmatmul.f32.gmra.mxu0 %v4850
    %v5144 = vpop.f32.mrf.mxu0
    %v5145 = vadd.f32 0.0, %v5144
    %5146 = vdwg.mxu0
    %5147 = vmatpush.msra.mxu0 %v5010
    %5148 = vmatpush.msra.mxu0 %v5008
    %5149 = vmatpush.msra.mxu0 %v5006
    %5150 = vmatpush.msra.mxu0 %v5004
    %5151 = vmatpush.msra.mxu0 %v5002
    %5152 = vmatpush.msra.mxu0 %v5000
    %5153 = vmatpush.msra.mxu0 %v4998
    %5154 = vmatpush.msra.mxu0 %v4996
    %5155 = vmatpush.msra.mxu0 %v4994
    %5156 = vmatpush.msra.mxu0 %v4992
    %5157 = vmatpush.msra.mxu0 %v4990
    %5158 = vmatpush.msra.mxu0 %v4988
    %5159 = vmatpush.msra.mxu0 %v4986
    %5160 = vmatpush.msra.mxu0 %v4984
    %5161 = vmatpush.msra.mxu0 %v4982
    %5162 = vmatpush.msra.mxu0 %v4980
    %5163 = vmatmul.f32.gmra.mxu0 %v4870
    %v5164 = vpop.f32.mrf.mxu0
    %v5165 = vadd.f32 %v5136, %v5164
    %5166 = vmatmul.f32.gmra.mxu0 %v4873
    %v5167 = vpop.f32.mrf.mxu0
    %v5168 = vadd.f32 %v5139, %v5167
    %5169 = vmatmul.f32.gmra.mxu0 %v4876
    %v5170 = vpop.f32.mrf.mxu0
    %v5171 = vadd.f32 %v5142, %v5170
    %5172 = vmatmul.f32.gmra.mxu0 %v4879
    %v5173 = vpop.f32.mrf.mxu0
    %v5174 = vadd.f32 %v5145, %v5173
    %5175 = vdwg.mxu0
    %5176 = vmatpush.msra.mxu0 0.0
    %5177 = vmatpush.msra.mxu0 0.0
    %5178 = vmatpush.msra.mxu0 0.0
    %5179 = vmatpush.msra.mxu0 0.0
    %5180 = vmatpush.msra.mxu0 0.0
    %5181 = vmatpush.msra.mxu0 0.0
    %5182 = vmatpush.msra.mxu0 0.0
    %5183 = vmatpush.msra.mxu0 0.0
    %5184 = vmatpush.msra.mxu0 0.0
    %5185 = vmatpush.msra.mxu0 0.0
    %5186 = vmatpush.msra.mxu0 0.0
    %5187 = vmatpush.msra.mxu0 0.0
    %5188 = vmatpush.msra.mxu0 %v5018
    %5189 = vmatpush.msra.mxu0 %v5016
    %5190 = vmatpush.msra.mxu0 %v5014
    %5191 = vmatpush.msra.mxu0 %v5012
    %5192 = vmatmul.f32.gmra.mxu0 %v5020
    %v5193 = vpop.f32.mrf.mxu0
    %v5194 = vadd.f32 %v5165, %v5193
    %5195 = vmatmul.f32.gmra.mxu0 %v5023
    %v5196 = vpop.f32.mrf.mxu0
    %v5197 = vadd.f32 %v5168, %v5196
    %5198 = vmatmul.f32.gmra.mxu0 %v5026
    %v5199 = vpop.f32.mrf.mxu0
    %v5200 = vadd.f32 %v5171, %v5199
    %5201 = vmatmul.f32.gmra.mxu0 %v5029
    %v5202 = vpop.f32.mrf.mxu0
    %v5203 = vadd.f32 %v5174, %v5202
    %5204 = vdwg.mxu0
    %v5205 = vadd.f32 %v4798, %v5107
    %v5206 = vadd.f32 %v4799, %v5194
    %v5207 = vadd.f32 %v4800, %v5110
    %v5208 = vadd.f32 %v4801, %v5197
    %v5209 = vadd.f32 %v4802, %v5113
    %v5210 = vadd.f32 %v4803, %v5200
    %v5211 = vadd.f32 %v4804, %v5116
    %v5212 = vadd.f32 %v4805, %v5203
    %s5213 = scalar_lea.vmem %s5, 288
    %v5214 = vld [vmem:[%s5213] sm:$0xff]
    %v5215 = vld [vmem:[%s5213 + $0x8] sm:$0xff]
    %v5216 = vld [vmem:[%s5213 + $0x10] sm:$0xff]
    %v5217 = vld [vmem:[%s5213 + $0x18] sm:$0x3f]
    %v5219 = vsel %vm1571, %v5214, 0
    %v5222 = vsel %vm1571, %v5215, 0
    %v5225 = vsel %vm1571, %v5216, 0
    %v5228 = vsel %vm1571, %v5217, 0
    %5230 = vmatpush.msra.mxu0 0.0
    %5231 = vmatpush.msra.mxu0 0.0
    %5232 = vmatpush.msra.mxu0 0.0
    %5233 = vmatpush.msra.mxu0 0.0
    %5234 = vmatpush.msra.mxu0 0.0
    %5235 = vmatpush.msra.mxu0 0.0
    %5236 = vmatpush.msra.mxu0 0.0
    %5237 = vmatpush.msra.mxu0 %v1564
    %5238 = vmatpush.msra.mxu0 %v1561
    %5239 = vmatpush.msra.mxu0 %v1558
    %5240 = vmatpush.msra.mxu0 %v1555
    %5241 = vmatpush.msra.mxu0 %v1552
    %5242 = vmatpush.msra.mxu0 %v1549
    %5243 = vmatpush.msra.mxu0 %v1546
    %5244 = vmatpush.msra.mxu0 %v1543
    %5245 = vmatpush.msra.mxu0 %v1540
    %5246 = vmatmul.f32.gmra.mxu0 %v5219
    %v5247 = vpop.f32.mrf.mxu0
    %v5248 = vadd.f32 0.0, %v5247
    %5249 = vmatmul.f32.gmra.mxu0 %v5222
    %v5250 = vpop.f32.mrf.mxu0
    %v5251 = vadd.f32 0.0, %v5250
    %5252 = vmatmul.f32.gmra.mxu0 %v5225
    %v5253 = vpop.f32.mrf.mxu0
    %v5254 = vadd.f32 0.0, %v5253
    %5255 = vmatmul.f32.gmra.mxu0 %v5228
    %v5256 = vpop.f32.mrf.mxu0
    %v5257 = vadd.f32 0.0, %v5256
    %5258 = vdwg.mxu0
    %5259 = vmatpush.msra.mxu0 0.0
    %5260 = vmatpush.msra.mxu0 0.0
    %5261 = vmatpush.msra.mxu0 0.0
    %5262 = vmatpush.msra.mxu0 0.0
    %5263 = vmatpush.msra.mxu0 0.0
    %5264 = vmatpush.msra.mxu0 0.0
    %5265 = vmatpush.msra.mxu0 0.0
    %5266 = vmatpush.msra.mxu0 %v1565
    %5267 = vmatpush.msra.mxu0 %v1562
    %5268 = vmatpush.msra.mxu0 %v1559
    %5269 = vmatpush.msra.mxu0 %v1556
    %5270 = vmatpush.msra.mxu0 %v1553
    %5271 = vmatpush.msra.mxu0 %v1550
    %5272 = vmatpush.msra.mxu0 %v1547
    %5273 = vmatpush.msra.mxu0 %v1544
    %5274 = vmatpush.msra.mxu0 %v1541
    %5275 = vmatmul.f32.gmra.mxu0 %v5219
    %v5276 = vpop.f32.mrf.mxu0
    %v5277 = vadd.f32 0.0, %v5276
    %5278 = vmatmul.f32.gmra.mxu0 %v5222
    %v5279 = vpop.f32.mrf.mxu0
    %v5280 = vadd.f32 0.0, %v5279
    %5281 = vmatmul.f32.gmra.mxu0 %v5225
    %v5282 = vpop.f32.mrf.mxu0
    %v5283 = vadd.f32 0.0, %v5282
    %5284 = vmatmul.f32.gmra.mxu0 %v5228
    %v5285 = vpop.f32.mrf.mxu0
    %v5286 = vadd.f32 0.0, %v5285
    %5287 = vdwg.mxu0
    %5288 = vmatpush.msra.mxu0 0.0
    %5289 = vmatpush.msra.mxu0 0.0
    %5290 = vmatpush.msra.mxu0 0.0
    %5291 = vmatpush.msra.mxu0 0.0
    %5292 = vmatpush.msra.mxu0 0.0
    %5293 = vmatpush.msra.mxu0 0.0
    %5294 = vmatpush.msra.mxu0 0.0
    %5295 = vmatpush.msra.mxu0 %v1566
    %5296 = vmatpush.msra.mxu0 %v1563
    %5297 = vmatpush.msra.mxu0 %v1560
    %5298 = vmatpush.msra.mxu0 %v1557
    %5299 = vmatpush.msra.mxu0 %v1554
    %5300 = vmatpush.msra.mxu0 %v1551
    %5301 = vmatpush.msra.mxu0 %v1548
    %5302 = vmatpush.msra.mxu0 %v1545
    %5303 = vmatpush.msra.mxu0 %v1542
    %5304 = vmatmul.f32.gmra.mxu0 %v5219
    %v5305 = vpop.f32.mrf.mxu0
    %v5306 = vadd.f32 0.0, %v5305
    %5307 = vmatmul.f32.gmra.mxu0 %v5222
    %v5308 = vpop.f32.mrf.mxu0
    %v5309 = vadd.f32 0.0, %v5308
    %5310 = vmatmul.f32.gmra.mxu0 %v5225
    %v5311 = vpop.f32.mrf.mxu0
    %v5312 = vadd.f32 0.0, %v5311
    %5313 = vmatmul.f32.gmra.mxu0 %v5228
    %v5314 = vpop.f32.mrf.mxu0
    %v5315 = vadd.f32 0.0, %v5314
    %5316 = vdwg.mxu0
    %s5317 = scalar_lea.vmem %s6, 2592
    %v5318 = vld [vmem:[%s5317] sm:$0xff]
    %v5319 = vld [vmem:[%s5317 + $0x8] sm:$0xff]
    %v5320 = vld [vmem:[%s5317 + $0x10] sm:$0xff]
    %v5321 = vld [vmem:[%s5317 + $0x18] sm:$0xff]
    %v5322 = vld [vmem:[%s5317 + $0x20] sm:$0xff]
    %v5323 = vld [vmem:[%s5317 + $0x28] sm:$0xff]
    %v5324 = vld [vmem:[%s5317 + $0x30] sm:$0xff]
    %v5325 = vld [vmem:[%s5317 + $0x38] sm:$0xff]
    %v5326 = vld [vmem:[%s5317 + $0x40] sm:$0xff]
    %v5327 = vld [vmem:[%s5317 + $0x48] sm:$0xff]
    %v5328 = vld [vmem:[%s5317 + $0x50] sm:$0xff]
    %v5329 = vld [vmem:[%s5317 + $0x58] sm:$0xff]
    %v5330 = vld [vmem:[%s5317 + $0x60] sm:$0xff]
    %v5331 = vld [vmem:[%s5317 + $0x68] sm:$0xff]
    %v5332 = vld [vmem:[%s5317 + $0x70] sm:$0xff]
    %v5333 = vld [vmem:[%s5317 + $0x78] sm:$0xff]
    %v5334 = vld [vmem:[%s5317 + $0x80] sm:$0xff]
    %v5335 = vld [vmem:[%s5317 + $0x88] sm:$0xff]
    %v5336 = vld [vmem:[%s5317 + $0x90] sm:$0xff]
    %v5337 = vld [vmem:[%s5317 + $0x98] sm:$0xff]
    %v5338 = vld [vmem:[%s5317 + $0xa0] sm:$0xff]
    %v5339 = vld [vmem:[%s5317 + $0xa8] sm:$0xff]
    %v5340 = vld [vmem:[%s5317 + $0xb0] sm:$0xff]
    %v5341 = vld [vmem:[%s5317 + $0xb8] sm:$0xff]
    %v5342 = vld [vmem:[%s5317 + $0xc0] sm:$0xff]
    %v5343 = vld [vmem:[%s5317 + $0xc8] sm:$0xff]
    %v5344 = vld [vmem:[%s5317 + $0xd0] sm:$0xff]
    %v5345 = vld [vmem:[%s5317 + $0xd8] sm:$0xff]
    %v5346 = vld [vmem:[%s5317 + $0xe0] sm:$0xff]
    %v5347 = vld [vmem:[%s5317 + $0xe8] sm:$0xff]
    %v5348 = vld [vmem:[%s5317 + $0xf0] sm:$0xff]
    %v5349 = vld [vmem:[%s5317 + $0xf8] sm:$0xff]
    %v5350 = vld [vmem:[%s5317 + $0x100] sm:$0xff]
    %v5351 = vld [vmem:[%s5317 + $0x108] sm:$0xff]
    %v5352 = vld [vmem:[%s5317 + $0x110] sm:$0xff]
    %v5353 = vld [vmem:[%s5317 + $0x118] sm:$0xff]
    %v5354 = vunpack.c.l.bf16 %v5318
    %v5355 = vunpack.c.h.bf16 %v5318
    %v5356 = vunpack.c.l.bf16 %v5319
    %v5357 = vunpack.c.h.bf16 %v5319
    %v5358 = vunpack.c.l.bf16 %v5320
    %v5359 = vunpack.c.h.bf16 %v5320
    %v5360 = vunpack.c.l.bf16 %v5321
    %v5361 = vunpack.c.h.bf16 %v5321
    %v5362 = vunpack.c.l.bf16 %v5322
    %v5363 = vunpack.c.h.bf16 %v5322
    %v5364 = vunpack.c.l.bf16 %v5323
    %v5365 = vunpack.c.h.bf16 %v5323
    %v5366 = vunpack.c.l.bf16 %v5324
    %v5367 = vunpack.c.h.bf16 %v5324
    %v5368 = vunpack.c.l.bf16 %v5325
    %v5369 = vunpack.c.h.bf16 %v5325
    %v5370 = vunpack.c.l.bf16 %v5326
    %v5371 = vunpack.c.h.bf16 %v5326
    %v5372 = vunpack.c.l.bf16 %v5327
    %v5373 = vunpack.c.h.bf16 %v5327
    %v5374 = vunpack.c.l.bf16 %v5328
    %v5375 = vunpack.c.h.bf16 %v5328
    %v5376 = vunpack.c.l.bf16 %v5329
    %v5377 = vunpack.c.h.bf16 %v5329
    %v5378 = vunpack.c.l.bf16 %v5330
    %v5379 = vunpack.c.h.bf16 %v5330
    %v5380 = vunpack.c.l.bf16 %v5331
    %v5381 = vunpack.c.h.bf16 %v5331
    %v5382 = vunpack.c.l.bf16 %v5332
    %v5383 = vunpack.c.h.bf16 %v5332
    %v5384 = vunpack.c.l.bf16 %v5333
    %v5385 = vunpack.c.h.bf16 %v5333
    %v5386 = vunpack.c.l.bf16 %v5334
    %v5387 = vunpack.c.h.bf16 %v5334
    %v5388 = vunpack.c.l.bf16 %v5335
    %v5389 = vunpack.c.h.bf16 %v5335
    %v5390 = vunpack.c.l.bf16 %v5336
    %v5391 = vunpack.c.h.bf16 %v5336
    %v5392 = vunpack.c.l.bf16 %v5337
    %v5393 = vunpack.c.h.bf16 %v5337
    %v5394 = vunpack.c.l.bf16 %v5338
    %v5395 = vunpack.c.h.bf16 %v5338
    %v5396 = vunpack.c.l.bf16 %v5339
    %v5397 = vunpack.c.h.bf16 %v5339
    %v5398 = vunpack.c.l.bf16 %v5340
    %v5399 = vunpack.c.h.bf16 %v5340
    %v5400 = vunpack.c.l.bf16 %v5341
    %v5401 = vunpack.c.h.bf16 %v5341
    %v5402 = vunpack.c.l.bf16 %v5342
    %v5403 = vunpack.c.h.bf16 %v5342
    %v5404 = vunpack.c.l.bf16 %v5343
    %v5405 = vunpack.c.h.bf16 %v5343
    %v5406 = vunpack.c.l.bf16 %v5344
    %v5407 = vunpack.c.h.bf16 %v5344
    %v5408 = vunpack.c.l.bf16 %v5345
    %v5409 = vunpack.c.h.bf16 %v5345
    %v5410 = vunpack.c.l.bf16 %v5346
    %v5411 = vunpack.c.h.bf16 %v5346
    %v5412 = vunpack.c.l.bf16 %v5347
    %v5413 = vunpack.c.h.bf16 %v5347
    %v5414 = vunpack.c.l.bf16 %v5348
    %v5415 = vunpack.c.h.bf16 %v5348
    %v5416 = vunpack.c.l.bf16 %v5349
    %v5417 = vunpack.c.h.bf16 %v5349
    %v5418 = vunpack.c.l.bf16 %v5350
    %v5419 = vunpack.c.h.bf16 %v5350
    %v5420 = vunpack.c.l.bf16 %v5351
    %v5421 = vunpack.c.h.bf16 %v5351
    %v5422 = vunpack.c.l.bf16 %v5352
    %v5423 = vunpack.c.h.bf16 %v5352
    %v5424 = vunpack.c.l.bf16 %v5353
    %v5425 = vunpack.c.h.bf16 %v5353
    %v5427 = vsel %vm1098, %v5306, 0
    %v5430 = vsel %vm1098, %v5309, 0
    %v5433 = vsel %vm1098, %v5312, 0
    %v5436 = vsel %vm1098, %v5315, 0
    %5438 = vmatpush.msra.mxu0 %v5384
    %5439 = vmatpush.msra.mxu0 %v5382
    %5440 = vmatpush.msra.mxu0 %v5380
    %5441 = vmatpush.msra.mxu0 %v5378
    %5442 = vmatpush.msra.mxu0 %v5376
    %5443 = vmatpush.msra.mxu0 %v5374
    %5444 = vmatpush.msra.mxu0 %v5372
    %5445 = vmatpush.msra.mxu0 %v5370
    %5446 = vmatpush.msra.mxu0 %v5368
    %5447 = vmatpush.msra.mxu0 %v5366
    %5448 = vmatpush.msra.mxu0 %v5364
    %5449 = vmatpush.msra.mxu0 %v5362
    %5450 = vmatpush.msra.mxu0 %v5360
    %5451 = vmatpush.msra.mxu0 %v5358
    %5452 = vmatpush.msra.mxu0 %v5356
    %5453 = vmatpush.msra.mxu0 %v5354
    %5454 = vmatmul.f32.gmra.mxu0 %v5248
    %v5455 = vpop.f32.mrf.mxu0
    %v5456 = vadd.f32 0.0, %v5455
    %5457 = vmatmul.f32.gmra.mxu0 %v5251
    %v5458 = vpop.f32.mrf.mxu0
    %v5459 = vadd.f32 0.0, %v5458
    %5460 = vmatmul.f32.gmra.mxu0 %v5254
    %v5461 = vpop.f32.mrf.mxu0
    %v5462 = vadd.f32 0.0, %v5461
    %5463 = vmatmul.f32.gmra.mxu0 %v5257
    %v5464 = vpop.f32.mrf.mxu0
    %v5465 = vadd.f32 0.0, %v5464
    %5466 = vdwg.mxu0
    %5467 = vmatpush.msra.mxu0 %v5416
    %5468 = vmatpush.msra.mxu0 %v5414
    %5469 = vmatpush.msra.mxu0 %v5412
    %5470 = vmatpush.msra.mxu0 %v5410
    %5471 = vmatpush.msra.mxu0 %v5408
    %5472 = vmatpush.msra.mxu0 %v5406
    %5473 = vmatpush.msra.mxu0 %v5404
    %5474 = vmatpush.msra.mxu0 %v5402
    %5475 = vmatpush.msra.mxu0 %v5400
    %5476 = vmatpush.msra.mxu0 %v5398
    %5477 = vmatpush.msra.mxu0 %v5396
    %5478 = vmatpush.msra.mxu0 %v5394
    %5479 = vmatpush.msra.mxu0 %v5392
    %5480 = vmatpush.msra.mxu0 %v5390
    %5481 = vmatpush.msra.mxu0 %v5388
    %5482 = vmatpush.msra.mxu0 %v5386
    %5483 = vmatmul.f32.gmra.mxu0 %v5277
    %v5484 = vpop.f32.mrf.mxu0
    %v5485 = vadd.f32 %v5456, %v5484
    %5486 = vmatmul.f32.gmra.mxu0 %v5280
    %v5487 = vpop.f32.mrf.mxu0
    %v5488 = vadd.f32 %v5459, %v5487
    %5489 = vmatmul.f32.gmra.mxu0 %v5283
    %v5490 = vpop.f32.mrf.mxu0
    %v5491 = vadd.f32 %v5462, %v5490
    %5492 = vmatmul.f32.gmra.mxu0 %v5286
    %v5493 = vpop.f32.mrf.mxu0
    %v5494 = vadd.f32 %v5465, %v5493
    %5495 = vdwg.mxu0
    %5496 = vmatpush.msra.mxu0 0.0
    %5497 = vmatpush.msra.mxu0 0.0
    %5498 = vmatpush.msra.mxu0 0.0
    %5499 = vmatpush.msra.mxu0 0.0
    %5500 = vmatpush.msra.mxu0 0.0
    %5501 = vmatpush.msra.mxu0 0.0
    %5502 = vmatpush.msra.mxu0 0.0
    %5503 = vmatpush.msra.mxu0 0.0
    %5504 = vmatpush.msra.mxu0 0.0
    %5505 = vmatpush.msra.mxu0 0.0
    %5506 = vmatpush.msra.mxu0 0.0
    %5507 = vmatpush.msra.mxu0 0.0
    %5508 = vmatpush.msra.mxu0 %v5424
    %5509 = vmatpush.msra.mxu0 %v5422
    %5510 = vmatpush.msra.mxu0 %v5420
    %5511 = vmatpush.msra.mxu0 %v5418
    %5512 = vmatmul.f32.gmra.mxu0 %v5427
    %v5513 = vpop.f32.mrf.mxu0
    %v5514 = vadd.f32 %v5485, %v5513
    %5515 = vmatmul.f32.gmra.mxu0 %v5430
    %v5516 = vpop.f32.mrf.mxu0
    %v5517 = vadd.f32 %v5488, %v5516
    %5518 = vmatmul.f32.gmra.mxu0 %v5433
    %v5519 = vpop.f32.mrf.mxu0
    %v5520 = vadd.f32 %v5491, %v5519
    %5521 = vmatmul.f32.gmra.mxu0 %v5436
    %v5522 = vpop.f32.mrf.mxu0
    %v5523 = vadd.f32 %v5494, %v5522
    %5524 = vdwg.mxu0
    %5525 = vmatpush.msra.mxu0 %v5385
    %5526 = vmatpush.msra.mxu0 %v5383
    %5527 = vmatpush.msra.mxu0 %v5381
    %5528 = vmatpush.msra.mxu0 %v5379
    %5529 = vmatpush.msra.mxu0 %v5377
    %5530 = vmatpush.msra.mxu0 %v5375
    %5531 = vmatpush.msra.mxu0 %v5373
    %5532 = vmatpush.msra.mxu0 %v5371
    %5533 = vmatpush.msra.mxu0 %v5369
    %5534 = vmatpush.msra.mxu0 %v5367
    %5535 = vmatpush.msra.mxu0 %v5365
    %5536 = vmatpush.msra.mxu0 %v5363
    %5537 = vmatpush.msra.mxu0 %v5361
    %5538 = vmatpush.msra.mxu0 %v5359
    %5539 = vmatpush.msra.mxu0 %v5357
    %5540 = vmatpush.msra.mxu0 %v5355
    %5541 = vmatmul.f32.gmra.mxu0 %v5248
    %v5542 = vpop.f32.mrf.mxu0
    %v5543 = vadd.f32 0.0, %v5542
    %5544 = vmatmul.f32.gmra.mxu0 %v5251
    %v5545 = vpop.f32.mrf.mxu0
    %v5546 = vadd.f32 0.0, %v5545
    %5547 = vmatmul.f32.gmra.mxu0 %v5254
    %v5548 = vpop.f32.mrf.mxu0
    %v5549 = vadd.f32 0.0, %v5548
    %5550 = vmatmul.f32.gmra.mxu0 %v5257
    %v5551 = vpop.f32.mrf.mxu0
    %v5552 = vadd.f32 0.0, %v5551
    %5553 = vdwg.mxu0
    %5554 = vmatpush.msra.mxu0 %v5417
    %5555 = vmatpush.msra.mxu0 %v5415
    %5556 = vmatpush.msra.mxu0 %v5413
    %5557 = vmatpush.msra.mxu0 %v5411
    %5558 = vmatpush.msra.mxu0 %v5409
    %5559 = vmatpush.msra.mxu0 %v5407
    %5560 = vmatpush.msra.mxu0 %v5405
    %5561 = vmatpush.msra.mxu0 %v5403
    %5562 = vmatpush.msra.mxu0 %v5401
    %5563 = vmatpush.msra.mxu0 %v5399
    %5564 = vmatpush.msra.mxu0 %v5397
    %5565 = vmatpush.msra.mxu0 %v5395
    %5566 = vmatpush.msra.mxu0 %v5393
    %5567 = vmatpush.msra.mxu0 %v5391
    %5568 = vmatpush.msra.mxu0 %v5389
    %5569 = vmatpush.msra.mxu0 %v5387
    %5570 = vmatmul.f32.gmra.mxu0 %v5277
    %v5571 = vpop.f32.mrf.mxu0
    %v5572 = vadd.f32 %v5543, %v5571
    %5573 = vmatmul.f32.gmra.mxu0 %v5280
    %v5574 = vpop.f32.mrf.mxu0
    %v5575 = vadd.f32 %v5546, %v5574
    %5576 = vmatmul.f32.gmra.mxu0 %v5283
    %v5577 = vpop.f32.mrf.mxu0
    %v5578 = vadd.f32 %v5549, %v5577
    %5579 = vmatmul.f32.gmra.mxu0 %v5286
    %v5580 = vpop.f32.mrf.mxu0
    %v5581 = vadd.f32 %v5552, %v5580
    %5582 = vdwg.mxu0
    %5583 = vmatpush.msra.mxu0 0.0
    %5584 = vmatpush.msra.mxu0 0.0
    %5585 = vmatpush.msra.mxu0 0.0
    %5586 = vmatpush.msra.mxu0 0.0
    %5587 = vmatpush.msra.mxu0 0.0
    %5588 = vmatpush.msra.mxu0 0.0
    %5589 = vmatpush.msra.mxu0 0.0
    %5590 = vmatpush.msra.mxu0 0.0
    %5591 = vmatpush.msra.mxu0 0.0
    %5592 = vmatpush.msra.mxu0 0.0
    %5593 = vmatpush.msra.mxu0 0.0
    %5594 = vmatpush.msra.mxu0 0.0
    %5595 = vmatpush.msra.mxu0 %v5425
    %5596 = vmatpush.msra.mxu0 %v5423
    %5597 = vmatpush.msra.mxu0 %v5421
    %5598 = vmatpush.msra.mxu0 %v5419
    %5599 = vmatmul.f32.gmra.mxu0 %v5427
    %v5600 = vpop.f32.mrf.mxu0
    %v5601 = vadd.f32 %v5572, %v5600
    %5602 = vmatmul.f32.gmra.mxu0 %v5430
    %v5603 = vpop.f32.mrf.mxu0
    %v5604 = vadd.f32 %v5575, %v5603
    %5605 = vmatmul.f32.gmra.mxu0 %v5433
    %v5606 = vpop.f32.mrf.mxu0
    %v5607 = vadd.f32 %v5578, %v5606
    %5608 = vmatmul.f32.gmra.mxu0 %v5436
    %v5609 = vpop.f32.mrf.mxu0
    %v5610 = vadd.f32 %v5581, %v5609
    %5611 = vdwg.mxu0
    %v5612 = vadd.f32 %v5205, %v5514
    %v5613 = vadd.f32 %v5206, %v5601
    %v5614 = vadd.f32 %v5207, %v5517
    %v5615 = vadd.f32 %v5208, %v5604
    %v5616 = vadd.f32 %v5209, %v5520
    %v5617 = vadd.f32 %v5210, %v5607
    %v5618 = vadd.f32 %v5211, %v5523
    %v5619 = vadd.f32 %v5212, %v5610
    %v5620 = vld [vmem:[%s7] sm:$0x77]
    %v5621 = vld [vmem:[%s8] sm:$0xff]
    %v5622 = vld [vmem:[%s8 + $0x8] sm:$0xff]
    %v5623 = vld [vmem:[%s8 + $0x10] sm:$0xff]
    %v5624 = vld [vmem:[%s8 + $0x18] sm:$0xff]
    %v5625 = vld [vmem:[%s8 + $0x20] sm:$0xff]
    %v5626 = vld [vmem:[%s8 + $0x28] sm:$0xff]
    %v5627 = vld [vmem:[%s8 + $0x30] sm:$0xff]
    %v5628 = vld [vmem:[%s8 + $0x38] sm:$0xff]
    %v5629 = vld [vmem:[%s8 + $0x40] sm:$0xff]
    %v5630 = vld [vmem:[%s8 + $0x48] sm:$0xff]
    %v5631 = vld [vmem:[%s8 + $0x50] sm:$0xff]
    %v5632 = vld [vmem:[%s8 + $0x58] sm:$0xff]
    %v5633 = vld [vmem:[%s8 + $0x60] sm:$0xff]
    %v5634 = vld [vmem:[%s8 + $0x68] sm:$0xff]
    %v5635 = vld [vmem:[%s8 + $0x70] sm:$0xff]
    %v5636 = vld [vmem:[%s8 + $0x78] sm:$0xff]
    %v5637 = vld [vmem:[%s8 + $0x80] sm:$0xff]
    %v5638 = vld [vmem:[%s8 + $0x88] sm:$0xff]
    %v5639 = vld [vmem:[%s8 + $0x90] sm:$0xff]
    %v5640 = vld [vmem:[%s8 + $0x98] sm:$0xff]
    %v5641 = vld [vmem:[%s9] sm:$0xff]
    %v5642 = vld [vmem:[%s9 + $0x8] sm:$0xff]
    %v5643 = vld [vmem:[%s9 + $0x10] sm:$0xff]
    %v5644 = vld [vmem:[%s9 + $0x18] sm:$0xff]
    %v5645 = vld [vmem:[%s9 + $0x20] sm:$0xff]
    %v5646 = vld [vmem:[%s9 + $0x28] sm:$0xff]
    %v5647 = vld [vmem:[%s9 + $0x30] sm:$0xff]
    %v5648 = vld [vmem:[%s9 + $0x38] sm:$0xff]
    %v5650 = vperm.slane %v5620, 0
    %v5651 = vperm.slane %v5620, 4
    %v5654 = vperm.slane %v5650, 0
    %v5655 = vperm.slane %v5651, 0
    %v5656 = vadd.f32 %v5612, %v5654
    %v5657 = vadd.f32 %v5613, %v5655
    %v5658 = vadd.f32 %v5614, %v5654
    %v5659 = vadd.f32 %v5615, %v5655
    %v5660 = vadd.f32 %v5616, %v5654
    %v5661 = vadd.f32 %v5617, %v5655
    %v5662 = vadd.f32 %v5618, %v5654
    %v5663 = vadd.f32 %v5619, %v5655
    %v5664 = vmax.f32 %v5656, 0.0
    %v5665 = vmax.f32 %v5657, 0.0
    %v5666 = vmax.f32 %v5658, 0.0
    %v5667 = vmax.f32 %v5659, 0.0
    %v5668 = vmax.f32 %v5660, 0.0
    %v5669 = vmax.f32 %v5661, 0.0
    %v5670 = vmax.f32 %v5662, 0.0
    %v5671 = vmax.f32 %v5663, 0.0
    %v5672 = vadd.f32 %v5664, %v5666
    %v5673 = vadd.f32 %v5672, %v5668
    %vm5674 = vcmask 1045504
    %v5675 = vsel %vm5674, %v5670, 0.0
    %v5676 = vadd.f32 %v5673, %v5675
    %v5677 = vrot.slane %v5676, 4
    %v5678 = vadd.f32 %v5676, %v5677
    %v5679 = vrot.slane %v5678, 2
    %v5680 = vadd.f32 %v5678, %v5679
    %v5681 = vrot.slane %v5680, 1
    %v5682 = vadd.f32 %v5680, %v5681
    %v5683 = vsel %vm1098, %v5665, 0.0
    %v5684 = vsel %vm1098, %v5667, 0.0
    %v5685 = vadd.f32 %v5683, %v5684
    %v5686 = vsel %vm1098, %v5669, 0.0
    %v5687 = vadd.f32 %v5685, %v5686
    %vm5688 = vcmask 259072
    %v5689 = vsel %vm5688, %v5671, 0.0
    %v5690 = vadd.f32 %v5687, %v5689
    %v5691 = vrot.slane %v5690, 4
    %v5692 = vadd.f32 %v5690, %v5691
    %v5693 = vrot.slane %v5692, 2
    %v5694 = vadd.f32 %v5692, %v5693
    %v5695 = vrot.slane %v5694, 1
    %v5696 = vadd.f32 %v5694, %v5695
    %v5698 = vsel %vm1098, %v5696, 0
    %5700 = vmatpush.msra.mxu0 %v5636
    %5701 = vmatpush.msra.mxu0 %v5635
    %5702 = vmatpush.msra.mxu0 %v5634
    %5703 = vmatpush.msra.mxu0 %v5633
    %5704 = vmatpush.msra.mxu0 %v5632
    %5705 = vmatpush.msra.mxu0 %v5631
    %5706 = vmatpush.msra.mxu0 %v5630
    %5707 = vmatpush.msra.mxu0 %v5629
    %5708 = vmatpush.msra.mxu0 %v5628
    %5709 = vmatpush.msra.mxu0 %v5627
    %5710 = vmatpush.msra.mxu0 %v5626
    %5711 = vmatpush.msra.mxu0 %v5625
    %5712 = vmatpush.msra.mxu0 %v5624
    %5713 = vmatpush.msra.mxu0 %v5623
    %5714 = vmatpush.msra.mxu0 %v5622
    %5715 = vmatpush.msra.mxu0 %v5621
    %5716 = vmatmul.f32.gmra.mxu0 %v5682
    %v5717 = vpop.f32.mrf.mxu0
    %v5718 = vadd.f32 0.0, %v5717
    %5719 = vdwg.mxu0
    %5720 = vmatpush.msra.mxu0 0.0
    %5721 = vmatpush.msra.mxu0 0.0
    %5722 = vmatpush.msra.mxu0 0.0
    %5723 = vmatpush.msra.mxu0 0.0
    %5724 = vmatpush.msra.mxu0 0.0
    %5725 = vmatpush.msra.mxu0 0.0
    %5726 = vmatpush.msra.mxu0 0.0
    %5727 = vmatpush.msra.mxu0 0.0
    %5728 = vmatpush.msra.mxu0 0.0
    %5729 = vmatpush.msra.mxu0 0.0
    %5730 = vmatpush.msra.mxu0 0.0
    %5731 = vmatpush.msra.mxu0 0.0
    %5732 = vmatpush.msra.mxu0 %v5640
    %5733 = vmatpush.msra.mxu0 %v5639
    %5734 = vmatpush.msra.mxu0 %v5638
    %5735 = vmatpush.msra.mxu0 %v5637
    %5736 = vmatmul.f32.gmra.mxu0 %v5698
    %v5737 = vpop.f32.mrf.mxu0
    %v5738 = vadd.f32 %v5718, %v5737
    %5739 = vdwg.mxu0
    %v5741 = vsel %vm1098, %v5738, 0
    %5743 = vmatpush.msra.mxu0 0.0
    %5744 = vmatpush.msra.mxu0 0.0
    %5745 = vmatpush.msra.mxu0 0.0
    %5746 = vmatpush.msra.mxu0 0.0
    %5747 = vmatpush.msra.mxu0 0.0
    %5748 = vmatpush.msra.mxu0 0.0
    %5749 = vmatpush.msra.mxu0 0.0
    %5750 = vmatpush.msra.mxu0 0.0
    %5751 = vmatpush.msra.mxu0 0.0
    %5752 = vmatpush.msra.mxu0 0.0
    %5753 = vmatpush.msra.mxu0 0.0
    %5754 = vmatpush.msra.mxu0 0.0
    %5755 = vmatpush.msra.mxu0 %v5647
    %5756 = vmatpush.msra.mxu0 %v5645
    %5757 = vmatpush.msra.mxu0 %v5643
    %5758 = vmatpush.msra.mxu0 %v5641
    %5759 = vmatmul.f32.gmra.mxu0 %v5741
    %v5760 = vpop.f32.mrf.mxu0
    %v5761 = vadd.f32 0.0, %v5760
    %5762 = vdwg.mxu0
    %5763 = vmatpush.msra.mxu0 0.0
    %5764 = vmatpush.msra.mxu0 0.0
    %5765 = vmatpush.msra.mxu0 0.0
    %5766 = vmatpush.msra.mxu0 0.0
    %5767 = vmatpush.msra.mxu0 0.0
    %5768 = vmatpush.msra.mxu0 0.0
    %5769 = vmatpush.msra.mxu0 0.0
    %5770 = vmatpush.msra.mxu0 0.0
    %5771 = vmatpush.msra.mxu0 0.0
    %5772 = vmatpush.msra.mxu0 0.0
    %5773 = vmatpush.msra.mxu0 0.0
    %5774 = vmatpush.msra.mxu0 0.0
    %5775 = vmatpush.msra.mxu0 %v5648
    %5776 = vmatpush.msra.mxu0 %v5646
    %5777 = vmatpush.msra.mxu0 %v5644
    %5778 = vmatpush.msra.mxu0 %v5642
    %5779 = vmatmul.f32.gmra.mxu0 %v5741
    %v5780 = vpop.f32.mrf.mxu0
    %v5781 = vadd.f32 0.0, %v5780
    %5782 = vdwg.mxu0
    %v5783 = vperm.slane %v5761, 0
    %v5784 = vperm.slane %v5781, 0
    %v5785 = vsub.f32 %v5664, %v5783
    %v5786 = vsub.f32 %v5665, %v5784
    %v5787 = vsub.f32 %v5666, %v5783
    %v5788 = vsub.f32 %v5667, %v5784
    %v5789 = vsub.f32 %v5668, %v5783
    %v5790 = vsub.f32 %v5669, %v5784
    %v5791 = vsub.f32 %v5670, %v5783
    %v5792 = vsub.f32 %v5671, %v5784
    %v5793 = vmul.f32 %v5785, %v5785
    %v5794 = vmul.f32 %v5786, %v5786
    %v5795 = vmul.f32 %v5787, %v5787
    %v5796 = vmul.f32 %v5788, %v5788
    %v5797 = vmul.f32 %v5789, %v5789
    %v5798 = vmul.f32 %v5790, %v5790
    %v5799 = vmul.f32 %v5791, %v5791
    %v5800 = vmul.f32 %v5792, %v5792
    %v5801 = vadd.f32 %v5793, %v5795
    %v5802 = vadd.f32 %v5801, %v5797
    %v5803 = vsel %vm5674, %v5799, 0.0
    %v5804 = vadd.f32 %v5802, %v5803
    %v5805 = vrot.slane %v5804, 4
    %v5806 = vadd.f32 %v5804, %v5805
    %v5807 = vrot.slane %v5806, 2
    %v5808 = vadd.f32 %v5806, %v5807
    %v5809 = vrot.slane %v5808, 1
    %v5810 = vadd.f32 %v5808, %v5809
    %v5811 = vsel %vm1098, %v5794, 0.0
    %v5812 = vsel %vm1098, %v5796, 0.0
    %v5813 = vadd.f32 %v5811, %v5812
    %v5814 = vsel %vm1098, %v5798, 0.0
    %v5815 = vadd.f32 %v5813, %v5814
    %v5816 = vsel %vm5688, %v5800, 0.0
    %v5817 = vadd.f32 %v5815, %v5816
    %v5818 = vrot.slane %v5817, 4
    %v5819 = vadd.f32 %v5817, %v5818
    %v5820 = vrot.slane %v5819, 2
    %v5821 = vadd.f32 %v5819, %v5820
    %v5822 = vrot.slane %v5821, 1
    %v5823 = vadd.f32 %v5821, %v5822
    %v5825 = vsel %vm1098, %v5823, 0
    %5827 = vmatpush.msra.mxu0 %v5636
    %5828 = vmatpush.msra.mxu0 %v5635
    %5829 = vmatpush.msra.mxu0 %v5634
    %5830 = vmatpush.msra.mxu0 %v5633
    %5831 = vmatpush.msra.mxu0 %v5632
    %5832 = vmatpush.msra.mxu0 %v5631
    %5833 = vmatpush.msra.mxu0 %v5630
    %5834 = vmatpush.msra.mxu0 %v5629
    %5835 = vmatpush.msra.mxu0 %v5628
    %5836 = vmatpush.msra.mxu0 %v5627
    %5837 = vmatpush.msra.mxu0 %v5626
    %5838 = vmatpush.msra.mxu0 %v5625
    %5839 = vmatpush.msra.mxu0 %v5624
    %5840 = vmatpush.msra.mxu0 %v5623
    %5841 = vmatpush.msra.mxu0 %v5622
    %5842 = vmatpush.msra.mxu0 %v5621
    %5843 = vmatmul.f32.gmra.mxu0 %v5810
    %v5844 = vpop.f32.mrf.mxu0
    %v5845 = vadd.f32 1e-05, %v5844
    %5846 = vdwg.mxu0
    %5847 = vmatpush.msra.mxu0 0.0
    %5848 = vmatpush.msra.mxu0 0.0
    %5849 = vmatpush.msra.mxu0 0.0
    %5850 = vmatpush.msra.mxu0 0.0
    %5851 = vmatpush.msra.mxu0 0.0
    %5852 = vmatpush.msra.mxu0 0.0
    %5853 = vmatpush.msra.mxu0 0.0
    %5854 = vmatpush.msra.mxu0 0.0
    %5855 = vmatpush.msra.mxu0 0.0
    %5856 = vmatpush.msra.mxu0 0.0
    %5857 = vmatpush.msra.mxu0 0.0
    %5858 = vmatpush.msra.mxu0 0.0
    %5859 = vmatpush.msra.mxu0 %v5640
    %5860 = vmatpush.msra.mxu0 %v5639
    %5861 = vmatpush.msra.mxu0 %v5638
    %5862 = vmatpush.msra.mxu0 %v5637
    %5863 = vmatmul.f32.gmra.mxu0 %v5825
    %v5864 = vpop.f32.mrf.mxu0
    %v5865 = vadd.f32 %v5845, %v5864
    %5866 = vdwg.mxu0
    %v5867 = vrsqrt.pop %v5865
    %v5868 = vmul.f32 %v5867, %v5865
    %v5869 = vmul.f32 %v5868, %v5867
    %v5870 = vmul.f32 0.5, %v5869
    %v5871 = vsub.f32 1.5, %v5870
    %v5872 = vmul.f32 %v5867, %v5871
    %vm5873 = vweird.f32 %v5865
    %vm5874 = vweird.f32 %v5867
    %vm5875 = vmor %vm5873, %vm5874
    %v5876 = vsel %vm5875, %v5867, %v5872
    %v5878 = vsel %vm1098, %v5876, 0
    %5880 = vmatpush.msra.mxu0 0.0
    %5881 = vmatpush.msra.mxu0 0.0
    %5882 = vmatpush.msra.mxu0 0.0
    %5883 = vmatpush.msra.mxu0 0.0
    %5884 = vmatpush.msra.mxu0 0.0
    %5885 = vmatpush.msra.mxu0 0.0
    %5886 = vmatpush.msra.mxu0 0.0
    %5887 = vmatpush.msra.mxu0 0.0
    %5888 = vmatpush.msra.mxu0 0.0
    %5889 = vmatpush.msra.mxu0 0.0
    %5890 = vmatpush.msra.mxu0 0.0
    %5891 = vmatpush.msra.mxu0 0.0
    %5892 = vmatpush.msra.mxu0 %v5647
    %5893 = vmatpush.msra.mxu0 %v5645
    %5894 = vmatpush.msra.mxu0 %v5643
    %5895 = vmatpush.msra.mxu0 %v5641
    %5896 = vmatmul.f32.gmra.mxu0 %v5878
    %v5897 = vpop.f32.mrf.mxu0
    %v5898 = vadd.f32 0.0, %v5897
    %5899 = vdwg.mxu0
    %5900 = vmatpush.msra.mxu0 0.0
    %5901 = vmatpush.msra.mxu0 0.0
    %5902 = vmatpush.msra.mxu0 0.0
    %5903 = vmatpush.msra.mxu0 0.0
    %5904 = vmatpush.msra.mxu0 0.0
    %5905 = vmatpush.msra.mxu0 0.0
    %5906 = vmatpush.msra.mxu0 0.0
    %5907 = vmatpush.msra.mxu0 0.0
    %5908 = vmatpush.msra.mxu0 0.0
    %5909 = vmatpush.msra.mxu0 0.0
    %5910 = vmatpush.msra.mxu0 0.0
    %5911 = vmatpush.msra.mxu0 0.0
    %5912 = vmatpush.msra.mxu0 %v5648
    %5913 = vmatpush.msra.mxu0 %v5646
    %5914 = vmatpush.msra.mxu0 %v5644
    %5915 = vmatpush.msra.mxu0 %v5642
    %5916 = vmatmul.f32.gmra.mxu0 %v5878
    %v5917 = vpop.f32.mrf.mxu0
    %v5918 = vadd.f32 0.0, %v5917
    %5919 = vdwg.mxu0
    %v5920 = vperm.slane %v5620, 1
    %v5921 = vperm.slane %v5620, 5
    %v5924 = vmul.f32 %v5898, %v5920
    %v5925 = vmul.f32 %v5918, %v5921
    %v5926 = vperm.slane %v5924, 0
    %v5927 = vperm.slane %v5925, 0
    %v5928 = vmul.f32 %v5785, %v5926
    %v5929 = vmul.f32 %v5786, %v5927
    %v5930 = vmul.f32 %v5787, %v5926
    %v5931 = vmul.f32 %v5788, %v5927
    %v5932 = vmul.f32 %v5789, %v5926
    %v5933 = vmul.f32 %v5790, %v5927
    %v5934 = vmul.f32 %v5791, %v5926
    %v5935 = vmul.f32 %v5792, %v5927
    %v5936 = vperm.slane %v5620, 2
    %v5937 = vperm.slane %v5620, 6
    %v5940 = vperm.slane %v5936, 2
    %v5941 = vperm.slane %v5937, 2
    %v5942 = vadd.f32 %v5928, %v5940
    %v5943 = vadd.f32 %v5929, %v5941
    %v5944 = vadd.f32 %v5930, %v5940
    %v5945 = vadd.f32 %v5931, %v5941
    %v5946 = vadd.f32 %v5932, %v5940
    %v5947 = vadd.f32 %v5933, %v5941
    %v5948 = vadd.f32 %v5934, %v5940
    %v5949 = vadd.f32 %v5935, %v5941
    %v5950 = vld [vmem:[%s10] sm:$0xff]
    %v5951 = vld [vmem:[%s10 + $0x8] sm:$0xf]
    %vm5952 = vcmask 244736
    %v5954 = vsel %vm5952, %v5950, 0
    %v5957 = vsel %vm5952, %v5951, 0
    %v5960 = vsel %vm5674, %v5948, 0
    %v5963 = vsel %vm5674, %v5949, 0
    %5965 = vmatpush.msra.mxu0 0.0
    %5966 = vmatpush.msra.mxu0 0.0
    %5967 = vmatpush.msra.mxu0 0.0
    %5968 = vmatpush.msra.mxu0 0.0
    %5969 = vmatpush.msra.mxu0 0.0
    %5970 = vmatpush.msra.mxu0 0.0
    %5971 = vmatpush.msra.mxu0 0.0
    %5972 = vmatpush.msra.mxu0 0.0
    %5973 = vmatpush.msra.mxu0 0.0
    %5974 = vmatpush.msra.mxu0 0.0
    %5975 = vmatpush.msra.mxu0 0.0
    %5976 = vmatpush.msra.mxu0 0.0
    %5977 = vmatpush.msra.mxu0 %v5960
    %5978 = vmatpush.msra.mxu0 %v5946
    %5979 = vmatpush.msra.mxu0 %v5944
    %5980 = vmatpush.msra.mxu0 %v5942
    %5981 = vmatmul.f32.gmra.mxu0 %v5954
    %v5982 = vpop.f32.mrf.mxu0
    %v5983 = vadd.f32 0.0, %v5982
    %5984 = vmatmul.f32.gmra.mxu0 %v5957
    %v5985 = vpop.f32.mrf.mxu0
    %v5986 = vadd.f32 0.0, %v5985
    %5987 = vdwg.mxu0
    %5988 = vmatpush.msra.mxu0 0.0
    %5989 = vmatpush.msra.mxu0 0.0
    %5990 = vmatpush.msra.mxu0 0.0
    %5991 = vmatpush.msra.mxu0 0.0
    %5992 = vmatpush.msra.mxu0 0.0
    %5993 = vmatpush.msra.mxu0 0.0
    %5994 = vmatpush.msra.mxu0 0.0
    %5995 = vmatpush.msra.mxu0 0.0
    %5996 = vmatpush.msra.mxu0 0.0
    %5997 = vmatpush.msra.mxu0 0.0
    %5998 = vmatpush.msra.mxu0 0.0
    %5999 = vmatpush.msra.mxu0 0.0
    %6000 = vmatpush.msra.mxu0 %v5963
    %6001 = vmatpush.msra.mxu0 %v5947
    %6002 = vmatpush.msra.mxu0 %v5945
    %6003 = vmatpush.msra.mxu0 %v5943
    %6004 = vmatmul.f32.gmra.mxu0 %v5954
    %v6005 = vpop.f32.mrf.mxu0
    %v6006 = vadd.f32 0.0, %v6005
    %6007 = vmatmul.f32.gmra.mxu0 %v5957
    %v6008 = vpop.f32.mrf.mxu0
    %v6009 = vadd.f32 0.0, %v6008
    %6010 = vdwg.mxu0
    %v6011 = vld [vmem:[%s11] sm:$0xf]
    %v6012 = vld [vmem:[%s11 + $0x4] sm:$0xf]
    %v6013 = vld [vmem:[%s11 + $0x8] sm:$0xf]
    %v6014 = vld [vmem:[%s11 + $0xc] sm:$0xf]
    %v6015 = vld [vmem:[%s11 + $0x10] sm:$0xf]
    %v6016 = vld [vmem:[%s11 + $0x14] sm:$0xf]
    %v6017 = vld [vmem:[%s11 + $0x18] sm:$0xf]
    %v6018 = vld [vmem:[%s11 + $0x1c] sm:$0xf]
    %v6019 = vld [vmem:[%s11 + $0x20] sm:$0xf]
    %v6020 = vld [vmem:[%s11 + $0x24] sm:$0xf]
    %v6021 = vld [vmem:[%s11 + $0x28] sm:$0xf]
    %v6022 = vld [vmem:[%s11 + $0x2c] sm:$0xf]
    %v6023 = vld [vmem:[%s11 + $0x30] sm:$0xf]
    %v6024 = vld [vmem:[%s11 + $0x34] sm:$0xf]
    %v6025 = vld [vmem:[%s11 + $0x38] sm:$0xf]
    %v6026 = vld [vmem:[%s11 + $0x3c] sm:$0xf]
    %v6027 = vld [vmem:[%s11 + $0x40] sm:$0xf]
    %v6028 = vld [vmem:[%s11 + $0x44] sm:$0xf]
    %v6029 = vld [vmem:[%s11 + $0x48] sm:$0xf]
    %v6030 = vld [vmem:[%s11 + $0x4c] sm:$0xf]
    %v6031 = vunpack.c.l.bf16 %v6011
    %v6032 = vunpack.c.l.bf16 %v6012
    %v6033 = vunpack.c.l.bf16 %v6013
    %v6034 = vunpack.c.l.bf16 %v6014
    %v6035 = vunpack.c.l.bf16 %v6015
    %v6036 = vunpack.c.l.bf16 %v6016
    %v6037 = vunpack.c.l.bf16 %v6017
    %v6038 = vunpack.c.l.bf16 %v6018
    %v6039 = vunpack.c.l.bf16 %v6019
    %v6040 = vunpack.c.l.bf16 %v6020
    %v6041 = vunpack.c.l.bf16 %v6021
    %v6042 = vunpack.c.l.bf16 %v6022
    %v6043 = vunpack.c.l.bf16 %v6023
    %v6044 = vunpack.c.l.bf16 %v6024
    %v6045 = vunpack.c.l.bf16 %v6025
    %v6046 = vunpack.c.l.bf16 %v6026
    %v6047 = vunpack.c.l.bf16 %v6027
    %v6048 = vunpack.c.l.bf16 %v6028
    %v6049 = vunpack.c.l.bf16 %v6029
    %v6050 = vunpack.c.l.bf16 %v6030
    %s6051 = scalar_lea.vmem %s10, 16
    %v6052 = vld [vmem:[%s6051] sm:$0xff]
    %v6053 = vld [vmem:[%s6051 + $0x8] sm:$0xf]
    %v6055 = vsel %vm5952, %v6052, 0
    %v6058 = vsel %vm5952, %v6053, 0
    %6060 = vmatpush.msra.mxu0 0.0
    %6061 = vmatpush.msra.mxu0 0.0
    %6062 = vmatpush.msra.mxu0 0.0
    %6063 = vmatpush.msra.mxu0 0.0
    %6064 = vmatpush.msra.mxu0 0.0
    %6065 = vmatpush.msra.mxu0 0.0
    %6066 = vmatpush.msra.mxu0 0.0
    %6067 = vmatpush.msra.mxu0 0.0
    %6068 = vmatpush.msra.mxu0 0.0
    %6069 = vmatpush.msra.mxu0 0.0
    %6070 = vmatpush.msra.mxu0 0.0
    %6071 = vmatpush.msra.mxu0 0.0
    %6072 = vmatpush.msra.mxu0 %v5960
    %6073 = vmatpush.msra.mxu0 %v5946
    %6074 = vmatpush.msra.mxu0 %v5944
    %6075 = vmatpush.msra.mxu0 %v5942
    %6076 = vmatmul.f32.gmra.mxu0 %v6055
    %v6077 = vpop.f32.mrf.mxu0
    %v6078 = vadd.f32 0.0, %v6077
    %6079 = vmatmul.f32.gmra.mxu0 %v6058
    %v6080 = vpop.f32.mrf.mxu0
    %v6081 = vadd.f32 0.0, %v6080
    %6082 = vdwg.mxu0
    %6083 = vmatpush.msra.mxu0 0.0
    %6084 = vmatpush.msra.mxu0 0.0
    %6085 = vmatpush.msra.mxu0 0.0
    %6086 = vmatpush.msra.mxu0 0.0
    %6087 = vmatpush.msra.mxu0 0.0
    %6088 = vmatpush.msra.mxu0 0.0
    %6089 = vmatpush.msra.mxu0 0.0
    %6090 = vmatpush.msra.mxu0 0.0
    %6091 = vmatpush.msra.mxu0 0.0
    %6092 = vmatpush.msra.mxu0 0.0
    %6093 = vmatpush.msra.mxu0 0.0
    %6094 = vmatpush.msra.mxu0 0.0
    %6095 = vmatpush.msra.mxu0 %v5963
    %6096 = vmatpush.msra.mxu0 %v5947
    %6097 = vmatpush.msra.mxu0 %v5945
    %6098 = vmatpush.msra.mxu0 %v5943
    %6099 = vmatmul.f32.gmra.mxu0 %v6055
    %v6100 = vpop.f32.mrf.mxu0
    %v6101 = vadd.f32 0.0, %v6100
    %6102 = vmatmul.f32.gmra.mxu0 %v6058
    %v6103 = vpop.f32.mrf.mxu0
    %v6104 = vadd.f32 0.0, %v6103
    %6105 = vdwg.mxu0
    %s6106 = scalar_lea.vmem %s11, 80
    %v6107 = vld [vmem:[%s6106] sm:$0xf]
    %v6108 = vld [vmem:[%s6106 + $0x4] sm:$0xf]
    %v6109 = vld [vmem:[%s6106 + $0x8] sm:$0xf]
    %v6110 = vld [vmem:[%s6106 + $0xc] sm:$0xf]
    %v6111 = vld [vmem:[%s6106 + $0x10] sm:$0xf]
    %v6112 = vld [vmem:[%s6106 + $0x14] sm:$0xf]
    %v6113 = vld [vmem:[%s6106 + $0x18] sm:$0xf]
    %v6114 = vld [vmem:[%s6106 + $0x1c] sm:$0xf]
    %v6115 = vld [vmem:[%s6106 + $0x20] sm:$0xf]
    %v6116 = vld [vmem:[%s6106 + $0x24] sm:$0xf]
    %v6117 = vld [vmem:[%s6106 + $0x28] sm:$0xf]
    %v6118 = vld [vmem:[%s6106 + $0x2c] sm:$0xf]
    %v6119 = vld [vmem:[%s6106 + $0x30] sm:$0xf]
    %v6120 = vld [vmem:[%s6106 + $0x34] sm:$0xf]
    %v6121 = vld [vmem:[%s6106 + $0x38] sm:$0xf]
    %v6122 = vld [vmem:[%s6106 + $0x3c] sm:$0xf]
    %v6123 = vld [vmem:[%s6106 + $0x40] sm:$0xf]
    %v6124 = vld [vmem:[%s6106 + $0x44] sm:$0xf]
    %v6125 = vld [vmem:[%s6106 + $0x48] sm:$0xf]
    %v6126 = vld [vmem:[%s6106 + $0x4c] sm:$0xf]
    %v6127 = vunpack.c.l.bf16 %v6107
    %v6128 = vunpack.c.l.bf16 %v6108
    %v6129 = vunpack.c.l.bf16 %v6109
    %v6130 = vunpack.c.l.bf16 %v6110
    %v6131 = vunpack.c.l.bf16 %v6111
    %v6132 = vunpack.c.l.bf16 %v6112
    %v6133 = vunpack.c.l.bf16 %v6113
    %v6134 = vunpack.c.l.bf16 %v6114
    %v6135 = vunpack.c.l.bf16 %v6115
    %v6136 = vunpack.c.l.bf16 %v6116
    %v6137 = vunpack.c.l.bf16 %v6117
    %v6138 = vunpack.c.l.bf16 %v6118
    %v6139 = vunpack.c.l.bf16 %v6119
    %v6140 = vunpack.c.l.bf16 %v6120
    %v6141 = vunpack.c.l.bf16 %v6121
    %v6142 = vunpack.c.l.bf16 %v6122
    %v6143 = vunpack.c.l.bf16 %v6123
    %v6144 = vunpack.c.l.bf16 %v6124
    %v6145 = vunpack.c.l.bf16 %v6125
    %v6146 = vunpack.c.l.bf16 %v6126
    %v6148 = vsel %vm1098, %v6101, 0
    %v6151 = vsel %vm1098, %v6104, 0
    %6153 = vmatpush.msra.mxu0 %v6142
    %6154 = vmatpush.msra.mxu0 %v6141
    %6155 = vmatpush.msra.mxu0 %v6140
    %6156 = vmatpush.msra.mxu0 %v6139
    %6157 = vmatpush.msra.mxu0 %v6138
    %6158 = vmatpush.msra.mxu0 %v6137
    %6159 = vmatpush.msra.mxu0 %v6136
    %6160 = vmatpush.msra.mxu0 %v6135
    %6161 = vmatpush.msra.mxu0 %v6134
    %6162 = vmatpush.msra.mxu0 %v6133
    %6163 = vmatpush.msra.mxu0 %v6132
    %6164 = vmatpush.msra.mxu0 %v6131
    %6165 = vmatpush.msra.mxu0 %v6130
    %6166 = vmatpush.msra.mxu0 %v6129
    %6167 = vmatpush.msra.mxu0 %v6128
    %6168 = vmatpush.msra.mxu0 %v6127
    %6169 = vmatmul.f32.gmra.mxu0 %v6078
    %v6170 = vpop.f32.mrf.mxu0
    %v6171 = vadd.f32 0.0, %v6170
    %6172 = vmatmul.f32.gmra.mxu0 %v6081
    %v6173 = vpop.f32.mrf.mxu0
    %v6174 = vadd.f32 0.0, %v6173
    %6175 = vdwg.mxu0
    %6176 = vmatpush.msra.mxu0 0.0
    %6177 = vmatpush.msra.mxu0 0.0
    %6178 = vmatpush.msra.mxu0 0.0
    %6179 = vmatpush.msra.mxu0 0.0
    %6180 = vmatpush.msra.mxu0 0.0
    %6181 = vmatpush.msra.mxu0 0.0
    %6182 = vmatpush.msra.mxu0 0.0
    %6183 = vmatpush.msra.mxu0 0.0
    %6184 = vmatpush.msra.mxu0 0.0
    %6185 = vmatpush.msra.mxu0 0.0
    %6186 = vmatpush.msra.mxu0 0.0
    %6187 = vmatpush.msra.mxu0 0.0
    %6188 = vmatpush.msra.mxu0 %v6146
    %6189 = vmatpush.msra.mxu0 %v6145
    %6190 = vmatpush.msra.mxu0 %v6144
    %6191 = vmatpush.msra.mxu0 %v6143
    %6192 = vmatmul.f32.gmra.mxu0 %v6148
    %v6193 = vpop.f32.mrf.mxu0
    %v6194 = vadd.f32 %v6171, %v6193
    %6195 = vmatmul.f32.gmra.mxu0 %v6151
    %v6196 = vpop.f32.mrf.mxu0
    %v6197 = vadd.f32 %v6174, %v6196
    %6198 = vdwg.mxu0
    %v6200 = vsel %vm1098, %v6006, 0
    %v6203 = vsel %vm1098, %v6009, 0
    %6205 = vmatpush.msra.mxu0 %v6046
    %6206 = vmatpush.msra.mxu0 %v6045
    %6207 = vmatpush.msra.mxu0 %v6044
    %6208 = vmatpush.msra.mxu0 %v6043
    %6209 = vmatpush.msra.mxu0 %v6042
    %6210 = vmatpush.msra.mxu0 %v6041
    %6211 = vmatpush.msra.mxu0 %v6040
    %6212 = vmatpush.msra.mxu0 %v6039
    %6213 = vmatpush.msra.mxu0 %v6038
    %6214 = vmatpush.msra.mxu0 %v6037
    %6215 = vmatpush.msra.mxu0 %v6036
    %6216 = vmatpush.msra.mxu0 %v6035
    %6217 = vmatpush.msra.mxu0 %v6034
    %6218 = vmatpush.msra.mxu0 %v6033
    %6219 = vmatpush.msra.mxu0 %v6032
    %6220 = vmatpush.msra.mxu0 %v6031
    %6221 = vmatmul.f32.gmra.mxu0 %v5983
    %v6222 = vpop.f32.mrf.mxu0
    %v6223 = vadd.f32 %v6194, %v6222
    %6224 = vmatmul.f32.gmra.mxu0 %v5986
    %v6225 = vpop.f32.mrf.mxu0
    %v6226 = vadd.f32 %v6197, %v6225
    %6227 = vdwg.mxu0
    %6228 = vmatpush.msra.mxu0 0.0
    %6229 = vmatpush.msra.mxu0 0.0
    %6230 = vmatpush.msra.mxu0 0.0
    %6231 = vmatpush.msra.mxu0 0.0
    %6232 = vmatpush.msra.mxu0 0.0
    %6233 = vmatpush.msra.mxu0 0.0
    %6234 = vmatpush.msra.mxu0 0.0
    %6235 = vmatpush.msra.mxu0 0.0
    %6236 = vmatpush.msra.mxu0 0.0
    %6237 = vmatpush.msra.mxu0 0.0
    %6238 = vmatpush.msra.mxu0 0.0
    %6239 = vmatpush.msra.mxu0 0.0
    %6240 = vmatpush.msra.mxu0 %v6050
    %6241 = vmatpush.msra.mxu0 %v6049
    %6242 = vmatpush.msra.mxu0 %v6048
    %6243 = vmatpush.msra.mxu0 %v6047
    %6244 = vmatmul.f32.gmra.mxu0 %v6200
    %v6245 = vpop.f32.mrf.mxu0
    %v6246 = vadd.f32 %v6223, %v6245
    %6247 = vmatmul.f32.gmra.mxu0 %v6203
    %v6248 = vpop.f32.mrf.mxu0
    %v6249 = vadd.f32 %v6226, %v6248
    %6250 = vdwg.mxu0
    %s6251 = scalar_lea.vmem %s10, 32
    %v6252 = vld [vmem:[%s6251] sm:$0xff]
    %v6253 = vld [vmem:[%s6251 + $0x8] sm:$0xf]
    %v6255 = vsel %vm5952, %v6252, 0
    %v6258 = vsel %vm5952, %v6253, 0
    %6260 = vmatpush.msra.mxu0 0.0
    %6261 = vmatpush.msra.mxu0 0.0
    %6262 = vmatpush.msra.mxu0 0.0
    %6263 = vmatpush.msra.mxu0 0.0
    %6264 = vmatpush.msra.mxu0 0.0
    %6265 = vmatpush.msra.mxu0 0.0
    %6266 = vmatpush.msra.mxu0 0.0
    %6267 = vmatpush.msra.mxu0 0.0
    %6268 = vmatpush.msra.mxu0 0.0
    %6269 = vmatpush.msra.mxu0 0.0
    %6270 = vmatpush.msra.mxu0 0.0
    %6271 = vmatpush.msra.mxu0 0.0
    %6272 = vmatpush.msra.mxu0 %v5960
    %6273 = vmatpush.msra.mxu0 %v5946
    %6274 = vmatpush.msra.mxu0 %v5944
    %6275 = vmatpush.msra.mxu0 %v5942
    %6276 = vmatmul.f32.gmra.mxu0 %v6255
    %v6277 = vpop.f32.mrf.mxu0
    %v6278 = vadd.f32 0.0, %v6277
    %6279 = vmatmul.f32.gmra.mxu0 %v6258
    %v6280 = vpop.f32.mrf.mxu0
    %v6281 = vadd.f32 0.0, %v6280
    %6282 = vdwg.mxu0
    %6283 = vmatpush.msra.mxu0 0.0
    %6284 = vmatpush.msra.mxu0 0.0
    %6285 = vmatpush.msra.mxu0 0.0
    %6286 = vmatpush.msra.mxu0 0.0
    %6287 = vmatpush.msra.mxu0 0.0
    %6288 = vmatpush.msra.mxu0 0.0
    %6289 = vmatpush.msra.mxu0 0.0
    %6290 = vmatpush.msra.mxu0 0.0
    %6291 = vmatpush.msra.mxu0 0.0
    %6292 = vmatpush.msra.mxu0 0.0
    %6293 = vmatpush.msra.mxu0 0.0
    %6294 = vmatpush.msra.mxu0 0.0
    %6295 = vmatpush.msra.mxu0 %v5963
    %6296 = vmatpush.msra.mxu0 %v5947
    %6297 = vmatpush.msra.mxu0 %v5945
    %6298 = vmatpush.msra.mxu0 %v5943
    %6299 = vmatmul.f32.gmra.mxu0 %v6255
    %v6300 = vpop.f32.mrf.mxu0
    %v6301 = vadd.f32 0.0, %v6300
    %6302 = vmatmul.f32.gmra.mxu0 %v6258
    %v6303 = vpop.f32.mrf.mxu0
    %v6304 = vadd.f32 0.0, %v6303
    %6305 = vdwg.mxu0
    %s6306 = scalar_lea.vmem %s11, 160
    %v6307 = vld [vmem:[%s6306] sm:$0xf]
    %v6308 = vld [vmem:[%s6306 + $0x4] sm:$0xf]
    %v6309 = vld [vmem:[%s6306 + $0x8] sm:$0xf]
    %v6310 = vld [vmem:[%s6306 + $0xc] sm:$0xf]
    %v6311 = vld [vmem:[%s6306 + $0x10] sm:$0xf]
    %v6312 = vld [vmem:[%s6306 + $0x14] sm:$0xf]
    %v6313 = vld [vmem:[%s6306 + $0x18] sm:$0xf]
    %v6314 = vld [vmem:[%s6306 + $0x1c] sm:$0xf]
    %v6315 = vld [vmem:[%s6306 + $0x20] sm:$0xf]
    %v6316 = vld [vmem:[%s6306 + $0x24] sm:$0xf]
    %v6317 = vld [vmem:[%s6306 + $0x28] sm:$0xf]
    %v6318 = vld [vmem:[%s6306 + $0x2c] sm:$0xf]
    %v6319 = vld [vmem:[%s6306 + $0x30] sm:$0xf]
    %v6320 = vld [vmem:[%s6306 + $0x34] sm:$0xf]
    %v6321 = vld [vmem:[%s6306 + $0x38] sm:$0xf]
    %v6322 = vld [vmem:[%s6306 + $0x3c] sm:$0xf]
    %v6323 = vld [vmem:[%s6306 + $0x40] sm:$0xf]
    %v6324 = vld [vmem:[%s6306 + $0x44] sm:$0xf]
    %v6325 = vld [vmem:[%s6306 + $0x48] sm:$0xf]
    %v6326 = vld [vmem:[%s6306 + $0x4c] sm:$0xf]
    %v6327 = vunpack.c.l.bf16 %v6307
    %v6328 = vunpack.c.l.bf16 %v6308
    %v6329 = vunpack.c.l.bf16 %v6309
    %v6330 = vunpack.c.l.bf16 %v6310
    %v6331 = vunpack.c.l.bf16 %v6311
    %v6332 = vunpack.c.l.bf16 %v6312
    %v6333 = vunpack.c.l.bf16 %v6313
    %v6334 = vunpack.c.l.bf16 %v6314
    %v6335 = vunpack.c.l.bf16 %v6315
    %v6336 = vunpack.c.l.bf16 %v6316
    %v6337 = vunpack.c.l.bf16 %v6317
    %v6338 = vunpack.c.l.bf16 %v6318
    %v6339 = vunpack.c.l.bf16 %v6319
    %v6340 = vunpack.c.l.bf16 %v6320
    %v6341 = vunpack.c.l.bf16 %v6321
    %v6342 = vunpack.c.l.bf16 %v6322
    %v6343 = vunpack.c.l.bf16 %v6323
    %v6344 = vunpack.c.l.bf16 %v6324
    %v6345 = vunpack.c.l.bf16 %v6325
    %v6346 = vunpack.c.l.bf16 %v6326
    %v6348 = vsel %vm1098, %v6301, 0
    %v6351 = vsel %vm1098, %v6304, 0
    %6353 = vmatpush.msra.mxu0 %v6342
    %6354 = vmatpush.msra.mxu0 %v6341
    %6355 = vmatpush.msra.mxu0 %v6340
    %6356 = vmatpush.msra.mxu0 %v6339
    %6357 = vmatpush.msra.mxu0 %v6338
    %6358 = vmatpush.msra.mxu0 %v6337
    %6359 = vmatpush.msra.mxu0 %v6336
    %6360 = vmatpush.msra.mxu0 %v6335
    %6361 = vmatpush.msra.mxu0 %v6334
    %6362 = vmatpush.msra.mxu0 %v6333
    %6363 = vmatpush.msra.mxu0 %v6332
    %6364 = vmatpush.msra.mxu0 %v6331
    %6365 = vmatpush.msra.mxu0 %v6330
    %6366 = vmatpush.msra.mxu0 %v6329
    %6367 = vmatpush.msra.mxu0 %v6328
    %6368 = vmatpush.msra.mxu0 %v6327
    %6369 = vmatmul.f32.gmra.mxu0 %v6278
    %v6370 = vpop.f32.mrf.mxu0
    %v6371 = vadd.f32 0.0, %v6370
    %6372 = vmatmul.f32.gmra.mxu0 %v6281
    %v6373 = vpop.f32.mrf.mxu0
    %v6374 = vadd.f32 0.0, %v6373
    %6375 = vdwg.mxu0
    %6376 = vmatpush.msra.mxu0 0.0
    %6377 = vmatpush.msra.mxu0 0.0
    %6378 = vmatpush.msra.mxu0 0.0
    %6379 = vmatpush.msra.mxu0 0.0
    %6380 = vmatpush.msra.mxu0 0.0
    %6381 = vmatpush.msra.mxu0 0.0
    %6382 = vmatpush.msra.mxu0 0.0
    %6383 = vmatpush.msra.mxu0 0.0
    %6384 = vmatpush.msra.mxu0 0.0
    %6385 = vmatpush.msra.mxu0 0.0
    %6386 = vmatpush.msra.mxu0 0.0
    %6387 = vmatpush.msra.mxu0 0.0
    %6388 = vmatpush.msra.mxu0 %v6346
    %6389 = vmatpush.msra.mxu0 %v6345
    %6390 = vmatpush.msra.mxu0 %v6344
    %6391 = vmatpush.msra.mxu0 %v6343
    %6392 = vmatmul.f32.gmra.mxu0 %v6348
    %v6393 = vpop.f32.mrf.mxu0
    %v6394 = vadd.f32 %v6371, %v6393
    %6395 = vmatmul.f32.gmra.mxu0 %v6351
    %v6396 = vpop.f32.mrf.mxu0
    %v6397 = vadd.f32 %v6374, %v6396
    %6398 = vdwg.mxu0
    %v6399 = vadd.f32 %v6246, %v6394
    %v6400 = vadd.f32 %v6249, %v6397
    %s6401 = scalar_lea.vmem %s10, 48
    %v6402 = vld [vmem:[%s6401] sm:$0xff]
    %v6403 = vld [vmem:[%s6401 + $0x8] sm:$0xf]
    %v6405 = vsel %vm5952, %v6402, 0
    %v6408 = vsel %vm5952, %v6403, 0
    %6410 = vmatpush.msra.mxu0 0.0
    %6411 = vmatpush.msra.mxu0 0.0
    %6412 = vmatpush.msra.mxu0 0.0
    %6413 = vmatpush.msra.mxu0 0.0
    %6414 = vmatpush.msra.mxu0 0.0
    %6415 = vmatpush.msra.mxu0 0.0
    %6416 = vmatpush.msra.mxu0 0.0
    %6417 = vmatpush.msra.mxu0 0.0
    %6418 = vmatpush.msra.mxu0 0.0
    %6419 = vmatpush.msra.mxu0 0.0
    %6420 = vmatpush.msra.mxu0 0.0
    %6421 = vmatpush.msra.mxu0 0.0
    %6422 = vmatpush.msra.mxu0 %v5960
    %6423 = vmatpush.msra.mxu0 %v5946
    %6424 = vmatpush.msra.mxu0 %v5944
    %6425 = vmatpush.msra.mxu0 %v5942
    %6426 = vmatmul.f32.gmra.mxu0 %v6405
    %v6427 = vpop.f32.mrf.mxu0
    %v6428 = vadd.f32 0.0, %v6427
    %6429 = vmatmul.f32.gmra.mxu0 %v6408
    %v6430 = vpop.f32.mrf.mxu0
    %v6431 = vadd.f32 0.0, %v6430
    %6432 = vdwg.mxu0
    %6433 = vmatpush.msra.mxu0 0.0
    %6434 = vmatpush.msra.mxu0 0.0
    %6435 = vmatpush.msra.mxu0 0.0
    %6436 = vmatpush.msra.mxu0 0.0
    %6437 = vmatpush.msra.mxu0 0.0
    %6438 = vmatpush.msra.mxu0 0.0
    %6439 = vmatpush.msra.mxu0 0.0
    %6440 = vmatpush.msra.mxu0 0.0
    %6441 = vmatpush.msra.mxu0 0.0
    %6442 = vmatpush.msra.mxu0 0.0
    %6443 = vmatpush.msra.mxu0 0.0
    %6444 = vmatpush.msra.mxu0 0.0
    %6445 = vmatpush.msra.mxu0 %v5963
    %6446 = vmatpush.msra.mxu0 %v5947
    %6447 = vmatpush.msra.mxu0 %v5945
    %6448 = vmatpush.msra.mxu0 %v5943
    %6449 = vmatmul.f32.gmra.mxu0 %v6405
    %v6450 = vpop.f32.mrf.mxu0
    %v6451 = vadd.f32 0.0, %v6450
    %6452 = vmatmul.f32.gmra.mxu0 %v6408
    %v6453 = vpop.f32.mrf.mxu0
    %v6454 = vadd.f32 0.0, %v6453
    %6455 = vdwg.mxu0
    %s6456 = scalar_lea.vmem %s11, 240
    %v6457 = vld [vmem:[%s6456] sm:$0xf]
    %v6458 = vld [vmem:[%s6456 + $0x4] sm:$0xf]
    %v6459 = vld [vmem:[%s6456 + $0x8] sm:$0xf]
    %v6460 = vld [vmem:[%s6456 + $0xc] sm:$0xf]
    %v6461 = vld [vmem:[%s6456 + $0x10] sm:$0xf]
    %v6462 = vld [vmem:[%s6456 + $0x14] sm:$0xf]
    %v6463 = vld [vmem:[%s6456 + $0x18] sm:$0xf]
    %v6464 = vld [vmem:[%s6456 + $0x1c] sm:$0xf]
    %v6465 = vld [vmem:[%s6456 + $0x20] sm:$0xf]
    %v6466 = vld [vmem:[%s6456 + $0x24] sm:$0xf]
    %v6467 = vld [vmem:[%s6456 + $0x28] sm:$0xf]
    %v6468 = vld [vmem:[%s6456 + $0x2c] sm:$0xf]
    %v6469 = vld [vmem:[%s6456 + $0x30] sm:$0xf]
    %v6470 = vld [vmem:[%s6456 + $0x34] sm:$0xf]
    %v6471 = vld [vmem:[%s6456 + $0x38] sm:$0xf]
    %v6472 = vld [vmem:[%s6456 + $0x3c] sm:$0xf]
    %v6473 = vld [vmem:[%s6456 + $0x40] sm:$0xf]
    %v6474 = vld [vmem:[%s6456 + $0x44] sm:$0xf]
    %v6475 = vld [vmem:[%s6456 + $0x48] sm:$0xf]
    %v6476 = vld [vmem:[%s6456 + $0x4c] sm:$0xf]
    %v6477 = vunpack.c.l.bf16 %v6457
    %v6478 = vunpack.c.l.bf16 %v6458
    %v6479 = vunpack.c.l.bf16 %v6459
    %v6480 = vunpack.c.l.bf16 %v6460
    %v6481 = vunpack.c.l.bf16 %v6461
    %v6482 = vunpack.c.l.bf16 %v6462
    %v6483 = vunpack.c.l.bf16 %v6463
    %v6484 = vunpack.c.l.bf16 %v6464
    %v6485 = vunpack.c.l.bf16 %v6465
    %v6486 = vunpack.c.l.bf16 %v6466
    %v6487 = vunpack.c.l.bf16 %v6467
    %v6488 = vunpack.c.l.bf16 %v6468
    %v6489 = vunpack.c.l.bf16 %v6469
    %v6490 = vunpack.c.l.bf16 %v6470
    %v6491 = vunpack.c.l.bf16 %v6471
    %v6492 = vunpack.c.l.bf16 %v6472
    %v6493 = vunpack.c.l.bf16 %v6473
    %v6494 = vunpack.c.l.bf16 %v6474
    %v6495 = vunpack.c.l.bf16 %v6475
    %v6496 = vunpack.c.l.bf16 %v6476
    %v6498 = vsel %vm1098, %v6451, 0
    %v6501 = vsel %vm1098, %v6454, 0
    %6503 = vmatpush.msra.mxu0 %v6492
    %6504 = vmatpush.msra.mxu0 %v6491
    %6505 = vmatpush.msra.mxu0 %v6490
    %6506 = vmatpush.msra.mxu0 %v6489
    %6507 = vmatpush.msra.mxu0 %v6488
    %6508 = vmatpush.msra.mxu0 %v6487
    %6509 = vmatpush.msra.mxu0 %v6486
    %6510 = vmatpush.msra.mxu0 %v6485
    %6511 = vmatpush.msra.mxu0 %v6484
    %6512 = vmatpush.msra.mxu0 %v6483
    %6513 = vmatpush.msra.mxu0 %v6482
    %6514 = vmatpush.msra.mxu0 %v6481
    %6515 = vmatpush.msra.mxu0 %v6480
    %6516 = vmatpush.msra.mxu0 %v6479
    %6517 = vmatpush.msra.mxu0 %v6478
    %6518 = vmatpush.msra.mxu0 %v6477
    %6519 = vmatmul.f32.gmra.mxu0 %v6428
    %v6520 = vpop.f32.mrf.mxu0
    %v6521 = vadd.f32 0.0, %v6520
    %6522 = vmatmul.f32.gmra.mxu0 %v6431
    %v6523 = vpop.f32.mrf.mxu0
    %v6524 = vadd.f32 0.0, %v6523
    %6525 = vdwg.mxu0
    %6526 = vmatpush.msra.mxu0 0.0
    %6527 = vmatpush.msra.mxu0 0.0
    %6528 = vmatpush.msra.mxu0 0.0
    %6529 = vmatpush.msra.mxu0 0.0
    %6530 = vmatpush.msra.mxu0 0.0
    %6531 = vmatpush.msra.mxu0 0.0
    %6532 = vmatpush.msra.mxu0 0.0
    %6533 = vmatpush.msra.mxu0 0.0
    %6534 = vmatpush.msra.mxu0 0.0
    %6535 = vmatpush.msra.mxu0 0.0
    %6536 = vmatpush.msra.mxu0 0.0
    %6537 = vmatpush.msra.mxu0 0.0
    %6538 = vmatpush.msra.mxu0 %v6496
    %6539 = vmatpush.msra.mxu0 %v6495
    %6540 = vmatpush.msra.mxu0 %v6494
    %6541 = vmatpush.msra.mxu0 %v6493
    %6542 = vmatmul.f32.gmra.mxu0 %v6498
    %v6543 = vpop.f32.mrf.mxu0
    %v6544 = vadd.f32 %v6521, %v6543
    %6545 = vmatmul.f32.gmra.mxu0 %v6501
    %v6546 = vpop.f32.mrf.mxu0
    %v6547 = vadd.f32 %v6524, %v6546
    %6548 = vdwg.mxu0
    %v6549 = vadd.f32 %v6399, %v6544
    %v6550 = vadd.f32 %v6400, %v6547
    %s6551 = scalar_lea.vmem %s10, 64
    %v6552 = vld [vmem:[%s6551] sm:$0xff]
    %v6553 = vld [vmem:[%s6551 + $0x8] sm:$0xf]
    %v6555 = vsel %vm5952, %v6552, 0
    %v6558 = vsel %vm5952, %v6553, 0
    %6560 = vmatpush.msra.mxu0 0.0
    %6561 = vmatpush.msra.mxu0 0.0
    %6562 = vmatpush.msra.mxu0 0.0
    %6563 = vmatpush.msra.mxu0 0.0
    %6564 = vmatpush.msra.mxu0 0.0
    %6565 = vmatpush.msra.mxu0 0.0
    %6566 = vmatpush.msra.mxu0 0.0
    %6567 = vmatpush.msra.mxu0 0.0
    %6568 = vmatpush.msra.mxu0 0.0
    %6569 = vmatpush.msra.mxu0 0.0
    %6570 = vmatpush.msra.mxu0 0.0
    %6571 = vmatpush.msra.mxu0 0.0
    %6572 = vmatpush.msra.mxu0 %v5960
    %6573 = vmatpush.msra.mxu0 %v5946
    %6574 = vmatpush.msra.mxu0 %v5944
    %6575 = vmatpush.msra.mxu0 %v5942
    %6576 = vmatmul.f32.gmra.mxu0 %v6555
    %v6577 = vpop.f32.mrf.mxu0
    %v6578 = vadd.f32 0.0, %v6577
    %6579 = vmatmul.f32.gmra.mxu0 %v6558
    %v6580 = vpop.f32.mrf.mxu0
    %v6581 = vadd.f32 0.0, %v6580
    %6582 = vdwg.mxu0
    %6583 = vmatpush.msra.mxu0 0.0
    %6584 = vmatpush.msra.mxu0 0.0
    %6585 = vmatpush.msra.mxu0 0.0
    %6586 = vmatpush.msra.mxu0 0.0
    %6587 = vmatpush.msra.mxu0 0.0
    %6588 = vmatpush.msra.mxu0 0.0
    %6589 = vmatpush.msra.mxu0 0.0
    %6590 = vmatpush.msra.mxu0 0.0
    %6591 = vmatpush.msra.mxu0 0.0
    %6592 = vmatpush.msra.mxu0 0.0
    %6593 = vmatpush.msra.mxu0 0.0
    %6594 = vmatpush.msra.mxu0 0.0
    %6595 = vmatpush.msra.mxu0 %v5963
    %6596 = vmatpush.msra.mxu0 %v5947
    %6597 = vmatpush.msra.mxu0 %v5945
    %6598 = vmatpush.msra.mxu0 %v5943
    %6599 = vmatmul.f32.gmra.mxu0 %v6555
    %v6600 = vpop.f32.mrf.mxu0
    %v6601 = vadd.f32 0.0, %v6600
    %6602 = vmatmul.f32.gmra.mxu0 %v6558
    %v6603 = vpop.f32.mrf.mxu0
    %v6604 = vadd.f32 0.0, %v6603
    %6605 = vdwg.mxu0
    %s6606 = scalar_lea.vmem %s11, 320
    %v6607 = vld [vmem:[%s6606] sm:$0xf]
    %v6608 = vld [vmem:[%s6606 + $0x4] sm:$0xf]
    %v6609 = vld [vmem:[%s6606 + $0x8] sm:$0xf]
    %v6610 = vld [vmem:[%s6606 + $0xc] sm:$0xf]
    %v6611 = vld [vmem:[%s6606 + $0x10] sm:$0xf]
    %v6612 = vld [vmem:[%s6606 + $0x14] sm:$0xf]
    %v6613 = vld [vmem:[%s6606 + $0x18] sm:$0xf]
    %v6614 = vld [vmem:[%s6606 + $0x1c] sm:$0xf]
    %v6615 = vld [vmem:[%s6606 + $0x20] sm:$0xf]
    %v6616 = vld [vmem:[%s6606 + $0x24] sm:$0xf]
    %v6617 = vld [vmem:[%s6606 + $0x28] sm:$0xf]
    %v6618 = vld [vmem:[%s6606 + $0x2c] sm:$0xf]
    %v6619 = vld [vmem:[%s6606 + $0x30] sm:$0xf]
    %v6620 = vld [vmem:[%s6606 + $0x34] sm:$0xf]
    %v6621 = vld [vmem:[%s6606 + $0x38] sm:$0xf]
    %v6622 = vld [vmem:[%s6606 + $0x3c] sm:$0xf]
    %v6623 = vld [vmem:[%s6606 + $0x40] sm:$0xf]
    %v6624 = vld [vmem:[%s6606 + $0x44] sm:$0xf]
    %v6625 = vld [vmem:[%s6606 + $0x48] sm:$0xf]
    %v6626 = vld [vmem:[%s6606 + $0x4c] sm:$0xf]
    %v6627 = vunpack.c.l.bf16 %v6607
    %v6628 = vunpack.c.l.bf16 %v6608
    %v6629 = vunpack.c.l.bf16 %v6609
    %v6630 = vunpack.c.l.bf16 %v6610
    %v6631 = vunpack.c.l.bf16 %v6611
    %v6632 = vunpack.c.l.bf16 %v6612
    %v6633 = vunpack.c.l.bf16 %v6613
    %v6634 = vunpack.c.l.bf16 %v6614
    %v6635 = vunpack.c.l.bf16 %v6615
    %v6636 = vunpack.c.l.bf16 %v6616
    %v6637 = vunpack.c.l.bf16 %v6617
    %v6638 = vunpack.c.l.bf16 %v6618
    %v6639 = vunpack.c.l.bf16 %v6619
    %v6640 = vunpack.c.l.bf16 %v6620
    %v6641 = vunpack.c.l.bf16 %v6621
    %v6642 = vunpack.c.l.bf16 %v6622
    %v6643 = vunpack.c.l.bf16 %v6623
    %v6644 = vunpack.c.l.bf16 %v6624
    %v6645 = vunpack.c.l.bf16 %v6625
    %v6646 = vunpack.c.l.bf16 %v6626
    %v6648 = vsel %vm1098, %v6601, 0
    %v6651 = vsel %vm1098, %v6604, 0
    %6653 = vmatpush.msra.mxu0 %v6642
    %6654 = vmatpush.msra.mxu0 %v6641
    %6655 = vmatpush.msra.mxu0 %v6640
    %6656 = vmatpush.msra.mxu0 %v6639
    %6657 = vmatpush.msra.mxu0 %v6638
    %6658 = vmatpush.msra.mxu0 %v6637
    %6659 = vmatpush.msra.mxu0 %v6636
    %6660 = vmatpush.msra.mxu0 %v6635
    %6661 = vmatpush.msra.mxu0 %v6634
    %6662 = vmatpush.msra.mxu0 %v6633
    %6663 = vmatpush.msra.mxu0 %v6632
    %6664 = vmatpush.msra.mxu0 %v6631
    %6665 = vmatpush.msra.mxu0 %v6630
    %6666 = vmatpush.msra.mxu0 %v6629
    %6667 = vmatpush.msra.mxu0 %v6628
    %6668 = vmatpush.msra.mxu0 %v6627
    %6669 = vmatmul.f32.gmra.mxu0 %v6578
    %v6670 = vpop.f32.mrf.mxu0
    %v6671 = vadd.f32 0.0, %v6670
    %6672 = vmatmul.f32.gmra.mxu0 %v6581
    %v6673 = vpop.f32.mrf.mxu0
    %v6674 = vadd.f32 0.0, %v6673
    %6675 = vdwg.mxu0
    %6676 = vmatpush.msra.mxu0 0.0
    %6677 = vmatpush.msra.mxu0 0.0
    %6678 = vmatpush.msra.mxu0 0.0
    %6679 = vmatpush.msra.mxu0 0.0
    %6680 = vmatpush.msra.mxu0 0.0
    %6681 = vmatpush.msra.mxu0 0.0
    %6682 = vmatpush.msra.mxu0 0.0
    %6683 = vmatpush.msra.mxu0 0.0
    %6684 = vmatpush.msra.mxu0 0.0
    %6685 = vmatpush.msra.mxu0 0.0
    %6686 = vmatpush.msra.mxu0 0.0
    %6687 = vmatpush.msra.mxu0 0.0
    %6688 = vmatpush.msra.mxu0 %v6646
    %6689 = vmatpush.msra.mxu0 %v6645
    %6690 = vmatpush.msra.mxu0 %v6644
    %6691 = vmatpush.msra.mxu0 %v6643
    %6692 = vmatmul.f32.gmra.mxu0 %v6648
    %v6693 = vpop.f32.mrf.mxu0
    %v6694 = vadd.f32 %v6671, %v6693
    %6695 = vmatmul.f32.gmra.mxu0 %v6651
    %v6696 = vpop.f32.mrf.mxu0
    %v6697 = vadd.f32 %v6674, %v6696
    %6698 = vdwg.mxu0
    %v6699 = vadd.f32 %v6549, %v6694
    %v6700 = vadd.f32 %v6550, %v6697
    %s6701 = scalar_lea.vmem %s10, 80
    %v6702 = vld [vmem:[%s6701] sm:$0xff]
    %v6703 = vld [vmem:[%s6701 + $0x8] sm:$0xf]
    %v6705 = vsel %vm5952, %v6702, 0
    %v6708 = vsel %vm5952, %v6703, 0
    %6710 = vmatpush.msra.mxu0 0.0
    %6711 = vmatpush.msra.mxu0 0.0
    %6712 = vmatpush.msra.mxu0 0.0
    %6713 = vmatpush.msra.mxu0 0.0
    %6714 = vmatpush.msra.mxu0 0.0
    %6715 = vmatpush.msra.mxu0 0.0
    %6716 = vmatpush.msra.mxu0 0.0
    %6717 = vmatpush.msra.mxu0 0.0
    %6718 = vmatpush.msra.mxu0 0.0
    %6719 = vmatpush.msra.mxu0 0.0
    %6720 = vmatpush.msra.mxu0 0.0
    %6721 = vmatpush.msra.mxu0 0.0
    %6722 = vmatpush.msra.mxu0 %v5960
    %6723 = vmatpush.msra.mxu0 %v5946
    %6724 = vmatpush.msra.mxu0 %v5944
    %6725 = vmatpush.msra.mxu0 %v5942
    %6726 = vmatmul.f32.gmra.mxu0 %v6705
    %v6727 = vpop.f32.mrf.mxu0
    %v6728 = vadd.f32 0.0, %v6727
    %6729 = vmatmul.f32.gmra.mxu0 %v6708
    %v6730 = vpop.f32.mrf.mxu0
    %v6731 = vadd.f32 0.0, %v6730
    %6732 = vdwg.mxu0
    %6733 = vmatpush.msra.mxu0 0.0
    %6734 = vmatpush.msra.mxu0 0.0
    %6735 = vmatpush.msra.mxu0 0.0
    %6736 = vmatpush.msra.mxu0 0.0
    %6737 = vmatpush.msra.mxu0 0.0
    %6738 = vmatpush.msra.mxu0 0.0
    %6739 = vmatpush.msra.mxu0 0.0
    %6740 = vmatpush.msra.mxu0 0.0
    %6741 = vmatpush.msra.mxu0 0.0
    %6742 = vmatpush.msra.mxu0 0.0
    %6743 = vmatpush.msra.mxu0 0.0
    %6744 = vmatpush.msra.mxu0 0.0
    %6745 = vmatpush.msra.mxu0 %v5963
    %6746 = vmatpush.msra.mxu0 %v5947
    %6747 = vmatpush.msra.mxu0 %v5945
    %6748 = vmatpush.msra.mxu0 %v5943
    %6749 = vmatmul.f32.gmra.mxu0 %v6705
    %v6750 = vpop.f32.mrf.mxu0
    %v6751 = vadd.f32 0.0, %v6750
    %6752 = vmatmul.f32.gmra.mxu0 %v6708
    %v6753 = vpop.f32.mrf.mxu0
    %v6754 = vadd.f32 0.0, %v6753
    %6755 = vdwg.mxu0
    %s6756 = scalar_lea.vmem %s11, 400
    %v6757 = vld [vmem:[%s6756] sm:$0xf]
    %v6758 = vld [vmem:[%s6756 + $0x4] sm:$0xf]
    %v6759 = vld [vmem:[%s6756 + $0x8] sm:$0xf]
    %v6760 = vld [vmem:[%s6756 + $0xc] sm:$0xf]
    %v6761 = vld [vmem:[%s6756 + $0x10] sm:$0xf]
    %v6762 = vld [vmem:[%s6756 + $0x14] sm:$0xf]
    %v6763 = vld [vmem:[%s6756 + $0x18] sm:$0xf]
    %v6764 = vld [vmem:[%s6756 + $0x1c] sm:$0xf]
    %v6765 = vld [vmem:[%s6756 + $0x20] sm:$0xf]
    %v6766 = vld [vmem:[%s6756 + $0x24] sm:$0xf]
    %v6767 = vld [vmem:[%s6756 + $0x28] sm:$0xf]
    %v6768 = vld [vmem:[%s6756 + $0x2c] sm:$0xf]
    %v6769 = vld [vmem:[%s6756 + $0x30] sm:$0xf]
    %v6770 = vld [vmem:[%s6756 + $0x34] sm:$0xf]
    %v6771 = vld [vmem:[%s6756 + $0x38] sm:$0xf]
    %v6772 = vld [vmem:[%s6756 + $0x3c] sm:$0xf]
    %v6773 = vld [vmem:[%s6756 + $0x40] sm:$0xf]
    %v6774 = vld [vmem:[%s6756 + $0x44] sm:$0xf]
    %v6775 = vld [vmem:[%s6756 + $0x48] sm:$0xf]
    %v6776 = vld [vmem:[%s6756 + $0x4c] sm:$0xf]
    %v6777 = vunpack.c.l.bf16 %v6757
    %v6778 = vunpack.c.l.bf16 %v6758
    %v6779 = vunpack.c.l.bf16 %v6759
    %v6780 = vunpack.c.l.bf16 %v6760
    %v6781 = vunpack.c.l.bf16 %v6761
    %v6782 = vunpack.c.l.bf16 %v6762
    %v6783 = vunpack.c.l.bf16 %v6763
    %v6784 = vunpack.c.l.bf16 %v6764
    %v6785 = vunpack.c.l.bf16 %v6765
    %v6786 = vunpack.c.l.bf16 %v6766
    %v6787 = vunpack.c.l.bf16 %v6767
    %v6788 = vunpack.c.l.bf16 %v6768
    %v6789 = vunpack.c.l.bf16 %v6769
    %v6790 = vunpack.c.l.bf16 %v6770
    %v6791 = vunpack.c.l.bf16 %v6771
    %v6792 = vunpack.c.l.bf16 %v6772
    %v6793 = vunpack.c.l.bf16 %v6773
    %v6794 = vunpack.c.l.bf16 %v6774
    %v6795 = vunpack.c.l.bf16 %v6775
    %v6796 = vunpack.c.l.bf16 %v6776
    %v6798 = vsel %vm1098, %v6751, 0
    %v6801 = vsel %vm1098, %v6754, 0
    %6803 = vmatpush.msra.mxu0 %v6792
    %6804 = vmatpush.msra.mxu0 %v6791
    %6805 = vmatpush.msra.mxu0 %v6790
    %6806 = vmatpush.msra.mxu0 %v6789
    %6807 = vmatpush.msra.mxu0 %v6788
    %6808 = vmatpush.msra.mxu0 %v6787
    %6809 = vmatpush.msra.mxu0 %v6786
    %6810 = vmatpush.msra.mxu0 %v6785
    %6811 = vmatpush.msra.mxu0 %v6784
    %6812 = vmatpush.msra.mxu0 %v6783
    %6813 = vmatpush.msra.mxu0 %v6782
    %6814 = vmatpush.msra.mxu0 %v6781
    %6815 = vmatpush.msra.mxu0 %v6780
    %6816 = vmatpush.msra.mxu0 %v6779
    %6817 = vmatpush.msra.mxu0 %v6778
    %6818 = vmatpush.msra.mxu0 %v6777
    %6819 = vmatmul.f32.gmra.mxu0 %v6728
    %v6820 = vpop.f32.mrf.mxu0
    %v6821 = vadd.f32 0.0, %v6820
    %6822 = vmatmul.f32.gmra.mxu0 %v6731
    %v6823 = vpop.f32.mrf.mxu0
    %v6824 = vadd.f32 0.0, %v6823
    %6825 = vdwg.mxu0
    %6826 = vmatpush.msra.mxu0 0.0
    %6827 = vmatpush.msra.mxu0 0.0
    %6828 = vmatpush.msra.mxu0 0.0
    %6829 = vmatpush.msra.mxu0 0.0
    %6830 = vmatpush.msra.mxu0 0.0
    %6831 = vmatpush.msra.mxu0 0.0
    %6832 = vmatpush.msra.mxu0 0.0
    %6833 = vmatpush.msra.mxu0 0.0
    %6834 = vmatpush.msra.mxu0 0.0
    %6835 = vmatpush.msra.mxu0 0.0
    %6836 = vmatpush.msra.mxu0 0.0
    %6837 = vmatpush.msra.mxu0 0.0
    %6838 = vmatpush.msra.mxu0 %v6796
    %6839 = vmatpush.msra.mxu0 %v6795
    %6840 = vmatpush.msra.mxu0 %v6794
    %6841 = vmatpush.msra.mxu0 %v6793
    %6842 = vmatmul.f32.gmra.mxu0 %v6798
    %v6843 = vpop.f32.mrf.mxu0
    %v6844 = vadd.f32 %v6821, %v6843
    %6845 = vmatmul.f32.gmra.mxu0 %v6801
    %v6846 = vpop.f32.mrf.mxu0
    %v6847 = vadd.f32 %v6824, %v6846
    %6848 = vdwg.mxu0
    %v6849 = vadd.f32 %v6699, %v6844
    %v6850 = vadd.f32 %v6700, %v6847
    %v6851 = vld [vmem:[%s12] sm:$0x7]
    %v6852 = vld [vmem:[%s13] sm:$0xff]
    %v6853 = vld [vmem:[%s13 + $0x8] sm:$0xff]
    %v6854 = vld [vmem:[%s13 + $0x10] sm:$0xff]
    %v6855 = vld [vmem:[%s13 + $0x18] sm:$0xff]
    %v6856 = vld [vmem:[%s13 + $0x20] sm:$0xff]
    %v6857 = vld [vmem:[%s13 + $0x28] sm:$0xff]
    %v6858 = vld [vmem:[%s13 + $0x30] sm:$0xff]
    %v6859 = vld [vmem:[%s13 + $0x38] sm:$0xff]
    %v6860 = vld [vmem:[%s13 + $0x40] sm:$0xff]
    %v6861 = vld [vmem:[%s13 + $0x48] sm:$0xff]
    %v6862 = vld [vmem:[%s13 + $0x50] sm:$0xff]
    %v6863 = vld [vmem:[%s13 + $0x58] sm:$0xff]
    %v6864 = vld [vmem:[%s14] sm:$0xff]
    %v6865 = vld [vmem:[%s14 + $0x8] sm:$0xff]
    %v6866 = vld [vmem:[%s14 + $0x10] sm:$0xff]
    %v6867 = vld [vmem:[%s14 + $0x18] sm:$0xff]
    %v6868 = vperm.slane %v6851, 0
    %v6869 = vadd.f32 %v6849, %v6868
    %v6870 = vadd.f32 %v6850, %v6868
    %v6871 = vmax.f32 %v6869, 0.0
    %v6872 = vmax.f32 %v6870, 0.0
    %vm6873 = vcmask 785408
    %v6874 = vsel %vm6873, %v6871, 0.0
    %vm6875 = vcmask 781312
    %v6876 = vsel %vm6875, %v6872, 0.0
    %v6877 = vadd.f32 %v6874, %v6876
    %v6878 = vrot.slane %v6877, 4
    %v6879 = vadd.f32 %v6877, %v6878
    %v6880 = vrot.slane %v6879, 2
    %v6881 = vadd.f32 %v6879, %v6880
    %v6882 = vrot.slane %v6881, 1
    %v6883 = vadd.f32 %v6881, %v6882
    %v6885 = vsel %vm6873, %v6883, 0
    %6887 = vmatpush.msra.mxu0 0.0
    %6888 = vmatpush.msra.mxu0 0.0
    %6889 = vmatpush.msra.mxu0 0.0
    %6890 = vmatpush.msra.mxu0 0.0
    %6891 = vmatpush.msra.mxu0 %v6863
    %6892 = vmatpush.msra.mxu0 %v6862
    %6893 = vmatpush.msra.mxu0 %v6861
    %6894 = vmatpush.msra.mxu0 %v6860
    %6895 = vmatpush.msra.mxu0 %v6859
    %6896 = vmatpush.msra.mxu0 %v6858
    %6897 = vmatpush.msra.mxu0 %v6857
    %6898 = vmatpush.msra.mxu0 %v6856
    %6899 = vmatpush.msra.mxu0 %v6855
    %6900 = vmatpush.msra.mxu0 %v6854
    %6901 = vmatpush.msra.mxu0 %v6853
    %6902 = vmatpush.msra.mxu0 %v6852
    %6903 = vmatmul.f32.gmra.mxu0 %v6885
    %v6904 = vpop.f32.mrf.mxu0
    %v6905 = vadd.f32 0.0, %v6904
    %6906 = vdwg.mxu0
    %v6908 = vsel %vm1098, %v6905, 0
    %6910 = vmatpush.msra.mxu0 0.0
    %6911 = vmatpush.msra.mxu0 0.0
    %6912 = vmatpush.msra.mxu0 0.0
    %6913 = vmatpush.msra.mxu0 0.0
    %6914 = vmatpush.msra.mxu0 0.0
    %6915 = vmatpush.msra.mxu0 0.0
    %6916 = vmatpush.msra.mxu0 0.0
    %6917 = vmatpush.msra.mxu0 0.0
    %6918 = vmatpush.msra.mxu0 0.0
    %6919 = vmatpush.msra.mxu0 0.0
    %6920 = vmatpush.msra.mxu0 0.0
    %6921 = vmatpush.msra.mxu0 0.0
    %6922 = vmatpush.msra.mxu0 %v6867
    %6923 = vmatpush.msra.mxu0 %v6866
    %6924 = vmatpush.msra.mxu0 %v6865
    %6925 = vmatpush.msra.mxu0 %v6864
    %6926 = vmatmul.f32.gmra.mxu0 %v6908
    %v6927 = vpop.f32.mrf.mxu0
    %v6928 = vadd.f32 0.0, %v6927
    %6929 = vdwg.mxu0
    %v6930 = vperm.slane %v6928, 0
    %v6931 = vsub.f32 %v6871, %v6930
    %v6932 = vsub.f32 %v6872, %v6930
    %v6933 = vmul.f32 %v6931, %v6931
    %v6934 = vmul.f32 %v6932, %v6932
    %v6935 = vsel %vm6873, %v6933, 0.0
    %v6936 = vsel %vm6875, %v6934, 0.0
    %v6937 = vadd.f32 %v6935, %v6936
    %v6938 = vrot.slane %v6937, 4
    %v6939 = vadd.f32 %v6937, %v6938
    %v6940 = vrot.slane %v6939, 2
    %v6941 = vadd.f32 %v6939, %v6940
    %v6942 = vrot.slane %v6941, 1
    %v6943 = vadd.f32 %v6941, %v6942
    %v6945 = vsel %vm6873, %v6943, 0
    %6947 = vmatpush.msra.mxu0 0.0
    %6948 = vmatpush.msra.mxu0 0.0
    %6949 = vmatpush.msra.mxu0 0.0
    %6950 = vmatpush.msra.mxu0 0.0
    %6951 = vmatpush.msra.mxu0 %v6863
    %6952 = vmatpush.msra.mxu0 %v6862
    %6953 = vmatpush.msra.mxu0 %v6861
    %6954 = vmatpush.msra.mxu0 %v6860
    %6955 = vmatpush.msra.mxu0 %v6859
    %6956 = vmatpush.msra.mxu0 %v6858
    %6957 = vmatpush.msra.mxu0 %v6857
    %6958 = vmatpush.msra.mxu0 %v6856
    %6959 = vmatpush.msra.mxu0 %v6855
    %6960 = vmatpush.msra.mxu0 %v6854
    %6961 = vmatpush.msra.mxu0 %v6853
    %6962 = vmatpush.msra.mxu0 %v6852
    %6963 = vmatmul.f32.gmra.mxu0 %v6945
    %v6964 = vpop.f32.mrf.mxu0
    %v6965 = vadd.f32 1e-05, %v6964
    %6966 = vdwg.mxu0
    %v6967 = vrsqrt.pop %v6965
    %v6968 = vmul.f32 %v6967, %v6965
    %v6969 = vmul.f32 %v6968, %v6967
    %v6970 = vmul.f32 0.5, %v6969
    %v6971 = vsub.f32 1.5, %v6970
    %v6972 = vmul.f32 %v6967, %v6971
    %vm6973 = vweird.f32 %v6965
    %vm6974 = vweird.f32 %v6967
    %vm6975 = vmor %vm6973, %vm6974
    %v6976 = vsel %vm6975, %v6967, %v6972
    %v6978 = vsel %vm1098, %v6976, 0
    %6980 = vmatpush.msra.mxu0 0.0
    %6981 = vmatpush.msra.mxu0 0.0
    %6982 = vmatpush.msra.mxu0 0.0
    %6983 = vmatpush.msra.mxu0 0.0
    %6984 = vmatpush.msra.mxu0 0.0
    %6985 = vmatpush.msra.mxu0 0.0
    %6986 = vmatpush.msra.mxu0 0.0
    %6987 = vmatpush.msra.mxu0 0.0
    %6988 = vmatpush.msra.mxu0 0.0
    %6989 = vmatpush.msra.mxu0 0.0
    %6990 = vmatpush.msra.mxu0 0.0
    %6991 = vmatpush.msra.mxu0 0.0
    %6992 = vmatpush.msra.mxu0 %v6867
    %6993 = vmatpush.msra.mxu0 %v6866
    %6994 = vmatpush.msra.mxu0 %v6865
    %6995 = vmatpush.msra.mxu0 %v6864
    %6996 = vmatmul.f32.gmra.mxu0 %v6978
    %v6997 = vpop.f32.mrf.mxu0
    %v6998 = vadd.f32 0.0, %v6997
    %6999 = vdwg.mxu0
    %v7001 = vrot.slane %v6851, 1
    %v7003 = vmul.f32 %v6998, %v7001
    %v7004 = vperm.slane %v7003, 0
    %v7005 = vmul.f32 %v6931, %v7004
    %v7006 = vmul.f32 %v6932, %v7004
    %v7007 = vperm.slane %v6851, 2
    %v7008 = vadd.f32 %v7005, %v7007
    %v7009 = vadd.f32 %v7006, %v7007
    %v7010 = vld [vmem:[%s15] sm:$0x3]
    %vm7011 = vcmask 97280
    %v7013 = vsel %vm7011, %v7010, 0
    %vm7015 = vcmask 1043456
    %v7017 = vsel %vm7015, %v7009, 0
    %7019 = vmatpush.msra.mxu0 0.0
    %7020 = vmatpush.msra.mxu0 0.0
    %7021 = vmatpush.msra.mxu0 0.0
    %7022 = vmatpush.msra.mxu0 0.0
    %7023 = vmatpush.msra.mxu0 0.0
    %7024 = vmatpush.msra.mxu0 0.0
    %7025 = vmatpush.msra.mxu0 0.0
    %7026 = vmatpush.msra.mxu0 0.0
    %7027 = vmatpush.msra.mxu0 0.0
    %7028 = vmatpush.msra.mxu0 0.0
    %7029 = vmatpush.msra.mxu0 0.0
    %7030 = vmatpush.msra.mxu0 0.0
    %7031 = vmatpush.msra.mxu0 0.0
    %7032 = vmatpush.msra.mxu0 0.0
    %7033 = vmatpush.msra.mxu0 %v7017
    %7034 = vmatpush.msra.mxu0 %v7008
    %7035 = vmatmul.f32.gmra.mxu0 %v7013
    %v7036 = vpop.f32.mrf.mxu0
    %v7037 = vadd.f32 0.0, %v7036
    %7038 = vdwg.mxu0
    %v7039 = vld [vmem:[%s16] sm:$0xf]
    %v7040 = vld [vmem:[%s16 + $0x4] sm:$0xf]
    %v7041 = vld [vmem:[%s16 + $0x8] sm:$0xf]
    %v7042 = vld [vmem:[%s16 + $0xc] sm:$0xf]
    %v7043 = vld [vmem:[%s16 + $0x10] sm:$0xf]
    %v7044 = vld [vmem:[%s16 + $0x14] sm:$0xf]
    %v7045 = vld [vmem:[%s16 + $0x18] sm:$0xf]
    %v7046 = vld [vmem:[%s16 + $0x1c] sm:$0xf]
    %v7047 = vld [vmem:[%s16 + $0x20] sm:$0xf]
    %v7048 = vld [vmem:[%s16 + $0x24] sm:$0xf]
    %v7049 = vld [vmem:[%s16 + $0x28] sm:$0xf]
    %v7050 = vld [vmem:[%s16 + $0x2c] sm:$0xf]
    %v7051 = vunpack.c.l.bf16 %v7039
    %v7052 = vunpack.c.l.bf16 %v7040
    %v7053 = vunpack.c.l.bf16 %v7041
    %v7054 = vunpack.c.l.bf16 %v7042
    %v7055 = vunpack.c.l.bf16 %v7043
    %v7056 = vunpack.c.l.bf16 %v7044
    %v7057 = vunpack.c.l.bf16 %v7045
    %v7058 = vunpack.c.l.bf16 %v7046
    %v7059 = vunpack.c.l.bf16 %v7047
    %v7060 = vunpack.c.l.bf16 %v7048
    %v7061 = vunpack.c.l.bf16 %v7049
    %v7062 = vunpack.c.l.bf16 %v7050
    %s7063 = scalar_lea.vmem %s15, 2
    %v7064 = vld [vmem:[%s7063] sm:$0x3]
    %v7066 = vsel %vm7011, %v7064, 0
    %7068 = vmatpush.msra.mxu0 0.0
    %7069 = vmatpush.msra.mxu0 0.0
    %7070 = vmatpush.msra.mxu0 0.0
    %7071 = vmatpush.msra.mxu0 0.0
    %7072 = vmatpush.msra.mxu0 0.0
    %7073 = vmatpush.msra.mxu0 0.0
    %7074 = vmatpush.msra.mxu0 0.0
    %7075 = vmatpush.msra.mxu0 0.0
    %7076 = vmatpush.msra.mxu0 0.0
    %7077 = vmatpush.msra.mxu0 0.0
    %7078 = vmatpush.msra.mxu0 0.0
    %7079 = vmatpush.msra.mxu0 0.0
    %7080 = vmatpush.msra.mxu0 0.0
    %7081 = vmatpush.msra.mxu0 0.0
    %7082 = vmatpush.msra.mxu0 %v7017
    %7083 = vmatpush.msra.mxu0 %v7008
    %7084 = vmatmul.f32.gmra.mxu0 %v7066
    %v7085 = vpop.f32.mrf.mxu0
    %v7086 = vadd.f32 0.0, %v7085
    %7087 = vdwg.mxu0
    %s7088 = scalar_lea.vmem %s16, 48
    %v7089 = vld [vmem:[%s7088] sm:$0xf]
    %v7090 = vld [vmem:[%s7088 + $0x4] sm:$0xf]
    %v7091 = vld [vmem:[%s7088 + $0x8] sm:$0xf]
    %v7092 = vld [vmem:[%s7088 + $0xc] sm:$0xf]
    %v7093 = vld [vmem:[%s7088 + $0x10] sm:$0xf]
    %v7094 = vld [vmem:[%s7088 + $0x14] sm:$0xf]
    %v7095 = vld [vmem:[%s7088 + $0x18] sm:$0xf]
    %v7096 = vld [vmem:[%s7088 + $0x1c] sm:$0xf]
    %v7097 = vld [vmem:[%s7088 + $0x20] sm:$0xf]
    %v7098 = vld [vmem:[%s7088 + $0x24] sm:$0xf]
    %v7099 = vld [vmem:[%s7088 + $0x28] sm:$0xf]
    %v7100 = vld [vmem:[%s7088 + $0x2c] sm:$0xf]
    %v7101 = vunpack.c.l.bf16 %v7089
    %v7102 = vunpack.c.l.bf16 %v7090
    %v7103 = vunpack.c.l.bf16 %v7091
    %v7104 = vunpack.c.l.bf16 %v7092
    %v7105 = vunpack.c.l.bf16 %v7093
    %v7106 = vunpack.c.l.bf16 %v7094
    %v7107 = vunpack.c.l.bf16 %v7095
    %v7108 = vunpack.c.l.bf16 %v7096
    %v7109 = vunpack.c.l.bf16 %v7097
    %v7110 = vunpack.c.l.bf16 %v7098
    %v7111 = vunpack.c.l.bf16 %v7099
    %v7112 = vunpack.c.l.bf16 %v7100
    %v7114 = vsel %vm6873, %v7086, 0
    %7116 = vmatpush.msra.mxu0 0.0
    %7117 = vmatpush.msra.mxu0 0.0
    %7118 = vmatpush.msra.mxu0 0.0
    %7119 = vmatpush.msra.mxu0 0.0
    %7120 = vmatpush.msra.mxu0 %v7112
    %7121 = vmatpush.msra.mxu0 %v7111
    %7122 = vmatpush.msra.mxu0 %v7110
    %7123 = vmatpush.msra.mxu0 %v7109
    %7124 = vmatpush.msra.mxu0 %v7108
    %7125 = vmatpush.msra.mxu0 %v7107
    %7126 = vmatpush.msra.mxu0 %v7106
    %7127 = vmatpush.msra.mxu0 %v7105
    %7128 = vmatpush.msra.mxu0 %v7104
    %7129 = vmatpush.msra.mxu0 %v7103
    %7130 = vmatpush.msra.mxu0 %v7102
    %7131 = vmatpush.msra.mxu0 %v7101
    %7132 = vmatmul.f32.gmra.mxu0 %v7114
    %v7133 = vpop.f32.mrf.mxu0
    %v7134 = vadd.f32 0.0, %v7133
    %7135 = vdwg.mxu0
    %v7137 = vsel %vm6873, %v7037, 0
    %7139 = vmatpush.msra.mxu0 0.0
    %7140 = vmatpush.msra.mxu0 0.0
    %7141 = vmatpush.msra.mxu0 0.0
    %7142 = vmatpush.msra.mxu0 0.0
    %7143 = vmatpush.msra.mxu0 %v7062
    %7144 = vmatpush.msra.mxu0 %v7061
    %7145 = vmatpush.msra.mxu0 %v7060
    %7146 = vmatpush.msra.mxu0 %v7059
    %7147 = vmatpush.msra.mxu0 %v7058
    %7148 = vmatpush.msra.mxu0 %v7057
    %7149 = vmatpush.msra.mxu0 %v7056
    %7150 = vmatpush.msra.mxu0 %v7055
    %7151 = vmatpush.msra.mxu0 %v7054
    %7152 = vmatpush.msra.mxu0 %v7053
    %7153 = vmatpush.msra.mxu0 %v7052
    %7154 = vmatpush.msra.mxu0 %v7051
    %7155 = vmatmul.f32.gmra.mxu0 %v7137
    %v7156 = vpop.f32.mrf.mxu0
    %v7157 = vadd.f32 %v7134, %v7156
    %7158 = vdwg.mxu0
    %s7159 = scalar_lea.vmem %s15, 4
    %v7160 = vld [vmem:[%s7159] sm:$0x3]
    %v7162 = vsel %vm7011, %v7160, 0
    %7164 = vmatpush.msra.mxu0 0.0
    %7165 = vmatpush.msra.mxu0 0.0
    %7166 = vmatpush.msra.mxu0 0.0
    %7167 = vmatpush.msra.mxu0 0.0
    %7168 = vmatpush.msra.mxu0 0.0
    %7169 = vmatpush.msra.mxu0 0.0
    %7170 = vmatpush.msra.mxu0 0.0
    %7171 = vmatpush.msra.mxu0 0.0
    %7172 = vmatpush.msra.mxu0 0.0
    %7173 = vmatpush.msra.mxu0 0.0
    %7174 = vmatpush.msra.mxu0 0.0
    %7175 = vmatpush.msra.mxu0 0.0
    %7176 = vmatpush.msra.mxu0 0.0
    %7177 = vmatpush.msra.mxu0 0.0
    %7178 = vmatpush.msra.mxu0 %v7017
    %7179 = vmatpush.msra.mxu0 %v7008
    %7180 = vmatmul.f32.gmra.mxu0 %v7162
    %v7181 = vpop.f32.mrf.mxu0
    %v7182 = vadd.f32 0.0, %v7181
    %7183 = vdwg.mxu0
    %s7184 = scalar_lea.vmem %s16, 96
    %v7185 = vld [vmem:[%s7184] sm:$0xf]
    %v7186 = vld [vmem:[%s7184 + $0x4] sm:$0xf]
    %v7187 = vld [vmem:[%s7184 + $0x8] sm:$0xf]
    %v7188 = vld [vmem:[%s7184 + $0xc] sm:$0xf]
    %v7189 = vld [vmem:[%s7184 + $0x10] sm:$0xf]
    %v7190 = vld [vmem:[%s7184 + $0x14] sm:$0xf]
    %v7191 = vld [vmem:[%s7184 + $0x18] sm:$0xf]
    %v7192 = vld [vmem:[%s7184 + $0x1c] sm:$0xf]
    %v7193 = vld [vmem:[%s7184 + $0x20] sm:$0xf]
    %v7194 = vld [vmem:[%s7184 + $0x24] sm:$0xf]
    %v7195 = vld [vmem:[%s7184 + $0x28] sm:$0xf]
    %v7196 = vld [vmem:[%s7184 + $0x2c] sm:$0xf]
    %v7197 = vunpack.c.l.bf16 %v7185
    %v7198 = vunpack.c.l.bf16 %v7186
    %v7199 = vunpack.c.l.bf16 %v7187
    %v7200 = vunpack.c.l.bf16 %v7188
    %v7201 = vunpack.c.l.bf16 %v7189
    %v7202 = vunpack.c.l.bf16 %v7190
    %v7203 = vunpack.c.l.bf16 %v7191
    %v7204 = vunpack.c.l.bf16 %v7192
    %v7205 = vunpack.c.l.bf16 %v7193
    %v7206 = vunpack.c.l.bf16 %v7194
    %v7207 = vunpack.c.l.bf16 %v7195
    %v7208 = vunpack.c.l.bf16 %v7196
    %v7210 = vsel %vm6873, %v7182, 0
    %7212 = vmatpush.msra.mxu0 0.0
    %7213 = vmatpush.msra.mxu0 0.0
    %7214 = vmatpush.msra.mxu0 0.0
    %7215 = vmatpush.msra.mxu0 0.0
    %7216 = vmatpush.msra.mxu0 %v7208
    %7217 = vmatpush.msra.mxu0 %v7207
    %7218 = vmatpush.msra.mxu0 %v7206
    %7219 = vmatpush.msra.mxu0 %v7205
    %7220 = vmatpush.msra.mxu0 %v7204
    %7221 = vmatpush.msra.mxu0 %v7203
    %7222 = vmatpush.msra.mxu0 %v7202
    %7223 = vmatpush.msra.mxu0 %v7201
    %7224 = vmatpush.msra.mxu0 %v7200
    %7225 = vmatpush.msra.mxu0 %v7199
    %7226 = vmatpush.msra.mxu0 %v7198
    %7227 = vmatpush.msra.mxu0 %v7197
    %7228 = vmatmul.f32.gmra.mxu0 %v7210
    %v7229 = vpop.f32.mrf.mxu0
    %v7230 = vadd.f32 0.0, %v7229
    %7231 = vdwg.mxu0
    %v7232 = vadd.f32 %v7157, %v7230
    %s7233 = scalar_lea.vmem %s15, 6
    %v7234 = vld [vmem:[%s7233] sm:$0x3]
    %v7236 = vsel %vm7011, %v7234, 0
    %7238 = vmatpush.msra.mxu0 0.0
    %7239 = vmatpush.msra.mxu0 0.0
    %7240 = vmatpush.msra.mxu0 0.0
    %7241 = vmatpush.msra.mxu0 0.0
    %7242 = vmatpush.msra.mxu0 0.0
    %7243 = vmatpush.msra.mxu0 0.0
    %7244 = vmatpush.msra.mxu0 0.0
    %7245 = vmatpush.msra.mxu0 0.0
    %7246 = vmatpush.msra.mxu0 0.0
    %7247 = vmatpush.msra.mxu0 0.0
    %7248 = vmatpush.msra.mxu0 0.0
    %7249 = vmatpush.msra.mxu0 0.0
    %7250 = vmatpush.msra.mxu0 0.0
    %7251 = vmatpush.msra.mxu0 0.0
    %7252 = vmatpush.msra.mxu0 %v7017
    %7253 = vmatpush.msra.mxu0 %v7008
    %7254 = vmatmul.f32.gmra.mxu0 %v7236
    %v7255 = vpop.f32.mrf.mxu0
    %v7256 = vadd.f32 0.0, %v7255
    %7257 = vdwg.mxu0
    %s7258 = scalar_lea.vmem %s16, 144
    %v7259 = vld [vmem:[%s7258] sm:$0xf]
    %v7260 = vld [vmem:[%s7258 + $0x4] sm:$0xf]
    %v7261 = vld [vmem:[%s7258 + $0x8] sm:$0xf]
    %v7262 = vld [vmem:[%s7258 + $0xc] sm:$0xf]
    %v7263 = vld [vmem:[%s7258 + $0x10] sm:$0xf]
    %v7264 = vld [vmem:[%s7258 + $0x14] sm:$0xf]
    %v7265 = vld [vmem:[%s7258 + $0x18] sm:$0xf]
    %v7266 = vld [vmem:[%s7258 + $0x1c] sm:$0xf]
    %v7267 = vld [vmem:[%s7258 + $0x20] sm:$0xf]
    %v7268 = vld [vmem:[%s7258 + $0x24] sm:$0xf]
    %v7269 = vld [vmem:[%s7258 + $0x28] sm:$0xf]
    %v7270 = vld [vmem:[%s7258 + $0x2c] sm:$0xf]
    %v7271 = vunpack.c.l.bf16 %v7259
    %v7272 = vunpack.c.l.bf16 %v7260
    %v7273 = vunpack.c.l.bf16 %v7261
    %v7274 = vunpack.c.l.bf16 %v7262
    %v7275 = vunpack.c.l.bf16 %v7263
    %v7276 = vunpack.c.l.bf16 %v7264
    %v7277 = vunpack.c.l.bf16 %v7265
    %v7278 = vunpack.c.l.bf16 %v7266
    %v7279 = vunpack.c.l.bf16 %v7267
    %v7280 = vunpack.c.l.bf16 %v7268
    %v7281 = vunpack.c.l.bf16 %v7269
    %v7282 = vunpack.c.l.bf16 %v7270
    %v7284 = vsel %vm6873, %v7256, 0
    %7286 = vmatpush.msra.mxu0 0.0
    %7287 = vmatpush.msra.mxu0 0.0
    %7288 = vmatpush.msra.mxu0 0.0
    %7289 = vmatpush.msra.mxu0 0.0
    %7290 = vmatpush.msra.mxu0 %v7282
    %7291 = vmatpush.msra.mxu0 %v7281
    %7292 = vmatpush.msra.mxu0 %v7280
    %7293 = vmatpush.msra.mxu0 %v7279
    %7294 = vmatpush.msra.mxu0 %v7278
    %7295 = vmatpush.msra.mxu0 %v7277
    %7296 = vmatpush.msra.mxu0 %v7276
    %7297 = vmatpush.msra.mxu0 %v7275
    %7298 = vmatpush.msra.mxu0 %v7274
    %7299 = vmatpush.msra.mxu0 %v7273
    %7300 = vmatpush.msra.mxu0 %v7272
    %7301 = vmatpush.msra.mxu0 %v7271
    %7302 = vmatmul.f32.gmra.mxu0 %v7284
    %v7303 = vpop.f32.mrf.mxu0
    %v7304 = vadd.f32 0.0, %v7303
    %7305 = vdwg.mxu0
    %v7306 = vadd.f32 %v7232, %v7304
    %s7307 = scalar_lea.vmem %s15, 8
    %v7308 = vld [vmem:[%s7307] sm:$0x3]
    %v7310 = vsel %vm7011, %v7308, 0
    %7312 = vmatpush.msra.mxu0 0.0
    %7313 = vmatpush.msra.mxu0 0.0
    %7314 = vmatpush.msra.mxu0 0.0
    %7315 = vmatpush.msra.mxu0 0.0
    %7316 = vmatpush.msra.mxu0 0.0
    %7317 = vmatpush.msra.mxu0 0.0
    %7318 = vmatpush.msra.mxu0 0.0
    %7319 = vmatpush.msra.mxu0 0.0
    %7320 = vmatpush.msra.mxu0 0.0
    %7321 = vmatpush.msra.mxu0 0.0
    %7322 = vmatpush.msra.mxu0 0.0
    %7323 = vmatpush.msra.mxu0 0.0
    %7324 = vmatpush.msra.mxu0 0.0
    %7325 = vmatpush.msra.mxu0 0.0
    %7326 = vmatpush.msra.mxu0 %v7017
    %7327 = vmatpush.msra.mxu0 %v7008
    %7328 = vmatmul.f32.gmra.mxu0 %v7310
    %v7329 = vpop.f32.mrf.mxu0
    %v7330 = vadd.f32 0.0, %v7329
    %7331 = vdwg.mxu0
    %s7332 = scalar_lea.vmem %s16, 192
    %v7333 = vld [vmem:[%s7332] sm:$0xf]
    %v7334 = vld [vmem:[%s7332 + $0x4] sm:$0xf]
    %v7335 = vld [vmem:[%s7332 + $0x8] sm:$0xf]
    %v7336 = vld [vmem:[%s7332 + $0xc] sm:$0xf]
    %v7337 = vld [vmem:[%s7332 + $0x10] sm:$0xf]
    %v7338 = vld [vmem:[%s7332 + $0x14] sm:$0xf]
    %v7339 = vld [vmem:[%s7332 + $0x18] sm:$0xf]
    %v7340 = vld [vmem:[%s7332 + $0x1c] sm:$0xf]
    %v7341 = vld [vmem:[%s7332 + $0x20] sm:$0xf]
    %v7342 = vld [vmem:[%s7332 + $0x24] sm:$0xf]
    %v7343 = vld [vmem:[%s7332 + $0x28] sm:$0xf]
    %v7344 = vld [vmem:[%s7332 + $0x2c] sm:$0xf]
    %v7345 = vunpack.c.l.bf16 %v7333
    %v7346 = vunpack.c.l.bf16 %v7334
    %v7347 = vunpack.c.l.bf16 %v7335
    %v7348 = vunpack.c.l.bf16 %v7336
    %v7349 = vunpack.c.l.bf16 %v7337
    %v7350 = vunpack.c.l.bf16 %v7338
    %v7351 = vunpack.c.l.bf16 %v7339
    %v7352 = vunpack.c.l.bf16 %v7340
    %v7353 = vunpack.c.l.bf16 %v7341
    %v7354 = vunpack.c.l.bf16 %v7342
    %v7355 = vunpack.c.l.bf16 %v7343
    %v7356 = vunpack.c.l.bf16 %v7344
    %v7358 = vsel %vm6873, %v7330, 0
    %7360 = vmatpush.msra.mxu0 0.0
    %7361 = vmatpush.msra.mxu0 0.0
    %7362 = vmatpush.msra.mxu0 0.0
    %7363 = vmatpush.msra.mxu0 0.0
    %7364 = vmatpush.msra.mxu0 %v7356
    %7365 = vmatpush.msra.mxu0 %v7355
    %7366 = vmatpush.msra.mxu0 %v7354
    %7367 = vmatpush.msra.mxu0 %v7353
    %7368 = vmatpush.msra.mxu0 %v7352
    %7369 = vmatpush.msra.mxu0 %v7351
    %7370 = vmatpush.msra.mxu0 %v7350
    %7371 = vmatpush.msra.mxu0 %v7349
    %7372 = vmatpush.msra.mxu0 %v7348
    %7373 = vmatpush.msra.mxu0 %v7347
    %7374 = vmatpush.msra.mxu0 %v7346
    %7375 = vmatpush.msra.mxu0 %v7345
    %7376 = vmatmul.f32.gmra.mxu0 %v7358
    %v7377 = vpop.f32.mrf.mxu0
    %v7378 = vadd.f32 0.0, %v7377
    %7379 = vdwg.mxu0
    %v7380 = vadd.f32 %v7306, %v7378
    %s7381 = scalar_lea.vmem %s15, 10
    %v7382 = vld [vmem:[%s7381] sm:$0x3]
    %v7384 = vsel %vm7011, %v7382, 0
    %7386 = vmatpush.msra.mxu0 0.0
    %7387 = vmatpush.msra.mxu0 0.0
    %7388 = vmatpush.msra.mxu0 0.0
    %7389 = vmatpush.msra.mxu0 0.0
    %7390 = vmatpush.msra.mxu0 0.0
    %7391 = vmatpush.msra.mxu0 0.0
    %7392 = vmatpush.msra.mxu0 0.0
    %7393 = vmatpush.msra.mxu0 0.0
    %7394 = vmatpush.msra.mxu0 0.0
    %7395 = vmatpush.msra.mxu0 0.0
    %7396 = vmatpush.msra.mxu0 0.0
    %7397 = vmatpush.msra.mxu0 0.0
    %7398 = vmatpush.msra.mxu0 0.0
    %7399 = vmatpush.msra.mxu0 0.0
    %7400 = vmatpush.msra.mxu0 %v7017
    %7401 = vmatpush.msra.mxu0 %v7008
    %7402 = vmatmul.f32.gmra.mxu0 %v7384
    %v7403 = vpop.f32.mrf.mxu0
    %v7404 = vadd.f32 0.0, %v7403
    %7405 = vdwg.mxu0
    %s7406 = scalar_lea.vmem %s16, 240
    %v7407 = vld [vmem:[%s7406] sm:$0xf]
    %v7408 = vld [vmem:[%s7406 + $0x4] sm:$0xf]
    %v7409 = vld [vmem:[%s7406 + $0x8] sm:$0xf]
    %v7410 = vld [vmem:[%s7406 + $0xc] sm:$0xf]
    %v7411 = vld [vmem:[%s7406 + $0x10] sm:$0xf]
    %v7412 = vld [vmem:[%s7406 + $0x14] sm:$0xf]
    %v7413 = vld [vmem:[%s7406 + $0x18] sm:$0xf]
    %v7414 = vld [vmem:[%s7406 + $0x1c] sm:$0xf]
    %v7415 = vld [vmem:[%s7406 + $0x20] sm:$0xf]
    %v7416 = vld [vmem:[%s7406 + $0x24] sm:$0xf]
    %v7417 = vld [vmem:[%s7406 + $0x28] sm:$0xf]
    %v7418 = vld [vmem:[%s7406 + $0x2c] sm:$0xf]
    %v7419 = vunpack.c.l.bf16 %v7407
    %v7420 = vunpack.c.l.bf16 %v7408
    %v7421 = vunpack.c.l.bf16 %v7409
    %v7422 = vunpack.c.l.bf16 %v7410
    %v7423 = vunpack.c.l.bf16 %v7411
    %v7424 = vunpack.c.l.bf16 %v7412
    %v7425 = vunpack.c.l.bf16 %v7413
    %v7426 = vunpack.c.l.bf16 %v7414
    %v7427 = vunpack.c.l.bf16 %v7415
    %v7428 = vunpack.c.l.bf16 %v7416
    %v7429 = vunpack.c.l.bf16 %v7417
    %v7430 = vunpack.c.l.bf16 %v7418
    %v7432 = vsel %vm6873, %v7404, 0
    %7434 = vmatpush.msra.mxu0 0.0
    %7435 = vmatpush.msra.mxu0 0.0
    %7436 = vmatpush.msra.mxu0 0.0
    %7437 = vmatpush.msra.mxu0 0.0
    %7438 = vmatpush.msra.mxu0 %v7430
    %7439 = vmatpush.msra.mxu0 %v7429
    %7440 = vmatpush.msra.mxu0 %v7428
    %7441 = vmatpush.msra.mxu0 %v7427
    %7442 = vmatpush.msra.mxu0 %v7426
    %7443 = vmatpush.msra.mxu0 %v7425
    %7444 = vmatpush.msra.mxu0 %v7424
    %7445 = vmatpush.msra.mxu0 %v7423
    %7446 = vmatpush.msra.mxu0 %v7422
    %7447 = vmatpush.msra.mxu0 %v7421
    %7448 = vmatpush.msra.mxu0 %v7420
    %7449 = vmatpush.msra.mxu0 %v7419
    %7450 = vmatmul.f32.gmra.mxu0 %v7432
    %v7451 = vpop.f32.mrf.mxu0
    %v7452 = vadd.f32 0.0, %v7451
    %7453 = vdwg.mxu0
    %v7454 = vadd.f32 %v7380, %v7452
    %v7455 = vld [vmem:[%s17] sm:$0x7]
    %v7456 = vld [vmem:[%s18] sm:$0xff]
    %v7457 = vld [vmem:[%s18 + $0x8] sm:$0xff]
    %v7458 = vld [vmem:[%s18 + $0x10] sm:$0xff]
    %v7459 = vld [vmem:[%s18 + $0x18] sm:$0xff]
    %v7460 = vld [vmem:[%s19] sm:$0xff]
    %v7461 = vld [vmem:[%s19 + $0x8] sm:$0xff]
    %v7462 = vld [vmem:[%s19 + $0x10] sm:$0xff]
    %v7463 = vld [vmem:[%s19 + $0x18] sm:$0xff]
    %v7464 = vperm.slane %v7455, 0
    %v7465 = vadd.f32 %v7454, %v7464
    %v7466 = vmax.f32 %v7465, 0.0
    %vm7467 = vcmask 254976
    %v7468 = vsel %vm7467, %v7466, 0.0
    %v7469 = vrot.slane %v7468, 4
    %v7470 = vadd.f32 %v7468, %v7469
    %v7471 = vrot.slane %v7470, 2
    %v7472 = vadd.f32 %v7470, %v7471
    %v7473 = vrot.slane %v7472, 1
    %v7474 = vadd.f32 %v7472, %v7473
    %v7476 = vsel %vm1098, %v7474, 0
    %7478 = vmatpush.msra.mxu0 0.0
    %7479 = vmatpush.msra.mxu0 0.0
    %7480 = vmatpush.msra.mxu0 0.0
    %7481 = vmatpush.msra.mxu0 0.0
    %7482 = vmatpush.msra.mxu0 0.0
    %7483 = vmatpush.msra.mxu0 0.0
    %7484 = vmatpush.msra.mxu0 0.0
    %7485 = vmatpush.msra.mxu0 0.0
    %7486 = vmatpush.msra.mxu0 0.0
    %7487 = vmatpush.msra.mxu0 0.0
    %7488 = vmatpush.msra.mxu0 0.0
    %7489 = vmatpush.msra.mxu0 0.0
    %7490 = vmatpush.msra.mxu0 %v7459
    %7491 = vmatpush.msra.mxu0 %v7458
    %7492 = vmatpush.msra.mxu0 %v7457
    %7493 = vmatpush.msra.mxu0 %v7456
    %7494 = vmatmul.f32.gmra.mxu0 %v7476
    %v7495 = vpop.f32.mrf.mxu0
    %v7496 = vadd.f32 0.0, %v7495
    %7497 = vdwg.mxu0
    %v7499 = vsel %vm1098, %v7496, 0
    %7501 = vmatpush.msra.mxu0 0.0
    %7502 = vmatpush.msra.mxu0 0.0
    %7503 = vmatpush.msra.mxu0 0.0
    %7504 = vmatpush.msra.mxu0 0.0
    %7505 = vmatpush.msra.mxu0 0.0
    %7506 = vmatpush.msra.mxu0 0.0
    %7507 = vmatpush.msra.mxu0 0.0
    %7508 = vmatpush.msra.mxu0 0.0
    %7509 = vmatpush.msra.mxu0 0.0
    %7510 = vmatpush.msra.mxu0 0.0
    %7511 = vmatpush.msra.mxu0 0.0
    %7512 = vmatpush.msra.mxu0 0.0
    %7513 = vmatpush.msra.mxu0 %v7463
    %7514 = vmatpush.msra.mxu0 %v7462
    %7515 = vmatpush.msra.mxu0 %v7461
    %7516 = vmatpush.msra.mxu0 %v7460
    %7517 = vmatmul.f32.gmra.mxu0 %v7499
    %v7518 = vpop.f32.mrf.mxu0
    %v7519 = vadd.f32 0.0, %v7518
    %7520 = vdwg.mxu0
    %v7521 = vperm.slane %v7519, 0
    %v7522 = vsub.f32 %v7466, %v7521
    %v7523 = vmul.f32 %v7522, %v7522
    %v7524 = vsel %vm7467, %v7523, 0.0
    %v7525 = vrot.slane %v7524, 4
    %v7526 = vadd.f32 %v7524, %v7525
    %v7527 = vrot.slane %v7526, 2
    %v7528 = vadd.f32 %v7526, %v7527
    %v7529 = vrot.slane %v7528, 1
    %v7530 = vadd.f32 %v7528, %v7529
    %v7532 = vsel %vm1098, %v7530, 0
    %7534 = vmatpush.msra.mxu0 0.0
    %7535 = vmatpush.msra.mxu0 0.0
    %7536 = vmatpush.msra.mxu0 0.0
    %7537 = vmatpush.msra.mxu0 0.0
    %7538 = vmatpush.msra.mxu0 0.0
    %7539 = vmatpush.msra.mxu0 0.0
    %7540 = vmatpush.msra.mxu0 0.0
    %7541 = vmatpush.msra.mxu0 0.0
    %7542 = vmatpush.msra.mxu0 0.0
    %7543 = vmatpush.msra.mxu0 0.0
    %7544 = vmatpush.msra.mxu0 0.0
    %7545 = vmatpush.msra.mxu0 0.0
    %7546 = vmatpush.msra.mxu0 %v7459
    %7547 = vmatpush.msra.mxu0 %v7458
    %7548 = vmatpush.msra.mxu0 %v7457
    %7549 = vmatpush.msra.mxu0 %v7456
    %7550 = vmatmul.f32.gmra.mxu0 %v7532
    %v7551 = vpop.f32.mrf.mxu0
    %v7552 = vadd.f32 1e-05, %v7551
    %7553 = vdwg.mxu0
    %v7554 = vrsqrt.pop %v7552
    %v7555 = vmul.f32 %v7554, %v7552
    %v7556 = vmul.f32 %v7555, %v7554
    %v7557 = vmul.f32 0.5, %v7556
    %v7558 = vsub.f32 1.5, %v7557
    %v7559 = vmul.f32 %v7554, %v7558
    %vm7560 = vweird.f32 %v7552
    %vm7561 = vweird.f32 %v7554
    %vm7562 = vmor %vm7560, %vm7561
    %v7563 = vsel %vm7562, %v7554, %v7559
    %v7565 = vsel %vm1098, %v7563, 0
    %7567 = vmatpush.msra.mxu0 0.0
    %7568 = vmatpush.msra.mxu0 0.0
    %7569 = vmatpush.msra.mxu0 0.0
    %7570 = vmatpush.msra.mxu0 0.0
    %7571 = vmatpush.msra.mxu0 0.0
    %7572 = vmatpush.msra.mxu0 0.0
    %7573 = vmatpush.msra.mxu0 0.0
    %7574 = vmatpush.msra.mxu0 0.0
    %7575 = vmatpush.msra.mxu0 0.0
    %7576 = vmatpush.msra.mxu0 0.0
    %7577 = vmatpush.msra.mxu0 0.0
    %7578 = vmatpush.msra.mxu0 0.0
    %7579 = vmatpush.msra.mxu0 %v7463
    %7580 = vmatpush.msra.mxu0 %v7462
    %7581 = vmatpush.msra.mxu0 %v7461
    %7582 = vmatpush.msra.mxu0 %v7460
    %7583 = vmatmul.f32.gmra.mxu0 %v7565
    %v7584 = vpop.f32.mrf.mxu0
    %v7585 = vadd.f32 0.0, %v7584
    %7586 = vdwg.mxu0
    %v7588 = vrot.slane %v7455, 1
    %v7590 = vmul.f32 %v7585, %v7588
    %v7591 = vperm.slane %v7590, 0
    %v7592 = vmul.f32 %v7522, %v7591
    %v7593 = vperm.slane %v7455, 2
    %v7594 = vadd.f32 %v7592, %v7593
    %v7595 = vld [vmem:[%s20] sm:$0x3]
    %vm7596 = vcmask 15360
    %v7598 = vsel %vm7596, %v7595, 0
    %vm7600 = vcmask 1041408
    %v7602 = vsel %vm7600, %v7594, 0
    %7604 = vmatpush.msra.mxu0 0.0
    %7605 = vmatpush.msra.mxu0 0.0
    %7606 = vmatpush.msra.mxu0 0.0
    %7607 = vmatpush.msra.mxu0 0.0
    %7608 = vmatpush.msra.mxu0 0.0
    %7609 = vmatpush.msra.mxu0 0.0
    %7610 = vmatpush.msra.mxu0 0.0
    %7611 = vmatpush.msra.mxu0 0.0
    %7612 = vmatpush.msra.mxu0 0.0
    %7613 = vmatpush.msra.mxu0 0.0
    %7614 = vmatpush.msra.mxu0 0.0
    %7615 = vmatpush.msra.mxu0 0.0
    %7616 = vmatpush.msra.mxu0 0.0
    %7617 = vmatpush.msra.mxu0 0.0
    %7618 = vmatpush.msra.mxu0 0.0
    %7619 = vmatpush.msra.mxu0 %v7602
    %7620 = vmatmul.f32.gmra.mxu0 %v7598
    %v7621 = vpop.f32.mrf.mxu0
    %v7622 = vadd.f32 0.0, %v7621
    %7623 = vdwg.mxu0
    %v7624 = vld [vmem:[%s21] sm:$0xff]
    %v7625 = vld [vmem:[%s21 + $0x8] sm:$0xff]
    %v7626 = vld [vmem:[%s21 + $0x10] sm:$0xff]
    %v7627 = vld [vmem:[%s21 + $0x18] sm:$0xff]
    %v7628 = vld [vmem:[%s22] sm:$0x1]
    %v7630 = vperm.slane %v7628, 0
    %v7633 = vsel %vm1098, %v7622, 0
    %7635 = vmatpush.msra.mxu0 0.0
    %7636 = vmatpush.msra.mxu0 0.0
    %7637 = vmatpush.msra.mxu0 0.0
    %7638 = vmatpush.msra.mxu0 0.0
    %7639 = vmatpush.msra.mxu0 0.0
    %7640 = vmatpush.msra.mxu0 0.0
    %7641 = vmatpush.msra.mxu0 0.0
    %7642 = vmatpush.msra.mxu0 0.0
    %7643 = vmatpush.msra.mxu0 0.0
    %7644 = vmatpush.msra.mxu0 0.0
    %7645 = vmatpush.msra.mxu0 0.0
    %7646 = vmatpush.msra.mxu0 0.0
    %7647 = vmatpush.msra.mxu0 %v7627
    %7648 = vmatpush.msra.mxu0 %v7626
    %7649 = vmatpush.msra.mxu0 %v7625
    %7650 = vmatpush.msra.mxu0 %v7624
    %7651 = vmatmul.f32.gmra.mxu0 %v7633
    %v7652 = vpop.f32.mrf.mxu0
    %v7653 = vadd.f32 %v7630, %v7652
    %7654 = vdwg.mxu0
    %vm7655 = vcmask 9216
    %7656 = vst.msk [vmem:[#allocation2] sm:$0x3] %vm7655, %v7653
    // Predicated region
    $region94: #{glaucoma3d_forward.1} parent=1 // pred_check
      _
    $region95: #{glaucoma3d_forward.1} parent=1 // pred_check_branch
      %7658 = sbr.rel (0) target = $region97
    $region96: #{glaucoma3d_forward.1} parent=1 // pred_region
      %7660 = vsyncadd [#allocation3], 0
      %s7662 = sshll.u32 [#allocation2], 4
      %s7663 = int_to_ptr.vmem [resolvable:$true] %s7662
      %s7664 = sshll.u32 %s23, 4
      %s7665 = int_to_ptr.hbm [resolvable:$true] %s7664
      %7667 = dma.vmem_to_hbm [thread:$0]  %s7663, 32, %s7665, [#allocation3]
    $region97: #{glaucoma3d_forward.1} parent=1 // pred_fallthru
      _
    // Predicated region
    $region98: #{glaucoma3d_forward.1} parent=1 // pred_check
      _
    $region99: #{glaucoma3d_forward.1} parent=1 // pred_check_branch
      %7669 = sbr.rel (0) target = $region101
    $region100: #{glaucoma3d_forward.1} parent=1 // pred_region
      %7671 = dma.done [#allocation3], 32
    $region101: #{glaucoma3d_forward.1} parent=1 // pred_fallthru
      _
    %7672 = vsyncpa [#allocation3], 1

</llo_original>
